<compile_context>
chip_gen: v7x
topology: tpu7x:2x2x1
jax: 0.10.0
libtpu: 0.0.40
codegen_flags: <defaults>
</compile_context>

<pallas_src>
import functools
import math

import jax
import jax.numpy as jnp
from jax.experimental import pallas as pl
from jax.experimental.pallas import tpu as pltpu

# ----------------------- small synthetic config -----------------------
HIDDEN = 64
NUM_HEADS = 4
HEAD_DIM = HIDDEN // NUM_HEADS
INTERMEDIATE = 128
NUM_LAYERS = 2
VOCAB = 100
MAX_POS = 64
TEXT_LEN = 8
NUM_ANSWERS = 10
VIS_DIM = 64          # stand-in for resnet50's 2048-channel feature map
LN_EPS = 1e-12


def _pick_tm(M, cap=256):
    """Row-tile size: whole M when small, else largest multiple-of-8 divisor <= cap."""
    if M <= cap or M % 8 != 0:
        return M
    for tm in range(cap - cap % 8, 7, -8):
        if M % tm == 0:
            return tm
    return M


# --------------------------- shared helpers ---------------------------
def _ln_rows(y, g, b, eps):
    mean = jnp.mean(y, axis=-1, keepdims=True)
    var = jnp.mean(jnp.square(y - mean), axis=-1, keepdims=True)
    return (y - mean) * jax.lax.rsqrt(var + eps) * g + b


# --------------------------- conv1 kernel -----------------------------
def _mm_bias_relu_kernel(a_ref, w_ref, b_ref, o_ref):
    y = jnp.dot(a_ref[...], w_ref[...], preferred_element_type=jnp.float32)
    y = jnp.maximum(y + b_ref[...], 0.0)
    o_ref[...] = y.astype(o_ref.dtype)


def pallas_matmul_relu(a, w, b, out_dtype=jnp.bfloat16):
    """relu(a @ w + b); a:(M,K) bf16, w:(K,N) bf16, b:(1,N) f32.  No padding.
    NOTE: N=16 (<128 lanes) forces masked stores here; vanishes at real ResNet
    channel counts (2048)."""
    M, K = a.shape
    N = w.shape[1]
    tm = _pick_tm(M)
    cost = pl.CostEstimate(
        flops=2 * M * K * N, transcendentals=0,
        bytes_accessed=(a.size + w.size) * 2 + b.size * 4
        + M * N * jnp.dtype(out_dtype).itemsize)
    return pl.pallas_call(
        _mm_bias_relu_kernel,
        out_shape=jax.ShapeDtypeStruct((M, N), out_dtype),
        grid_spec=pltpu.PrefetchScalarGridSpec(
            num_scalar_prefetch=0,
            grid=(M // tm,),
            in_specs=[
                pl.BlockSpec((tm, K), lambda i: (i, 0)),
                pl.BlockSpec((K, N), lambda i: (0, 0)),
                pl.BlockSpec((1, N), lambda i: (0, 0)),
            ],
            out_specs=pl.BlockSpec((tm, N), lambda i: (i, 0)),
        ),
        compiler_params=pltpu.CompilerParams(dimension_semantics=("parallel",)),
        cost_estimate=cost,
    )(a, w, b)


# ------------------- the single fused core kernel ---------------------
def _vqa_core_kernel(*refs, B, T, Nv, num_heads, num_layers, scale, eps):
    (cols2_ref, conv2w_ref, conv2b_ref, visw_ref, visb_ref,
     text_ref, typevis_ref, embg_ref, embb_ref, mask_ref, *rest) = refs
    o_ref = rest[-1]
    poolw_ref, poolb_ref, fcw_ref, fcb_ref = rest[-5:-1]
    layer_refs = rest[:-5]                      # 12 refs per encoder layer

    H = visw_ref.shape[1]
    D = H // num_heads
    S = T + Nv

    # ---- stage 1: conv2 (im2col matmul) + relu + visual projection ----
    t = jnp.dot(cols2_ref[...], conv2w_ref[...],
                preferred_element_type=jnp.float32)
    t = jnp.maximum(t + conv2b_ref[...], 0.0)
    vis = jnp.dot(t.astype(jnp.bfloat16), visw_ref[...],
                  preferred_element_type=jnp.float32) + visb_ref[...]
    vis = vis + typevis_ref[...]                                  # (B*Nv, H) f32

    # ---- stage 2: assemble [text | visual] per batch + embedding LN ----
    text = text_ref[...]                                          # (B*T, H) f32
    rows = []
    for bi in range(B):
        rows.append(text[bi * T:(bi + 1) * T])
        rows.append(vis[bi * Nv:(bi + 1) * Nv])
    h = jnp.concatenate(rows, axis=0)                             # (B*S, H) f32
    h = _ln_rows(h, embg_ref[...], embb_ref[...], eps)

    # ---- stage 3: encoder layers (unrolled) ----
    for l in range(num_layers):
        (wqkv_r, bqkv_r, wo_r, bo_r, ln1g_r, ln1b_r,
         ff1w_r, ff1b_r, ff2w_r, ff2b_r, ln2g_r, ln2b_r) = \
            layer_refs[12 * l:12 * (l + 1)]

        hb = h.astype(jnp.bfloat16)
        # one fat QKV dot over all B*S rows
        qkv = jnp.dot(hb, wqkv_r[...],
                      preferred_element_type=jnp.float32) + bqkv_r[...]

        ctx_rows = []
        for bi in range(B):                                       # static loop
            qkv_b = qkv[bi * S:(bi + 1) * S]                      # (S, 3H)
            m = mask_ref[bi]                                      # (1, S) additive
            heads = []
            for hd in range(num_heads):
                q = qkv_b[:, hd * D:(hd + 1) * D]
                k = qkv_b[:, H + hd * D:H + (hd + 1) * D]
                v = qkv_b[:, 2 * H + hd * D:2 * H + (hd + 1) * D]
                s = jax.lax.dot_general(q, k, (((1,), (1,)), ((), ())),
                                        preferred_element_type=jnp.float32)
                s = s * scale + m
                s = s - jnp.max(s, axis=-1, keepdims=True)
                p = jnp.exp(s)
                p = p / jnp.sum(p, axis=-1, keepdims=True)        # exact softmax
                heads.append(jnp.dot(p, v, preferred_element_type=jnp.float32))
            ctx_rows.append(jnp.concatenate(heads, axis=-1))      # (S, H)
        ctx = jnp.concatenate(ctx_rows, axis=0)                   # (B*S, H) f32

        attn = jnp.dot(ctx.astype(jnp.bfloat16), wo_r[...],
                       preferred_element_type=jnp.float32) + bo_r[...]
        h = _ln_rows(attn + h, ln1g_r[...], ln1b_r[...], eps)     # residual + LN1

        hb = h.astype(jnp.bfloat16)
        ff = jnp.dot(hb, ff1w_r[...],
                     preferred_element_type=jnp.float32) + ff1b_r[...]
        # TODO(synk): HF BERT-style encoders use erf-based GELU; tanh approx kept
        # here for guaranteed Mosaic lowering.
        ff = jax.nn.gelu(ff)
        y = jnp.dot(ff.astype(jnp.bfloat16), ff2w_r[...],
                    preferred_element_type=jnp.float32) + ff2b_r[...]
        h = _ln_rows(y + h, ln2g_r[...], ln2b_r[...], eps)        # residual + LN2

    # ---- stage 4: pooler (tanh on CLS rows) + answer head ----
    cls = jnp.concatenate([h[bi * S:bi * S + 1] for bi in range(B)], axis=0)
    pooled = jnp.tanh(jnp.dot(cls.astype(jnp.bfloat16), poolw_ref[...],
                              preferred_element_type=jnp.float32) + poolb_ref[...])
    logits = jnp.dot(pooled.astype(jnp.bfloat16), fcw_ref[...],
                     preferred_element_type=jnp.float32) + fcb_ref[...]
    o_ref[...] = logits.astype(o_ref.dtype)


def pallas_vqa_core(cols2, conv2_w, conv2_b, vis_w, vis_b,
                    text, type_vis, emb_g, emb_b, add_mask,
                    layers, pool_w, pool_b, fc_w, fc_b,
                    *, B, T, Nv):
    """Everything downstream of conv1 / embedding gathers in a single pallas_call
    (no grid: all operands are whole-array VMEM blocks at these sizes)."""
    S = T + Nv
    M = B * S
    inputs = [cols2, conv2_w, conv2_b, vis_w, vis_b,
              text, type_vis, emb_g, emb_b, add_mask]
    for lp in layers:
        inputs += [lp["wqkv"], lp["bqkv"], lp["o"]["w"], lp["o"]["b"],
                   lp["ln1_g"], lp["ln1_b"],
                   lp["ff1"]["w"], lp["ff1"]["b"],
                   lp["ff2"]["w"], lp["ff2"]["b"],
                   lp["ln2_g"], lp["ln2_b"]]
    inputs += [pool_w, pool_b, fc_w, fc_b]

    flops = (2 * (B * Nv) * cols2.shape[1] * conv2_w.shape[1]
             + 2 * (B * Nv) * vis_w.shape[0] * vis_w.shape[1])
    for _ in range(NUM_LAYERS):
        flops += 2 * M * HIDDEN * 3 * HIDDEN                      # qkv
        flops += 4 * B * NUM_HEADS * S * S * HEAD_DIM             # qk^T + p@v
        flops += 2 * M * HIDDEN * HIDDEN                          # out proj
        flops += 4 * M * HIDDEN * INTERMEDIATE                    # ffn
    flops += 2 * B * HIDDEN * HIDDEN + 2 * B * HIDDEN * NUM_ANSWERS
    transc = NUM_LAYERS * (B * NUM_HEADS * S * S + M * INTERMEDIATE) + B * HIDDEN
    bytes_accessed = (sum(int(a.size) * a.dtype.itemsize for a in inputs)
                      + B * NUM_ANSWERS * 4)

    kernel = functools.partial(
        _vqa_core_kernel, B=B, T=T, Nv=Nv,
        num_heads=NUM_HEADS, num_layers=NUM_LAYERS,
        scale=1.0 / math.sqrt(HEAD_DIM), eps=LN_EPS)

    return pl.pallas_call(
        kernel,
        out_shape=jax.ShapeDtypeStruct((B, NUM_ANSWERS), jnp.float32),
        cost_estimate=pl.CostEstimate(flops=flops, transcendentals=transc,
                                      bytes_accessed=bytes_accessed),
    )(*inputs)


# ------------------- conv im2col glue (XLA side) ----------------------
def _im2col(x, kh, kw, stride, pad):
    x = jnp.pad(x, ((0, 0), (pad, pad), (pad, pad), (0, 0)))
    _, Hp, Wp, _ = x.shape
    Ho = (Hp - kh) // stride + 1
    Wo = (Wp - kw) // stride + 1
    cols = []
    for i in range(kh):
        for j in range(kw):
            cols.append(x[:, i:i + stride * Ho:stride, j:j + stride * Wo:stride, :])
    return jnp.concatenate(cols, axis=-1), Ho, Wo            # (B, Ho, Wo, kh*kw*C)


# ------------------------------ params ---------------------------------
def init_params(key):
    ks = iter(jax.random.split(key, 64))

    def dense(cin, cout):
        w = 0.02 * jax.random.normal(next(ks), (cin, cout), jnp.float32)
        return {"w": w.astype(jnp.bfloat16),                  # pre-cast once
                "b": jnp.zeros((1, cout), jnp.float32)}

    params = {
        "conv1_w": (0.1 * jax.random.normal(next(ks), (3 * 3 * 3, 16),
                                            jnp.float32)).astype(jnp.bfloat16),
        "conv1_b": jnp.zeros((1, 16), jnp.float32),
        "conv2_w": (0.1 * jax.random.normal(next(ks), (3 * 3 * 16, VIS_DIM),
                                            jnp.float32)).astype(jnp.bfloat16),
        "conv2_b": jnp.zeros((1, VIS_DIM), jnp.float32),
        "word_emb": 0.02 * jax.random.normal(next(ks), (VOCAB, HIDDEN), jnp.float32),
        "pos_emb": 0.02 * jax.random.normal(next(ks), (MAX_POS, HIDDEN), jnp.float32),
        "type_emb": 0.02 * jax.random.normal(next(ks), (2, HIDDEN), jnp.float32),
        "emb_ln_g": jnp.ones((1, HIDDEN), jnp.float32),
        "emb_ln_b": jnp.zeros((1, HIDDEN), jnp.float32),
        "vis_proj": dense(VIS_DIM, HIDDEN),
        "pooler": dense(HIDDEN, HIDDEN),
        "fc": dense(HIDDEN, NUM_ANSWERS),
        "layers": [],
    }
    for _ in range(NUM_LAYERS):
        q, k, v = dense(HIDDEN, HIDDEN), dense(HIDDEN, HIDDEN), dense(HIDDEN, HIDDEN)
        params["layers"].append({
            # QKV fused once at init (single concatenated projection weight)
            "wqkv": jnp.concatenate([q["w"], k["w"], v["w"]], axis=1),
            "bqkv": jnp.concatenate([q["b"], k["b"], v["b"]], axis=1),
            "o": dense(HIDDEN, HIDDEN),
            "ln1_g": jnp.ones((1, HIDDEN), jnp.float32),
            "ln1_b": jnp.zeros((1, HIDDEN), jnp.float32),
            "ff1": dense(HIDDEN, INTERMEDIATE),
            "ff2": dense(INTERMEDIATE, HIDDEN),
            "ln2_g": jnp.ones((1, HIDDEN), jnp.float32),
            "ln2_b": jnp.zeros((1, HIDDEN), jnp.float32),
        })
    return params


# ------------------------------ forward ---------------------------------
def vqa_forward(params, images, question_input_ids, question_attention_mask):
    B = images.shape[0]

    # ---- visual backbone (resnet stand-in), NCHW -> NHWC ----
    x = jnp.transpose(images, (0, 2, 3, 1))
    cols1, H1, W1 = _im2col(x, 3, 3, stride=2, pad=1)
    a1 = cols1.reshape(B * H1 * W1, -1).astype(jnp.bfloat16)
    y1 = pallas_matmul_relu(a1, params["conv1_w"], params["conv1_b"])
    y1 = y1.reshape(B, H1, W1, -1)

    # conv2 patches feed the fused core kernel (conv2 matmul runs in-kernel);
    # token order matches .view(B, C, -1).permute(0, 2, 1)
    cols2, H2, W2 = _im2col(y1, 3, 3, stride=2, pad=1)
    Nv = H2 * W2
    cols2 = cols2.reshape(B * Nv, -1)                         # bf16

    # ---- VisualBERT-style embeddings (gathers stay in XLA) ----
    input_ids = question_input_ids[:, 0, :]                  # squeeze(1)
    attention_mask = question_attention_mask[:, 0, :]        # squeeze(1)
    T = input_ids.shape[1]

    word = params["word_emb"][input_ids]                     # (B, T, H)
    pos = params["pos_emb"][:T][None, :, :]
    text = (word + pos + params["type_emb"][0][None, None, :]).reshape(B * T, HIDDEN)
    type_vis = params["type_emb"][1][None, :]                # (1, H)

    mask = jnp.concatenate(
        [attention_mask, jnp.ones((B, Nv), attention_mask.dtype)], axis=1)
    add_mask = ((1.0 - mask.astype(jnp.float32)) * -1e9)[:, None, :]   # (B, 1, S)

    # ---- everything else: ONE fused pallas_call ----
    logits = pallas_vqa_core(
        cols2, params["conv2_w"], params["conv2_b"],
        params["vis_proj"]["w"], params["vis_proj"]["b"],
        text, type_vis, params["emb_ln_g"], params["emb_ln_b"], add_mask,
        params["layers"],
        params["pooler"]["w"], params["pooler"]["b"],
        params["fc"]["w"], params["fc"]["b"],
        B=B, T=T, Nv=Nv)
    return logits


if __name__ == "__main__":
    key = jax.random.PRNGKey(0)
    pkey, ikey, qkey = jax.random.split(key, 3)
    params = init_params(pkey)

    B = 2
    images = jax.random.normal(ikey, (B, 3, 16, 16), jnp.float32)            # NCHW
    input_ids = jax.random.randint(qkey, (B, 1, TEXT_LEN), 0, VOCAB,
                                   dtype=jnp.int32)                          # (B, 1, T)
    attention_mask = jnp.ones((B, 1, TEXT_LEN), jnp.int32).at[1, 0, -2:].set(0)

    fwd = jax.jit(vqa_forward)
    logits = fwd(params, images, input_ids, attention_mask)
    jax.block_until_ready(logits)
    assert logits.shape == (B, NUM_ANSWERS)
    assert bool(jnp.all(jnp.isfinite(logits)))
    print("KERNEL_OK")
</pallas_src>

<mosaic_0001>
module attributes {stable_mosaic.version = 11 : i64} {
  func.func @_mm_bias_relu_kernel(%arg0: i32, %arg1: memref<128x27xbf16, #tpu.memory_space<vmem>>, %arg2: memref<27x16xbf16, #tpu.memory_space<vmem>>, %arg3: memref<1x16xf32, #tpu.memory_space<vmem>>, %arg4: memref<128x16xbf16, #tpu.memory_space<vmem>>) attributes {dimension_semantics = [#tpu.dimension_semantics<parallel>], iteration_bounds = array<i64: 1>, scalar_prefetch = 0 : i64, scratch_operands = 0 : i64, tpu.core_type = #tpu.core_type<tc>, window_params = [{transform_indices = @transform_0, window_bounds = array<i64: 128, 27>}, {pipeline_mode = #tpu.pipeline_mode<synchronous>, transform_indices = @transform_1, window_bounds = array<i64: 27, 16>}, {pipeline_mode = #tpu.pipeline_mode<synchronous>, transform_indices = @transform_2, window_bounds = array<i64: 1, 16>}, {transform_indices = @transform_3, window_bounds = array<i64: 128, 16>}]} {
    %c0 = arith.constant 0 : index
    %c0_0 = arith.constant 0 : index
    %0 = vector.load %arg1[%c0, %c0_0] : memref<128x27xbf16, #tpu.memory_space<vmem>>, vector<128x27xbf16>
    %c0_1 = arith.constant 0 : index
    %c0_2 = arith.constant 0 : index
    %1 = vector.load %arg2[%c0_1, %c0_2] : memref<27x16xbf16, #tpu.memory_space<vmem>>, vector<27x16xbf16>
    %cst = arith.constant dense<0.000000e+00> : vector<128x16xf32>
    %2 = tpu.matmul %0, %1, %cst {dimension_numbers = #tpu.dot_dimension_numbers<[1], [0], [0], [1], [0, 0, 1, 1], [], []>} : vector<128x27xbf16>, vector<27x16xbf16>, vector<128x16xf32> -> vector<128x16xf32>
    %c0_3 = arith.constant 0 : index
    %c0_4 = arith.constant 0 : index
    %3 = vector.load %arg3[%c0_3, %c0_4] : memref<1x16xf32, #tpu.memory_space<vmem>>, vector<1x16xf32>
    %4 = vector.broadcast %3 : vector<1x16xf32> to vector<128x16xf32>
    %5 = arith.addf %2, %4 : vector<128x16xf32>
    %cst_5 = arith.constant 0.000000e+00 : f32
    %6 = vector.broadcast %cst_5 : f32 to vector<128x16xf32>
    %7 = arith.maximumf %5, %6 : vector<128x16xf32>
    %8 = arith.truncf %7 : vector<128x16xf32> to vector<128x16xbf16>
    %c0_6 = arith.constant 0 : index
    %c0_7 = arith.constant 0 : index
    %9 = vector.load %arg4[%c0_6, %c0_7] : memref<128x16xbf16, #tpu.memory_space<vmem>>, vector<128x16xbf16>
    tpu.vector_store %arg4[%c0_6, %c0_7], %8 {strides = array<i32>} : memref<128x16xbf16, #tpu.memory_space<vmem>>, vector<128x16xbf16>,
    return
  }
  func.func @transform_0(%arg0: i32) -> (i32, i32) {
    %c0_i32 = arith.constant 0 : i32
    %c0_i32_0 = arith.constant 0 : i32
    return %arg0, %c0_i32 : i32, i32
  }
  func.func @transform_1(%arg0: i32) -> (i32, i32) {
    %c0_i32 = arith.constant 0 : i32
    %c0_i32_0 = arith.constant 0 : i32
    %c0_i32_1 = arith.constant 0 : i32
    return %c0_i32, %c0_i32_0 : i32, i32
  }
  func.func @transform_2(%arg0: i32) -> (i32, i32) {
    %c0_i32 = arith.constant 0 : i32
    %c0_i32_0 = arith.constant 0 : i32
    %c0_i32_1 = arith.constant 0 : i32
    return %c0_i32, %c0_i32_0 : i32, i32
  }
  func.func @transform_3(%arg0: i32) -> (i32, i32) {
    %c0_i32 = arith.constant 0 : i32
    %c0_i32_0 = arith.constant 0 : i32
    return %arg0, %c0_i32 : i32, i32
  }
}

module attributes {stable_mosaic.version = 11 : i64} {
  func.func @_vqa_core_kernel(%arg0: memref<32x144xbf16, #tpu.memory_space<vmem>>, %arg1: memref<144x64xbf16, #tpu.memory_space<vmem>>, %arg2: memref<1x64xf32, #tpu.memory_space<vmem>>, %arg3: memref<64x64xbf16, #tpu.memory_space<vmem>>, %arg4: memref<1x64xf32, #tpu.memory_space<vmem>>, %arg5: memref<16x64xf32, #tpu.memory_space<vmem>>, %arg6: memref<1x64xf32, #tpu.memory_space<vmem>>, %arg7: memref<1x64xf32, #tpu.memory_space<vmem>>, %arg8: memref<1x64xf32, #tpu.memory_space<vmem>>, %arg9: memref<2x1x24xf32, #tpu.memory_space<vmem>>, %arg10: memref<64x192xbf16, #tpu.memory_space<vmem>>, %arg11: memref<1x192xf32, #tpu.memory_space<vmem>>, %arg12: memref<64x64xbf16, #tpu.memory_space<vmem>>, %arg13: memref<1x64xf32, #tpu.memory_space<vmem>>, %arg14: memref<1x64xf32, #tpu.memory_space<vmem>>, %arg15: memref<1x64xf32, #tpu.memory_space<vmem>>, %arg16: memref<64x128xbf16, #tpu.memory_space<vmem>>, %arg17: memref<1x128xf32, #tpu.memory_space<vmem>>, %arg18: memref<128x64xbf16, #tpu.memory_space<vmem>>, %arg19: memref<1x64xf32, #tpu.memory_space<vmem>>, %arg20: memref<1x64xf32, #tpu.memory_space<vmem>>, %arg21: memref<1x64xf32, #tpu.memory_space<vmem>>, %arg22: memref<64x192xbf16, #tpu.memory_space<vmem>>, %arg23: memref<1x192xf32, #tpu.memory_space<vmem>>, %arg24: memref<64x64xbf16, #tpu.memory_space<vmem>>, %arg25: memref<1x64xf32, #tpu.memory_space<vmem>>, %arg26: memref<1x64xf32, #tpu.memory_space<vmem>>, %arg27: memref<1x64xf32, #tpu.memory_space<vmem>>, %arg28: memref<64x128xbf16, #tpu.memory_space<vmem>>, %arg29: memref<1x128xf32, #tpu.memory_space<vmem>>, %arg30: memref<128x64xbf16, #tpu.memory_space<vmem>>, %arg31: memref<1x64xf32, #tpu.memory_space<vmem>>, %arg32: memref<1x64xf32, #tpu.memory_space<vmem>>, %arg33: memref<1x64xf32, #tpu.memory_space<vmem>>, %arg34: memref<64x64xbf16, #tpu.memory_space<vmem>>, %arg35: memref<1x64xf32, #tpu.memory_space<vmem>>, %arg36: memref<64x10xbf16, #tpu.memory_space<vmem>>, %arg37: memref<1x10xf32, #tpu.memory_space<vmem>>, %arg38: memref<2x10xf32, #tpu.memory_space<vmem>>) attributes {dimension_semantics = [], scalar_prefetch = 0 : i64, scratch_operands = 0 : i64, tpu.core_type = #tpu.core_type<tc>} {
    %c0 = arith.constant 0 : index
    %c0_0 = arith.constant 0 : index
    %0 = vector.load %arg0[%c0, %c0_0] : memref<32x144xbf16, #tpu.memory_space<vmem>>, vector<32x144xbf16>
    %c0_1 = arith.constant 0 : index
    %c0_2 = arith.constant 0 : index
    %1 = vector.load %arg1[%c0_1, %c0_2] : memref<144x64xbf16, #tpu.memory_space<vmem>>, vector<144x64xbf16>
    %cst = arith.constant dense<0.000000e+00> : vector<32x64xf32>
    %2 = tpu.matmul %0, %1, %cst {dimension_numbers = #tpu.dot_dimension_numbers<[1], [0], [0], [1], [0, 0, 1, 1], [], []>} : vector<32x144xbf16>, vector<144x64xbf16>, vector<32x64xf32> -> vector<32x64xf32>
    %c0_3 = arith.constant 0 : index
    %c0_4 = arith.constant 0 : index
    %3 = vector.load %arg2[%c0_3, %c0_4] : memref<1x64xf32, #tpu.memory_space<vmem>>, vector<1x64xf32>
    %4 = vector.broadcast %3 : vector<1x64xf32> to vector<32x64xf32>
    %5 = arith.addf %2, %4 : vector<32x64xf32>
    %cst_5 = arith.constant 0.000000e+00 : f32
    %6 = vector.broadcast %cst_5 : f32 to vector<32x64xf32>
    %7 = arith.maximumf %5, %6 : vector<32x64xf32>
    %8 = arith.truncf %7 : vector<32x64xf32> to vector<32x64xbf16>
    %c0_6 = arith.constant 0 : index
    %c0_7 = arith.constant 0 : index
    %9 = vector.load %arg3[%c0_6, %c0_7] : memref<64x64xbf16, #tpu.memory_space<vmem>>, vector<64x64xbf16>
    %cst_8 = arith.constant dense<0.000000e+00> : vector<32x64xf32>
    %10 = tpu.matmul %8, %9, %cst_8 {dimension_numbers = #tpu.dot_dimension_numbers<[1], [0], [0], [1], [0, 0, 1, 1], [], []>} : vector<32x64xbf16>, vector<64x64xbf16>, vector<32x64xf32> -> vector<32x64xf32>
    %c0_9 = arith.constant 0 : index
    %c0_10 = arith.constant 0 : index
    %11 = vector.load %arg4[%c0_9, %c0_10] : memref<1x64xf32, #tpu.memory_space<vmem>>, vector<1x64xf32>
    %12 = vector.broadcast %11 : vector<1x64xf32> to vector<32x64xf32>
    %13 = arith.addf %10, %12 : vector<32x64xf32>
    %c0_11 = arith.constant 0 : index
    %c0_12 = arith.constant 0 : index
    %14 = vector.load %arg6[%c0_11, %c0_12] : memref<1x64xf32, #tpu.memory_space<vmem>>, vector<1x64xf32>
    %15 = vector.broadcast %14 : vector<1x64xf32> to vector<32x64xf32>
    %16 = arith.addf %13, %15 : vector<32x64xf32>
    %c0_13 = arith.constant 0 : index
    %c0_14 = arith.constant 0 : index
    %17 = vector.load %arg5[%c0_13, %c0_14] : memref<16x64xf32, #tpu.memory_space<vmem>>, vector<16x64xf32>
    %18 = vector.extract_strided_slice %17 {offsets = [0, 0], sizes = [8, 64], strides = [1, 1]} : vector<16x64xf32> to vector<8x64xf32>
    %19 = vector.extract_strided_slice %16 {offsets = [0, 0], sizes = [16, 64], strides = [1, 1]} : vector<32x64xf32> to vector<16x64xf32>
    %20 = vector.extract_strided_slice %17 {offsets = [8, 0], sizes = [8, 64], strides = [1, 1]} : vector<16x64xf32> to vector<8x64xf32>
    %21 = vector.extract_strided_slice %16 {offsets = [16, 0], sizes = [16, 64], strides = [1, 1]} : vector<32x64xf32> to vector<16x64xf32>
    %22 = tpu.concatenate %18, %19, %20, %21 in 0 : vector<8x64xf32>, vector<16x64xf32>, vector<8x64xf32>, vector<16x64xf32> -> vector<48x64xf32>
    %c0_15 = arith.constant 0 : index
    %c0_16 = arith.constant 0 : index
    %23 = vector.load %arg7[%c0_15, %c0_16] : memref<1x64xf32, #tpu.memory_space<vmem>>, vector<1x64xf32>
    %c0_17 = arith.constant 0 : index
    %c0_18 = arith.constant 0 : index
    %24 = vector.load %arg8[%c0_17, %c0_18] : memref<1x64xf32, #tpu.memory_space<vmem>>, vector<1x64xf32>
    %cst_19 = arith.constant dense<0.000000e+00> : vector<48xf32>
    %25 = vector.multi_reduction <add>, %22, %cst_19 [1] : vector<48x64xf32> to vector<48xf32>
    %26 = vector.shape_cast %25 : vector<48xf32> to vector<48x1xf32>
    %cst_20 = arith.constant 6.400000e+01 : f32
    %27 = vector.broadcast %cst_20 : f32 to vector<48x1xf32>
    %28 = arith.divf %26, %27 : vector<48x1xf32>
    %29 = vector.broadcast %28 : vector<48x1xf32> to vector<48x64xf32>
    %30 = arith.subf %22, %29 : vector<48x64xf32>
    %31 = arith.mulf %30, %30 : vector<48x64xf32>
    %cst_21 = arith.constant dense<0.000000e+00> : vector<48xf32>
    %32 = vector.multi_reduction <add>, %31, %cst_21 [1] : vector<48x64xf32> to vector<48xf32>
    %33 = vector.shape_cast %32 : vector<48xf32> to vector<48x1xf32>
    %cst_22 = arith.constant 6.400000e+01 : f32
    %34 = vector.broadcast %cst_22 : f32 to vector<48x1xf32>
    %35 = arith.divf %33, %34 : vector<48x1xf32>
    %36 = vector.broadcast %28 : vector<48x1xf32> to vector<48x64xf32>
    %37 = arith.subf %22, %36 : vector<48x64xf32>
    %cst_23 = arith.constant 9.99999996E-13 : f32
    %38 = vector.broadcast %cst_23 : f32 to vector<48x1xf32>
    %39 = arith.addf %35, %38 : vector<48x1xf32>
    %40 = math.rsqrt %39 : vector<48x1xf32>
    %41 = vector.broadcast %40 : vector<48x1xf32> to vector<48x64xf32>
    %42 = arith.mulf %37, %41 : vector<48x64xf32>
    %43 = vector.broadcast %23 : vector<1x64xf32> to vector<48x64xf32>
    %44 = arith.mulf %42, %43 : vector<48x64xf32>
    %45 = vector.broadcast %24 : vector<1x64xf32> to vector<48x64xf32>
    %46 = arith.addf %44, %45 : vector<48x64xf32>
    %47 = arith.truncf %46 : vector<48x64xf32> to vector<48x64xbf16>
    %c0_24 = arith.constant 0 : index
    %c0_25 = arith.constant 0 : index
    %48 = vector.load %arg10[%c0_24, %c0_25] : memref<64x192xbf16, #tpu.memory_space<vmem>>, vector<64x192xbf16>
    %cst_26 = arith.constant dense<0.000000e+00> : vector<48x192xf32>
    %49 = tpu.matmul %47, %48, %cst_26 {dimension_numbers = #tpu.dot_dimension_numbers<[1], [0], [0], [1], [0, 0, 1, 1], [], []>} : vector<48x64xbf16>, vector<64x192xbf16>, vector<48x192xf32> -> vector<48x192xf32>
    %c0_27 = arith.constant 0 : index
    %c0_28 = arith.constant 0 : index
    %50 = vector.load %arg11[%c0_27, %c0_28] : memref<1x192xf32, #tpu.memory_space<vmem>>, vector<1x192xf32>
    %51 = vector.broadcast %50 : vector<1x192xf32> to vector<48x192xf32>
    %52 = arith.addf %49, %51 : vector<48x192xf32>
    %53 = vector.extract_strided_slice %52 {offsets = [0, 0], sizes = [24, 192], strides = [1, 1]} : vector<48x192xf32> to vector<24x192xf32>
    %c0_29 = arith.constant 0 : index
    %c0_30 = arith.constant 0 : index
    %c0_31 = arith.constant 0 : index
    %54 = vector.load %arg9[%c0_29, %c0_30, %c0_31] : memref<2x1x24xf32, #tpu.memory_space<vmem>>, vector<1x1x24xf32>
    %55 = vector.shape_cast %54 : vector<1x1x24xf32> to vector<1x24xf32>
    %56 = vector.extract_strided_slice %53 {offsets = [0, 0], sizes = [24, 16], strides = [1, 1]} : vector<24x192xf32> to vector<24x16xf32>
    %57 = vector.extract_strided_slice %53 {offsets = [0, 64], sizes = [24, 16], strides = [1, 1]} : vector<24x192xf32> to vector<24x16xf32>
    %58 = vector.extract_strided_slice %53 {offsets = [0, 128], sizes = [24, 16], strides = [1, 1]} : vector<24x192xf32> to vector<24x16xf32>
    %cst_32 = arith.constant dense<0.000000e+00> : vector<24x24xf32>
    %59 = tpu.matmul %56, %57, %cst_32 {dimension_numbers = #tpu.dot_dimension_numbers<[1], [1], [0], [0], [0, 0, 1, 0], [], []>} : vector<24x16xf32>, vector<24x16xf32>, vector<24x24xf32> -> vector<24x24xf32>
    %cst_33 = arith.constant 2.500000e-01 : f32
    %60 = vector.broadcast %cst_33 : f32 to vector<24x24xf32>
    %61 = arith.mulf %59, %60 : vector<24x24xf32>
    %62 = vector.broadcast %55 : vector<1x24xf32> to vector<24x24xf32>
    %63 = arith.addf %61, %62 : vector<24x24xf32>
    %cst_34 = arith.constant dense<0xFF800000> : vector<24xf32>
    %64 = vector.multi_reduction <maximumf>, %63, %cst_34 [1] : vector<24x24xf32> to vector<24xf32>
    %65 = vector.shape_cast %64 : vector<24xf32> to vector<24x1xf32>
    %66 = vector.broadcast %65 : vector<24x1xf32> to vector<24x24xf32>
    %67 = arith.subf %63, %66 : vector<24x24xf32>
    %68 = math.exp %67 : vector<24x24xf32>
    %cst_35 = arith.constant dense<0.000000e+00> : vector<24xf32>
    %69 = vector.multi_reduction <add>, %68, %cst_35 [1] : vector<24x24xf32> to vector<24xf32>
    %70 = vector.shape_cast %69 : vector<24xf32> to vector<24x1xf32>
    %71 = vector.broadcast %70 : vector<24x1xf32> to vector<24x24xf32>
    %72 = arith.divf %68, %71 : vector<24x24xf32>
    %cst_36 = arith.constant dense<0.000000e+00> : vector<24x16xf32>
    %73 = tpu.matmul %72, %58, %cst_36 {dimension_numbers = #tpu.dot_dimension_numbers<[1], [0], [0], [1], [0, 0, 1, 1], [], []>} : vector<24x24xf32>, vector<24x16xf32>, vector<24x16xf32> -> vector<24x16xf32>
    %74 = vector.extract_strided_slice %53 {offsets = [0, 16], sizes = [24, 16], strides = [1, 1]} : vector<24x192xf32> to vector<24x16xf32>
    %75 = vector.extract_strided_slice %53 {offsets = [0, 80], sizes = [24, 16], strides = [1, 1]} : vector<24x192xf32> to vector<24x16xf32>
    %76 = vector.extract_strided_slice %53 {offsets = [0, 144], sizes = [24, 16], strides = [1, 1]} : vector<24x192xf32> to vector<24x16xf32>
    %cst_37 = arith.constant dense<0.000000e+00> : vector<24x24xf32>
    %77 = tpu.matmul %74, %75, %cst_37 {dimension_numbers = #tpu.dot_dimension_numbers<[1], [1], [0], [0], [0, 0, 1, 0], [], []>} : vector<24x16xf32>, vector<24x16xf32>, vector<24x24xf32> -> vector<24x24xf32>
    %cst_38 = arith.constant 2.500000e-01 : f32
    %78 = vector.broadcast %cst_38 : f32 to vector<24x24xf32>
    %79 = arith.mulf %77, %78 : vector<24x24xf32>
    %80 = vector.broadcast %55 : vector<1x24xf32> to vector<24x24xf32>
    %81 = arith.addf %79, %80 : vector<24x24xf32>
    %cst_39 = arith.constant dense<0xFF800000> : vector<24xf32>
    %82 = vector.multi_reduction <maximumf>, %81, %cst_39 [1] : vector<24x24xf32> to vector<24xf32>
    %83 = vector.shape_cast %82 : vector<24xf32> to vector<24x1xf32>
    %84 = vector.broadcast %83 : vector<24x1xf32> to vector<24x24xf32>
    %85 = arith.subf %81, %84 : vector<24x24xf32>
    %86 = math.exp %85 : vector<24x24xf32>
    %cst_40 = arith.constant dense<0.000000e+00> : vector<24xf32>
    %87 = vector.multi_reduction <add>, %86, %cst_40 [1] : vector<24x24xf32> to vector<24xf32>
    %88 = vector.shape_cast %87 : vector<24xf32> to vector<24x1xf32>
    %89 = vector.broadcast %88 : vector<24x1xf32> to vector<24x24xf32>
    %90 = arith.divf %86, %89 : vector<24x24xf32>
    %cst_41 = arith.constant dense<0.000000e+00> : vector<24x16xf32>
    %91 = tpu.matmul %90, %76, %cst_41 {dimension_numbers = #tpu.dot_dimension_numbers<[1], [0], [0], [1], [0, 0, 1, 1], [], []>} : vector<24x24xf32>, vector<24x16xf32>, vector<24x16xf32> -> vector<24x16xf32>
    %92 = vector.extract_strided_slice %53 {offsets = [0, 32], sizes = [24, 16], strides = [1, 1]} : vector<24x192xf32> to vector<24x16xf32>
    %93 = vector.extract_strided_slice %53 {offsets = [0, 96], sizes = [24, 16], strides = [1, 1]} : vector<24x192xf32> to vector<24x16xf32>
    %94 = vector.extract_strided_slice %53 {offsets = [0, 160], sizes = [24, 16], strides = [1, 1]} : vector<24x192xf32> to vector<24x16xf32>
    %cst_42 = arith.constant dense<0.000000e+00> : vector<24x24xf32>
    %95 = tpu.matmul %92, %93, %cst_42 {dimension_numbers = #tpu.dot_dimension_numbers<[1], [1], [0], [0], [0, 0, 1, 0], [], []>} : vector<24x16xf32>, vector<24x16xf32>, vector<24x24xf32> -> vector<24x24xf32>
    %cst_43 = arith.constant 2.500000e-01 : f32
    %96 = vector.broadcast %cst_43 : f32 to vector<24x24xf32>
    %97 = arith.mulf %95, %96 : vector<24x24xf32>
    %98 = vector.broadcast %55 : vector<1x24xf32> to vector<24x24xf32>
    %99 = arith.addf %97, %98 : vector<24x24xf32>
    %cst_44 = arith.constant dense<0xFF800000> : vector<24xf32>
    %100 = vector.multi_reduction <maximumf>, %99, %cst_44 [1] : vector<24x24xf32> to vector<24xf32>
    %101 = vector.shape_cast %100 : vector<24xf32> to vector<24x1xf32>
    %102 = vector.broadcast %101 : vector<24x1xf32> to vector<24x24xf32>
    %103 = arith.subf %99, %102 : vector<24x24xf32>
    %104 = math.exp %103 : vector<24x24xf32>
    %cst_45 = arith.constant dense<0.000000e+00> : vector<24xf32>
    %105 = vector.multi_reduction <add>, %104, %cst_45 [1] : vector<24x24xf32> to vector<24xf32>
    %106 = vector.shape_cast %105 : vector<24xf32> to vector<24x1xf32>
    %107 = vector.broadcast %106 : vector<24x1xf32> to vector<24x24xf32>
    %108 = arith.divf %104, %107 : vector<24x24xf32>
    %cst_46 = arith.constant dense<0.000000e+00> : vector<24x16xf32>
    %109 = tpu.matmul %108, %94, %cst_46 {dimension_numbers = #tpu.dot_dimension_numbers<[1], [0], [0], [1], [0, 0, 1, 1], [], []>} : vector<24x24xf32>, vector<24x16xf32>, vector<24x16xf32> -> vector<24x16xf32>
    %110 = vector.extract_strided_slice %53 {offsets = [0, 48], sizes = [24, 16], strides = [1, 1]} : vector<24x192xf32> to vector<24x16xf32>
    %111 = vector.extract_strided_slice %53 {offsets = [0, 112], sizes = [24, 16], strides = [1, 1]} : vector<24x192xf32> to vector<24x16xf32>
    %112 = vector.extract_strided_slice %53 {offsets = [0, 176], sizes = [24, 16], strides = [1, 1]} : vector<24x192xf32> to vector<24x16xf32>
    %cst_47 = arith.constant dense<0.000000e+00> : vector<24x24xf32>
    %113 = tpu.matmul %110, %111, %cst_47 {dimension_numbers = #tpu.dot_dimension_numbers<[1], [1], [0], [0], [0, 0, 1, 0], [], []>} : vector<24x16xf32>, vector<24x16xf32>, vector<24x24xf32> -> vector<24x24xf32>
    %cst_48 = arith.constant 2.500000e-01 : f32
    %114 = vector.broadcast %cst_48 : f32 to vector<24x24xf32>
    %115 = arith.mulf %113, %114 : vector<24x24xf32>
    %116 = vector.broadcast %55 : vector<1x24xf32> to vector<24x24xf32>
    %117 = arith.addf %115, %116 : vector<24x24xf32>
    %cst_49 = arith.constant dense<0xFF800000> : vector<24xf32>
    %118 = vector.multi_reduction <maximumf>, %117, %cst_49 [1] : vector<24x24xf32> to vector<24xf32>
    %119 = vector.shape_cast %118 : vector<24xf32> to vector<24x1xf32>
    %120 = vector.broadcast %119 : vector<24x1xf32> to vector<24x24xf32>
    %121 = arith.subf %117, %120 : vector<24x24xf32>
    %122 = math.exp %121 : vector<24x24xf32>
    %cst_50 = arith.constant dense<0.000000e+00> : vector<24xf32>
    %123 = vector.multi_reduction <add>, %122, %cst_50 [1] : vector<24x24xf32> to vector<24xf32>
    %124 = vector.shape_cast %123 : vector<24xf32> to vector<24x1xf32>
    %125 = vector.broadcast %124 : vector<24x1xf32> to vector<24x24xf32>
    %126 = arith.divf %122, %125 : vector<24x24xf32>
    %cst_51 = arith.constant dense<0.000000e+00> : vector<24x16xf32>
    %127 = tpu.matmul %126, %112, %cst_51 {dimension_numbers = #tpu.dot_dimension_numbers<[1], [0], [0], [1], [0, 0, 1, 1], [], []>} : vector<24x24xf32>, vector<24x16xf32>, vector<24x16xf32> -> vector<24x16xf32>
    %128 = tpu.concatenate %73, %91, %109, %127 in 1 : vector<24x16xf32>, vector<24x16xf32>, vector<24x16xf32>, vector<24x16xf32> -> vector<24x64xf32>
    %129 = vector.extract_strided_slice %52 {offsets = [24, 0], sizes = [24, 192], strides = [1, 1]} : vector<48x192xf32> to vector<24x192xf32>
    %c1 = arith.constant 1 : index
    %c0_52 = arith.constant 0 : index
    %c0_53 = arith.constant 0 : index
    %130 = vector.load %arg9[%c1, %c0_52, %c0_53] : memref<2x1x24xf32, #tpu.memory_space<vmem>>, vector<1x1x24xf32>
    %131 = vector.shape_cast %130 : vector<1x1x24xf32> to vector<1x24xf32>
    %132 = vector.extract_strided_slice %129 {offsets = [0, 0], sizes = [24, 16], strides = [1, 1]} : vector<24x192xf32> to vector<24x16xf32>
    %133 = vector.extract_strided_slice %129 {offsets = [0, 64], sizes = [24, 16], strides = [1, 1]} : vector<24x192xf32> to vector<24x16xf32>
    %134 = vector.extract_strided_slice %129 {offsets = [0, 128], sizes = [24, 16], strides = [1, 1]} : vector<24x192xf32> to vector<24x16xf32>
    %cst_54 = arith.constant dense<0.000000e+00> : vector<24x24xf32>
    %135 = tpu.matmul %132, %133, %cst_54 {dimension_numbers = #tpu.dot_dimension_numbers<[1], [1], [0], [0], [0, 0, 1, 0], [], []>} : vector<24x16xf32>, vector<24x16xf32>, vector<24x24xf32> -> vector<24x24xf32>
    %cst_55 = arith.constant 2.500000e-01 : f32
    %136 = vector.broadcast %cst_55 : f32 to vector<24x24xf32>
    %137 = arith.mulf %135, %136 : vector<24x24xf32>
    %138 = vector.broadcast %131 : vector<1x24xf32> to vector<24x24xf32>
    %139 = arith.addf %137, %138 : vector<24x24xf32>
    %cst_56 = arith.constant dense<0xFF800000> : vector<24xf32>
    %140 = vector.multi_reduction <maximumf>, %139, %cst_56 [1] : vector<24x24xf32> to vector<24xf32>
    %141 = vector.shape_cast %140 : vector<24xf32> to vector<24x1xf32>
    %142 = vector.broadcast %141 : vector<24x1xf32> to vector<24x24xf32>
    %143 = arith.subf %139, %142 : vector<24x24xf32>
    %144 = math.exp %143 : vector<24x24xf32>
    %cst_57 = arith.constant dense<0.000000e+00> : vector<24xf32>
    %145 = vector.multi_reduction <add>, %144, %cst_57 [1] : vector<24x24xf32> to vector<24xf32>
    %146 = vector.shape_cast %145 : vector<24xf32> to vector<24x1xf32>
    %147 = vector.broadcast %146 : vector<24x1xf32> to vector<24x24xf32>
    %148 = arith.divf %144, %147 : vector<24x24xf32>
    %cst_58 = arith.constant dense<0.000000e+00> : vector<24x16xf32>
    %149 = tpu.matmul %148, %134, %cst_58 {dimension_numbers = #tpu.dot_dimension_numbers<[1], [0], [0], [1], [0, 0, 1, 1], [], []>} : vector<24x24xf32>, vector<24x16xf32>, vector<24x16xf32> -> vector<24x16xf32>
    %150 = vector.extract_strided_slice %129 {offsets = [0, 16], sizes = [24, 16], strides = [1, 1]} : vector<24x192xf32> to vector<24x16xf32>
    %151 = vector.extract_strided_slice %129 {offsets = [0, 80], sizes = [24, 16], strides = [1, 1]} : vector<24x192xf32> to vector<24x16xf32>
    %152 = vector.extract_strided_slice %129 {offsets = [0, 144], sizes = [24, 16], strides = [1, 1]} : vector<24x192xf32> to vector<24x16xf32>
    %cst_59 = arith.constant dense<0.000000e+00> : vector<24x24xf32>
    %153 = tpu.matmul %150, %151, %cst_59 {dimension_numbers = #tpu.dot_dimension_numbers<[1], [1], [0], [0], [0, 0, 1, 0], [], []>} : vector<24x16xf32>, vector<24x16xf32>, vector<24x24xf32> -> vector<24x24xf32>
    %cst_60 = arith.constant 2.500000e-01 : f32
    %154 = vector.broadcast %cst_60 : f32 to vector<24x24xf32>
    %155 = arith.mulf %153, %154 : vector<24x24xf32>
    %156 = vector.broadcast %131 : vector<1x24xf32> to vector<24x24xf32>
    %157 = arith.addf %155, %156 : vector<24x24xf32>
    %cst_61 = arith.constant dense<0xFF800000> : vector<24xf32>
    %158 = vector.multi_reduction <maximumf>, %157, %cst_61 [1] : vector<24x24xf32> to vector<24xf32>
    %159 = vector.shape_cast %158 : vector<24xf32> to vector<24x1xf32>
    %160 = vector.broadcast %159 : vector<24x1xf32> to vector<24x24xf32>
    %161 = arith.subf %157, %160 : vector<24x24xf32>
    %162 = math.exp %161 : vector<24x24xf32>
    %cst_62 = arith.constant dense<0.000000e+00> : vector<24xf32>
    %163 = vector.multi_reduction <add>, %162, %cst_62 [1] : vector<24x24xf32> to vector<24xf32>
    %164 = vector.shape_cast %163 : vector<24xf32> to vector<24x1xf32>
    %165 = vector.broadcast %164 : vector<24x1xf32> to vector<24x24xf32>
    %166 = arith.divf %162, %165 : vector<24x24xf32>
    %cst_63 = arith.constant dense<0.000000e+00> : vector<24x16xf32>
    %167 = tpu.matmul %166, %152, %cst_63 {dimension_numbers = #tpu.dot_dimension_numbers<[1], [0], [0], [1], [0, 0, 1, 1], [], []>} : vector<24x24xf32>, vector<24x16xf32>, vector<24x16xf32> -> vector<24x16xf32>
    %168 = vector.extract_strided_slice %129 {offsets = [0, 32], sizes = [24, 16], strides = [1, 1]} : vector<24x192xf32> to vector<24x16xf32>
    %169 = vector.extract_strided_slice %129 {offsets = [0, 96], sizes = [24, 16], strides = [1, 1]} : vector<24x192xf32> to vector<24x16xf32>
    %170 = vector.extract_strided_slice %129 {offsets = [0, 160], sizes = [24, 16], strides = [1, 1]} : vector<24x192xf32> to vector<24x16xf32>
    %cst_64 = arith.constant dense<0.000000e+00> : vector<24x24xf32>
    %171 = tpu.matmul %168, %169, %cst_64 {dimension_numbers = #tpu.dot_dimension_numbers<[1], [1], [0], [0], [0, 0, 1, 0], [], []>} : vector<24x16xf32>, vector<24x16xf32>, vector<24x24xf32> -> vector<24x24xf32>
    %cst_65 = arith.constant 2.500000e-01 : f32
    %172 = vector.broadcast %cst_65 : f32 to vector<24x24xf32>
    %173 = arith.mulf %171, %172 : vector<24x24xf32>
    %174 = vector.broadcast %131 : vector<1x24xf32> to vector<24x24xf32>
    %175 = arith.addf %173, %174 : vector<24x24xf32>
    %cst_66 = arith.constant dense<0xFF800000> : vector<24xf32>
    %176 = vector.multi_reduction <maximumf>, %175, %cst_66 [1] : vector<24x24xf32> to vector<24xf32>
    %177 = vector.shape_cast %176 : vector<24xf32> to vector<24x1xf32>
    %178 = vector.broadcast %177 : vector<24x1xf32> to vector<24x24xf32>
    %179 = arith.subf %175, %178 : vector<24x24xf32>
    %180 = math.exp %179 : vector<24x24xf32>
    %cst_67 = arith.constant dense<0.000000e+00> : vector<24xf32>
    %181 = vector.multi_reduction <add>, %180, %cst_67 [1] : vector<24x24xf32> to vector<24xf32>
    %182 = vector.shape_cast %181 : vector<24xf32> to vector<24x1xf32>
    %183 = vector.broadcast %182 : vector<24x1xf32> to vector<24x24xf32>
    %184 = arith.divf %180, %183 : vector<24x24xf32>
    %cst_68 = arith.constant dense<0.000000e+00> : vector<24x16xf32>
    %185 = tpu.matmul %184, %170, %cst_68 {dimension_numbers = #tpu.dot_dimension_numbers<[1], [0], [0], [1], [0, 0, 1, 1], [], []>} : vector<24x24xf32>, vector<24x16xf32>, vector<24x16xf32> -> vector<24x16xf32>
    %186 = vector.extract_strided_slice %129 {offsets = [0, 48], sizes = [24, 16], strides = [1, 1]} : vector<24x192xf32> to vector<24x16xf32>
    %187 = vector.extract_strided_slice %129 {offsets = [0, 112], sizes = [24, 16], strides = [1, 1]} : vector<24x192xf32> to vector<24x16xf32>
    %188 = vector.extract_strided_slice %129 {offsets = [0, 176], sizes = [24, 16], strides = [1, 1]} : vector<24x192xf32> to vector<24x16xf32>
    %cst_69 = arith.constant dense<0.000000e+00> : vector<24x24xf32>
    %189 = tpu.matmul %186, %187, %cst_69 {dimension_numbers = #tpu.dot_dimension_numbers<[1], [1], [0], [0], [0, 0, 1, 0], [], []>} : vector<24x16xf32>, vector<24x16xf32>, vector<24x24xf32> -> vector<24x24xf32>
    %cst_70 = arith.constant 2.500000e-01 : f32
    %190 = vector.broadcast %cst_70 : f32 to vector<24x24xf32>
    %191 = arith.mulf %189, %190 : vector<24x24xf32>
    %192 = vector.broadcast %131 : vector<1x24xf32> to vector<24x24xf32>
    %193 = arith.addf %191, %192 : vector<24x24xf32>
    %cst_71 = arith.constant dense<0xFF800000> : vector<24xf32>
    %194 = vector.multi_reduction <maximumf>, %193, %cst_71 [1] : vector<24x24xf32> to vector<24xf32>
    %195 = vector.shape_cast %194 : vector<24xf32> to vector<24x1xf32>
    %196 = vector.broadcast %195 : vector<24x1xf32> to vector<24x24xf32>
    %197 = arith.subf %193, %196 : vector<24x24xf32>
    %198 = math.exp %197 : vector<24x24xf32>
    %cst_72 = arith.constant dense<0.000000e+00> : vector<24xf32>
    %199 = vector.multi_reduction <add>, %198, %cst_72 [1] : vector<24x24xf32> to vector<24xf32>
    %200 = vector.shape_cast %199 : vector<24xf32> to vector<24x1xf32>
    %201 = vector.broadcast %200 : vector<24x1xf32> to vector<24x24xf32>
    %202 = arith.divf %198, %201 : vector<24x24xf32>
    %cst_73 = arith.constant dense<0.000000e+00> : vector<24x16xf32>
    %203 = tpu.matmul %202, %188, %cst_73 {dimension_numbers = #tpu.dot_dimension_numbers<[1], [0], [0], [1], [0, 0, 1, 1], [], []>} : vector<24x24xf32>, vector<24x16xf32>, vector<24x16xf32> -> vector<24x16xf32>
    %204 = tpu.concatenate %149, %167, %185, %203 in 1 : vector<24x16xf32>, vector<24x16xf32>, vector<24x16xf32>, vector<24x16xf32> -> vector<24x64xf32>
    %205 = tpu.concatenate %128, %204 in 0 : vector<24x64xf32>, vector<24x64xf32> -> vector<48x64xf32>
    %206 = arith.truncf %205 : vector<48x64xf32> to vector<48x64xbf16>
    %c0_74 = arith.constant 0 : index
    %c0_75 = arith.constant 0 : index
    %207 = vector.load %arg12[%c0_74, %c0_75] : memref<64x64xbf16, #tpu.memory_space<vmem>>, vector<64x64xbf16>
    %cst_76 = arith.constant dense<0.000000e+00> : vector<48x64xf32>
    %208 = tpu.matmul %206, %207, %cst_76 {dimension_numbers = #tpu.dot_dimension_numbers<[1], [0], [0], [1], [0, 0, 1, 1], [], []>} : vector<48x64xbf16>, vector<64x64xbf16>, vector<48x64xf32> -> vector<48x64xf32>
    %c0_77 = arith.constant 0 : index
    %c0_78 = arith.constant 0 : index
    %209 = vector.load %arg13[%c0_77, %c0_78] : memref<1x64xf32, #tpu.memory_space<vmem>>, vector<1x64xf32>
    %210 = vector.broadcast %209 : vector<1x64xf32> to vector<48x64xf32>
    %211 = arith.addf %208, %210 : vector<48x64xf32>
    %212 = arith.addf %211, %46 : vector<48x64xf32>
    %c0_79 = arith.constant 0 : index
    %c0_80 = arith.constant 0 : index
    %213 = vector.load %arg14[%c0_79, %c0_80] : memref<1x64xf32, #tpu.memory_space<vmem>>, vector<1x64xf32>
    %c0_81 = arith.constant 0 : index
    %c0_82 = arith.constant 0 : index
    %214 = vector.load %arg15[%c0_81, %c0_82] : memref<1x64xf32, #tpu.memory_space<vmem>>, vector<1x64xf32>
    %cst_83 = arith.constant dense<0.000000e+00> : vector<48xf32>
    %215 = vector.multi_reduction <add>, %212, %cst_83 [1] : vector<48x64xf32> to vector<48xf32>
    %216 = vector.shape_cast %215 : vector<48xf32> to vector<48x1xf32>
    %cst_84 = arith.constant 6.400000e+01 : f32
    %217 = vector.broadcast %cst_84 : f32 to vector<48x1xf32>
    %218 = arith.divf %216, %217 : vector<48x1xf32>
    %219 = vector.broadcast %218 : vector<48x1xf32> to vector<48x64xf32>
    %220 = arith.subf %212, %219 : vector<48x64xf32>
    %221 = arith.mulf %220, %220 : vector<48x64xf32>
    %cst_85 = arith.constant dense<0.000000e+00> : vector<48xf32>
    %222 = vector.multi_reduction <add>, %221, %cst_85 [1] : vector<48x64xf32> to vector<48xf32>
    %223 = vector.shape_cast %222 : vector<48xf32> to vector<48x1xf32>
    %cst_86 = arith.constant 6.400000e+01 : f32
    %224 = vector.broadcast %cst_86 : f32 to vector<48x1xf32>
    %225 = arith.divf %223, %224 : vector<48x1xf32>
    %226 = vector.broadcast %218 : vector<48x1xf32> to vector<48x64xf32>
    %227 = arith.subf %212, %226 : vector<48x64xf32>
    %cst_87 = arith.constant 9.99999996E-13 : f32
    %228 = vector.broadcast %cst_87 : f32 to vector<48x1xf32>
    %229 = arith.addf %225, %228 : vector<48x1xf32>
    %230 = math.rsqrt %229 : vector<48x1xf32>
    %231 = vector.broadcast %230 : vector<48x1xf32> to vector<48x64xf32>
    %232 = arith.mulf %227, %231 : vector<48x64xf32>
    %233 = vector.broadcast %213 : vector<1x64xf32> to vector<48x64xf32>
    %234 = arith.mulf %232, %233 : vector<48x64xf32>
    %235 = vector.broadcast %214 : vector<1x64xf32> to vector<48x64xf32>
    %236 = arith.addf %234, %235 : vector<48x64xf32>
    %237 = arith.truncf %236 : vector<48x64xf32> to vector<48x64xbf16>
    %c0_88 = arith.constant 0 : index
    %c0_89 = arith.constant 0 : index
    %238 = vector.load %arg16[%c0_88, %c0_89] : memref<64x128xbf16, #tpu.memory_space<vmem>>, vector<64x128xbf16>
    %cst_90 = arith.constant dense<0.000000e+00> : vector<48x128xf32>
    %239 = tpu.matmul %237, %238, %cst_90 {dimension_numbers = #tpu.dot_dimension_numbers<[1], [0], [0], [1], [0, 0, 1, 1], [], []>} : vector<48x64xbf16>, vector<64x128xbf16>, vector<48x128xf32> -> vector<48x128xf32>
    %c0_91 = arith.constant 0 : index
    %c0_92 = arith.constant 0 : index
    %240 = vector.load %arg17[%c0_91, %c0_92] : memref<1x128xf32, #tpu.memory_space<vmem>>, vector<1x128xf32>
    %241 = vector.broadcast %240 : vector<1x128xf32> to vector<48x128xf32>
    %242 = arith.addf %239, %241 : vector<48x128xf32>
    %243 = arith.mulf %242, %242 : vector<48x128xf32>
    %244 = arith.mulf %242, %243 : vector<48x128xf32>
    %cst_93 = arith.constant 4.471500e-02 : f32
    %245 = vector.broadcast %cst_93 : f32 to vector<48x128xf32>
    %246 = arith.mulf %245, %244 : vector<48x128xf32>
    %247 = arith.addf %242, %246 : vector<48x128xf32>
    %cst_94 = arith.constant 0.797884583 : f32
    %248 = vector.broadcast %cst_94 : f32 to vector<48x128xf32>
    %249 = arith.mulf %248, %247 : vector<48x128xf32>
    %250 = math.tanh %249 : vector<48x128xf32>
    %cst_95 = arith.constant 1.000000e+00 : f32
    %251 = vector.broadcast %cst_95 : f32 to vector<48x128xf32>
    %252 = arith.addf %251, %250 : vector<48x128xf32>
    %cst_96 = arith.constant 5.000000e-01 : f32
    %253 = vector.broadcast %cst_96 : f32 to vector<48x128xf32>
    %254 = arith.mulf %253, %252 : vector<48x128xf32>
    %255 = arith.mulf %242, %254 : vector<48x128xf32>
    %256 = arith.truncf %255 : vector<48x128xf32> to vector<48x128xbf16>
    %c0_97 = arith.constant 0 : index
    %c0_98 = arith.constant 0 : index
    %257 = vector.load %arg18[%c0_97, %c0_98] : memref<128x64xbf16, #tpu.memory_space<vmem>>, vector<128x64xbf16>
    %cst_99 = arith.constant dense<0.000000e+00> : vector<48x64xf32>
    %258 = tpu.matmul %256, %257, %cst_99 {dimension_numbers = #tpu.dot_dimension_numbers<[1], [0], [0], [1], [0, 0, 1, 1], [], []>} : vector<48x128xbf16>, vector<128x64xbf16>, vector<48x64xf32> -> vector<48x64xf32>
    %c0_100 = arith.constant 0 : index
    %c0_101 = arith.constant 0 : index
    %259 = vector.load %arg19[%c0_100, %c0_101] : memref<1x64xf32, #tpu.memory_space<vmem>>, vector<1x64xf32>
    %260 = vector.broadcast %259 : vector<1x64xf32> to vector<48x64xf32>
    %261 = arith.addf %258, %260 : vector<48x64xf32>
    %262 = arith.addf %261, %236 : vector<48x64xf32>
    %c0_102 = arith.constant 0 : index
    %c0_103 = arith.constant 0 : index
    %263 = vector.load %arg20[%c0_102, %c0_103] : memref<1x64xf32, #tpu.memory_space<vmem>>, vector<1x64xf32>
    %c0_104 = arith.constant 0 : index
    %c0_105 = arith.constant 0 : index
    %264 = vector.load %arg21[%c0_104, %c0_105] : memref<1x64xf32, #tpu.memory_space<vmem>>, vector<1x64xf32>
    %cst_106 = arith.constant dense<0.000000e+00> : vector<48xf32>
    %265 = vector.multi_reduction <add>, %262, %cst_106 [1] : vector<48x64xf32> to vector<48xf32>
    %266 = vector.shape_cast %265 : vector<48xf32> to vector<48x1xf32>
    %cst_107 = arith.constant 6.400000e+01 : f32
    %267 = vector.broadcast %cst_107 : f32 to vector<48x1xf32>
    %268 = arith.divf %266, %267 : vector<48x1xf32>
    %269 = vector.broadcast %268 : vector<48x1xf32> to vector<48x64xf32>
    %270 = arith.subf %262, %269 : vector<48x64xf32>
    %271 = arith.mulf %270, %270 : vector<48x64xf32>
    %cst_108 = arith.constant dense<0.000000e+00> : vector<48xf32>
    %272 = vector.multi_reduction <add>, %271, %cst_108 [1] : vector<48x64xf32> to vector<48xf32>
    %273 = vector.shape_cast %272 : vector<48xf32> to vector<48x1xf32>
    %cst_109 = arith.constant 6.400000e+01 : f32
    %274 = vector.broadcast %cst_109 : f32 to vector<48x1xf32>
    %275 = arith.divf %273, %274 : vector<48x1xf32>
    %276 = vector.broadcast %268 : vector<48x1xf32> to vector<48x64xf32>
    %277 = arith.subf %262, %276 : vector<48x64xf32>
    %cst_110 = arith.constant 9.99999996E-13 : f32
    %278 = vector.broadcast %cst_110 : f32 to vector<48x1xf32>
    %279 = arith.addf %275, %278 : vector<48x1xf32>
    %280 = math.rsqrt %279 : vector<48x1xf32>
    %281 = vector.broadcast %280 : vector<48x1xf32> to vector<48x64xf32>
    %282 = arith.mulf %277, %281 : vector<48x64xf32>
    %283 = vector.broadcast %263 : vector<1x64xf32> to vector<48x64xf32>
    %284 = arith.mulf %282, %283 : vector<48x64xf32>
    %285 = vector.broadcast %264 : vector<1x64xf32> to vector<48x64xf32>
    %286 = arith.addf %284, %285 : vector<48x64xf32>
    %287 = arith.truncf %286 : vector<48x64xf32> to vector<48x64xbf16>
    %c0_111 = arith.constant 0 : index
    %c0_112 = arith.constant 0 : index
    %288 = vector.load %arg22[%c0_111, %c0_112] : memref<64x192xbf16, #tpu.memory_space<vmem>>, vector<64x192xbf16>
    %cst_113 = arith.constant dense<0.000000e+00> : vector<48x192xf32>
    %289 = tpu.matmul %287, %288, %cst_113 {dimension_numbers = #tpu.dot_dimension_numbers<[1], [0], [0], [1], [0, 0, 1, 1], [], []>} : vector<48x64xbf16>, vector<64x192xbf16>, vector<48x192xf32> -> vector<48x192xf32>
    %c0_114 = arith.constant 0 : index
    %c0_115 = arith.constant 0 : index
    %290 = vector.load %arg23[%c0_114, %c0_115] : memref<1x192xf32, #tpu.memory_space<vmem>>, vector<1x192xf32>
    %291 = vector.broadcast %290 : vector<1x192xf32> to vector<48x192xf32>
    %292 = arith.addf %289, %291 : vector<48x192xf32>
    %293 = vector.extract_strided_slice %292 {offsets = [0, 0], sizes = [24, 192], strides = [1, 1]} : vector<48x192xf32> to vector<24x192xf32>
    %c0_116 = arith.constant 0 : index
    %c0_117 = arith.constant 0 : index
    %c0_118 = arith.constant 0 : index
    %294 = vector.load %arg9[%c0_116, %c0_117, %c0_118] : memref<2x1x24xf32, #tpu.memory_space<vmem>>, vector<1x1x24xf32>
    %295 = vector.shape_cast %294 : vector<1x1x24xf32> to vector<1x24xf32>
    %296 = vector.extract_strided_slice %293 {offsets = [0, 0], sizes = [24, 16], strides = [1, 1]} : vector<24x192xf32> to vector<24x16xf32>
    %297 = vector.extract_strided_slice %293 {offsets = [0, 64], sizes = [24, 16], strides = [1, 1]} : vector<24x192xf32> to vector<24x16xf32>
    %298 = vector.extract_strided_slice %293 {offsets = [0, 128], sizes = [24, 16], strides = [1, 1]} : vector<24x192xf32> to vector<24x16xf32>
    %cst_119 = arith.constant dense<0.000000e+00> : vector<24x24xf32>
    %299 = tpu.matmul %296, %297, %cst_119 {dimension_numbers = #tpu.dot_dimension_numbers<[1], [1], [0], [0], [0, 0, 1, 0], [], []>} : vector<24x16xf32>, vector<24x16xf32>, vector<24x24xf32> -> vector<24x24xf32>
    %cst_120 = arith.constant 2.500000e-01 : f32
    %300 = vector.broadcast %cst_120 : f32 to vector<24x24xf32>
    %301 = arith.mulf %299, %300 : vector<24x24xf32>
    %302 = vector.broadcast %295 : vector<1x24xf32> to vector<24x24xf32>
    %303 = arith.addf %301, %302 : vector<24x24xf32>
    %cst_121 = arith.constant dense<0xFF800000> : vector<24xf32>
    %304 = vector.multi_reduction <maximumf>, %303, %cst_121 [1] : vector<24x24xf32> to vector<24xf32>
    %305 = vector.shape_cast %304 : vector<24xf32> to vector<24x1xf32>
    %306 = vector.broadcast %305 : vector<24x1xf32> to vector<24x24xf32>
    %307 = arith.subf %303, %306 : vector<24x24xf32>
    %308 = math.exp %307 : vector<24x24xf32>
    %cst_122 = arith.constant dense<0.000000e+00> : vector<24xf32>
    %309 = vector.multi_reduction <add>, %308, %cst_122 [1] : vector<24x24xf32> to vector<24xf32>
    %310 = vector.shape_cast %309 : vector<24xf32> to vector<24x1xf32>
    %311 = vector.broadcast %310 : vector<24x1xf32> to vector<24x24xf32>
    %312 = arith.divf %308, %311 : vector<24x24xf32>
    %cst_123 = arith.constant dense<0.000000e+00> : vector<24x16xf32>
    %313 = tpu.matmul %312, %298, %cst_123 {dimension_numbers = #tpu.dot_dimension_numbers<[1], [0], [0], [1], [0, 0, 1, 1], [], []>} : vector<24x24xf32>, vector<24x16xf32>, vector<24x16xf32> -> vector<24x16xf32>
    %314 = vector.extract_strided_slice %293 {offsets = [0, 16], sizes = [24, 16], strides = [1, 1]} : vector<24x192xf32> to vector<24x16xf32>
    %315 = vector.extract_strided_slice %293 {offsets = [0, 80], sizes = [24, 16], strides = [1, 1]} : vector<24x192xf32> to vector<24x16xf32>
    %316 = vector.extract_strided_slice %293 {offsets = [0, 144], sizes = [24, 16], strides = [1, 1]} : vector<24x192xf32> to vector<24x16xf32>
    %cst_124 = arith.constant dense<0.000000e+00> : vector<24x24xf32>
    %317 = tpu.matmul %314, %315, %cst_124 {dimension_numbers = #tpu.dot_dimension_numbers<[1], [1], [0], [0], [0, 0, 1, 0], [], []>} : vector<24x16xf32>, vector<24x16xf32>, vector<24x24xf32> -> vector<24x24xf32>
    %cst_125 = arith.constant 2.500000e-01 : f32
    %318 = vector.broadcast %cst_125 : f32 to vector<24x24xf32>
    %319 = arith.mulf %317, %318 : vector<24x24xf32>
    %320 = vector.broadcast %295 : vector<1x24xf32> to vector<24x24xf32>
    %321 = arith.addf %319, %320 : vector<24x24xf32>
    %cst_126 = arith.constant dense<0xFF800000> : vector<24xf32>
    %322 = vector.multi_reduction <maximumf>, %321, %cst_126 [1] : vector<24x24xf32> to vector<24xf32>
    %323 = vector.shape_cast %322 : vector<24xf32> to vector<24x1xf32>
    %324 = vector.broadcast %323 : vector<24x1xf32> to vector<24x24xf32>
    %325 = arith.subf %321, %324 : vector<24x24xf32>
    %326 = math.exp %325 : vector<24x24xf32>
    %cst_127 = arith.constant dense<0.000000e+00> : vector<24xf32>
    %327 = vector.multi_reduction <add>, %326, %cst_127 [1] : vector<24x24xf32> to vector<24xf32>
    %328 = vector.shape_cast %327 : vector<24xf32> to vector<24x1xf32>
    %329 = vector.broadcast %328 : vector<24x1xf32> to vector<24x24xf32>
    %330 = arith.divf %326, %329 : vector<24x24xf32>
    %cst_128 = arith.constant dense<0.000000e+00> : vector<24x16xf32>
    %331 = tpu.matmul %330, %316, %cst_128 {dimension_numbers = #tpu.dot_dimension_numbers<[1], [0], [0], [1], [0, 0, 1, 1], [], []>} : vector<24x24xf32>, vector<24x16xf32>, vector<24x16xf32> -> vector<24x16xf32>
    %332 = vector.extract_strided_slice %293 {offsets = [0, 32], sizes = [24, 16], strides = [1, 1]} : vector<24x192xf32> to vector<24x16xf32>
    %333 = vector.extract_strided_slice %293 {offsets = [0, 96], sizes = [24, 16], strides = [1, 1]} : vector<24x192xf32> to vector<24x16xf32>
    %334 = vector.extract_strided_slice %293 {offsets = [0, 160], sizes = [24, 16], strides = [1, 1]} : vector<24x192xf32> to vector<24x16xf32>
    %cst_129 = arith.constant dense<0.000000e+00> : vector<24x24xf32>
    %335 = tpu.matmul %332, %333, %cst_129 {dimension_numbers = #tpu.dot_dimension_numbers<[1], [1], [0], [0], [0, 0, 1, 0], [], []>} : vector<24x16xf32>, vector<24x16xf32>, vector<24x24xf32> -> vector<24x24xf32>
    %cst_130 = arith.constant 2.500000e-01 : f32
    %336 = vector.broadcast %cst_130 : f32 to vector<24x24xf32>
    %337 = arith.mulf %335, %336 : vector<24x24xf32>
    %338 = vector.broadcast %295 : vector<1x24xf32> to vector<24x24xf32>
    %339 = arith.addf %337, %338 : vector<24x24xf32>
    %cst_131 = arith.constant dense<0xFF800000> : vector<24xf32>
    %340 = vector.multi_reduction <maximumf>, %339, %cst_131 [1] : vector<24x24xf32> to vector<24xf32>
    %341 = vector.shape_cast %340 : vector<24xf32> to vector<24x1xf32>
    %342 = vector.broadcast %341 : vector<24x1xf32> to vector<24x24xf32>
    %343 = arith.subf %339, %342 : vector<24x24xf32>
    %344 = math.exp %343 : vector<24x24xf32>
    %cst_132 = arith.constant dense<0.000000e+00> : vector<24xf32>
    %345 = vector.multi_reduction <add>, %344, %cst_132 [1] : vector<24x24xf32> to vector<24xf32>
    %346 = vector.shape_cast %345 : vector<24xf32> to vector<24x1xf32>
    %347 = vector.broadcast %346 : vector<24x1xf32> to vector<24x24xf32>
    %348 = arith.divf %344, %347 : vector<24x24xf32>
    %cst_133 = arith.constant dense<0.000000e+00> : vector<24x16xf32>
    %349 = tpu.matmul %348, %334, %cst_133 {dimension_numbers = #tpu.dot_dimension_numbers<[1], [0], [0], [1], [0, 0, 1, 1], [], []>} : vector<24x24xf32>, vector<24x16xf32>, vector<24x16xf32> -> vector<24x16xf32>
    %350 = vector.extract_strided_slice %293 {offsets = [0, 48], sizes = [24, 16], strides = [1, 1]} : vector<24x192xf32> to vector<24x16xf32>
    %351 = vector.extract_strided_slice %293 {offsets = [0, 112], sizes = [24, 16], strides = [1, 1]} : vector<24x192xf32> to vector<24x16xf32>
    %352 = vector.extract_strided_slice %293 {offsets = [0, 176], sizes = [24, 16], strides = [1, 1]} : vector<24x192xf32> to vector<24x16xf32>
    %cst_134 = arith.constant dense<0.000000e+00> : vector<24x24xf32>
    %353 = tpu.matmul %350, %351, %cst_134 {dimension_numbers = #tpu.dot_dimension_numbers<[1], [1], [0], [0], [0, 0, 1, 0], [], []>} : vector<24x16xf32>, vector<24x16xf32>, vector<24x24xf32> -> vector<24x24xf32>
    %cst_135 = arith.constant 2.500000e-01 : f32
    %354 = vector.broadcast %cst_135 : f32 to vector<24x24xf32>
    %355 = arith.mulf %353, %354 : vector<24x24xf32>
    %356 = vector.broadcast %295 : vector<1x24xf32> to vector<24x24xf32>
    %357 = arith.addf %355, %356 : vector<24x24xf32>
    %cst_136 = arith.constant dense<0xFF800000> : vector<24xf32>
    %358 = vector.multi_reduction <maximumf>, %357, %cst_136 [1] : vector<24x24xf32> to vector<24xf32>
    %359 = vector.shape_cast %358 : vector<24xf32> to vector<24x1xf32>
    %360 = vector.broadcast %359 : vector<24x1xf32> to vector<24x24xf32>
    %361 = arith.subf %357, %360 : vector<24x24xf32>
    %362 = math.exp %361 : vector<24x24xf32>
    %cst_137 = arith.constant dense<0.000000e+00> : vector<24xf32>
    %363 = vector.multi_reduction <add>, %362, %cst_137 [1] : vector<24x24xf32> to vector<24xf32>
    %364 = vector.shape_cast %363 : vector<24xf32> to vector<24x1xf32>
    %365 = vector.broadcast %364 : vector<24x1xf32> to vector<24x24xf32>
    %366 = arith.divf %362, %365 : vector<24x24xf32>
    %cst_138 = arith.constant dense<0.000000e+00> : vector<24x16xf32>
    %367 = tpu.matmul %366, %352, %cst_138 {dimension_numbers = #tpu.dot_dimension_numbers<[1], [0], [0], [1], [0, 0, 1, 1], [], []>} : vector<24x24xf32>, vector<24x16xf32>, vector<24x16xf32> -> vector<24x16xf32>
    %368 = tpu.concatenate %313, %331, %349, %367 in 1 : vector<24x16xf32>, vector<24x16xf32>, vector<24x16xf32>, vector<24x16xf32> -> vector<24x64xf32>
    %369 = vector.extract_strided_slice %292 {offsets = [24, 0], sizes = [24, 192], strides = [1, 1]} : vector<48x192xf32> to vector<24x192xf32>
    %c1_139 = arith.constant 1 : index
    %c0_140 = arith.constant 0 : index
    %c0_141 = arith.constant 0 : index
    %370 = vector.load %arg9[%c1_139, %c0_140, %c0_141] : memref<2x1x24xf32, #tpu.memory_space<vmem>>, vector<1x1x24xf32>
    %371 = vector.shape_cast %370 : vector<1x1x24xf32> to vector<1x24xf32>
    %372 = vector.extract_strided_slice %369 {offsets = [0, 0], sizes = [24, 16], strides = [1, 1]} : vector<24x192xf32> to vector<24x16xf32>
    %373 = vector.extract_strided_slice %369 {offsets = [0, 64], sizes = [24, 16], strides = [1, 1]} : vector<24x192xf32> to vector<24x16xf32>
    %374 = vector.extract_strided_slice %369 {offsets = [0, 128], sizes = [24, 16], strides = [1, 1]} : vector<24x192xf32> to vector<24x16xf32>
    %cst_142 = arith.constant dense<0.000000e+00> : vector<24x24xf32>
    %375 = tpu.matmul %372, %373, %cst_142 {dimension_numbers = #tpu.dot_dimension_numbers<[1], [1], [0], [0], [0, 0, 1, 0], [], []>} : vector<24x16xf32>, vector<24x16xf32>, vector<24x24xf32> -> vector<24x24xf32>
    %cst_143 = arith.constant 2.500000e-01 : f32
    %376 = vector.broadcast %cst_143 : f32 to vector<24x24xf32>
    %377 = arith.mulf %375, %376 : vector<24x24xf32>
    %378 = vector.broadcast %371 : vector<1x24xf32> to vector<24x24xf32>
    %379 = arith.addf %377, %378 : vector<24x24xf32>
    %cst_144 = arith.constant dense<0xFF800000> : vector<24xf32>
    %380 = vector.multi_reduction <maximumf>, %379, %cst_144 [1] : vector<24x24xf32> to vector<24xf32>
    %381 = vector.shape_cast %380 : vector<24xf32> to vector<24x1xf32>
    %382 = vector.broadcast %381 : vector<24x1xf32> to vector<24x24xf32>
    %383 = arith.subf %379, %382 : vector<24x24xf32>
    %384 = math.exp %383 : vector<24x24xf32>
    %cst_145 = arith.constant dense<0.000000e+00> : vector<24xf32>
    %385 = vector.multi_reduction <add>, %384, %cst_145 [1] : vector<24x24xf32> to vector<24xf32>
    %386 = vector.shape_cast %385 : vector<24xf32> to vector<24x1xf32>
    %387 = vector.broadcast %386 : vector<24x1xf32> to vector<24x24xf32>
    %388 = arith.divf %384, %387 : vector<24x24xf32>
    %cst_146 = arith.constant dense<0.000000e+00> : vector<24x16xf32>
    %389 = tpu.matmul %388, %374, %cst_146 {dimension_numbers = #tpu.dot_dimension_numbers<[1], [0], [0], [1], [0, 0, 1, 1], [], []>} : vector<24x24xf32>, vector<24x16xf32>, vector<24x16xf32> -> vector<24x16xf32>
    %390 = vector.extract_strided_slice %369 {offsets = [0, 16], sizes = [24, 16], strides = [1, 1]} : vector<24x192xf32> to vector<24x16xf32>
    %391 = vector.extract_strided_slice %369 {offsets = [0, 80], sizes = [24, 16], strides = [1, 1]} : vector<24x192xf32> to vector<24x16xf32>
    %392 = vector.extract_strided_slice %369 {offsets = [0, 144], sizes = [24, 16], strides = [1, 1]} : vector<24x192xf32> to vector<24x16xf32>
    %cst_147 = arith.constant dense<0.000000e+00> : vector<24x24xf32>
    %393 = tpu.matmul %390, %391, %cst_147 {dimension_numbers = #tpu.dot_dimension_numbers<[1], [1], [0], [0], [0, 0, 1, 0], [], []>} : vector<24x16xf32>, vector<24x16xf32>, vector<24x24xf32> -> vector<24x24xf32>
    %cst_148 = arith.constant 2.500000e-01 : f32
    %394 = vector.broadcast %cst_148 : f32 to vector<24x24xf32>
    %395 = arith.mulf %393, %394 : vector<24x24xf32>
    %396 = vector.broadcast %371 : vector<1x24xf32> to vector<24x24xf32>
    %397 = arith.addf %395, %396 : vector<24x24xf32>
    %cst_149 = arith.constant dense<0xFF800000> : vector<24xf32>
    %398 = vector.multi_reduction <maximumf>, %397, %cst_149 [1] : vector<24x24xf32> to vector<24xf32>
    %399 = vector.shape_cast %398 : vector<24xf32> to vector<24x1xf32>
    %400 = vector.broadcast %399 : vector<24x1xf32> to vector<24x24xf32>
    %401 = arith.subf %397, %400 : vector<24x24xf32>
    %402 = math.exp %401 : vector<24x24xf32>
    %cst_150 = arith.constant dense<0.000000e+00> : vector<24xf32>
    %403 = vector.multi_reduction <add>, %402, %cst_150 [1] : vector<24x24xf32> to vector<24xf32>
    %404 = vector.shape_cast %403 : vector<24xf32> to vector<24x1xf32>
    %405 = vector.broadcast %404 : vector<24x1xf32> to vector<24x24xf32>
    %406 = arith.divf %402, %405 : vector<24x24xf32>
    %cst_151 = arith.constant dense<0.000000e+00> : vector<24x16xf32>
    %407 = tpu.matmul %406, %392, %cst_151 {dimension_numbers = #tpu.dot_dimension_numbers<[1], [0], [0], [1], [0, 0, 1, 1], [], []>} : vector<24x24xf32>, vector<24x16xf32>, vector<24x16xf32> -> vector<24x16xf32>
    %408 = vector.extract_strided_slice %369 {offsets = [0, 32], sizes = [24, 16], strides = [1, 1]} : vector<24x192xf32> to vector<24x16xf32>
    %409 = vector.extract_strided_slice %369 {offsets = [0, 96], sizes = [24, 16], strides = [1, 1]} : vector<24x192xf32> to vector<24x16xf32>
    %410 = vector.extract_strided_slice %369 {offsets = [0, 160], sizes = [24, 16], strides = [1, 1]} : vector<24x192xf32> to vector<24x16xf32>
    %cst_152 = arith.constant dense<0.000000e+00> : vector<24x24xf32>
    %411 = tpu.matmul %408, %409, %cst_152 {dimension_numbers = #tpu.dot_dimension_numbers<[1], [1], [0], [0], [0, 0, 1, 0], [], []>} : vector<24x16xf32>, vector<24x16xf32>, vector<24x24xf32> -> vector<24x24xf32>
    %cst_153 = arith.constant 2.500000e-01 : f32
    %412 = vector.broadcast %cst_153 : f32 to vector<24x24xf32>
    %413 = arith.mulf %411, %412 : vector<24x24xf32>
    %414 = vector.broadcast %371 : vector<1x24xf32> to vector<24x24xf32>
    %415 = arith.addf %413, %414 : vector<24x24xf32>
    %cst_154 = arith.constant dense<0xFF800000> : vector<24xf32>
    %416 = vector.multi_reduction <maximumf>, %415, %cst_154 [1] : vector<24x24xf32> to vector<24xf32>
    %417 = vector.shape_cast %416 : vector<24xf32> to vector<24x1xf32>
    %418 = vector.broadcast %417 : vector<24x1xf32> to vector<24x24xf32>
    %419 = arith.subf %415, %418 : vector<24x24xf32>
    %420 = math.exp %419 : vector<24x24xf32>
    %cst_155 = arith.constant dense<0.000000e+00> : vector<24xf32>
    %421 = vector.multi_reduction <add>, %420, %cst_155 [1] : vector<24x24xf32> to vector<24xf32>
    %422 = vector.shape_cast %421 : vector<24xf32> to vector<24x1xf32>
    %423 = vector.broadcast %422 : vector<24x1xf32> to vector<24x24xf32>
    %424 = arith.divf %420, %423 : vector<24x24xf32>
    %cst_156 = arith.constant dense<0.000000e+00> : vector<24x16xf32>
    %425 = tpu.matmul %424, %410, %cst_156 {dimension_numbers = #tpu.dot_dimension_numbers<[1], [0], [0], [1], [0, 0, 1, 1], [], []>} : vector<24x24xf32>, vector<24x16xf32>, vector<24x16xf32> -> vector<24x16xf32>
    %426 = vector.extract_strided_slice %369 {offsets = [0, 48], sizes = [24, 16], strides = [1, 1]} : vector<24x192xf32> to vector<24x16xf32>
    %427 = vector.extract_strided_slice %369 {offsets = [0, 112], sizes = [24, 16], strides = [1, 1]} : vector<24x192xf32> to vector<24x16xf32>
    %428 = vector.extract_strided_slice %369 {offsets = [0, 176], sizes = [24, 16], strides = [1, 1]} : vector<24x192xf32> to vector<24x16xf32>
    %cst_157 = arith.constant dense<0.000000e+00> : vector<24x24xf32>
    %429 = tpu.matmul %426, %427, %cst_157 {dimension_numbers = #tpu.dot_dimension_numbers<[1], [1], [0], [0], [0, 0, 1, 0], [], []>} : vector<24x16xf32>, vector<24x16xf32>, vector<24x24xf32> -> vector<24x24xf32>
    %cst_158 = arith.constant 2.500000e-01 : f32
    %430 = vector.broadcast %cst_158 : f32 to vector<24x24xf32>
    %431 = arith.mulf %429, %430 : vector<24x24xf32>
    %432 = vector.broadcast %371 : vector<1x24xf32> to vector<24x24xf32>
    %433 = arith.addf %431, %432 : vector<24x24xf32>
    %cst_159 = arith.constant dense<0xFF800000> : vector<24xf32>
    %434 = vector.multi_reduction <maximumf>, %433, %cst_159 [1] : vector<24x24xf32> to vector<24xf32>
    %435 = vector.shape_cast %434 : vector<24xf32> to vector<24x1xf32>
    %436 = vector.broadcast %435 : vector<24x1xf32> to vector<24x24xf32>
    %437 = arith.subf %433, %436 : vector<24x24xf32>
    %438 = math.exp %437 : vector<24x24xf32>
    %cst_160 = arith.constant dense<0.000000e+00> : vector<24xf32>
    %439 = vector.multi_reduction <add>, %438, %cst_160 [1] : vector<24x24xf32> to vector<24xf32>
    %440 = vector.shape_cast %439 : vector<24xf32> to vector<24x1xf32>
    %441 = vector.broadcast %440 : vector<24x1xf32> to vector<24x24xf32>
    %442 = arith.divf %438, %441 : vector<24x24xf32>
    %cst_161 = arith.constant dense<0.000000e+00> : vector<24x16xf32>
    %443 = tpu.matmul %442, %428, %cst_161 {dimension_numbers = #tpu.dot_dimension_numbers<[1], [0], [0], [1], [0, 0, 1, 1], [], []>} : vector<24x24xf32>, vector<24x16xf32>, vector<24x16xf32> -> vector<24x16xf32>
    %444 = tpu.concatenate %389, %407, %425, %443 in 1 : vector<24x16xf32>, vector<24x16xf32>, vector<24x16xf32>, vector<24x16xf32> -> vector<24x64xf32>
    %445 = tpu.concatenate %368, %444 in 0 : vector<24x64xf32>, vector<24x64xf32> -> vector<48x64xf32>
    %446 = arith.truncf %445 : vector<48x64xf32> to vector<48x64xbf16>
    %c0_162 = arith.constant 0 : index
    %c0_163 = arith.constant 0 : index
    %447 = vector.load %arg24[%c0_162, %c0_163] : memref<64x64xbf16, #tpu.memory_space<vmem>>, vector<64x64xbf16>
    %cst_164 = arith.constant dense<0.000000e+00> : vector<48x64xf32>
    %448 = tpu.matmul %446, %447, %cst_164 {dimension_numbers = #tpu.dot_dimension_numbers<[1], [0], [0], [1], [0, 0, 1, 1], [], []>} : vector<48x64xbf16>, vector<64x64xbf16>, vector<48x64xf32> -> vector<48x64xf32>
    %c0_165 = arith.constant 0 : index
    %c0_166 = arith.constant 0 : index
    %449 = vector.load %arg25[%c0_165, %c0_166] : memref<1x64xf32, #tpu.memory_space<vmem>>, vector<1x64xf32>
    %450 = vector.broadcast %449 : vector<1x64xf32> to vector<48x64xf32>
    %451 = arith.addf %448, %450 : vector<48x64xf32>
    %452 = arith.addf %451, %286 : vector<48x64xf32>
    %c0_167 = arith.constant 0 : index
    %c0_168 = arith.constant 0 : index
    %453 = vector.load %arg26[%c0_167, %c0_168] : memref<1x64xf32, #tpu.memory_space<vmem>>, vector<1x64xf32>
    %c0_169 = arith.constant 0 : index
    %c0_170 = arith.constant 0 : index
    %454 = vector.load %arg27[%c0_169, %c0_170] : memref<1x64xf32, #tpu.memory_space<vmem>>, vector<1x64xf32>
    %cst_171 = arith.constant dense<0.000000e+00> : vector<48xf32>
    %455 = vector.multi_reduction <add>, %452, %cst_171 [1] : vector<48x64xf32> to vector<48xf32>
    %456 = vector.shape_cast %455 : vector<48xf32> to vector<48x1xf32>
    %cst_172 = arith.constant 6.400000e+01 : f32
    %457 = vector.broadcast %cst_172 : f32 to vector<48x1xf32>
    %458 = arith.divf %456, %457 : vector<48x1xf32>
    %459 = vector.broadcast %458 : vector<48x1xf32> to vector<48x64xf32>
    %460 = arith.subf %452, %459 : vector<48x64xf32>
    %461 = arith.mulf %460, %460 : vector<48x64xf32>
    %cst_173 = arith.constant dense<0.000000e+00> : vector<48xf32>
    %462 = vector.multi_reduction <add>, %461, %cst_173 [1] : vector<48x64xf32> to vector<48xf32>
    %463 = vector.shape_cast %462 : vector<48xf32> to vector<48x1xf32>
    %cst_174 = arith.constant 6.400000e+01 : f32
    %464 = vector.broadcast %cst_174 : f32 to vector<48x1xf32>
    %465 = arith.divf %463, %464 : vector<48x1xf32>
    %466 = vector.broadcast %458 : vector<48x1xf32> to vector<48x64xf32>
    %467 = arith.subf %452, %466 : vector<48x64xf32>
    %cst_175 = arith.constant 9.99999996E-13 : f32
    %468 = vector.broadcast %cst_175 : f32 to vector<48x1xf32>
    %469 = arith.addf %465, %468 : vector<48x1xf32>
    %470 = math.rsqrt %469 : vector<48x1xf32>
    %471 = vector.broadcast %470 : vector<48x1xf32> to vector<48x64xf32>
    %472 = arith.mulf %467, %471 : vector<48x64xf32>
    %473 = vector.broadcast %453 : vector<1x64xf32> to vector<48x64xf32>
    %474 = arith.mulf %472, %473 : vector<48x64xf32>
    %475 = vector.broadcast %454 : vector<1x64xf32> to vector<48x64xf32>
    %476 = arith.addf %474, %475 : vector<48x64xf32>
    %477 = arith.truncf %476 : vector<48x64xf32> to vector<48x64xbf16>
    %c0_176 = arith.constant 0 : index
    %c0_177 = arith.constant 0 : index
    %478 = vector.load %arg28[%c0_176, %c0_177] : memref<64x128xbf16, #tpu.memory_space<vmem>>, vector<64x128xbf16>
    %cst_178 = arith.constant dense<0.000000e+00> : vector<48x128xf32>
    %479 = tpu.matmul %477, %478, %cst_178 {dimension_numbers = #tpu.dot_dimension_numbers<[1], [0], [0], [1], [0, 0, 1, 1], [], []>} : vector<48x64xbf16>, vector<64x128xbf16>, vector<48x128xf32> -> vector<48x128xf32>
    %c0_179 = arith.constant 0 : index
    %c0_180 = arith.constant 0 : index
    %480 = vector.load %arg29[%c0_179, %c0_180] : memref<1x128xf32, #tpu.memory_space<vmem>>, vector<1x128xf32>
    %481 = vector.broadcast %480 : vector<1x128xf32> to vector<48x128xf32>
    %482 = arith.addf %479, %481 : vector<48x128xf32>
    %483 = arith.mulf %482, %482 : vector<48x128xf32>
    %484 = arith.mulf %482, %483 : vector<48x128xf32>
    %cst_181 = arith.constant 4.471500e-02 : f32
    %485 = vector.broadcast %cst_181 : f32 to vector<48x128xf32>
    %486 = arith.mulf %485, %484 : vector<48x128xf32>
    %487 = arith.addf %482, %486 : vector<48x128xf32>
    %cst_182 = arith.constant 0.797884583 : f32
    %488 = vector.broadcast %cst_182 : f32 to vector<48x128xf32>
    %489 = arith.mulf %488, %487 : vector<48x128xf32>
    %490 = math.tanh %489 : vector<48x128xf32>
    %cst_183 = arith.constant 1.000000e+00 : f32
    %491 = vector.broadcast %cst_183 : f32 to vector<48x128xf32>
    %492 = arith.addf %491, %490 : vector<48x128xf32>
    %cst_184 = arith.constant 5.000000e-01 : f32
    %493 = vector.broadcast %cst_184 : f32 to vector<48x128xf32>
    %494 = arith.mulf %493, %492 : vector<48x128xf32>
    %495 = arith.mulf %482, %494 : vector<48x128xf32>
    %496 = arith.truncf %495 : vector<48x128xf32> to vector<48x128xbf16>
    %c0_185 = arith.constant 0 : index
    %c0_186 = arith.constant 0 : index
    %497 = vector.load %arg30[%c0_185, %c0_186] : memref<128x64xbf16, #tpu.memory_space<vmem>>, vector<128x64xbf16>
    %cst_187 = arith.constant dense<0.000000e+00> : vector<48x64xf32>
    %498 = tpu.matmul %496, %497, %cst_187 {dimension_numbers = #tpu.dot_dimension_numbers<[1], [0], [0], [1], [0, 0, 1, 1], [], []>} : vector<48x128xbf16>, vector<128x64xbf16>, vector<48x64xf32> -> vector<48x64xf32>
    %c0_188 = arith.constant 0 : index
    %c0_189 = arith.constant 0 : index
    %499 = vector.load %arg31[%c0_188, %c0_189] : memref<1x64xf32, #tpu.memory_space<vmem>>, vector<1x64xf32>
    %500 = vector.broadcast %499 : vector<1x64xf32> to vector<48x64xf32>
    %501 = arith.addf %498, %500 : vector<48x64xf32>
    %502 = arith.addf %501, %476 : vector<48x64xf32>
    %c0_190 = arith.constant 0 : index
    %c0_191 = arith.constant 0 : index
    %503 = vector.load %arg32[%c0_190, %c0_191] : memref<1x64xf32, #tpu.memory_space<vmem>>, vector<1x64xf32>
    %c0_192 = arith.constant 0 : index
    %c0_193 = arith.constant 0 : index
    %504 = vector.load %arg33[%c0_192, %c0_193] : memref<1x64xf32, #tpu.memory_space<vmem>>, vector<1x64xf32>
    %cst_194 = arith.constant dense<0.000000e+00> : vector<48xf32>
    %505 = vector.multi_reduction <add>, %502, %cst_194 [1] : vector<48x64xf32> to vector<48xf32>
    %506 = vector.shape_cast %505 : vector<48xf32> to vector<48x1xf32>
    %cst_195 = arith.constant 6.400000e+01 : f32
    %507 = vector.broadcast %cst_195 : f32 to vector<48x1xf32>
    %508 = arith.divf %506, %507 : vector<48x1xf32>
    %509 = vector.broadcast %508 : vector<48x1xf32> to vector<48x64xf32>
    %510 = arith.subf %502, %509 : vector<48x64xf32>
    %511 = arith.mulf %510, %510 : vector<48x64xf32>
    %cst_196 = arith.constant dense<0.000000e+00> : vector<48xf32>
    %512 = vector.multi_reduction <add>, %511, %cst_196 [1] : vector<48x64xf32> to vector<48xf32>
    %513 = vector.shape_cast %512 : vector<48xf32> to vector<48x1xf32>
    %cst_197 = arith.constant 6.400000e+01 : f32
    %514 = vector.broadcast %cst_197 : f32 to vector<48x1xf32>
    %515 = arith.divf %513, %514 : vector<48x1xf32>
    %516 = vector.broadcast %508 : vector<48x1xf32> to vector<48x64xf32>
    %517 = arith.subf %502, %516 : vector<48x64xf32>
    %cst_198 = arith.constant 9.99999996E-13 : f32
    %518 = vector.broadcast %cst_198 : f32 to vector<48x1xf32>
    %519 = arith.addf %515, %518 : vector<48x1xf32>
    %520 = math.rsqrt %519 : vector<48x1xf32>
    %521 = vector.broadcast %520 : vector<48x1xf32> to vector<48x64xf32>
    %522 = arith.mulf %517, %521 : vector<48x64xf32>
    %523 = vector.broadcast %503 : vector<1x64xf32> to vector<48x64xf32>
    %524 = arith.mulf %522, %523 : vector<48x64xf32>
    %525 = vector.broadcast %504 : vector<1x64xf32> to vector<48x64xf32>
    %526 = arith.addf %524, %525 : vector<48x64xf32>
    %527 = vector.extract_strided_slice %526 {offsets = [0, 0], sizes = [1, 64], strides = [1, 1]} : vector<48x64xf32> to vector<1x64xf32>
    %528 = vector.extract_strided_slice %526 {offsets = [24, 0], sizes = [1, 64], strides = [1, 1]} : vector<48x64xf32> to vector<1x64xf32>
    %529 = tpu.concatenate %527, %528 in 0 : vector<1x64xf32>, vector<1x64xf32> -> vector<2x64xf32>
    %530 = arith.truncf %529 : vector<2x64xf32> to vector<2x64xbf16>
    %c0_199 = arith.constant 0 : index
    %c0_200 = arith.constant 0 : index
    %531 = vector.load %arg34[%c0_199, %c0_200] : memref<64x64xbf16, #tpu.memory_space<vmem>>, vector<64x64xbf16>
    %cst_201 = arith.constant dense<0.000000e+00> : vector<2x64xf32>
    %532 = tpu.matmul %530, %531, %cst_201 {dimension_numbers = #tpu.dot_dimension_numbers<[1], [0], [0], [1], [0, 0, 1, 1], [], []>} : vector<2x64xbf16>, vector<64x64xbf16>, vector<2x64xf32> -> vector<2x64xf32>
    %c0_202 = arith.constant 0 : index
    %c0_203 = arith.constant 0 : index
    %533 = vector.load %arg35[%c0_202, %c0_203] : memref<1x64xf32, #tpu.memory_space<vmem>>, vector<1x64xf32>
    %534 = vector.broadcast %533 : vector<1x64xf32> to vector<2x64xf32>
    %535 = arith.addf %532, %534 : vector<2x64xf32>
    %536 = math.tanh %535 : vector<2x64xf32>
    %537 = arith.truncf %536 : vector<2x64xf32> to vector<2x64xbf16>
    %c0_204 = arith.constant 0 : index
    %c0_205 = arith.constant 0 : index
    %538 = vector.load %arg36[%c0_204, %c0_205] : memref<64x10xbf16, #tpu.memory_space<vmem>>, vector<64x10xbf16>
    %cst_206 = arith.constant dense<0.000000e+00> : vector<2x10xf32>
    %539 = tpu.matmul %537, %538, %cst_206 {dimension_numbers = #tpu.dot_dimension_numbers<[1], [0], [0], [1], [0, 0, 1, 1], [], []>} : vector<2x64xbf16>, vector<64x10xbf16>, vector<2x10xf32> -> vector<2x10xf32>
    %c0_207 = arith.constant 0 : index
    %c0_208 = arith.constant 0 : index
    %540 = vector.load %arg37[%c0_207, %c0_208] : memref<1x10xf32, #tpu.memory_space<vmem>>, vector<1x10xf32>
    %541 = vector.broadcast %540 : vector<1x10xf32> to vector<2x10xf32>
    %542 = arith.addf %539, %541 : vector<2x10xf32>
    %c0_209 = arith.constant 0 : index
    %c0_210 = arith.constant 0 : index
    %543 = vector.load %arg38[%c0_209, %c0_210] : memref<2x10xf32, #tpu.memory_space<vmem>>, vector<2x10xf32>
    tpu.vector_store %arg38[%c0_209, %c0_210], %542 {strides = array<i32>} : memref<2x10xf32, #tpu.memory_space<vmem>>, vector<2x10xf32>,
    return
  }
}

</mosaic_0001>

<llo_original>
// kernel: vqa_forward.2
$region0: #{vqa_forward.2}
  #allocation0 [shape = 'u32[]', space=smem, size = 0x4, offset = 0x4, fixed_abs, tag = 'smem constant byte address 0x4 - core index']
  #allocation1 [shape = 'u32[144,128]{1,0:T(1,128)}', space=vmem, size = 0x12000, scoped, tag = 'internal scratch']
  %s0 = inlined_call_operand.vmem [shape: bf16[128,27], index: 0, kind: input, shape index: {}]
  %s1 = inlined_call_operand.vmem [shape: bf16[27,16], index: 1, kind: input, shape index: {}]
  %s2 = inlined_call_operand.vmem [shape: f32[1,16], index: 2, kind: input, shape index: {}]
  %s3 = inlined_call_operand.vmem [shape: bf16[128,16], index: 3, kind: output, shape index: {}]
  %s4 = sld [smem:[#allocation0]]
  $region22: #{vqa_forward.2} parent=0
    _
  %s6 = ssub.s32 1, %s4
  %s7 = scalar_select 0, %s6, %s4
  // Predicated region
  $region2: #{vqa_forward.2} parent=0 // pred_check
    _
  $region3: #{vqa_forward.2} parent=0 // pred_check_branch
    %9 = sbr.rel (0) target = $region5
  $region4: #{vqa_forward.2} parent=0 // pred_region
    _
  $region5: #{vqa_forward.2} parent=0 // pred_fallthru
    _
  // Predicated region
  $region6: #{vqa_forward.2} parent=0 // pred_check
    _
  $region7: #{vqa_forward.2} parent=0 // pred_check_branch
    %11 = sbr.rel (0) target = $region9
  $region8: #{vqa_forward.2} parent=0 // pred_region
    _
  $region9: #{vqa_forward.2} parent=0 // pred_fallthru
    _
  // Predicated region
  $region10: #{vqa_forward.2} parent=0 // pred_check
    _
  $region11: #{vqa_forward.2} parent=0 // pred_check_branch
    %13 = sbr.rel (0) target = $region13
  $region12: #{vqa_forward.2} parent=0 // pred_region
    _
  $region13: #{vqa_forward.2} parent=0 // pred_fallthru
    _
  %v15 = vld [vmem:[%s0] sm:$0xf]
  %v16 = vld [vmem:[%s0 + $0x4] sm:$0xf]
  %v17 = vld [vmem:[%s0 + $0x8] sm:$0xf]
  %v18 = vld [vmem:[%s0 + $0xc] sm:$0xf]
  %v19 = vld [vmem:[%s0 + $0x10] sm:$0xf]
  %v20 = vld [vmem:[%s0 + $0x14] sm:$0xf]
  %v21 = vld [vmem:[%s0 + $0x18] sm:$0xf]
  %v22 = vld [vmem:[%s0 + $0x1c] sm:$0xf]
  %v23 = vld [vmem:[%s0 + $0x20] sm:$0xf]
  %v24 = vld [vmem:[%s0 + $0x24] sm:$0xf]
  %v25 = vld [vmem:[%s0 + $0x28] sm:$0xf]
  %v26 = vld [vmem:[%s0 + $0x2c] sm:$0xf]
  %v27 = vld [vmem:[%s0 + $0x30] sm:$0xf]
  %v28 = vld [vmem:[%s0 + $0x34] sm:$0xf]
  %v29 = vld [vmem:[%s0 + $0x38] sm:$0xf]
  %v30 = vld [vmem:[%s0 + $0x3c] sm:$0xf]
  %v31 = vld [vmem:[%s1] sm:$0xf]
  %v32 = vld [vmem:[%s1 + $0x4] sm:$0xf]
  %v33 = vld [vmem:[%s1 + $0x8] sm:$0xf]
  %v34 = vld [vmem:[%s1 + $0xc] sm:$0x3]
  %v35 = vld [vmem:[%s2] sm:$0x1]
  %v37 = vlaneseq
  %v38 = vshrl.u32 %v37, 7
  %v39 = vsub.s32 0, %v38
  %v40 = vrot.slane %v35, %v39
  %v58 = vunpack.c.l.b16 %v15
  %v59 = vunpack.c.l.b16 %v16
  %v60 = vunpack.c.l.b16 %v17
  %v61 = vunpack.c.l.b16 %v18
  %v62 = vunpack.c.l.b16 %v19
  %v63 = vunpack.c.l.b16 %v20
  %v64 = vunpack.c.l.b16 %v21
  %v65 = vunpack.c.l.b16 %v22
  %v66 = vunpack.c.l.b16 %v23
  %v67 = vunpack.c.l.b16 %v24
  %v68 = vunpack.c.l.b16 %v25
  %v69 = vunpack.c.l.b16 %v26
  %v70 = vunpack.c.l.b16 %v27
  %v71 = vunpack.c.l.b16 %v28
  %v72 = vunpack.c.l.b16 %v29
  %v73 = vunpack.c.l.b16 %v30
  %v74 = vpack.c.b16 %v59, %v58
  %v75 = vpack.c.b16 %v61, %v60
  %v76 = vpack.c.b16 %v63, %v62
  %v77 = vpack.c.b16 %v65, %v64
  %v78 = vpack.c.b16 %v67, %v66
  %v79 = vpack.c.b16 %v69, %v68
  %v80 = vpack.c.b16 %v71, %v70
  %v81 = vpack.c.b16 %v73, %v72
  %v86 = vunpack.c.l.b16 %v31
  %v87 = vunpack.c.l.b16 %v32
  %v88 = vunpack.c.l.b16 %v33
  %v89 = vunpack.c.l.b16 %v34
  %v90 = vpack.c.b16 %v87, %v86
  %v91 = vpack.c.b16 %v89, %v88
  %vm93 = vcmask 220160
  %v95 = vsel %vm93, %v74, 0
  %v98 = vsel %vm93, %v75, 0
  %v101 = vsel %vm93, %v76, 0
  %v104 = vsel %vm93, %v77, 0
  %v107 = vsel %vm93, %v78, 0
  %v110 = vsel %vm93, %v79, 0
  %v113 = vsel %vm93, %v80, 0
  %v116 = vsel %vm93, %v81, 0
  %vm118 = vcmask 1044480
  %vm119 = vcmask 1045504
  %v120 = vsel %vm118, 4294967295, 65535
  %v121 = vsel %vm119, %v120, 0
  %v123 = vand.u32 %v91, %v121
  %125 = vmatprep.subr.bf16.mxu0 0
  %126 = vmatpush1.bf16.msra.mxu0 %v90
  %127 = vmatprep.subr.bf16.mxu0 0
  %128 = vmatpush1.bf16.msra.mxu0 %v123
  %129 = vmatprep.subr.bf16.mxu0 0
  %130 = vmatpush1.bf16.msra.mxu0 0
  %131 = vmatprep.subr.bf16.mxu0 0
  %132 = vmatpush1.bf16.msra.mxu0 0
  %133 = vmatprep.subr.bf16.mxu0 0
  %134 = vmatpush1.bf16.msra.mxu0 0
  %135 = vmatprep.subr.bf16.mxu0 0
  %136 = vmatpush1.bf16.msra.mxu0 0
  %137 = vmatprep.subr.bf16.mxu0 0
  %138 = vmatpush1.bf16.msra.mxu0 0
  %139 = vmatprep.subr.bf16.mxu0 0
  %140 = vmatpush1.bf16.msra.mxu0 0
  %141 = vmatprep.subr.bf16.mxu0 0
  %142 = vmatpush1.bf16.msra.mxu0 0
  %143 = vmatprep.subr.bf16.mxu0 0
  %144 = vmatpush1.bf16.msra.mxu0 0
  %145 = vmatprep.subr.bf16.mxu0 0
  %146 = vmatpush1.bf16.msra.mxu0 0
  %147 = vmatprep.subr.bf16.mxu0 0
  %148 = vmatpush1.bf16.msra.mxu0 0
  %149 = vmatprep.subr.bf16.mxu0 0
  %150 = vmatpush1.bf16.msra.mxu0 0
  %151 = vmatprep.subr.bf16.mxu0 0
  %152 = vmatpush1.bf16.msra.mxu0 0
  %153 = vmatprep.subr.bf16.mxu0 0
  %154 = vmatpush1.bf16.msra.mxu0 0
  %155 = vmatprep.subr.bf16.mxu0 0
  %156 = vmatpush1.bf16.msra.mxu0 0
  %157 = vmatprep.mubr.bf16.mxu0 0
  %158 = vmatmul.mubr.bf16.gmra.mrb[0].mxu0 %v95
  %v159 = vpop.f32.mrb[0].mxu0
  %v160 = vadd.f32 %v40, %v159
  %v161 = vpop.f32.mrb[0].mxu0
  %v162 = vpop.f32.mrb[0].mxu0
  %v163 = vadd.f32 %v40, %v162
  %v164 = vpop.f32.mrb[0].mxu0
  %165 = vmatprep.mubr.bf16.mxu0 0
  %166 = vmatmul.mubr.bf16.gmra.mrb[0].mxu0 %v98
  %v167 = vpop.f32.mrb[0].mxu0
  %v168 = vadd.f32 %v40, %v167
  %v169 = vpop.f32.mrb[0].mxu0
  %v170 = vpop.f32.mrb[0].mxu0
  %v171 = vadd.f32 %v40, %v170
  %v172 = vpop.f32.mrb[0].mxu0
  %173 = vmatprep.mubr.bf16.mxu0 0
  %174 = vmatmul.mubr.bf16.gmra.mrb[0].mxu0 %v101
  %v175 = vpop.f32.mrb[0].mxu0
  %v176 = vadd.f32 %v40, %v175
  %v177 = vpop.f32.mrb[0].mxu0
  %v178 = vpop.f32.mrb[0].mxu0
  %v179 = vadd.f32 %v40, %v178
  %v180 = vpop.f32.mrb[0].mxu0
  %181 = vmatprep.mubr.bf16.mxu0 0
  %182 = vmatmul.mubr.bf16.gmra.mrb[0].mxu0 %v104
  %v183 = vpop.f32.mrb[0].mxu0
  %v184 = vadd.f32 %v40, %v183
  %v185 = vpop.f32.mrb[0].mxu0
  %v186 = vpop.f32.mrb[0].mxu0
  %v187 = vadd.f32 %v40, %v186
  %v188 = vpop.f32.mrb[0].mxu0
  %189 = vmatprep.mubr.bf16.mxu0 0
  %190 = vmatmul.mubr.bf16.gmra.mrb[0].mxu0 %v107
  %v191 = vpop.f32.mrb[0].mxu0
  %v192 = vadd.f32 %v40, %v191
  %v193 = vpop.f32.mrb[0].mxu0
  %v194 = vpop.f32.mrb[0].mxu0
  %v195 = vadd.f32 %v40, %v194
  %v196 = vpop.f32.mrb[0].mxu0
  %197 = vmatprep.mubr.bf16.mxu0 0
  %198 = vmatmul.mubr.bf16.gmra.mrb[0].mxu0 %v110
  %v199 = vpop.f32.mrb[0].mxu0
  %v200 = vadd.f32 %v40, %v199
  %v201 = vpop.f32.mrb[0].mxu0
  %v202 = vpop.f32.mrb[0].mxu0
  %v203 = vadd.f32 %v40, %v202
  %v204 = vpop.f32.mrb[0].mxu0
  %205 = vmatprep.mubr.bf16.mxu0 0
  %206 = vmatmul.mubr.bf16.gmra.mrb[0].mxu0 %v113
  %v207 = vpop.f32.mrb[0].mxu0
  %v208 = vadd.f32 %v40, %v207
  %v209 = vpop.f32.mrb[0].mxu0
  %v210 = vpop.f32.mrb[0].mxu0
  %v211 = vadd.f32 %v40, %v210
  %v212 = vpop.f32.mrb[0].mxu0
  %213 = vmatprep.mubr.bf16.mxu0 0
  %214 = vmatmul.mubr.bf16.gmra.mrb[0].mxu0 %v116
  %v215 = vpop.f32.mrb[0].mxu0
  %v216 = vadd.f32 %v40, %v215
  %v217 = vpop.f32.mrb[0].mxu0
  %v218 = vpop.f32.mrb[0].mxu0
  %v219 = vadd.f32 %v40, %v218
  %v220 = vpop.f32.mrb[0].mxu0
  %221 = vdwg.mxu0
  %v222 = vmax.f32 %v160, 0.0
  %v223 = vmax.f32 %v163, 0.0
  %v224 = vmax.f32 %v168, 0.0
  %v225 = vmax.f32 %v171, 0.0
  %v226 = vmax.f32 %v176, 0.0
  %v227 = vmax.f32 %v179, 0.0
  %v228 = vmax.f32 %v184, 0.0
  %v229 = vmax.f32 %v187, 0.0
  %v230 = vmax.f32 %v192, 0.0
  %v231 = vmax.f32 %v195, 0.0
  %v232 = vmax.f32 %v200, 0.0
  %v233 = vmax.f32 %v203, 0.0
  %v234 = vmax.f32 %v208, 0.0
  %v235 = vmax.f32 %v211, 0.0
  %v236 = vmax.f32 %v216, 0.0
  %v237 = vmax.f32 %v219, 0.0
  %v238 = vpack.c.bf16 %v223, %v222
  %v239 = vpack.c.bf16 %v225, %v224
  %v240 = vpack.c.bf16 %v227, %v226
  %v241 = vpack.c.bf16 %v229, %v228
  %v242 = vpack.c.bf16 %v231, %v230
  %v243 = vpack.c.bf16 %v233, %v232
  %v244 = vpack.c.bf16 %v235, %v234
  %v245 = vpack.c.bf16 %v237, %v236
  %v254 = vunpack.c.l.b16 %v238
  %v255 = vunpack.c.h.b16 %v238
  %v256 = vunpack.c.l.b16 %v239
  %v257 = vunpack.c.h.b16 %v239
  %v258 = vunpack.c.l.b16 %v240
  %v259 = vunpack.c.h.b16 %v240
  %v260 = vunpack.c.l.b16 %v241
  %v261 = vunpack.c.h.b16 %v241
  %v262 = vunpack.c.l.b16 %v242
  %v263 = vunpack.c.h.b16 %v242
  %v264 = vunpack.c.l.b16 %v243
  %v265 = vunpack.c.h.b16 %v243
  %v266 = vunpack.c.l.b16 %v244
  %v267 = vunpack.c.h.b16 %v244
  %v268 = vunpack.c.l.b16 %v245
  %v269 = vunpack.c.h.b16 %v245
  %v270 = vpack.c.b16 %v254, %v254
  %v271 = vpack.c.b16 %v255, %v255
  %v272 = vpack.c.b16 %v256, %v256
  %v273 = vpack.c.b16 %v257, %v257
  %v274 = vpack.c.b16 %v258, %v258
  %v275 = vpack.c.b16 %v259, %v259
  %v276 = vpack.c.b16 %v260, %v260
  %v277 = vpack.c.b16 %v261, %v261
  %v278 = vpack.c.b16 %v262, %v262
  %v279 = vpack.c.b16 %v263, %v263
  %v280 = vpack.c.b16 %v264, %v264
  %v281 = vpack.c.b16 %v265, %v265
  %v282 = vpack.c.b16 %v266, %v266
  %v283 = vpack.c.b16 %v267, %v267
  %v284 = vpack.c.b16 %v268, %v268
  %v285 = vpack.c.b16 %v269, %v269
  %vm302 = vcmask 125952
  %303 = vst.msk [vmem:[%s3] sm:$0xf] %vm302, %v270
  %304 = vst.msk [vmem:[%s3 + $0x4] sm:$0xf] %vm302, %v271
  %305 = vst.msk [vmem:[%s3 + $0x8] sm:$0xf] %vm302, %v272
  %306 = vst.msk [vmem:[%s3 + $0xc] sm:$0xf] %vm302, %v273
  %307 = vst.msk [vmem:[%s3 + $0x10] sm:$0xf] %vm302, %v274
  %308 = vst.msk [vmem:[%s3 + $0x14] sm:$0xf] %vm302, %v275
  %309 = vst.msk [vmem:[%s3 + $0x18] sm:$0xf] %vm302, %v276
  %310 = vst.msk [vmem:[%s3 + $0x1c] sm:$0xf] %vm302, %v277
  %311 = vst.msk [vmem:[%s3 + $0x20] sm:$0xf] %vm302, %v278
  %312 = vst.msk [vmem:[%s3 + $0x24] sm:$0xf] %vm302, %v279
  %313 = vst.msk [vmem:[%s3 + $0x28] sm:$0xf] %vm302, %v280
  %314 = vst.msk [vmem:[%s3 + $0x2c] sm:$0xf] %vm302, %v281
  %315 = vst.msk [vmem:[%s3 + $0x30] sm:$0xf] %vm302, %v282
  %316 = vst.msk [vmem:[%s3 + $0x34] sm:$0xf] %vm302, %v283
  %317 = vst.msk [vmem:[%s3 + $0x38] sm:$0xf] %vm302, %v284
  %318 = vst.msk [vmem:[%s3 + $0x3c] sm:$0xf] %vm302, %v285
  // Predicated region
  $region14: #{vqa_forward.2} parent=0 // pred_check
    _
  $region15: #{vqa_forward.2} parent=0 // pred_check_branch
    %320 = sbr.rel (0) target = $region17
  $region16: #{vqa_forward.2} parent=0 // pred_region
    _
  $region17: #{vqa_forward.2} parent=0 // pred_fallthru
    _
  // Predicated region
  $region18: #{vqa_forward.2} parent=0 // pred_check
    _
  $region19: #{vqa_forward.2} parent=0 // pred_check_branch
    %322 = sbr.rel (0) target = $region21
  $region20: #{vqa_forward.2} parent=0 // pred_region
    _
  $region21: #{vqa_forward.2} parent=0 // pred_fallthru
    _

// kernel: vqa_forward.3
$region0: #{vqa_forward.3}
  #allocation0 [shape = 'u32[]', space=smem, size = 0x4, offset = 0x4, fixed_abs, tag = 'smem constant byte address 0x4 - core index']
  #allocation1 [shape = 'u32[144,128]{1,0:T(1,128)}', space=vmem, size = 0x12000, scoped, tag = 'internal scratch']
  %s0 = inlined_call_operand.smem [shape: u32[39], index: -1, kind: input, shape index: {}]
  %s1 = sld [smem:[%s0]]
  %s2 = scalar_lea.smem %s0, 1
  %s3 = sld [smem:[%s2]]
  %s4 = scalar_lea.smem %s0, 2
  %s5 = sld [smem:[%s4]]
  %s6 = scalar_lea.smem %s0, 3
  %s7 = sld [smem:[%s6]]
  %s8 = scalar_lea.smem %s0, 4
  %s9 = sld [smem:[%s8]]
  %s10 = scalar_lea.smem %s0, 5
  %s11 = sld [smem:[%s10]]
  %s12 = scalar_lea.smem %s0, 6
  %s13 = sld [smem:[%s12]]
  %s14 = scalar_lea.smem %s0, 7
  %s15 = sld [smem:[%s14]]
  %s16 = scalar_lea.smem %s0, 8
  %s17 = sld [smem:[%s16]]
  %s18 = scalar_lea.smem %s0, 9
  %s19 = sld [smem:[%s18]]
  %s20 = scalar_lea.smem %s0, 10
  %s21 = sld [smem:[%s20]]
  %s22 = scalar_lea.smem %s0, 11
  %s23 = sld [smem:[%s22]]
  %s24 = scalar_lea.smem %s0, 12
  %s25 = sld [smem:[%s24]]
  %s26 = scalar_lea.smem %s0, 13
  %s27 = sld [smem:[%s26]]
  %s28 = scalar_lea.smem %s0, 14
  %s29 = sld [smem:[%s28]]
  %s30 = scalar_lea.smem %s0, 15
  %s31 = sld [smem:[%s30]]
  %s32 = scalar_lea.smem %s0, 16
  %s33 = sld [smem:[%s32]]
  %s34 = scalar_lea.smem %s0, 17
  %s35 = sld [smem:[%s34]]
  %s36 = scalar_lea.smem %s0, 18
  %s37 = sld [smem:[%s36]]
  %s38 = scalar_lea.smem %s0, 19
  %s39 = sld [smem:[%s38]]
  %s40 = scalar_lea.smem %s0, 20
  %s41 = sld [smem:[%s40]]
  %s42 = scalar_lea.smem %s0, 21
  %s43 = sld [smem:[%s42]]
  %s44 = scalar_lea.smem %s0, 22
  %s45 = sld [smem:[%s44]]
  %s46 = scalar_lea.smem %s0, 23
  %s47 = sld [smem:[%s46]]
  %s48 = scalar_lea.smem %s0, 24
  %s49 = sld [smem:[%s48]]
  %s50 = scalar_lea.smem %s0, 25
  %s51 = sld [smem:[%s50]]
  %s52 = scalar_lea.smem %s0, 26
  %s53 = sld [smem:[%s52]]
  %s54 = scalar_lea.smem %s0, 27
  %s55 = sld [smem:[%s54]]
  %s56 = scalar_lea.smem %s0, 28
  %s57 = sld [smem:[%s56]]
  %s58 = scalar_lea.smem %s0, 29
  %s59 = sld [smem:[%s58]]
  %s60 = scalar_lea.smem %s0, 30
  %s61 = sld [smem:[%s60]]
  %s62 = scalar_lea.smem %s0, 31
  %s63 = sld [smem:[%s62]]
  %s64 = scalar_lea.smem %s0, 32
  %s65 = sld [smem:[%s64]]
  %s66 = scalar_lea.smem %s0, 33
  %s67 = sld [smem:[%s66]]
  %s68 = scalar_lea.smem %s0, 34
  %s69 = sld [smem:[%s68]]
  %s70 = scalar_lea.smem %s0, 35
  %s71 = sld [smem:[%s70]]
  %s72 = scalar_lea.smem %s0, 36
  %s73 = sld [smem:[%s72]]
  %s74 = scalar_lea.smem %s0, 37
  %s75 = sld [smem:[%s74]]
  %s76 = scalar_lea.smem %s0, 38
  %s77 = sld [smem:[%s76]]
  %s78 = sld [smem:[#allocation0]]
  $region162: #{vqa_forward.3} parent=0
    _
  %s80 = ssub.s32 1, %s78
  %s81 = scalar_select 0, %s80, %s78
  $region1: #{vqa_forward.3} parent=0
    #allocation2 [shape = 'u8[1024]{0}', space=vmem, size = 0x400, scoped, tag = 'output window, operand 0, single buffered']
    #allocation3 [shape = 's32[1]{0}', space=sflag, size = 0x4, scoped, tag = 'scoped memory for vqa_forward.3']
    %82 = vsyncpa [#allocation3], 0
    // Predicated region
    $region2: #{vqa_forward.3} parent=1 // pred_check
      _
    $region3: #{vqa_forward.3} parent=1 // pred_check_branch
      %84 = sbr.rel (0) target = $region5
    $region4: #{vqa_forward.3} parent=1 // pred_region
      _
    $region5: #{vqa_forward.3} parent=1 // pred_fallthru
      _
    // Predicated region
    $region6: #{vqa_forward.3} parent=1 // pred_check
      _
    $region7: #{vqa_forward.3} parent=1 // pred_check_branch
      %86 = sbr.rel (0) target = $region9
    $region8: #{vqa_forward.3} parent=1 // pred_region
      _
    $region9: #{vqa_forward.3} parent=1 // pred_fallthru
      _
    // Predicated region
    $region10: #{vqa_forward.3} parent=1 // pred_check
      _
    $region11: #{vqa_forward.3} parent=1 // pred_check_branch
      %88 = sbr.rel (0) target = $region13
    $region12: #{vqa_forward.3} parent=1 // pred_region
      _
    $region13: #{vqa_forward.3} parent=1 // pred_fallthru
      _
    // Predicated region
    $region14: #{vqa_forward.3} parent=1 // pred_check
      _
    $region15: #{vqa_forward.3} parent=1 // pred_check_branch
      %90 = sbr.rel (0) target = $region17
    $region16: #{vqa_forward.3} parent=1 // pred_region
      _
    $region17: #{vqa_forward.3} parent=1 // pred_fallthru
      _
    // Predicated region
    $region18: #{vqa_forward.3} parent=1 // pred_check
      _
    $region19: #{vqa_forward.3} parent=1 // pred_check_branch
      %92 = sbr.rel (0) target = $region21
    $region20: #{vqa_forward.3} parent=1 // pred_region
      _
    $region21: #{vqa_forward.3} parent=1 // pred_fallthru
      _
    // Predicated region
    $region22: #{vqa_forward.3} parent=1 // pred_check
      _
    $region23: #{vqa_forward.3} parent=1 // pred_check_branch
      %94 = sbr.rel (0) target = $region25
    $region24: #{vqa_forward.3} parent=1 // pred_region
      _
    $region25: #{vqa_forward.3} parent=1 // pred_fallthru
      _
    // Predicated region
    $region26: #{vqa_forward.3} parent=1 // pred_check
      _
    $region27: #{vqa_forward.3} parent=1 // pred_check_branch
      %96 = sbr.rel (0) target = $region29
    $region28: #{vqa_forward.3} parent=1 // pred_region
      _
    $region29: #{vqa_forward.3} parent=1 // pred_fallthru
      _
    // Predicated region
    $region30: #{vqa_forward.3} parent=1 // pred_check
      _
    $region31: #{vqa_forward.3} parent=1 // pred_check_branch
      %98 = sbr.rel (0) target = $region33
    $region32: #{vqa_forward.3} parent=1 // pred_region
      _
    $region33: #{vqa_forward.3} parent=1 // pred_fallthru
      _
    // Predicated region
    $region34: #{vqa_forward.3} parent=1 // pred_check
      _
    $region35: #{vqa_forward.3} parent=1 // pred_check_branch
      %100 = sbr.rel (0) target = $region37
    $region36: #{vqa_forward.3} parent=1 // pred_region
      _
    $region37: #{vqa_forward.3} parent=1 // pred_fallthru
      _
    // Predicated region
    $region38: #{vqa_forward.3} parent=1 // pred_check
      _
    $region39: #{vqa_forward.3} parent=1 // pred_check_branch
      %102 = sbr.rel (0) target = $region41
    $region40: #{vqa_forward.3} parent=1 // pred_region
      _
    $region41: #{vqa_forward.3} parent=1 // pred_fallthru
      _
    // Predicated region
    $region42: #{vqa_forward.3} parent=1 // pred_check
      _
    $region43: #{vqa_forward.3} parent=1 // pred_check_branch
      %104 = sbr.rel (0) target = $region45
    $region44: #{vqa_forward.3} parent=1 // pred_region
      _
    $region45: #{vqa_forward.3} parent=1 // pred_fallthru
      _
    // Predicated region
    $region46: #{vqa_forward.3} parent=1 // pred_check
      _
    $region47: #{vqa_forward.3} parent=1 // pred_check_branch
      %106 = sbr.rel (0) target = $region49
    $region48: #{vqa_forward.3} parent=1 // pred_region
      _
    $region49: #{vqa_forward.3} parent=1 // pred_fallthru
      _
    // Predicated region
    $region50: #{vqa_forward.3} parent=1 // pred_check
      _
    $region51: #{vqa_forward.3} parent=1 // pred_check_branch
      %108 = sbr.rel (0) target = $region53
    $region52: #{vqa_forward.3} parent=1 // pred_region
      _
    $region53: #{vqa_forward.3} parent=1 // pred_fallthru
      _
    // Predicated region
    $region54: #{vqa_forward.3} parent=1 // pred_check
      _
    $region55: #{vqa_forward.3} parent=1 // pred_check_branch
      %110 = sbr.rel (0) target = $region57
    $region56: #{vqa_forward.3} parent=1 // pred_region
      _
    $region57: #{vqa_forward.3} parent=1 // pred_fallthru
      _
    // Predicated region
    $region58: #{vqa_forward.3} parent=1 // pred_check
      _
    $region59: #{vqa_forward.3} parent=1 // pred_check_branch
      %112 = sbr.rel (0) target = $region61
    $region60: #{vqa_forward.3} parent=1 // pred_region
      _
    $region61: #{vqa_forward.3} parent=1 // pred_fallthru
      _
    // Predicated region
    $region62: #{vqa_forward.3} parent=1 // pred_check
      _
    $region63: #{vqa_forward.3} parent=1 // pred_check_branch
      %114 = sbr.rel (0) target = $region65
    $region64: #{vqa_forward.3} parent=1 // pred_region
      _
    $region65: #{vqa_forward.3} parent=1 // pred_fallthru
      _
    // Predicated region
    $region66: #{vqa_forward.3} parent=1 // pred_check
      _
    $region67: #{vqa_forward.3} parent=1 // pred_check_branch
      %116 = sbr.rel (0) target = $region69
    $region68: #{vqa_forward.3} parent=1 // pred_region
      _
    $region69: #{vqa_forward.3} parent=1 // pred_fallthru
      _
    // Predicated region
    $region70: #{vqa_forward.3} parent=1 // pred_check
      _
    $region71: #{vqa_forward.3} parent=1 // pred_check_branch
      %118 = sbr.rel (0) target = $region73
    $region72: #{vqa_forward.3} parent=1 // pred_region
      _
    $region73: #{vqa_forward.3} parent=1 // pred_fallthru
      _
    // Predicated region
    $region74: #{vqa_forward.3} parent=1 // pred_check
      _
    $region75: #{vqa_forward.3} parent=1 // pred_check_branch
      %120 = sbr.rel (0) target = $region77
    $region76: #{vqa_forward.3} parent=1 // pred_region
      _
    $region77: #{vqa_forward.3} parent=1 // pred_fallthru
      _
    // Predicated region
    $region78: #{vqa_forward.3} parent=1 // pred_check
      _
    $region79: #{vqa_forward.3} parent=1 // pred_check_branch
      %122 = sbr.rel (0) target = $region81
    $region80: #{vqa_forward.3} parent=1 // pred_region
      _
    $region81: #{vqa_forward.3} parent=1 // pred_fallthru
      _
    // Predicated region
    $region82: #{vqa_forward.3} parent=1 // pred_check
      _
    $region83: #{vqa_forward.3} parent=1 // pred_check_branch
      %124 = sbr.rel (0) target = $region85
    $region84: #{vqa_forward.3} parent=1 // pred_region
      _
    $region85: #{vqa_forward.3} parent=1 // pred_fallthru
      _
    // Predicated region
    $region86: #{vqa_forward.3} parent=1 // pred_check
      _
    $region87: #{vqa_forward.3} parent=1 // pred_check_branch
      %126 = sbr.rel (0) target = $region89
    $region88: #{vqa_forward.3} parent=1 // pred_region
      _
    $region89: #{vqa_forward.3} parent=1 // pred_fallthru
      _
    // Predicated region
    $region90: #{vqa_forward.3} parent=1 // pred_check
      _
    $region91: #{vqa_forward.3} parent=1 // pred_check_branch
      %128 = sbr.rel (0) target = $region93
    $region92: #{vqa_forward.3} parent=1 // pred_region
      _
    $region93: #{vqa_forward.3} parent=1 // pred_fallthru
      _
    // Predicated region
    $region94: #{vqa_forward.3} parent=1 // pred_check
      _
    $region95: #{vqa_forward.3} parent=1 // pred_check_branch
      %130 = sbr.rel (0) target = $region97
    $region96: #{vqa_forward.3} parent=1 // pred_region
      _
    $region97: #{vqa_forward.3} parent=1 // pred_fallthru
      _
    // Predicated region
    $region98: #{vqa_forward.3} parent=1 // pred_check
      _
    $region99: #{vqa_forward.3} parent=1 // pred_check_branch
      %132 = sbr.rel (0) target = $region101
    $region100: #{vqa_forward.3} parent=1 // pred_region
      _
    $region101: #{vqa_forward.3} parent=1 // pred_fallthru
      _
    // Predicated region
    $region102: #{vqa_forward.3} parent=1 // pred_check
      _
    $region103: #{vqa_forward.3} parent=1 // pred_check_branch
      %134 = sbr.rel (0) target = $region105
    $region104: #{vqa_forward.3} parent=1 // pred_region
      _
    $region105: #{vqa_forward.3} parent=1 // pred_fallthru
      _
    // Predicated region
    $region106: #{vqa_forward.3} parent=1 // pred_check
      _
    $region107: #{vqa_forward.3} parent=1 // pred_check_branch
      %136 = sbr.rel (0) target = $region109
    $region108: #{vqa_forward.3} parent=1 // pred_region
      _
    $region109: #{vqa_forward.3} parent=1 // pred_fallthru
      _
    // Predicated region
    $region110: #{vqa_forward.3} parent=1 // pred_check
      _
    $region111: #{vqa_forward.3} parent=1 // pred_check_branch
      %138 = sbr.rel (0) target = $region113
    $region112: #{vqa_forward.3} parent=1 // pred_region
      _
    $region113: #{vqa_forward.3} parent=1 // pred_fallthru
      _
    // Predicated region
    $region114: #{vqa_forward.3} parent=1 // pred_check
      _
    $region115: #{vqa_forward.3} parent=1 // pred_check_branch
      %140 = sbr.rel (0) target = $region117
    $region116: #{vqa_forward.3} parent=1 // pred_region
      _
    $region117: #{vqa_forward.3} parent=1 // pred_fallthru
      _
    // Predicated region
    $region118: #{vqa_forward.3} parent=1 // pred_check
      _
    $region119: #{vqa_forward.3} parent=1 // pred_check_branch
      %142 = sbr.rel (0) target = $region121
    $region120: #{vqa_forward.3} parent=1 // pred_region
      _
    $region121: #{vqa_forward.3} parent=1 // pred_fallthru
      _
    // Predicated region
    $region122: #{vqa_forward.3} parent=1 // pred_check
      _
    $region123: #{vqa_forward.3} parent=1 // pred_check_branch
      %144 = sbr.rel (0) target = $region125
    $region124: #{vqa_forward.3} parent=1 // pred_region
      _
    $region125: #{vqa_forward.3} parent=1 // pred_fallthru
      _
    // Predicated region
    $region126: #{vqa_forward.3} parent=1 // pred_check
      _
    $region127: #{vqa_forward.3} parent=1 // pred_check_branch
      %146 = sbr.rel (0) target = $region129
    $region128: #{vqa_forward.3} parent=1 // pred_region
      _
    $region129: #{vqa_forward.3} parent=1 // pred_fallthru
      _
    // Predicated region
    $region130: #{vqa_forward.3} parent=1 // pred_check
      _
    $region131: #{vqa_forward.3} parent=1 // pred_check_branch
      %148 = sbr.rel (0) target = $region133
    $region132: #{vqa_forward.3} parent=1 // pred_region
      _
    $region133: #{vqa_forward.3} parent=1 // pred_fallthru
      _
    // Predicated region
    $region134: #{vqa_forward.3} parent=1 // pred_check
      _
    $region135: #{vqa_forward.3} parent=1 // pred_check_branch
      %150 = sbr.rel (0) target = $region137
    $region136: #{vqa_forward.3} parent=1 // pred_region
      _
    $region137: #{vqa_forward.3} parent=1 // pred_fallthru
      _
    // Predicated region
    $region138: #{vqa_forward.3} parent=1 // pred_check
      _
    $region139: #{vqa_forward.3} parent=1 // pred_check_branch
      %152 = sbr.rel (0) target = $region141
    $region140: #{vqa_forward.3} parent=1 // pred_region
      _
    $region141: #{vqa_forward.3} parent=1 // pred_fallthru
      _
    // Predicated region
    $region142: #{vqa_forward.3} parent=1 // pred_check
      _
    $region143: #{vqa_forward.3} parent=1 // pred_check_branch
      %154 = sbr.rel (0) target = $region145
    $region144: #{vqa_forward.3} parent=1 // pred_region
      _
    $region145: #{vqa_forward.3} parent=1 // pred_fallthru
      _
    // Predicated region
    $region146: #{vqa_forward.3} parent=1 // pred_check
      _
    $region147: #{vqa_forward.3} parent=1 // pred_check_branch
      %156 = sbr.rel (0) target = $region149
    $region148: #{vqa_forward.3} parent=1 // pred_region
      _
    $region149: #{vqa_forward.3} parent=1 // pred_fallthru
      _
    // Predicated region
    $region150: #{vqa_forward.3} parent=1 // pred_check
      _
    $region151: #{vqa_forward.3} parent=1 // pred_check_branch
      %158 = sbr.rel (0) target = $region153
    $region152: #{vqa_forward.3} parent=1 // pred_region
      _
    $region153: #{vqa_forward.3} parent=1 // pred_fallthru
      _
    %v160 = vld [vmem:[%s1] sm:$0xff]
    %v161 = vld [vmem:[%s1 + $0x8] sm:$0xff]
    %v162 = vld [vmem:[%s1 + $0x10] sm:$0xff]
    %v163 = vld [vmem:[%s1 + $0x18] sm:$0xff]
    %v164 = vld [vmem:[%s3] sm:$0xf]
    %v165 = vld [vmem:[%s3 + $0x4] sm:$0xf]
    %v166 = vld [vmem:[%s3 + $0x8] sm:$0xf]
    %v167 = vld [vmem:[%s3 + $0xc] sm:$0xf]
    %v168 = vld [vmem:[%s3 + $0x10] sm:$0xf]
    %v169 = vld [vmem:[%s3 + $0x14] sm:$0xf]
    %v170 = vld [vmem:[%s3 + $0x18] sm:$0xf]
    %v171 = vld [vmem:[%s3 + $0x1c] sm:$0xf]
    %v172 = vld [vmem:[%s3 + $0x20] sm:$0xf]
    %v173 = vld [vmem:[%s3 + $0x24] sm:$0xf]
    %v174 = vld [vmem:[%s3 + $0x28] sm:$0xf]
    %v175 = vld [vmem:[%s3 + $0x2c] sm:$0xf]
    %v176 = vld [vmem:[%s3 + $0x30] sm:$0xf]
    %v177 = vld [vmem:[%s3 + $0x34] sm:$0xf]
    %v178 = vld [vmem:[%s3 + $0x38] sm:$0xf]
    %v179 = vld [vmem:[%s3 + $0x3c] sm:$0xf]
    %v180 = vld [vmem:[%s3 + $0x40] sm:$0xf]
    %v181 = vld [vmem:[%s3 + $0x44] sm:$0xf]
    %v182 = vld [vmem:[%s5] sm:$0x1]
    %v184 = vlaneseq
    %v185 = vshrl.u32 %v184, 7
    %v186 = vsub.s32 0, %v185
    %v187 = vrot.slane %v182, %v186
    %v193 = vunpack.c.l.b16 %v160
    %v194 = vunpack.c.h.b16 %v160
    %v195 = vunpack.c.l.b16 %v161
    %v196 = vunpack.c.h.b16 %v161
    %v197 = vunpack.c.l.b16 %v162
    %v198 = vunpack.c.h.b16 %v162
    %v199 = vunpack.c.l.b16 %v163
    %v200 = vunpack.c.h.b16 %v163
    %v201 = vpack.c.b16 %v195, %v193
    %v202 = vpack.c.b16 %v196, %v194
    %v203 = vpack.c.b16 %v199, %v197
    %v204 = vpack.c.b16 %v200, %v198
    %v225 = vunpack.c.l.b16 %v164
    %v226 = vunpack.c.l.b16 %v165
    %v227 = vunpack.c.l.b16 %v166
    %v228 = vunpack.c.l.b16 %v167
    %v229 = vunpack.c.l.b16 %v168
    %v230 = vunpack.c.l.b16 %v169
    %v231 = vunpack.c.l.b16 %v170
    %v232 = vunpack.c.l.b16 %v171
    %v233 = vunpack.c.l.b16 %v172
    %v234 = vunpack.c.l.b16 %v173
    %v235 = vunpack.c.l.b16 %v174
    %v236 = vunpack.c.l.b16 %v175
    %v237 = vunpack.c.l.b16 %v176
    %v238 = vunpack.c.l.b16 %v177
    %v239 = vunpack.c.l.b16 %v178
    %v240 = vunpack.c.l.b16 %v179
    %v241 = vunpack.c.l.b16 %v180
    %v242 = vunpack.c.l.b16 %v181
    %v243 = vpack.c.b16 %v226, %v225
    %v244 = vpack.c.b16 %v228, %v227
    %v245 = vpack.c.b16 %v230, %v229
    %v246 = vpack.c.b16 %v232, %v231
    %v247 = vpack.c.b16 %v234, %v233
    %v248 = vpack.c.b16 %v236, %v235
    %v249 = vpack.c.b16 %v238, %v237
    %v250 = vpack.c.b16 %v240, %v239
    %v251 = vpack.c.b16 %v242, %v241
    %vm261 = vcmask 130048
    %v263 = vsel %vm261, %v202, 0
    %v266 = vsel %vm261, %v204, 0
    %268 = vmatprep.subr.bf16.mxu0 0
    %269 = vmatpush1.bf16.msra.mxu0 %v243
    %270 = vmatprep.subr.bf16.mxu0 0
    %271 = vmatpush1.bf16.msra.mxu0 %v244
    %272 = vmatprep.subr.bf16.mxu0 0
    %273 = vmatpush1.bf16.msra.mxu0 %v245
    %274 = vmatprep.subr.bf16.mxu0 0
    %275 = vmatpush1.bf16.msra.mxu0 %v246
    %276 = vmatprep.subr.bf16.mxu0 0
    %277 = vmatpush1.bf16.msra.mxu0 %v247
    %278 = vmatprep.subr.bf16.mxu0 0
    %279 = vmatpush1.bf16.msra.mxu0 %v248
    %280 = vmatprep.subr.bf16.mxu0 0
    %281 = vmatpush1.bf16.msra.mxu0 %v249
    %282 = vmatprep.subr.bf16.mxu0 0
    %283 = vmatpush1.bf16.msra.mxu0 %v250
    %284 = vmatprep.subr.bf16.mxu0 0
    %285 = vmatpush1.bf16.msra.mxu0 %v251
    %286 = vmatprep.subr.bf16.mxu0 0
    %287 = vmatpush1.bf16.msra.mxu0 0
    %288 = vmatprep.subr.bf16.mxu0 0
    %289 = vmatpush1.bf16.msra.mxu0 0
    %290 = vmatprep.subr.bf16.mxu0 0
    %291 = vmatpush1.bf16.msra.mxu0 0
    %292 = vmatprep.subr.bf16.mxu0 0
    %293 = vmatpush1.bf16.msra.mxu0 0
    %294 = vmatprep.subr.bf16.mxu0 0
    %295 = vmatpush1.bf16.msra.mxu0 0
    %296 = vmatprep.subr.bf16.mxu0 0
    %297 = vmatpush1.bf16.msra.mxu0 0
    %298 = vmatprep.subr.bf16.mxu0 0
    %299 = vmatpush1.bf16.msra.mxu0 0
    %300 = vmatprep.mubr.bf16.mxu0 %v263
    %301 = vmatmul.mubr.bf16.gmra.mrb[0].mxu0 %v201
    %v302 = vpop.f32.mrb[0].mxu0
    %v303 = vadd.f32 %v187, %v302
    %v304 = vpop.f32.mrb[0].mxu0
    %v305 = vpop.f32.mrb[0].mxu0
    %v306 = vadd.f32 %v187, %v305
    %v307 = vpop.f32.mrb[0].mxu0
    %308 = vmatprep.mubr.bf16.mxu0 %v266
    %309 = vmatmul.mubr.bf16.gmra.mrb[0].mxu0 %v203
    %v310 = vpop.f32.mrb[0].mxu0
    %v311 = vadd.f32 %v187, %v310
    %v312 = vpop.f32.mrb[0].mxu0
    %v313 = vpop.f32.mrb[0].mxu0
    %v314 = vadd.f32 %v187, %v313
    %v315 = vpop.f32.mrb[0].mxu0
    %316 = vdwg.mxu0
    %v317 = vmax.f32 %v303, 0.0
    %v318 = vmax.f32 %v306, 0.0
    %v319 = vmax.f32 %v311, 0.0
    %v320 = vmax.f32 %v314, 0.0
    %v321 = vpack.c.bf16 %v318, %v317
    %v322 = vpack.c.bf16 %v320, %v319
    %v323 = vld [vmem:[%s7] sm:$0xf]
    %v324 = vld [vmem:[%s7 + $0x4] sm:$0xf]
    %v325 = vld [vmem:[%s7 + $0x8] sm:$0xf]
    %v326 = vld [vmem:[%s7 + $0xc] sm:$0xf]
    %v327 = vld [vmem:[%s7 + $0x10] sm:$0xf]
    %v328 = vld [vmem:[%s7 + $0x14] sm:$0xf]
    %v329 = vld [vmem:[%s7 + $0x18] sm:$0xf]
    %v330 = vld [vmem:[%s7 + $0x1c] sm:$0xf]
    %v331 = vld [vmem:[%s9] sm:$0x1]
    %v333 = vlaneseq
    %v334 = vshrl.u32 %v333, 7
    %v335 = vsub.s32 0, %v334
    %v336 = vrot.slane %v331, %v335
    %v346 = vunpack.c.l.b16 %v323
    %v347 = vunpack.c.l.b16 %v324
    %v348 = vunpack.c.l.b16 %v325
    %v349 = vunpack.c.l.b16 %v326
    %v350 = vunpack.c.l.b16 %v327
    %v351 = vunpack.c.l.b16 %v328
    %v352 = vunpack.c.l.b16 %v329
    %v353 = vunpack.c.l.b16 %v330
    %v354 = vpack.c.b16 %v347, %v346
    %v355 = vpack.c.b16 %v349, %v348
    %v356 = vpack.c.b16 %v351, %v350
    %v357 = vpack.c.b16 %v353, %v352
    %vm362 = vcmask 523264
    %v364 = vsel %vm362, %v321, 0
    %v367 = vsel %vm362, %v322, 0
    %369 = vmatprep.subr.bf16.mxu0 0
    %370 = vmatpush1.bf16.msra.mxu0 %v354
    %371 = vmatprep.subr.bf16.mxu0 0
    %372 = vmatpush1.bf16.msra.mxu0 %v355
    %373 = vmatprep.subr.bf16.mxu0 0
    %374 = vmatpush1.bf16.msra.mxu0 %v356
    %375 = vmatprep.subr.bf16.mxu0 0
    %376 = vmatpush1.bf16.msra.mxu0 %v357
    %377 = vmatprep.subr.bf16.mxu0 0
    %378 = vmatpush1.bf16.msra.mxu0 0
    %379 = vmatprep.subr.bf16.mxu0 0
    %380 = vmatpush1.bf16.msra.mxu0 0
    %381 = vmatprep.subr.bf16.mxu0 0
    %382 = vmatpush1.bf16.msra.mxu0 0
    %383 = vmatprep.subr.bf16.mxu0 0
    %384 = vmatpush1.bf16.msra.mxu0 0
    %385 = vmatprep.subr.bf16.mxu0 0
    %386 = vmatpush1.bf16.msra.mxu0 0
    %387 = vmatprep.subr.bf16.mxu0 0
    %388 = vmatpush1.bf16.msra.mxu0 0
    %389 = vmatprep.subr.bf16.mxu0 0
    %390 = vmatpush1.bf16.msra.mxu0 0
    %391 = vmatprep.subr.bf16.mxu0 0
    %392 = vmatpush1.bf16.msra.mxu0 0
    %393 = vmatprep.subr.bf16.mxu0 0
    %394 = vmatpush1.bf16.msra.mxu0 0
    %395 = vmatprep.subr.bf16.mxu0 0
    %396 = vmatpush1.bf16.msra.mxu0 0
    %397 = vmatprep.subr.bf16.mxu0 0
    %398 = vmatpush1.bf16.msra.mxu0 0
    %399 = vmatprep.subr.bf16.mxu0 0
    %400 = vmatpush1.bf16.msra.mxu0 0
    %401 = vmatprep.mubr.bf16.mxu0 0
    %402 = vmatmul.mubr.bf16.gmra.mrb[0].mxu0 %v364
    %v403 = vpop.f32.mrb[0].mxu0
    %v404 = vadd.f32 %v336, %v403
    %v405 = vpop.f32.mrb[0].mxu0
    %v406 = vpop.f32.mrb[0].mxu0
    %v407 = vadd.f32 %v336, %v406
    %v408 = vpop.f32.mrb[0].mxu0
    %409 = vmatprep.mubr.bf16.mxu0 0
    %410 = vmatmul.mubr.bf16.gmra.mrb[0].mxu0 %v367
    %v411 = vpop.f32.mrb[0].mxu0
    %v412 = vadd.f32 %v336, %v411
    %v413 = vpop.f32.mrb[0].mxu0
    %v414 = vpop.f32.mrb[0].mxu0
    %v415 = vadd.f32 %v336, %v414
    %v416 = vpop.f32.mrb[0].mxu0
    %417 = vdwg.mxu0
    %v418 = vld [vmem:[%s13] sm:$0x1]
    %v420 = vlaneseq
    %v421 = vshrl.u32 %v420, 7
    %v422 = vsub.s32 0, %v421
    %v423 = vrot.slane %v418, %v422
    %v425 = vadd.f32 %v404, %v423
    %v426 = vadd.f32 %v407, %v423
    %v427 = vadd.f32 %v412, %v423
    %v428 = vadd.f32 %v415, %v423
    %v429 = vld [vmem:[%s11] sm:$0xff]
    %v430 = vld [vmem:[%s11 + $0x8] sm:$0xff]
    %v431 = vld [vmem:[%s15] sm:$0x1]
    %v432 = vld [vmem:[%s17] sm:$0x1]
    %v433 = vsel %vm362, %v429, 0.0
    %434 = vadd.xlane.f32.xlu0 %v433
    %v435 = vpop.xlane.xlu0 %434
    %v436 = vsel %vm362, %v425, 0.0
    %437 = vadd.xlane.f32.xlu0 %v436
    %v438 = vpop.xlane.xlu0 %437
    %v439 = vsel %vm362, %v426, 0.0
    %440 = vadd.xlane.f32.xlu0 %v439
    %v441 = vpop.xlane.xlu0 %440
    %v442 = vsel %vm362, %v430, 0.0
    %443 = vadd.xlane.f32.xlu0 %v442
    %v444 = vpop.xlane.xlu0 %443
    %v445 = vsel %vm362, %v427, 0.0
    %446 = vadd.xlane.f32.xlu0 %v445
    %v447 = vpop.xlane.xlu0 %446
    %v448 = vsel %vm362, %v428, 0.0
    %449 = vadd.xlane.f32.xlu0 %v448
    %v450 = vpop.xlane.xlu0 %449
    %v451 = vrcp.pop 64.0
    %v452 = vmul.f32 %v435, %v451
    %v453 = vmul.f32 %v438, %v451
    %v454 = vmul.f32 %v441, %v451
    %v455 = vmul.f32 %v444, %v451
    %v456 = vmul.f32 %v447, %v451
    %v457 = vmul.f32 %v450, %v451
    %v458 = vsub.f32 %v429, %v452
    %v459 = vsub.f32 %v425, %v453
    %v460 = vsub.f32 %v426, %v454
    %v461 = vsub.f32 %v430, %v455
    %v462 = vsub.f32 %v427, %v456
    %v463 = vsub.f32 %v428, %v457
    %v464 = vmul.f32 %v458, %v458
    %v465 = vmul.f32 %v459, %v459
    %v466 = vmul.f32 %v460, %v460
    %v467 = vmul.f32 %v461, %v461
    %v468 = vmul.f32 %v462, %v462
    %v469 = vmul.f32 %v463, %v463
    %v470 = vsel %vm362, %v464, 0.0
    %471 = vadd.xlane.f32.xlu0 %v470
    %v472 = vpop.xlane.xlu0 %471
    %v473 = vsel %vm362, %v465, 0.0
    %474 = vadd.xlane.f32.xlu0 %v473
    %v475 = vpop.xlane.xlu0 %474
    %v476 = vsel %vm362, %v466, 0.0
    %477 = vadd.xlane.f32.xlu0 %v476
    %v478 = vpop.xlane.xlu0 %477
    %v479 = vsel %vm362, %v467, 0.0
    %480 = vadd.xlane.f32.xlu0 %v479
    %v481 = vpop.xlane.xlu0 %480
    %v482 = vsel %vm362, %v468, 0.0
    %483 = vadd.xlane.f32.xlu0 %v482
    %v484 = vpop.xlane.xlu0 %483
    %v485 = vsel %vm362, %v469, 0.0
    %486 = vadd.xlane.f32.xlu0 %v485
    %v487 = vpop.xlane.xlu0 %486
    %v488 = vmul.f32 %v472, %v451
    %v489 = vmul.f32 %v475, %v451
    %v490 = vmul.f32 %v478, %v451
    %v491 = vmul.f32 %v481, %v451
    %v492 = vmul.f32 %v484, %v451
    %v493 = vmul.f32 %v487, %v451
    %v494 = vadd.f32 %v488, 1e-12
    %v495 = vadd.f32 %v489, 1e-12
    %v496 = vadd.f32 %v490, 1e-12
    %v497 = vadd.f32 %v491, 1e-12
    %v498 = vadd.f32 %v492, 1e-12
    %v499 = vadd.f32 %v493, 1e-12
    %v500 = vrsqrt.pop %v494
    %v501 = vrsqrt.pop %v495
    %v502 = vrsqrt.pop %v496
    %v503 = vrsqrt.pop %v497
    %v504 = vrsqrt.pop %v498
    %v505 = vrsqrt.pop %v499
    %v506 = vmul.f32 %v458, %v500
    %v507 = vmul.f32 %v459, %v501
    %v508 = vmul.f32 %v460, %v502
    %v509 = vmul.f32 %v461, %v503
    %v510 = vmul.f32 %v462, %v504
    %v511 = vmul.f32 %v463, %v505
    %v513 = vlaneseq
    %v514 = vshrl.u32 %v513, 7
    %v515 = vsub.s32 0, %v514
    %v516 = vrot.slane %v431, %v515
    %v518 = vmul.f32 %v506, %v516
    %v519 = vmul.f32 %v507, %v516
    %v520 = vmul.f32 %v508, %v516
    %v521 = vmul.f32 %v509, %v516
    %v522 = vmul.f32 %v510, %v516
    %v523 = vmul.f32 %v511, %v516
    %v525 = vlaneseq
    %v526 = vshrl.u32 %v525, 7
    %v527 = vsub.s32 0, %v526
    %v528 = vrot.slane %v432, %v527
    %v530 = vadd.f32 %v518, %v528
    %v531 = vadd.f32 %v519, %v528
    %v532 = vadd.f32 %v520, %v528
    %v533 = vadd.f32 %v521, %v528
    %v534 = vadd.f32 %v522, %v528
    %v535 = vadd.f32 %v523, %v528
    %v536 = vpack.c.bf16 %v531, %v530
    %v537 = vpack.c.bf16 %v533, %v532
    %v538 = vpack.c.bf16 %v535, %v534
    %v539 = vld [vmem:[%s21] sm:$0xff]
    %v540 = vld [vmem:[%s21 + $0x8] sm:$0xff]
    %v541 = vld [vmem:[%s21 + $0x10] sm:$0xff]
    %v542 = vld [vmem:[%s21 + $0x18] sm:$0xff]
    %v543 = vld [vmem:[%s21 + $0x20] sm:$0xff]
    %v544 = vld [vmem:[%s21 + $0x28] sm:$0xff]
    %v545 = vld [vmem:[%s21 + $0x30] sm:$0xff]
    %v546 = vld [vmem:[%s21 + $0x38] sm:$0xff]
    %v547 = vld [vmem:[%s23] sm:$0x3]
    %v549 = vlaneseq
    %v550 = vshrl.u32 %v549, 7
    %v551 = vsub.s32 0, %v550
    %v552 = vrot.slane %v547, %v551
    %v553 = vlaneseq
    %v554 = vshrl.u32 %v553, 7
    %v555 = vsub.s32 1, %v554
    %v556 = vrot.slane %v547, %v555
    %v567 = vunpack.c.l.b16 %v539
    %v568 = vunpack.c.h.b16 %v539
    %v569 = vunpack.c.l.b16 %v540
    %v570 = vunpack.c.h.b16 %v540
    %v571 = vunpack.c.l.b16 %v541
    %v572 = vunpack.c.h.b16 %v541
    %v573 = vunpack.c.l.b16 %v542
    %v574 = vunpack.c.h.b16 %v542
    %v575 = vunpack.c.l.b16 %v543
    %v576 = vunpack.c.h.b16 %v543
    %v577 = vunpack.c.l.b16 %v544
    %v578 = vunpack.c.h.b16 %v544
    %v579 = vunpack.c.l.b16 %v545
    %v580 = vunpack.c.h.b16 %v545
    %v581 = vunpack.c.l.b16 %v546
    %v582 = vunpack.c.h.b16 %v546
    %v583 = vpack.c.b16 %v569, %v567
    %v584 = vpack.c.b16 %v570, %v568
    %v585 = vpack.c.b16 %v573, %v571
    %v586 = vpack.c.b16 %v574, %v572
    %v587 = vpack.c.b16 %v577, %v575
    %v588 = vpack.c.b16 %v578, %v576
    %v589 = vpack.c.b16 %v581, %v579
    %v590 = vpack.c.b16 %v582, %v580
    %v600 = vsel %vm362, %v536, 0
    %v603 = vsel %vm362, %v537, 0
    %v606 = vsel %vm362, %v538, 0
    %608 = vmatprep.subr.bf16.mxu0 %v584
    %609 = vmatpush1.bf16.msra.mxu0 %v583
    %610 = vmatprep.subr.bf16.mxu0 %v586
    %611 = vmatpush1.bf16.msra.mxu0 %v585
    %612 = vmatprep.subr.bf16.mxu0 %v588
    %613 = vmatpush1.bf16.msra.mxu0 %v587
    %614 = vmatprep.subr.bf16.mxu0 %v590
    %615 = vmatpush1.bf16.msra.mxu0 %v589
    %616 = vmatprep.subr.bf16.mxu0 0
    %617 = vmatpush1.bf16.msra.mxu0 0
    %618 = vmatprep.subr.bf16.mxu0 0
    %619 = vmatpush1.bf16.msra.mxu0 0
    %620 = vmatprep.subr.bf16.mxu0 0
    %621 = vmatpush1.bf16.msra.mxu0 0
    %622 = vmatprep.subr.bf16.mxu0 0
    %623 = vmatpush1.bf16.msra.mxu0 0
    %624 = vmatprep.subr.bf16.mxu0 0
    %625 = vmatpush1.bf16.msra.mxu0 0
    %626 = vmatprep.subr.bf16.mxu0 0
    %627 = vmatpush1.bf16.msra.mxu0 0
    %628 = vmatprep.subr.bf16.mxu0 0
    %629 = vmatpush1.bf16.msra.mxu0 0
    %630 = vmatprep.subr.bf16.mxu0 0
    %631 = vmatpush1.bf16.msra.mxu0 0
    %632 = vmatprep.subr.bf16.mxu0 0
    %633 = vmatpush1.bf16.msra.mxu0 0
    %634 = vmatprep.subr.bf16.mxu0 0
    %635 = vmatpush1.bf16.msra.mxu0 0
    %636 = vmatprep.subr.bf16.mxu0 0
    %637 = vmatpush1.bf16.msra.mxu0 0
    %638 = vmatprep.subr.bf16.mxu0 0
    %639 = vmatpush1.bf16.msra.mxu0 0
    %640 = vmatprep.mubr.bf16.mxu0 0
    %641 = vmatmul.mubr.bf16.gmra.mrb[0].mxu0 %v600
    %v642 = vpop.f32.mrb[0].mxu0
    %v643 = vadd.f32 %v552, %v642
    %v644 = vpop.f32.mrb[0].mxu0
    %v645 = vadd.f32 %v556, %v644
    %v646 = vpop.f32.mrb[0].mxu0
    %v647 = vadd.f32 %v552, %v646
    %v648 = vpop.f32.mrb[0].mxu0
    %v649 = vadd.f32 %v556, %v648
    %650 = vmatprep.mubr.bf16.mxu0 0
    %651 = vmatmul.mubr.bf16.gmra.mrb[0].mxu0 %v603
    %v652 = vpop.f32.mrb[0].mxu0
    %v653 = vadd.f32 %v552, %v652
    %v654 = vpop.f32.mrb[0].mxu0
    %v655 = vadd.f32 %v556, %v654
    %v656 = vpop.f32.mrb[0].mxu0
    %v657 = vadd.f32 %v552, %v656
    %v658 = vpop.f32.mrb[0].mxu0
    %v659 = vadd.f32 %v556, %v658
    %660 = vmatprep.mubr.bf16.mxu0 0
    %661 = vmatmul.mubr.bf16.gmra.mrb[0].mxu0 %v606
    %v662 = vpop.f32.mrb[0].mxu0
    %v663 = vadd.f32 %v552, %v662
    %v664 = vpop.f32.mrb[0].mxu0
    %v665 = vadd.f32 %v556, %v664
    %v666 = vpop.f32.mrb[0].mxu0
    %v667 = vadd.f32 %v552, %v666
    %v668 = vpop.f32.mrb[0].mxu0
    %v669 = vadd.f32 %v556, %v668
    %670 = vdwg.mxu0
    %v671 = vld [vmem:[%s19] sm:$0x1]
    %675 = vrot.lane.b32.xlu0 %v643, 64
    %v676 = vpop.permute.xlu0 %675
    %677 = vrot.lane.b32.xlu0 %v647, 64
    %v678 = vpop.permute.xlu0 %677
    %679 = vrot.lane.b32.xlu0 %v653, 64
    %v680 = vpop.permute.xlu0 %679
    %v681 = vsel %vm261, %v643, 0
    %v683 = vsel %vm261, %v647, 0
    %v685 = vsel %vm261, %v653, 0
    %v687 = vsel %vm261, %v676, 0
    %v689 = vsel %vm261, %v678, 0
    %v691 = vsel %vm261, %v680, 0
    %693 = vmatprep.subr.mxu0 0.0
    %694 = vmatpush1.xpose.msra.mxu0 %v687
    %695 = vmatprep.subr.mxu0 0.0
    %696 = vmatpush1.xpose.msra.mxu0 %v689
    %697 = vmatprep.subr.mxu0 0.0
    %698 = vmatpush1.xpose.msra.mxu0 %v691
    %699 = vmatprep.subr.mxu0 0.0
    %700 = vmatpush1.xpose.msra.mxu0 0.0
    %701 = vmatprep.subr.mxu0 0.0
    %702 = vmatpush1.xpose.msra.mxu0 0.0
    %703 = vmatprep.subr.mxu0 0.0
    %704 = vmatpush1.xpose.msra.mxu0 0.0
    %705 = vmatprep.subr.mxu0 0.0
    %706 = vmatpush1.xpose.msra.mxu0 0.0
    %707 = vmatprep.subr.mxu0 0.0
    %708 = vmatpush1.xpose.msra.mxu0 0.0
    %709 = vmatprep.subr.mxu0 0.0
    %710 = vmatpush1.xpose.msra.mxu0 0.0
    %711 = vmatprep.subr.mxu0 0.0
    %712 = vmatpush1.xpose.msra.mxu0 0.0
    %713 = vmatprep.subr.mxu0 0.0
    %714 = vmatpush1.xpose.msra.mxu0 0.0
    %715 = vmatprep.subr.mxu0 0.0
    %716 = vmatpush1.xpose.msra.mxu0 0.0
    %717 = vmatprep.subr.mxu0 0.0
    %718 = vmatpush1.xpose.msra.mxu0 0.0
    %719 = vmatprep.subr.mxu0 0.0
    %720 = vmatpush1.xpose.msra.mxu0 0.0
    %721 = vmatprep.subr.mxu0 0.0
    %722 = vmatpush1.xpose.msra.mxu0 0.0
    %723 = vmatprep.subr.mxu0 0.0
    %724 = vmatpush1.xpose.msra.mxu0 0.0
    %725 = vmatprep.subr.mxu0 0.0
    %726 = vmatpush1.xpose.msra.mxu0 0.0
    %727 = vmatprep.subr.mxu0 0.0
    %728 = vmatpush1.xpose.msra.mxu0 0.0
    %729 = vmatprep.subr.mxu0 0.0
    %730 = vmatpush1.xpose.msra.mxu0 0.0
    %731 = vmatprep.subr.mxu0 0.0
    %732 = vmatpush1.xpose.msra.mxu0 0.0
    %733 = vmatprep.subr.mxu0 0.0
    %734 = vmatpush1.xpose.msra.mxu0 0.0
    %735 = vmatprep.subr.mxu0 0.0
    %736 = vmatpush1.xpose.msra.mxu0 0.0
    %737 = vmatprep.subr.mxu0 0.0
    %738 = vmatpush1.xpose.msra.mxu0 0.0
    %739 = vmatprep.subr.mxu0 0.0
    %740 = vmatpush1.xpose.msra.mxu0 0.0
    %741 = vmatprep.subr.mxu0 0.0
    %742 = vmatpush1.xpose.msra.mxu0 0.0
    %743 = vmatprep.subr.mxu0 0.0
    %744 = vmatpush1.xpose.msra.mxu0 0.0
    %745 = vmatprep.subr.mxu0 0.0
    %746 = vmatpush1.xpose.msra.mxu0 0.0
    %747 = vmatprep.subr.mxu0 0.0
    %748 = vmatpush1.xpose.msra.mxu0 0.0
    %749 = vmatprep.subr.mxu0 0.0
    %750 = vmatpush1.xpose.msra.mxu0 0.0
    %751 = vmatprep.subr.mxu0 0.0
    %752 = vmatpush1.xpose.msra.mxu0 0.0
    %753 = vmatprep.subr.mxu0 0.0
    %754 = vmatpush1.xpose.msra.mxu0 0.0
    %755 = vmatprep.subr.mxu0 0.0
    %756 = vmatpush1.xpose.msra.mxu0 0.0
    %757 = vmatprep.mubr.f32.mxu0 0.0
    %758 = vmatmul.mubr.f32.gmra.mrb[0].mxu0 %v681
    %v759 = vpop.f32.mrb[0].mxu0
    %v760 = vadd.f32 0.0, %v759
    %v761 = vpop.f32.mrb[0].mxu0
    %762 = vmatprep.mubr.f32.mxu0 0.0
    %763 = vmatmul.mubr.f32.gmra.mrb[0].mxu0 %v683
    %v764 = vpop.f32.mrb[0].mxu0
    %v765 = vadd.f32 0.0, %v764
    %v766 = vpop.f32.mrb[0].mxu0
    %767 = vmatprep.mubr.f32.mxu0 0.0
    %768 = vmatmul.mubr.f32.gmra.mrb[0].mxu0 %v685
    %v769 = vpop.f32.mrb[0].mxu0
    %v770 = vadd.f32 0.0, %v769
    %v771 = vpop.f32.mrb[0].mxu0
    %772 = vdwg.mxu0
    %v773 = vmul.f32 %v760, 0.25
    %v774 = vmul.f32 %v765, 0.25
    %v775 = vmul.f32 %v770, 0.25
    %v777 = vlaneseq
    %v778 = vshrl.u32 %v777, 7
    %v779 = vsub.s32 0, %v778
    %v780 = vrot.slane %v671, %v779
    %v782 = vadd.f32 %v773, %v780
    %v783 = vadd.f32 %v774, %v780
    %v784 = vadd.f32 %v775, %v780
    %vm785 = vcmask 195584
    %v786 = vsel %vm785, %v782, -inf
    %787 = vmax.xlane.f32.xlu0 %v786
    %v788 = vpop.xlane.xlu0 %787
    %v789 = vsel %vm785, %v783, -inf
    %790 = vmax.xlane.f32.xlu0 %v789
    %v791 = vpop.xlane.xlu0 %790
    %v792 = vsel %vm785, %v784, -inf
    %793 = vmax.xlane.f32.xlu0 %v792
    %v794 = vpop.xlane.xlu0 %793
    %v795 = vsub.f32 %v782, %v788
    %v796 = vsub.f32 %v783, %v791
    %v797 = vsub.f32 %v784, %v794
    %v798 = vmul.f32 %v795, 1.442695
    %v799 = vpow.pop %v798
    %v800 = vmul.f32 %v796, 1.442695
    %v801 = vpow.pop %v800
    %v802 = vmul.f32 %v797, 1.442695
    %v803 = vpow.pop %v802
    %v804 = vsel %vm785, %v799, 0.0
    %805 = vadd.xlane.f32.xlu0 %v804
    %v806 = vpop.xlane.xlu0 %805
    %v807 = vsel %vm785, %v801, 0.0
    %808 = vadd.xlane.f32.xlu0 %v807
    %v809 = vpop.xlane.xlu0 %808
    %v810 = vsel %vm785, %v803, 0.0
    %811 = vadd.xlane.f32.xlu0 %v810
    %v812 = vpop.xlane.xlu0 %811
    %v813 = vrcp.pop %v806
    %v814 = vmul.f32 %v799, %v813
    %v815 = vrcp.pop %v809
    %v816 = vmul.f32 %v801, %v815
    %v817 = vrcp.pop %v812
    %v818 = vmul.f32 %v803, %v817
    %v820 = vsel %vm785, %v814, 0
    %v823 = vsel %vm785, %v816, 0
    %v826 = vsel %vm785, %v818, 0
    %828 = vmatprep.subr.mxu0 0.0
    %829 = vmatpush1.msra.mxu0 %v645
    %830 = vmatprep.subr.mxu0 0.0
    %831 = vmatpush1.msra.mxu0 %v649
    %832 = vmatprep.subr.mxu0 0.0
    %833 = vmatpush1.msra.mxu0 %v655
    %834 = vmatprep.subr.mxu0 0.0
    %835 = vmatpush1.msra.mxu0 0.0
    %836 = vmatprep.subr.mxu0 0.0
    %837 = vmatpush1.msra.mxu0 0.0
    %838 = vmatprep.subr.mxu0 0.0
    %839 = vmatpush1.msra.mxu0 0.0
    %840 = vmatprep.subr.mxu0 0.0
    %841 = vmatpush1.msra.mxu0 0.0
    %842 = vmatprep.subr.mxu0 0.0
    %843 = vmatpush1.msra.mxu0 0.0
    %844 = vmatprep.subr.mxu0 0.0
    %845 = vmatpush1.msra.mxu0 0.0
    %846 = vmatprep.subr.mxu0 0.0
    %847 = vmatpush1.msra.mxu0 0.0
    %848 = vmatprep.subr.mxu0 0.0
    %849 = vmatpush1.msra.mxu0 0.0
    %850 = vmatprep.subr.mxu0 0.0
    %851 = vmatpush1.msra.mxu0 0.0
    %852 = vmatprep.subr.mxu0 0.0
    %853 = vmatpush1.msra.mxu0 0.0
    %854 = vmatprep.subr.mxu0 0.0
    %855 = vmatpush1.msra.mxu0 0.0
    %856 = vmatprep.subr.mxu0 0.0
    %857 = vmatpush1.msra.mxu0 0.0
    %858 = vmatprep.subr.mxu0 0.0
    %859 = vmatpush1.msra.mxu0 0.0
    %860 = vmatprep.subr.mxu0 0.0
    %861 = vmatpush1.msra.mxu0 0.0
    %862 = vmatprep.subr.mxu0 0.0
    %863 = vmatpush1.msra.mxu0 0.0
    %864 = vmatprep.subr.mxu0 0.0
    %865 = vmatpush1.msra.mxu0 0.0
    %866 = vmatprep.subr.mxu0 0.0
    %867 = vmatpush1.msra.mxu0 0.0
    %868 = vmatprep.subr.mxu0 0.0
    %869 = vmatpush1.msra.mxu0 0.0
    %870 = vmatprep.subr.mxu0 0.0
    %871 = vmatpush1.msra.mxu0 0.0
    %872 = vmatprep.subr.mxu0 0.0
    %873 = vmatpush1.msra.mxu0 0.0
    %874 = vmatprep.subr.mxu0 0.0
    %875 = vmatpush1.msra.mxu0 0.0
    %876 = vmatprep.subr.mxu0 0.0
    %877 = vmatpush1.msra.mxu0 0.0
    %878 = vmatprep.subr.mxu0 0.0
    %879 = vmatpush1.msra.mxu0 0.0
    %880 = vmatprep.subr.mxu0 0.0
    %881 = vmatpush1.msra.mxu0 0.0
    %882 = vmatprep.subr.mxu0 0.0
    %883 = vmatpush1.msra.mxu0 0.0
    %884 = vmatprep.subr.mxu0 0.0
    %885 = vmatpush1.msra.mxu0 0.0
    %886 = vmatprep.subr.mxu0 0.0
    %887 = vmatpush1.msra.mxu0 0.0
    %888 = vmatprep.subr.mxu0 0.0
    %889 = vmatpush1.msra.mxu0 0.0
    %890 = vmatprep.subr.mxu0 0.0
    %891 = vmatpush1.msra.mxu0 0.0
    %892 = vmatprep.mubr.f32.mxu0 0.0
    %893 = vmatmul.mubr.f32.gmra.mrb[0].mxu0 %v820
    %v894 = vpop.f32.mrb[0].mxu0
    %v895 = vadd.f32 0.0, %v894
    %v896 = vpop.f32.mrb[0].mxu0
    %897 = vmatprep.mubr.f32.mxu0 0.0
    %898 = vmatmul.mubr.f32.gmra.mrb[0].mxu0 %v823
    %v899 = vpop.f32.mrb[0].mxu0
    %v900 = vadd.f32 0.0, %v899
    %v901 = vpop.f32.mrb[0].mxu0
    %902 = vmatprep.mubr.f32.mxu0 0.0
    %903 = vmatmul.mubr.f32.gmra.mrb[0].mxu0 %v826
    %v904 = vpop.f32.mrb[0].mxu0
    %v905 = vadd.f32 0.0, %v904
    %v906 = vpop.f32.mrb[0].mxu0
    %907 = vdwg.mxu0
    %908 = vrot.lane.b32.xlu0 %v643, 112
    %v909 = vpop.permute.xlu0 %908
    %910 = vrot.lane.b32.xlu0 %v647, 112
    %v911 = vpop.permute.xlu0 %910
    %912 = vrot.lane.b32.xlu0 %v653, 112
    %v913 = vpop.permute.xlu0 %912
    %914 = vrot.lane.b32.xlu0 %v643, 48
    %v915 = vpop.permute.xlu0 %914
    %916 = vrot.lane.b32.xlu0 %v647, 48
    %v917 = vpop.permute.xlu0 %916
    %918 = vrot.lane.b32.xlu0 %v653, 48
    %v919 = vpop.permute.xlu0 %918
    %v920 = vsel %vm261, %v909, 0
    %v922 = vsel %vm261, %v911, 0
    %v924 = vsel %vm261, %v913, 0
    %v926 = vsel %vm261, %v915, 0
    %v928 = vsel %vm261, %v917, 0
    %v930 = vsel %vm261, %v919, 0
    %932 = vmatprep.subr.mxu0 0.0
    %933 = vmatpush1.xpose.msra.mxu0 %v926
    %934 = vmatprep.subr.mxu0 0.0
    %935 = vmatpush1.xpose.msra.mxu0 %v928
    %936 = vmatprep.subr.mxu0 0.0
    %937 = vmatpush1.xpose.msra.mxu0 %v930
    %938 = vmatprep.subr.mxu0 0.0
    %939 = vmatpush1.xpose.msra.mxu0 0.0
    %940 = vmatprep.subr.mxu0 0.0
    %941 = vmatpush1.xpose.msra.mxu0 0.0
    %942 = vmatprep.subr.mxu0 0.0
    %943 = vmatpush1.xpose.msra.mxu0 0.0
    %944 = vmatprep.subr.mxu0 0.0
    %945 = vmatpush1.xpose.msra.mxu0 0.0
    %946 = vmatprep.subr.mxu0 0.0
    %947 = vmatpush1.xpose.msra.mxu0 0.0
    %948 = vmatprep.subr.mxu0 0.0
    %949 = vmatpush1.xpose.msra.mxu0 0.0
    %950 = vmatprep.subr.mxu0 0.0
    %951 = vmatpush1.xpose.msra.mxu0 0.0
    %952 = vmatprep.subr.mxu0 0.0
    %953 = vmatpush1.xpose.msra.mxu0 0.0
    %954 = vmatprep.subr.mxu0 0.0
    %955 = vmatpush1.xpose.msra.mxu0 0.0
    %956 = vmatprep.subr.mxu0 0.0
    %957 = vmatpush1.xpose.msra.mxu0 0.0
    %958 = vmatprep.subr.mxu0 0.0
    %959 = vmatpush1.xpose.msra.mxu0 0.0
    %960 = vmatprep.subr.mxu0 0.0
    %961 = vmatpush1.xpose.msra.mxu0 0.0
    %962 = vmatprep.subr.mxu0 0.0
    %963 = vmatpush1.xpose.msra.mxu0 0.0
    %964 = vmatprep.subr.mxu0 0.0
    %965 = vmatpush1.xpose.msra.mxu0 0.0
    %966 = vmatprep.subr.mxu0 0.0
    %967 = vmatpush1.xpose.msra.mxu0 0.0
    %968 = vmatprep.subr.mxu0 0.0
    %969 = vmatpush1.xpose.msra.mxu0 0.0
    %970 = vmatprep.subr.mxu0 0.0
    %971 = vmatpush1.xpose.msra.mxu0 0.0
    %972 = vmatprep.subr.mxu0 0.0
    %973 = vmatpush1.xpose.msra.mxu0 0.0
    %974 = vmatprep.subr.mxu0 0.0
    %975 = vmatpush1.xpose.msra.mxu0 0.0
    %976 = vmatprep.subr.mxu0 0.0
    %977 = vmatpush1.xpose.msra.mxu0 0.0
    %978 = vmatprep.subr.mxu0 0.0
    %979 = vmatpush1.xpose.msra.mxu0 0.0
    %980 = vmatprep.subr.mxu0 0.0
    %981 = vmatpush1.xpose.msra.mxu0 0.0
    %982 = vmatprep.subr.mxu0 0.0
    %983 = vmatpush1.xpose.msra.mxu0 0.0
    %984 = vmatprep.subr.mxu0 0.0
    %985 = vmatpush1.xpose.msra.mxu0 0.0
    %986 = vmatprep.subr.mxu0 0.0
    %987 = vmatpush1.xpose.msra.mxu0 0.0
    %988 = vmatprep.subr.mxu0 0.0
    %989 = vmatpush1.xpose.msra.mxu0 0.0
    %990 = vmatprep.subr.mxu0 0.0
    %991 = vmatpush1.xpose.msra.mxu0 0.0
    %992 = vmatprep.subr.mxu0 0.0
    %993 = vmatpush1.xpose.msra.mxu0 0.0
    %994 = vmatprep.subr.mxu0 0.0
    %995 = vmatpush1.xpose.msra.mxu0 0.0
    %996 = vmatprep.mubr.f32.mxu0 0.0
    %997 = vmatmul.mubr.f32.gmra.mrb[0].mxu0 %v920
    %v998 = vpop.f32.mrb[0].mxu0
    %v999 = vadd.f32 0.0, %v998
    %v1000 = vpop.f32.mrb[0].mxu0
    %1001 = vmatprep.mubr.f32.mxu0 0.0
    %1002 = vmatmul.mubr.f32.gmra.mrb[0].mxu0 %v922
    %v1003 = vpop.f32.mrb[0].mxu0
    %v1004 = vadd.f32 0.0, %v1003
    %v1005 = vpop.f32.mrb[0].mxu0
    %1006 = vmatprep.mubr.f32.mxu0 0.0
    %1007 = vmatmul.mubr.f32.gmra.mrb[0].mxu0 %v924
    %v1008 = vpop.f32.mrb[0].mxu0
    %v1009 = vadd.f32 0.0, %v1008
    %v1010 = vpop.f32.mrb[0].mxu0
    %1011 = vdwg.mxu0
    %v1012 = vmul.f32 %v999, 0.25
    %v1013 = vmul.f32 %v1004, 0.25
    %v1014 = vmul.f32 %v1009, 0.25
    %v1015 = vadd.f32 %v1012, %v780
    %v1016 = vadd.f32 %v1013, %v780
    %v1017 = vadd.f32 %v1014, %v780
    %v1018 = vsel %vm785, %v1015, -inf
    %1019 = vmax.xlane.f32.xlu0 %v1018
    %v1020 = vpop.xlane.xlu0 %1019
    %v1021 = vsel %vm785, %v1016, -inf
    %1022 = vmax.xlane.f32.xlu0 %v1021
    %v1023 = vpop.xlane.xlu0 %1022
    %v1024 = vsel %vm785, %v1017, -inf
    %1025 = vmax.xlane.f32.xlu0 %v1024
    %v1026 = vpop.xlane.xlu0 %1025
    %v1027 = vsub.f32 %v1015, %v1020
    %v1028 = vsub.f32 %v1016, %v1023
    %v1029 = vsub.f32 %v1017, %v1026
    %v1030 = vmul.f32 %v1027, 1.442695
    %v1031 = vpow.pop %v1030
    %v1032 = vmul.f32 %v1028, 1.442695
    %v1033 = vpow.pop %v1032
    %v1034 = vmul.f32 %v1029, 1.442695
    %v1035 = vpow.pop %v1034
    %v1036 = vsel %vm785, %v1031, 0.0
    %1037 = vadd.xlane.f32.xlu0 %v1036
    %v1038 = vpop.xlane.xlu0 %1037
    %v1039 = vsel %vm785, %v1033, 0.0
    %1040 = vadd.xlane.f32.xlu0 %v1039
    %v1041 = vpop.xlane.xlu0 %1040
    %v1042 = vsel %vm785, %v1035, 0.0
    %1043 = vadd.xlane.f32.xlu0 %v1042
    %v1044 = vpop.xlane.xlu0 %1043
    %v1045 = vrcp.pop %v1038
    %v1046 = vmul.f32 %v1031, %v1045
    %v1047 = vrcp.pop %v1041
    %v1048 = vmul.f32 %v1033, %v1047
    %v1049 = vrcp.pop %v1044
    %v1050 = vmul.f32 %v1035, %v1049
    %1054 = vrot.lane.b32.xlu0 %v645, 112
    %v1055 = vpop.permute.xlu0 %1054
    %1056 = vrot.lane.b32.xlu0 %v649, 112
    %v1057 = vpop.permute.xlu0 %1056
    %1058 = vrot.lane.b32.xlu0 %v655, 112
    %v1059 = vpop.permute.xlu0 %1058
    %v1064 = vsel %vm785, %v1046, 0
    %v1067 = vsel %vm785, %v1048, 0
    %v1070 = vsel %vm785, %v1050, 0
    %1072 = vmatprep.subr.mxu0 0.0
    %1073 = vmatpush1.msra.mxu0 %v1055
    %1074 = vmatprep.subr.mxu0 0.0
    %1075 = vmatpush1.msra.mxu0 %v1057
    %1076 = vmatprep.subr.mxu0 0.0
    %1077 = vmatpush1.msra.mxu0 %v1059
    %1078 = vmatprep.subr.mxu0 0.0
    %1079 = vmatpush1.msra.mxu0 0.0
    %1080 = vmatprep.subr.mxu0 0.0
    %1081 = vmatpush1.msra.mxu0 0.0
    %1082 = vmatprep.subr.mxu0 0.0
    %1083 = vmatpush1.msra.mxu0 0.0
    %1084 = vmatprep.subr.mxu0 0.0
    %1085 = vmatpush1.msra.mxu0 0.0
    %1086 = vmatprep.subr.mxu0 0.0
    %1087 = vmatpush1.msra.mxu0 0.0
    %1088 = vmatprep.subr.mxu0 0.0
    %1089 = vmatpush1.msra.mxu0 0.0
    %1090 = vmatprep.subr.mxu0 0.0
    %1091 = vmatpush1.msra.mxu0 0.0
    %1092 = vmatprep.subr.mxu0 0.0
    %1093 = vmatpush1.msra.mxu0 0.0
    %1094 = vmatprep.subr.mxu0 0.0
    %1095 = vmatpush1.msra.mxu0 0.0
    %1096 = vmatprep.subr.mxu0 0.0
    %1097 = vmatpush1.msra.mxu0 0.0
    %1098 = vmatprep.subr.mxu0 0.0
    %1099 = vmatpush1.msra.mxu0 0.0
    %1100 = vmatprep.subr.mxu0 0.0
    %1101 = vmatpush1.msra.mxu0 0.0
    %1102 = vmatprep.subr.mxu0 0.0
    %1103 = vmatpush1.msra.mxu0 0.0
    %1104 = vmatprep.subr.mxu0 0.0
    %1105 = vmatpush1.msra.mxu0 0.0
    %1106 = vmatprep.subr.mxu0 0.0
    %1107 = vmatpush1.msra.mxu0 0.0
    %1108 = vmatprep.subr.mxu0 0.0
    %1109 = vmatpush1.msra.mxu0 0.0
    %1110 = vmatprep.subr.mxu0 0.0
    %1111 = vmatpush1.msra.mxu0 0.0
    %1112 = vmatprep.subr.mxu0 0.0
    %1113 = vmatpush1.msra.mxu0 0.0
    %1114 = vmatprep.subr.mxu0 0.0
    %1115 = vmatpush1.msra.mxu0 0.0
    %1116 = vmatprep.subr.mxu0 0.0
    %1117 = vmatpush1.msra.mxu0 0.0
    %1118 = vmatprep.subr.mxu0 0.0
    %1119 = vmatpush1.msra.mxu0 0.0
    %1120 = vmatprep.subr.mxu0 0.0
    %1121 = vmatpush1.msra.mxu0 0.0
    %1122 = vmatprep.subr.mxu0 0.0
    %1123 = vmatpush1.msra.mxu0 0.0
    %1124 = vmatprep.subr.mxu0 0.0
    %1125 = vmatpush1.msra.mxu0 0.0
    %1126 = vmatprep.subr.mxu0 0.0
    %1127 = vmatpush1.msra.mxu0 0.0
    %1128 = vmatprep.subr.mxu0 0.0
    %1129 = vmatpush1.msra.mxu0 0.0
    %1130 = vmatprep.subr.mxu0 0.0
    %1131 = vmatpush1.msra.mxu0 0.0
    %1132 = vmatprep.subr.mxu0 0.0
    %1133 = vmatpush1.msra.mxu0 0.0
    %1134 = vmatprep.subr.mxu0 0.0
    %1135 = vmatpush1.msra.mxu0 0.0
    %1136 = vmatprep.mubr.f32.mxu0 0.0
    %1137 = vmatmul.mubr.f32.gmra.mrb[0].mxu0 %v1064
    %v1138 = vpop.f32.mrb[0].mxu0
    %v1139 = vadd.f32 0.0, %v1138
    %v1140 = vpop.f32.mrb[0].mxu0
    %1141 = vmatprep.mubr.f32.mxu0 0.0
    %1142 = vmatmul.mubr.f32.gmra.mrb[0].mxu0 %v1067
    %v1143 = vpop.f32.mrb[0].mxu0
    %v1144 = vadd.f32 0.0, %v1143
    %v1145 = vpop.f32.mrb[0].mxu0
    %1146 = vmatprep.mubr.f32.mxu0 0.0
    %1147 = vmatmul.mubr.f32.gmra.mrb[0].mxu0 %v1070
    %v1148 = vpop.f32.mrb[0].mxu0
    %v1149 = vadd.f32 0.0, %v1148
    %v1150 = vpop.f32.mrb[0].mxu0
    %1151 = vdwg.mxu0
    %1152 = vrot.lane.b32.xlu0 %v643, 96
    %v1153 = vpop.permute.xlu0 %1152
    %1154 = vrot.lane.b32.xlu0 %v647, 96
    %v1155 = vpop.permute.xlu0 %1154
    %1156 = vrot.lane.b32.xlu0 %v653, 96
    %v1157 = vpop.permute.xlu0 %1156
    %1158 = vrot.lane.b32.xlu0 %v643, 32
    %v1159 = vpop.permute.xlu0 %1158
    %1160 = vrot.lane.b32.xlu0 %v647, 32
    %v1161 = vpop.permute.xlu0 %1160
    %1162 = vrot.lane.b32.xlu0 %v653, 32
    %v1163 = vpop.permute.xlu0 %1162
    %v1164 = vsel %vm261, %v1153, 0
    %v1166 = vsel %vm261, %v1155, 0
    %v1168 = vsel %vm261, %v1157, 0
    %v1170 = vsel %vm261, %v1159, 0
    %v1172 = vsel %vm261, %v1161, 0
    %v1174 = vsel %vm261, %v1163, 0
    %1176 = vmatprep.subr.mxu0 0.0
    %1177 = vmatpush1.xpose.msra.mxu0 %v1170
    %1178 = vmatprep.subr.mxu0 0.0
    %1179 = vmatpush1.xpose.msra.mxu0 %v1172
    %1180 = vmatprep.subr.mxu0 0.0
    %1181 = vmatpush1.xpose.msra.mxu0 %v1174
    %1182 = vmatprep.subr.mxu0 0.0
    %1183 = vmatpush1.xpose.msra.mxu0 0.0
    %1184 = vmatprep.subr.mxu0 0.0
    %1185 = vmatpush1.xpose.msra.mxu0 0.0
    %1186 = vmatprep.subr.mxu0 0.0
    %1187 = vmatpush1.xpose.msra.mxu0 0.0
    %1188 = vmatprep.subr.mxu0 0.0
    %1189 = vmatpush1.xpose.msra.mxu0 0.0
    %1190 = vmatprep.subr.mxu0 0.0
    %1191 = vmatpush1.xpose.msra.mxu0 0.0
    %1192 = vmatprep.subr.mxu0 0.0
    %1193 = vmatpush1.xpose.msra.mxu0 0.0
    %1194 = vmatprep.subr.mxu0 0.0
    %1195 = vmatpush1.xpose.msra.mxu0 0.0
    %1196 = vmatprep.subr.mxu0 0.0
    %1197 = vmatpush1.xpose.msra.mxu0 0.0
    %1198 = vmatprep.subr.mxu0 0.0
    %1199 = vmatpush1.xpose.msra.mxu0 0.0
    %1200 = vmatprep.subr.mxu0 0.0
    %1201 = vmatpush1.xpose.msra.mxu0 0.0
    %1202 = vmatprep.subr.mxu0 0.0
    %1203 = vmatpush1.xpose.msra.mxu0 0.0
    %1204 = vmatprep.subr.mxu0 0.0
    %1205 = vmatpush1.xpose.msra.mxu0 0.0
    %1206 = vmatprep.subr.mxu0 0.0
    %1207 = vmatpush1.xpose.msra.mxu0 0.0
    %1208 = vmatprep.subr.mxu0 0.0
    %1209 = vmatpush1.xpose.msra.mxu0 0.0
    %1210 = vmatprep.subr.mxu0 0.0
    %1211 = vmatpush1.xpose.msra.mxu0 0.0
    %1212 = vmatprep.subr.mxu0 0.0
    %1213 = vmatpush1.xpose.msra.mxu0 0.0
    %1214 = vmatprep.subr.mxu0 0.0
    %1215 = vmatpush1.xpose.msra.mxu0 0.0
    %1216 = vmatprep.subr.mxu0 0.0
    %1217 = vmatpush1.xpose.msra.mxu0 0.0
    %1218 = vmatprep.subr.mxu0 0.0
    %1219 = vmatpush1.xpose.msra.mxu0 0.0
    %1220 = vmatprep.subr.mxu0 0.0
    %1221 = vmatpush1.xpose.msra.mxu0 0.0
    %1222 = vmatprep.subr.mxu0 0.0
    %1223 = vmatpush1.xpose.msra.mxu0 0.0
    %1224 = vmatprep.subr.mxu0 0.0
    %1225 = vmatpush1.xpose.msra.mxu0 0.0
    %1226 = vmatprep.subr.mxu0 0.0
    %1227 = vmatpush1.xpose.msra.mxu0 0.0
    %1228 = vmatprep.subr.mxu0 0.0
    %1229 = vmatpush1.xpose.msra.mxu0 0.0
    %1230 = vmatprep.subr.mxu0 0.0
    %1231 = vmatpush1.xpose.msra.mxu0 0.0
    %1232 = vmatprep.subr.mxu0 0.0
    %1233 = vmatpush1.xpose.msra.mxu0 0.0
    %1234 = vmatprep.subr.mxu0 0.0
    %1235 = vmatpush1.xpose.msra.mxu0 0.0
    %1236 = vmatprep.subr.mxu0 0.0
    %1237 = vmatpush1.xpose.msra.mxu0 0.0
    %1238 = vmatprep.subr.mxu0 0.0
    %1239 = vmatpush1.xpose.msra.mxu0 0.0
    %1240 = vmatprep.mubr.f32.mxu0 0.0
    %1241 = vmatmul.mubr.f32.gmra.mrb[0].mxu0 %v1164
    %v1242 = vpop.f32.mrb[0].mxu0
    %v1243 = vadd.f32 0.0, %v1242
    %v1244 = vpop.f32.mrb[0].mxu0
    %1245 = vmatprep.mubr.f32.mxu0 0.0
    %1246 = vmatmul.mubr.f32.gmra.mrb[0].mxu0 %v1166
    %v1247 = vpop.f32.mrb[0].mxu0
    %v1248 = vadd.f32 0.0, %v1247
    %v1249 = vpop.f32.mrb[0].mxu0
    %1250 = vmatprep.mubr.f32.mxu0 0.0
    %1251 = vmatmul.mubr.f32.gmra.mrb[0].mxu0 %v1168
    %v1252 = vpop.f32.mrb[0].mxu0
    %v1253 = vadd.f32 0.0, %v1252
    %v1254 = vpop.f32.mrb[0].mxu0
    %1255 = vdwg.mxu0
    %v1256 = vmul.f32 %v1243, 0.25
    %v1257 = vmul.f32 %v1248, 0.25
    %v1258 = vmul.f32 %v1253, 0.25
    %v1259 = vadd.f32 %v1256, %v780
    %v1260 = vadd.f32 %v1257, %v780
    %v1261 = vadd.f32 %v1258, %v780
    %v1262 = vsel %vm785, %v1259, -inf
    %1263 = vmax.xlane.f32.xlu0 %v1262
    %v1264 = vpop.xlane.xlu0 %1263
    %v1265 = vsel %vm785, %v1260, -inf
    %1266 = vmax.xlane.f32.xlu0 %v1265
    %v1267 = vpop.xlane.xlu0 %1266
    %v1268 = vsel %vm785, %v1261, -inf
    %1269 = vmax.xlane.f32.xlu0 %v1268
    %v1270 = vpop.xlane.xlu0 %1269
    %v1271 = vsub.f32 %v1259, %v1264
    %v1272 = vsub.f32 %v1260, %v1267
    %v1273 = vsub.f32 %v1261, %v1270
    %v1274 = vmul.f32 %v1271, 1.442695
    %v1275 = vpow.pop %v1274
    %v1276 = vmul.f32 %v1272, 1.442695
    %v1277 = vpow.pop %v1276
    %v1278 = vmul.f32 %v1273, 1.442695
    %v1279 = vpow.pop %v1278
    %v1280 = vsel %vm785, %v1275, 0.0
    %1281 = vadd.xlane.f32.xlu0 %v1280
    %v1282 = vpop.xlane.xlu0 %1281
    %v1283 = vsel %vm785, %v1277, 0.0
    %1284 = vadd.xlane.f32.xlu0 %v1283
    %v1285 = vpop.xlane.xlu0 %1284
    %v1286 = vsel %vm785, %v1279, 0.0
    %1287 = vadd.xlane.f32.xlu0 %v1286
    %v1288 = vpop.xlane.xlu0 %1287
    %v1289 = vrcp.pop %v1282
    %v1290 = vmul.f32 %v1275, %v1289
    %v1291 = vrcp.pop %v1285
    %v1292 = vmul.f32 %v1277, %v1291
    %v1293 = vrcp.pop %v1288
    %v1294 = vmul.f32 %v1279, %v1293
    %1295 = vrot.lane.b32.xlu0 %v645, 96
    %v1296 = vpop.permute.xlu0 %1295
    %1297 = vrot.lane.b32.xlu0 %v649, 96
    %v1298 = vpop.permute.xlu0 %1297
    %1299 = vrot.lane.b32.xlu0 %v655, 96
    %v1300 = vpop.permute.xlu0 %1299
    %v1305 = vsel %vm785, %v1290, 0
    %v1308 = vsel %vm785, %v1292, 0
    %v1311 = vsel %vm785, %v1294, 0
    %1313 = vmatprep.subr.mxu0 0.0
    %1314 = vmatpush1.msra.mxu0 %v1296
    %1315 = vmatprep.subr.mxu0 0.0
    %1316 = vmatpush1.msra.mxu0 %v1298
    %1317 = vmatprep.subr.mxu0 0.0
    %1318 = vmatpush1.msra.mxu0 %v1300
    %1319 = vmatprep.subr.mxu0 0.0
    %1320 = vmatpush1.msra.mxu0 0.0
    %1321 = vmatprep.subr.mxu0 0.0
    %1322 = vmatpush1.msra.mxu0 0.0
    %1323 = vmatprep.subr.mxu0 0.0
    %1324 = vmatpush1.msra.mxu0 0.0
    %1325 = vmatprep.subr.mxu0 0.0
    %1326 = vmatpush1.msra.mxu0 0.0
    %1327 = vmatprep.subr.mxu0 0.0
    %1328 = vmatpush1.msra.mxu0 0.0
    %1329 = vmatprep.subr.mxu0 0.0
    %1330 = vmatpush1.msra.mxu0 0.0
    %1331 = vmatprep.subr.mxu0 0.0
    %1332 = vmatpush1.msra.mxu0 0.0
    %1333 = vmatprep.subr.mxu0 0.0
    %1334 = vmatpush1.msra.mxu0 0.0
    %1335 = vmatprep.subr.mxu0 0.0
    %1336 = vmatpush1.msra.mxu0 0.0
    %1337 = vmatprep.subr.mxu0 0.0
    %1338 = vmatpush1.msra.mxu0 0.0
    %1339 = vmatprep.subr.mxu0 0.0
    %1340 = vmatpush1.msra.mxu0 0.0
    %1341 = vmatprep.subr.mxu0 0.0
    %1342 = vmatpush1.msra.mxu0 0.0
    %1343 = vmatprep.subr.mxu0 0.0
    %1344 = vmatpush1.msra.mxu0 0.0
    %1345 = vmatprep.subr.mxu0 0.0
    %1346 = vmatpush1.msra.mxu0 0.0
    %1347 = vmatprep.subr.mxu0 0.0
    %1348 = vmatpush1.msra.mxu0 0.0
    %1349 = vmatprep.subr.mxu0 0.0
    %1350 = vmatpush1.msra.mxu0 0.0
    %1351 = vmatprep.subr.mxu0 0.0
    %1352 = vmatpush1.msra.mxu0 0.0
    %1353 = vmatprep.subr.mxu0 0.0
    %1354 = vmatpush1.msra.mxu0 0.0
    %1355 = vmatprep.subr.mxu0 0.0
    %1356 = vmatpush1.msra.mxu0 0.0
    %1357 = vmatprep.subr.mxu0 0.0
    %1358 = vmatpush1.msra.mxu0 0.0
    %1359 = vmatprep.subr.mxu0 0.0
    %1360 = vmatpush1.msra.mxu0 0.0
    %1361 = vmatprep.subr.mxu0 0.0
    %1362 = vmatpush1.msra.mxu0 0.0
    %1363 = vmatprep.subr.mxu0 0.0
    %1364 = vmatpush1.msra.mxu0 0.0
    %1365 = vmatprep.subr.mxu0 0.0
    %1366 = vmatpush1.msra.mxu0 0.0
    %1367 = vmatprep.subr.mxu0 0.0
    %1368 = vmatpush1.msra.mxu0 0.0
    %1369 = vmatprep.subr.mxu0 0.0
    %1370 = vmatpush1.msra.mxu0 0.0
    %1371 = vmatprep.subr.mxu0 0.0
    %1372 = vmatpush1.msra.mxu0 0.0
    %1373 = vmatprep.subr.mxu0 0.0
    %1374 = vmatpush1.msra.mxu0 0.0
    %1375 = vmatprep.subr.mxu0 0.0
    %1376 = vmatpush1.msra.mxu0 0.0
    %1377 = vmatprep.mubr.f32.mxu0 0.0
    %1378 = vmatmul.mubr.f32.gmra.mrb[0].mxu0 %v1305
    %v1379 = vpop.f32.mrb[0].mxu0
    %v1380 = vadd.f32 0.0, %v1379
    %v1381 = vpop.f32.mrb[0].mxu0
    %1382 = vmatprep.mubr.f32.mxu0 0.0
    %1383 = vmatmul.mubr.f32.gmra.mrb[0].mxu0 %v1308
    %v1384 = vpop.f32.mrb[0].mxu0
    %v1385 = vadd.f32 0.0, %v1384
    %v1386 = vpop.f32.mrb[0].mxu0
    %1387 = vmatprep.mubr.f32.mxu0 0.0
    %1388 = vmatmul.mubr.f32.gmra.mrb[0].mxu0 %v1311
    %v1389 = vpop.f32.mrb[0].mxu0
    %v1390 = vadd.f32 0.0, %v1389
    %v1391 = vpop.f32.mrb[0].mxu0
    %1392 = vdwg.mxu0
    %1393 = vrot.lane.b32.xlu0 %v643, 80
    %v1394 = vpop.permute.xlu0 %1393
    %1395 = vrot.lane.b32.xlu0 %v647, 80
    %v1396 = vpop.permute.xlu0 %1395
    %1397 = vrot.lane.b32.xlu0 %v653, 80
    %v1398 = vpop.permute.xlu0 %1397
    %1399 = vrot.lane.b32.xlu0 %v643, 16
    %v1400 = vpop.permute.xlu0 %1399
    %1401 = vrot.lane.b32.xlu0 %v647, 16
    %v1402 = vpop.permute.xlu0 %1401
    %1403 = vrot.lane.b32.xlu0 %v653, 16
    %v1404 = vpop.permute.xlu0 %1403
    %v1405 = vsel %vm261, %v1394, 0
    %v1407 = vsel %vm261, %v1396, 0
    %v1409 = vsel %vm261, %v1398, 0
    %v1411 = vsel %vm261, %v1400, 0
    %v1413 = vsel %vm261, %v1402, 0
    %v1415 = vsel %vm261, %v1404, 0
    %1417 = vmatprep.subr.mxu0 0.0
    %1418 = vmatpush1.xpose.msra.mxu0 %v1411
    %1419 = vmatprep.subr.mxu0 0.0
    %1420 = vmatpush1.xpose.msra.mxu0 %v1413
    %1421 = vmatprep.subr.mxu0 0.0
    %1422 = vmatpush1.xpose.msra.mxu0 %v1415
    %1423 = vmatprep.subr.mxu0 0.0
    %1424 = vmatpush1.xpose.msra.mxu0 0.0
    %1425 = vmatprep.subr.mxu0 0.0
    %1426 = vmatpush1.xpose.msra.mxu0 0.0
    %1427 = vmatprep.subr.mxu0 0.0
    %1428 = vmatpush1.xpose.msra.mxu0 0.0
    %1429 = vmatprep.subr.mxu0 0.0
    %1430 = vmatpush1.xpose.msra.mxu0 0.0
    %1431 = vmatprep.subr.mxu0 0.0
    %1432 = vmatpush1.xpose.msra.mxu0 0.0
    %1433 = vmatprep.subr.mxu0 0.0
    %1434 = vmatpush1.xpose.msra.mxu0 0.0
    %1435 = vmatprep.subr.mxu0 0.0
    %1436 = vmatpush1.xpose.msra.mxu0 0.0
    %1437 = vmatprep.subr.mxu0 0.0
    %1438 = vmatpush1.xpose.msra.mxu0 0.0
    %1439 = vmatprep.subr.mxu0 0.0
    %1440 = vmatpush1.xpose.msra.mxu0 0.0
    %1441 = vmatprep.subr.mxu0 0.0
    %1442 = vmatpush1.xpose.msra.mxu0 0.0
    %1443 = vmatprep.subr.mxu0 0.0
    %1444 = vmatpush1.xpose.msra.mxu0 0.0
    %1445 = vmatprep.subr.mxu0 0.0
    %1446 = vmatpush1.xpose.msra.mxu0 0.0
    %1447 = vmatprep.subr.mxu0 0.0
    %1448 = vmatpush1.xpose.msra.mxu0 0.0
    %1449 = vmatprep.subr.mxu0 0.0
    %1450 = vmatpush1.xpose.msra.mxu0 0.0
    %1451 = vmatprep.subr.mxu0 0.0
    %1452 = vmatpush1.xpose.msra.mxu0 0.0
    %1453 = vmatprep.subr.mxu0 0.0
    %1454 = vmatpush1.xpose.msra.mxu0 0.0
    %1455 = vmatprep.subr.mxu0 0.0
    %1456 = vmatpush1.xpose.msra.mxu0 0.0
    %1457 = vmatprep.subr.mxu0 0.0
    %1458 = vmatpush1.xpose.msra.mxu0 0.0
    %1459 = vmatprep.subr.mxu0 0.0
    %1460 = vmatpush1.xpose.msra.mxu0 0.0
    %1461 = vmatprep.subr.mxu0 0.0
    %1462 = vmatpush1.xpose.msra.mxu0 0.0
    %1463 = vmatprep.subr.mxu0 0.0
    %1464 = vmatpush1.xpose.msra.mxu0 0.0
    %1465 = vmatprep.subr.mxu0 0.0
    %1466 = vmatpush1.xpose.msra.mxu0 0.0
    %1467 = vmatprep.subr.mxu0 0.0
    %1468 = vmatpush1.xpose.msra.mxu0 0.0
    %1469 = vmatprep.subr.mxu0 0.0
    %1470 = vmatpush1.xpose.msra.mxu0 0.0
    %1471 = vmatprep.subr.mxu0 0.0
    %1472 = vmatpush1.xpose.msra.mxu0 0.0
    %1473 = vmatprep.subr.mxu0 0.0
    %1474 = vmatpush1.xpose.msra.mxu0 0.0
    %1475 = vmatprep.subr.mxu0 0.0
    %1476 = vmatpush1.xpose.msra.mxu0 0.0
    %1477 = vmatprep.subr.mxu0 0.0
    %1478 = vmatpush1.xpose.msra.mxu0 0.0
    %1479 = vmatprep.subr.mxu0 0.0
    %1480 = vmatpush1.xpose.msra.mxu0 0.0
    %1481 = vmatprep.mubr.f32.mxu0 0.0
    %1482 = vmatmul.mubr.f32.gmra.mrb[0].mxu0 %v1405
    %v1483 = vpop.f32.mrb[0].mxu0
    %v1484 = vadd.f32 0.0, %v1483
    %v1485 = vpop.f32.mrb[0].mxu0
    %1486 = vmatprep.mubr.f32.mxu0 0.0
    %1487 = vmatmul.mubr.f32.gmra.mrb[0].mxu0 %v1407
    %v1488 = vpop.f32.mrb[0].mxu0
    %v1489 = vadd.f32 0.0, %v1488
    %v1490 = vpop.f32.mrb[0].mxu0
    %1491 = vmatprep.mubr.f32.mxu0 0.0
    %1492 = vmatmul.mubr.f32.gmra.mrb[0].mxu0 %v1409
    %v1493 = vpop.f32.mrb[0].mxu0
    %v1494 = vadd.f32 0.0, %v1493
    %v1495 = vpop.f32.mrb[0].mxu0
    %1496 = vdwg.mxu0
    %v1497 = vmul.f32 %v1484, 0.25
    %v1498 = vmul.f32 %v1489, 0.25
    %v1499 = vmul.f32 %v1494, 0.25
    %v1500 = vadd.f32 %v1497, %v780
    %v1501 = vadd.f32 %v1498, %v780
    %v1502 = vadd.f32 %v1499, %v780
    %v1503 = vsel %vm785, %v1500, -inf
    %1504 = vmax.xlane.f32.xlu0 %v1503
    %v1505 = vpop.xlane.xlu0 %1504
    %v1506 = vsel %vm785, %v1501, -inf
    %1507 = vmax.xlane.f32.xlu0 %v1506
    %v1508 = vpop.xlane.xlu0 %1507
    %v1509 = vsel %vm785, %v1502, -inf
    %1510 = vmax.xlane.f32.xlu0 %v1509
    %v1511 = vpop.xlane.xlu0 %1510
    %v1512 = vsub.f32 %v1500, %v1505
    %v1513 = vsub.f32 %v1501, %v1508
    %v1514 = vsub.f32 %v1502, %v1511
    %v1515 = vmul.f32 %v1512, 1.442695
    %v1516 = vpow.pop %v1515
    %v1517 = vmul.f32 %v1513, 1.442695
    %v1518 = vpow.pop %v1517
    %v1519 = vmul.f32 %v1514, 1.442695
    %v1520 = vpow.pop %v1519
    %v1521 = vsel %vm785, %v1516, 0.0
    %1522 = vadd.xlane.f32.xlu0 %v1521
    %v1523 = vpop.xlane.xlu0 %1522
    %v1524 = vsel %vm785, %v1518, 0.0
    %1525 = vadd.xlane.f32.xlu0 %v1524
    %v1526 = vpop.xlane.xlu0 %1525
    %v1527 = vsel %vm785, %v1520, 0.0
    %1528 = vadd.xlane.f32.xlu0 %v1527
    %v1529 = vpop.xlane.xlu0 %1528
    %v1530 = vrcp.pop %v1523
    %v1531 = vmul.f32 %v1516, %v1530
    %v1532 = vrcp.pop %v1526
    %v1533 = vmul.f32 %v1518, %v1532
    %v1534 = vrcp.pop %v1529
    %v1535 = vmul.f32 %v1520, %v1534
    %1536 = vrot.lane.b32.xlu0 %v645, 80
    %v1537 = vpop.permute.xlu0 %1536
    %1538 = vrot.lane.b32.xlu0 %v649, 80
    %v1539 = vpop.permute.xlu0 %1538
    %1540 = vrot.lane.b32.xlu0 %v655, 80
    %v1541 = vpop.permute.xlu0 %1540
    %v1546 = vsel %vm785, %v1531, 0
    %v1549 = vsel %vm785, %v1533, 0
    %v1552 = vsel %vm785, %v1535, 0
    %1554 = vmatprep.subr.mxu0 0.0
    %1555 = vmatpush1.msra.mxu0 %v1537
    %1556 = vmatprep.subr.mxu0 0.0
    %1557 = vmatpush1.msra.mxu0 %v1539
    %1558 = vmatprep.subr.mxu0 0.0
    %1559 = vmatpush1.msra.mxu0 %v1541
    %1560 = vmatprep.subr.mxu0 0.0
    %1561 = vmatpush1.msra.mxu0 0.0
    %1562 = vmatprep.subr.mxu0 0.0
    %1563 = vmatpush1.msra.mxu0 0.0
    %1564 = vmatprep.subr.mxu0 0.0
    %1565 = vmatpush1.msra.mxu0 0.0
    %1566 = vmatprep.subr.mxu0 0.0
    %1567 = vmatpush1.msra.mxu0 0.0
    %1568 = vmatprep.subr.mxu0 0.0
    %1569 = vmatpush1.msra.mxu0 0.0
    %1570 = vmatprep.subr.mxu0 0.0
    %1571 = vmatpush1.msra.mxu0 0.0
    %1572 = vmatprep.subr.mxu0 0.0
    %1573 = vmatpush1.msra.mxu0 0.0
    %1574 = vmatprep.subr.mxu0 0.0
    %1575 = vmatpush1.msra.mxu0 0.0
    %1576 = vmatprep.subr.mxu0 0.0
    %1577 = vmatpush1.msra.mxu0 0.0
    %1578 = vmatprep.subr.mxu0 0.0
    %1579 = vmatpush1.msra.mxu0 0.0
    %1580 = vmatprep.subr.mxu0 0.0
    %1581 = vmatpush1.msra.mxu0 0.0
    %1582 = vmatprep.subr.mxu0 0.0
    %1583 = vmatpush1.msra.mxu0 0.0
    %1584 = vmatprep.subr.mxu0 0.0
    %1585 = vmatpush1.msra.mxu0 0.0
    %1586 = vmatprep.subr.mxu0 0.0
    %1587 = vmatpush1.msra.mxu0 0.0
    %1588 = vmatprep.subr.mxu0 0.0
    %1589 = vmatpush1.msra.mxu0 0.0
    %1590 = vmatprep.subr.mxu0 0.0
    %1591 = vmatpush1.msra.mxu0 0.0
    %1592 = vmatprep.subr.mxu0 0.0
    %1593 = vmatpush1.msra.mxu0 0.0
    %1594 = vmatprep.subr.mxu0 0.0
    %1595 = vmatpush1.msra.mxu0 0.0
    %1596 = vmatprep.subr.mxu0 0.0
    %1597 = vmatpush1.msra.mxu0 0.0
    %1598 = vmatprep.subr.mxu0 0.0
    %1599 = vmatpush1.msra.mxu0 0.0
    %1600 = vmatprep.subr.mxu0 0.0
    %1601 = vmatpush1.msra.mxu0 0.0
    %1602 = vmatprep.subr.mxu0 0.0
    %1603 = vmatpush1.msra.mxu0 0.0
    %1604 = vmatprep.subr.mxu0 0.0
    %1605 = vmatpush1.msra.mxu0 0.0
    %1606 = vmatprep.subr.mxu0 0.0
    %1607 = vmatpush1.msra.mxu0 0.0
    %1608 = vmatprep.subr.mxu0 0.0
    %1609 = vmatpush1.msra.mxu0 0.0
    %1610 = vmatprep.subr.mxu0 0.0
    %1611 = vmatpush1.msra.mxu0 0.0
    %1612 = vmatprep.subr.mxu0 0.0
    %1613 = vmatpush1.msra.mxu0 0.0
    %1614 = vmatprep.subr.mxu0 0.0
    %1615 = vmatpush1.msra.mxu0 0.0
    %1616 = vmatprep.subr.mxu0 0.0
    %1617 = vmatpush1.msra.mxu0 0.0
    %1618 = vmatprep.mubr.f32.mxu0 0.0
    %1619 = vmatmul.mubr.f32.gmra.mrb[0].mxu0 %v1546
    %v1620 = vpop.f32.mrb[0].mxu0
    %v1621 = vadd.f32 0.0, %v1620
    %v1622 = vpop.f32.mrb[0].mxu0
    %1623 = vmatprep.mubr.f32.mxu0 0.0
    %1624 = vmatmul.mubr.f32.gmra.mrb[0].mxu0 %v1549
    %v1625 = vpop.f32.mrb[0].mxu0
    %v1626 = vadd.f32 0.0, %v1625
    %v1627 = vpop.f32.mrb[0].mxu0
    %1628 = vmatprep.mubr.f32.mxu0 0.0
    %1629 = vmatmul.mubr.f32.gmra.mrb[0].mxu0 %v1552
    %v1630 = vpop.f32.mrb[0].mxu0
    %v1631 = vadd.f32 0.0, %v1630
    %v1632 = vpop.f32.mrb[0].mxu0
    %1633 = vdwg.mxu0
    %1637 = vrot.lane.b32.xlu0 %v1139, 16
    %v1638 = vpop.permute.xlu0 %1637
    %1639 = vrot.lane.b32.xlu0 %v1144, 16
    %v1640 = vpop.permute.xlu0 %1639
    %1641 = vrot.lane.b32.xlu0 %v1149, 16
    %v1642 = vpop.permute.xlu0 %1641
    %1649 = vrot.lane.b32.xlu0 %v1380, 32
    %v1650 = vpop.permute.xlu0 %1649
    %1651 = vrot.lane.b32.xlu0 %v1385, 32
    %v1652 = vpop.permute.xlu0 %1651
    %1653 = vrot.lane.b32.xlu0 %v1390, 32
    %v1654 = vpop.permute.xlu0 %1653
    %1661 = vrot.lane.b32.xlu0 %v1621, 48
    %v1662 = vpop.permute.xlu0 %1661
    %1663 = vrot.lane.b32.xlu0 %v1626, 48
    %v1664 = vpop.permute.xlu0 %1663
    %1665 = vrot.lane.b32.xlu0 %v1631, 48
    %v1666 = vpop.permute.xlu0 %1665
    %v1670 = vsel %vm261, %v895, %v1638
    %v1671 = vsel %vm261, %v900, %v1640
    %v1672 = vsel %vm261, %v905, %v1642
    %vm1673 = vcmask 261120
    %v1674 = vsel %vm1673, %v1670, %v1650
    %v1675 = vsel %vm1673, %v1671, %v1652
    %v1676 = vsel %vm1673, %v1672, %v1654
    %vm1677 = vcmask 392192
    %v1678 = vsel %vm1677, %v1674, %v1662
    %v1679 = vsel %vm1677, %v1675, %v1664
    %v1680 = vsel %vm1677, %v1676, %v1666
    %s1681 = scalar_lea.vmem %s19, 1
    %v1682 = vld [vmem:[%s1681] sm:$0x1]
    %1686 = vrot.lane.b32.xlu0 %v657, 64
    %v1687 = vpop.permute.xlu0 %1686
    %1688 = vrot.lane.b32.xlu0 %v663, 64
    %v1689 = vpop.permute.xlu0 %1688
    %1690 = vrot.lane.b32.xlu0 %v667, 64
    %v1691 = vpop.permute.xlu0 %1690
    %v1692 = vsel %vm261, %v657, 0
    %v1694 = vsel %vm261, %v663, 0
    %v1696 = vsel %vm261, %v667, 0
    %v1698 = vsel %vm261, %v1687, 0
    %v1700 = vsel %vm261, %v1689, 0
    %v1702 = vsel %vm261, %v1691, 0
    %1704 = vmatprep.subr.mxu0 0.0
    %1705 = vmatpush1.xpose.msra.mxu0 %v1698
    %1706 = vmatprep.subr.mxu0 0.0
    %1707 = vmatpush1.xpose.msra.mxu0 %v1700
    %1708 = vmatprep.subr.mxu0 0.0
    %1709 = vmatpush1.xpose.msra.mxu0 %v1702
    %1710 = vmatprep.subr.mxu0 0.0
    %1711 = vmatpush1.xpose.msra.mxu0 0.0
    %1712 = vmatprep.subr.mxu0 0.0
    %1713 = vmatpush1.xpose.msra.mxu0 0.0
    %1714 = vmatprep.subr.mxu0 0.0
    %1715 = vmatpush1.xpose.msra.mxu0 0.0
    %1716 = vmatprep.subr.mxu0 0.0
    %1717 = vmatpush1.xpose.msra.mxu0 0.0
    %1718 = vmatprep.subr.mxu0 0.0
    %1719 = vmatpush1.xpose.msra.mxu0 0.0
    %1720 = vmatprep.subr.mxu0 0.0
    %1721 = vmatpush1.xpose.msra.mxu0 0.0
    %1722 = vmatprep.subr.mxu0 0.0
    %1723 = vmatpush1.xpose.msra.mxu0 0.0
    %1724 = vmatprep.subr.mxu0 0.0
    %1725 = vmatpush1.xpose.msra.mxu0 0.0
    %1726 = vmatprep.subr.mxu0 0.0
    %1727 = vmatpush1.xpose.msra.mxu0 0.0
    %1728 = vmatprep.subr.mxu0 0.0
    %1729 = vmatpush1.xpose.msra.mxu0 0.0
    %1730 = vmatprep.subr.mxu0 0.0
    %1731 = vmatpush1.xpose.msra.mxu0 0.0
    %1732 = vmatprep.subr.mxu0 0.0
    %1733 = vmatpush1.xpose.msra.mxu0 0.0
    %1734 = vmatprep.subr.mxu0 0.0
    %1735 = vmatpush1.xpose.msra.mxu0 0.0
    %1736 = vmatprep.subr.mxu0 0.0
    %1737 = vmatpush1.xpose.msra.mxu0 0.0
    %1738 = vmatprep.subr.mxu0 0.0
    %1739 = vmatpush1.xpose.msra.mxu0 0.0
    %1740 = vmatprep.subr.mxu0 0.0
    %1741 = vmatpush1.xpose.msra.mxu0 0.0
    %1742 = vmatprep.subr.mxu0 0.0
    %1743 = vmatpush1.xpose.msra.mxu0 0.0
    %1744 = vmatprep.subr.mxu0 0.0
    %1745 = vmatpush1.xpose.msra.mxu0 0.0
    %1746 = vmatprep.subr.mxu0 0.0
    %1747 = vmatpush1.xpose.msra.mxu0 0.0
    %1748 = vmatprep.subr.mxu0 0.0
    %1749 = vmatpush1.xpose.msra.mxu0 0.0
    %1750 = vmatprep.subr.mxu0 0.0
    %1751 = vmatpush1.xpose.msra.mxu0 0.0
    %1752 = vmatprep.subr.mxu0 0.0
    %1753 = vmatpush1.xpose.msra.mxu0 0.0
    %1754 = vmatprep.subr.mxu0 0.0
    %1755 = vmatpush1.xpose.msra.mxu0 0.0
    %1756 = vmatprep.subr.mxu0 0.0
    %1757 = vmatpush1.xpose.msra.mxu0 0.0
    %1758 = vmatprep.subr.mxu0 0.0
    %1759 = vmatpush1.xpose.msra.mxu0 0.0
    %1760 = vmatprep.subr.mxu0 0.0
    %1761 = vmatpush1.xpose.msra.mxu0 0.0
    %1762 = vmatprep.subr.mxu0 0.0
    %1763 = vmatpush1.xpose.msra.mxu0 0.0
    %1764 = vmatprep.subr.mxu0 0.0
    %1765 = vmatpush1.xpose.msra.mxu0 0.0
    %1766 = vmatprep.subr.mxu0 0.0
    %1767 = vmatpush1.xpose.msra.mxu0 0.0
    %1768 = vmatprep.mubr.f32.mxu0 0.0
    %1769 = vmatmul.mubr.f32.gmra.mrb[0].mxu0 %v1692
    %v1770 = vpop.f32.mrb[0].mxu0
    %v1771 = vadd.f32 0.0, %v1770
    %v1772 = vpop.f32.mrb[0].mxu0
    %1773 = vmatprep.mubr.f32.mxu0 0.0
    %1774 = vmatmul.mubr.f32.gmra.mrb[0].mxu0 %v1694
    %v1775 = vpop.f32.mrb[0].mxu0
    %v1776 = vadd.f32 0.0, %v1775
    %v1777 = vpop.f32.mrb[0].mxu0
    %1778 = vmatprep.mubr.f32.mxu0 0.0
    %1779 = vmatmul.mubr.f32.gmra.mrb[0].mxu0 %v1696
    %v1780 = vpop.f32.mrb[0].mxu0
    %v1781 = vadd.f32 0.0, %v1780
    %v1782 = vpop.f32.mrb[0].mxu0
    %1783 = vdwg.mxu0
    %v1784 = vmul.f32 %v1771, 0.25
    %v1785 = vmul.f32 %v1776, 0.25
    %v1786 = vmul.f32 %v1781, 0.25
    %v1788 = vlaneseq
    %v1789 = vshrl.u32 %v1788, 7
    %v1790 = vsub.s32 0, %v1789
    %v1791 = vrot.slane %v1682, %v1790
    %v1793 = vadd.f32 %v1784, %v1791
    %v1794 = vadd.f32 %v1785, %v1791
    %v1795 = vadd.f32 %v1786, %v1791
    %v1796 = vsel %vm785, %v1793, -inf
    %1797 = vmax.xlane.f32.xlu0 %v1796
    %v1798 = vpop.xlane.xlu0 %1797
    %v1799 = vsel %vm785, %v1794, -inf
    %1800 = vmax.xlane.f32.xlu0 %v1799
    %v1801 = vpop.xlane.xlu0 %1800
    %v1802 = vsel %vm785, %v1795, -inf
    %1803 = vmax.xlane.f32.xlu0 %v1802
    %v1804 = vpop.xlane.xlu0 %1803
    %v1805 = vsub.f32 %v1793, %v1798
    %v1806 = vsub.f32 %v1794, %v1801
    %v1807 = vsub.f32 %v1795, %v1804
    %v1808 = vmul.f32 %v1805, 1.442695
    %v1809 = vpow.pop %v1808
    %v1810 = vmul.f32 %v1806, 1.442695
    %v1811 = vpow.pop %v1810
    %v1812 = vmul.f32 %v1807, 1.442695
    %v1813 = vpow.pop %v1812
    %v1814 = vsel %vm785, %v1809, 0.0
    %1815 = vadd.xlane.f32.xlu0 %v1814
    %v1816 = vpop.xlane.xlu0 %1815
    %v1817 = vsel %vm785, %v1811, 0.0
    %1818 = vadd.xlane.f32.xlu0 %v1817
    %v1819 = vpop.xlane.xlu0 %1818
    %v1820 = vsel %vm785, %v1813, 0.0
    %1821 = vadd.xlane.f32.xlu0 %v1820
    %v1822 = vpop.xlane.xlu0 %1821
    %v1823 = vrcp.pop %v1816
    %v1824 = vmul.f32 %v1809, %v1823
    %v1825 = vrcp.pop %v1819
    %v1826 = vmul.f32 %v1811, %v1825
    %v1827 = vrcp.pop %v1822
    %v1828 = vmul.f32 %v1813, %v1827
    %v1830 = vsel %vm785, %v1824, 0
    %v1833 = vsel %vm785, %v1826, 0
    %v1836 = vsel %vm785, %v1828, 0
    %1838 = vmatprep.subr.mxu0 0.0
    %1839 = vmatpush1.msra.mxu0 %v659
    %1840 = vmatprep.subr.mxu0 0.0
    %1841 = vmatpush1.msra.mxu0 %v665
    %1842 = vmatprep.subr.mxu0 0.0
    %1843 = vmatpush1.msra.mxu0 %v669
    %1844 = vmatprep.subr.mxu0 0.0
    %1845 = vmatpush1.msra.mxu0 0.0
    %1846 = vmatprep.subr.mxu0 0.0
    %1847 = vmatpush1.msra.mxu0 0.0
    %1848 = vmatprep.subr.mxu0 0.0
    %1849 = vmatpush1.msra.mxu0 0.0
    %1850 = vmatprep.subr.mxu0 0.0
    %1851 = vmatpush1.msra.mxu0 0.0
    %1852 = vmatprep.subr.mxu0 0.0
    %1853 = vmatpush1.msra.mxu0 0.0
    %1854 = vmatprep.subr.mxu0 0.0
    %1855 = vmatpush1.msra.mxu0 0.0
    %1856 = vmatprep.subr.mxu0 0.0
    %1857 = vmatpush1.msra.mxu0 0.0
    %1858 = vmatprep.subr.mxu0 0.0
    %1859 = vmatpush1.msra.mxu0 0.0
    %1860 = vmatprep.subr.mxu0 0.0
    %1861 = vmatpush1.msra.mxu0 0.0
    %1862 = vmatprep.subr.mxu0 0.0
    %1863 = vmatpush1.msra.mxu0 0.0
    %1864 = vmatprep.subr.mxu0 0.0
    %1865 = vmatpush1.msra.mxu0 0.0
    %1866 = vmatprep.subr.mxu0 0.0
    %1867 = vmatpush1.msra.mxu0 0.0
    %1868 = vmatprep.subr.mxu0 0.0
    %1869 = vmatpush1.msra.mxu0 0.0
    %1870 = vmatprep.subr.mxu0 0.0
    %1871 = vmatpush1.msra.mxu0 0.0
    %1872 = vmatprep.subr.mxu0 0.0
    %1873 = vmatpush1.msra.mxu0 0.0
    %1874 = vmatprep.subr.mxu0 0.0
    %1875 = vmatpush1.msra.mxu0 0.0
    %1876 = vmatprep.subr.mxu0 0.0
    %1877 = vmatpush1.msra.mxu0 0.0
    %1878 = vmatprep.subr.mxu0 0.0
    %1879 = vmatpush1.msra.mxu0 0.0
    %1880 = vmatprep.subr.mxu0 0.0
    %1881 = vmatpush1.msra.mxu0 0.0
    %1882 = vmatprep.subr.mxu0 0.0
    %1883 = vmatpush1.msra.mxu0 0.0
    %1884 = vmatprep.subr.mxu0 0.0
    %1885 = vmatpush1.msra.mxu0 0.0
    %1886 = vmatprep.subr.mxu0 0.0
    %1887 = vmatpush1.msra.mxu0 0.0
    %1888 = vmatprep.subr.mxu0 0.0
    %1889 = vmatpush1.msra.mxu0 0.0
    %1890 = vmatprep.subr.mxu0 0.0
    %1891 = vmatpush1.msra.mxu0 0.0
    %1892 = vmatprep.subr.mxu0 0.0
    %1893 = vmatpush1.msra.mxu0 0.0
    %1894 = vmatprep.subr.mxu0 0.0
    %1895 = vmatpush1.msra.mxu0 0.0
    %1896 = vmatprep.subr.mxu0 0.0
    %1897 = vmatpush1.msra.mxu0 0.0
    %1898 = vmatprep.subr.mxu0 0.0
    %1899 = vmatpush1.msra.mxu0 0.0
    %1900 = vmatprep.subr.mxu0 0.0
    %1901 = vmatpush1.msra.mxu0 0.0
    %1902 = vmatprep.mubr.f32.mxu0 0.0
    %1903 = vmatmul.mubr.f32.gmra.mrb[0].mxu0 %v1830
    %v1904 = vpop.f32.mrb[0].mxu0
    %v1905 = vadd.f32 0.0, %v1904
    %v1906 = vpop.f32.mrb[0].mxu0
    %1907 = vmatprep.mubr.f32.mxu0 0.0
    %1908 = vmatmul.mubr.f32.gmra.mrb[0].mxu0 %v1833
    %v1909 = vpop.f32.mrb[0].mxu0
    %v1910 = vadd.f32 0.0, %v1909
    %v1911 = vpop.f32.mrb[0].mxu0
    %1912 = vmatprep.mubr.f32.mxu0 0.0
    %1913 = vmatmul.mubr.f32.gmra.mrb[0].mxu0 %v1836
    %v1914 = vpop.f32.mrb[0].mxu0
    %v1915 = vadd.f32 0.0, %v1914
    %v1916 = vpop.f32.mrb[0].mxu0
    %1917 = vdwg.mxu0
    %1918 = vrot.lane.b32.xlu0 %v657, 112
    %v1919 = vpop.permute.xlu0 %1918
    %1920 = vrot.lane.b32.xlu0 %v663, 112
    %v1921 = vpop.permute.xlu0 %1920
    %1922 = vrot.lane.b32.xlu0 %v667, 112
    %v1923 = vpop.permute.xlu0 %1922
    %1924 = vrot.lane.b32.xlu0 %v657, 48
    %v1925 = vpop.permute.xlu0 %1924
    %1926 = vrot.lane.b32.xlu0 %v663, 48
    %v1927 = vpop.permute.xlu0 %1926
    %1928 = vrot.lane.b32.xlu0 %v667, 48
    %v1929 = vpop.permute.xlu0 %1928
    %v1930 = vsel %vm261, %v1919, 0
    %v1932 = vsel %vm261, %v1921, 0
    %v1934 = vsel %vm261, %v1923, 0
    %v1936 = vsel %vm261, %v1925, 0
    %v1938 = vsel %vm261, %v1927, 0
    %v1940 = vsel %vm261, %v1929, 0
    %1942 = vmatprep.subr.mxu0 0.0
    %1943 = vmatpush1.xpose.msra.mxu0 %v1936
    %1944 = vmatprep.subr.mxu0 0.0
    %1945 = vmatpush1.xpose.msra.mxu0 %v1938
    %1946 = vmatprep.subr.mxu0 0.0
    %1947 = vmatpush1.xpose.msra.mxu0 %v1940
    %1948 = vmatprep.subr.mxu0 0.0
    %1949 = vmatpush1.xpose.msra.mxu0 0.0
    %1950 = vmatprep.subr.mxu0 0.0
    %1951 = vmatpush1.xpose.msra.mxu0 0.0
    %1952 = vmatprep.subr.mxu0 0.0
    %1953 = vmatpush1.xpose.msra.mxu0 0.0
    %1954 = vmatprep.subr.mxu0 0.0
    %1955 = vmatpush1.xpose.msra.mxu0 0.0
    %1956 = vmatprep.subr.mxu0 0.0
    %1957 = vmatpush1.xpose.msra.mxu0 0.0
    %1958 = vmatprep.subr.mxu0 0.0
    %1959 = vmatpush1.xpose.msra.mxu0 0.0
    %1960 = vmatprep.subr.mxu0 0.0
    %1961 = vmatpush1.xpose.msra.mxu0 0.0
    %1962 = vmatprep.subr.mxu0 0.0
    %1963 = vmatpush1.xpose.msra.mxu0 0.0
    %1964 = vmatprep.subr.mxu0 0.0
    %1965 = vmatpush1.xpose.msra.mxu0 0.0
    %1966 = vmatprep.subr.mxu0 0.0
    %1967 = vmatpush1.xpose.msra.mxu0 0.0
    %1968 = vmatprep.subr.mxu0 0.0
    %1969 = vmatpush1.xpose.msra.mxu0 0.0
    %1970 = vmatprep.subr.mxu0 0.0
    %1971 = vmatpush1.xpose.msra.mxu0 0.0
    %1972 = vmatprep.subr.mxu0 0.0
    %1973 = vmatpush1.xpose.msra.mxu0 0.0
    %1974 = vmatprep.subr.mxu0 0.0
    %1975 = vmatpush1.xpose.msra.mxu0 0.0
    %1976 = vmatprep.subr.mxu0 0.0
    %1977 = vmatpush1.xpose.msra.mxu0 0.0
    %1978 = vmatprep.subr.mxu0 0.0
    %1979 = vmatpush1.xpose.msra.mxu0 0.0
    %1980 = vmatprep.subr.mxu0 0.0
    %1981 = vmatpush1.xpose.msra.mxu0 0.0
    %1982 = vmatprep.subr.mxu0 0.0
    %1983 = vmatpush1.xpose.msra.mxu0 0.0
    %1984 = vmatprep.subr.mxu0 0.0
    %1985 = vmatpush1.xpose.msra.mxu0 0.0
    %1986 = vmatprep.subr.mxu0 0.0
    %1987 = vmatpush1.xpose.msra.mxu0 0.0
    %1988 = vmatprep.subr.mxu0 0.0
    %1989 = vmatpush1.xpose.msra.mxu0 0.0
    %1990 = vmatprep.subr.mxu0 0.0
    %1991 = vmatpush1.xpose.msra.mxu0 0.0
    %1992 = vmatprep.subr.mxu0 0.0
    %1993 = vmatpush1.xpose.msra.mxu0 0.0
    %1994 = vmatprep.subr.mxu0 0.0
    %1995 = vmatpush1.xpose.msra.mxu0 0.0
    %1996 = vmatprep.subr.mxu0 0.0
    %1997 = vmatpush1.xpose.msra.mxu0 0.0
    %1998 = vmatprep.subr.mxu0 0.0
    %1999 = vmatpush1.xpose.msra.mxu0 0.0
    %2000 = vmatprep.subr.mxu0 0.0
    %2001 = vmatpush1.xpose.msra.mxu0 0.0
    %2002 = vmatprep.subr.mxu0 0.0
    %2003 = vmatpush1.xpose.msra.mxu0 0.0
    %2004 = vmatprep.subr.mxu0 0.0
    %2005 = vmatpush1.xpose.msra.mxu0 0.0
    %2006 = vmatprep.mubr.f32.mxu0 0.0
    %2007 = vmatmul.mubr.f32.gmra.mrb[0].mxu0 %v1930
    %v2008 = vpop.f32.mrb[0].mxu0
    %v2009 = vadd.f32 0.0, %v2008
    %v2010 = vpop.f32.mrb[0].mxu0
    %2011 = vmatprep.mubr.f32.mxu0 0.0
    %2012 = vmatmul.mubr.f32.gmra.mrb[0].mxu0 %v1932
    %v2013 = vpop.f32.mrb[0].mxu0
    %v2014 = vadd.f32 0.0, %v2013
    %v2015 = vpop.f32.mrb[0].mxu0
    %2016 = vmatprep.mubr.f32.mxu0 0.0
    %2017 = vmatmul.mubr.f32.gmra.mrb[0].mxu0 %v1934
    %v2018 = vpop.f32.mrb[0].mxu0
    %v2019 = vadd.f32 0.0, %v2018
    %v2020 = vpop.f32.mrb[0].mxu0
    %2021 = vdwg.mxu0
    %v2022 = vmul.f32 %v2009, 0.25
    %v2023 = vmul.f32 %v2014, 0.25
    %v2024 = vmul.f32 %v2019, 0.25
    %v2025 = vadd.f32 %v2022, %v1791
    %v2026 = vadd.f32 %v2023, %v1791
    %v2027 = vadd.f32 %v2024, %v1791
    %v2028 = vsel %vm785, %v2025, -inf
    %2029 = vmax.xlane.f32.xlu0 %v2028
    %v2030 = vpop.xlane.xlu0 %2029
    %v2031 = vsel %vm785, %v2026, -inf
    %2032 = vmax.xlane.f32.xlu0 %v2031
    %v2033 = vpop.xlane.xlu0 %2032
    %v2034 = vsel %vm785, %v2027, -inf
    %2035 = vmax.xlane.f32.xlu0 %v2034
    %v2036 = vpop.xlane.xlu0 %2035
    %v2037 = vsub.f32 %v2025, %v2030
    %v2038 = vsub.f32 %v2026, %v2033
    %v2039 = vsub.f32 %v2027, %v2036
    %v2040 = vmul.f32 %v2037, 1.442695
    %v2041 = vpow.pop %v2040
    %v2042 = vmul.f32 %v2038, 1.442695
    %v2043 = vpow.pop %v2042
    %v2044 = vmul.f32 %v2039, 1.442695
    %v2045 = vpow.pop %v2044
    %v2046 = vsel %vm785, %v2041, 0.0
    %2047 = vadd.xlane.f32.xlu0 %v2046
    %v2048 = vpop.xlane.xlu0 %2047
    %v2049 = vsel %vm785, %v2043, 0.0
    %2050 = vadd.xlane.f32.xlu0 %v2049
    %v2051 = vpop.xlane.xlu0 %2050
    %v2052 = vsel %vm785, %v2045, 0.0
    %2053 = vadd.xlane.f32.xlu0 %v2052
    %v2054 = vpop.xlane.xlu0 %2053
    %v2055 = vrcp.pop %v2048
    %v2056 = vmul.f32 %v2041, %v2055
    %v2057 = vrcp.pop %v2051
    %v2058 = vmul.f32 %v2043, %v2057
    %v2059 = vrcp.pop %v2054
    %v2060 = vmul.f32 %v2045, %v2059
    %2064 = vrot.lane.b32.xlu0 %v659, 112
    %v2065 = vpop.permute.xlu0 %2064
    %2066 = vrot.lane.b32.xlu0 %v665, 112
    %v2067 = vpop.permute.xlu0 %2066
    %2068 = vrot.lane.b32.xlu0 %v669, 112
    %v2069 = vpop.permute.xlu0 %2068
    %v2074 = vsel %vm785, %v2056, 0
    %v2077 = vsel %vm785, %v2058, 0
    %v2080 = vsel %vm785, %v2060, 0
    %2082 = vmatprep.subr.mxu0 0.0
    %2083 = vmatpush1.msra.mxu0 %v2065
    %2084 = vmatprep.subr.mxu0 0.0
    %2085 = vmatpush1.msra.mxu0 %v2067
    %2086 = vmatprep.subr.mxu0 0.0
    %2087 = vmatpush1.msra.mxu0 %v2069
    %2088 = vmatprep.subr.mxu0 0.0
    %2089 = vmatpush1.msra.mxu0 0.0
    %2090 = vmatprep.subr.mxu0 0.0
    %2091 = vmatpush1.msra.mxu0 0.0
    %2092 = vmatprep.subr.mxu0 0.0
    %2093 = vmatpush1.msra.mxu0 0.0
    %2094 = vmatprep.subr.mxu0 0.0
    %2095 = vmatpush1.msra.mxu0 0.0
    %2096 = vmatprep.subr.mxu0 0.0
    %2097 = vmatpush1.msra.mxu0 0.0
    %2098 = vmatprep.subr.mxu0 0.0
    %2099 = vmatpush1.msra.mxu0 0.0
    %2100 = vmatprep.subr.mxu0 0.0
    %2101 = vmatpush1.msra.mxu0 0.0
    %2102 = vmatprep.subr.mxu0 0.0
    %2103 = vmatpush1.msra.mxu0 0.0
    %2104 = vmatprep.subr.mxu0 0.0
    %2105 = vmatpush1.msra.mxu0 0.0
    %2106 = vmatprep.subr.mxu0 0.0
    %2107 = vmatpush1.msra.mxu0 0.0
    %2108 = vmatprep.subr.mxu0 0.0
    %2109 = vmatpush1.msra.mxu0 0.0
    %2110 = vmatprep.subr.mxu0 0.0
    %2111 = vmatpush1.msra.mxu0 0.0
    %2112 = vmatprep.subr.mxu0 0.0
    %2113 = vmatpush1.msra.mxu0 0.0
    %2114 = vmatprep.subr.mxu0 0.0
    %2115 = vmatpush1.msra.mxu0 0.0
    %2116 = vmatprep.subr.mxu0 0.0
    %2117 = vmatpush1.msra.mxu0 0.0
    %2118 = vmatprep.subr.mxu0 0.0
    %2119 = vmatpush1.msra.mxu0 0.0
    %2120 = vmatprep.subr.mxu0 0.0
    %2121 = vmatpush1.msra.mxu0 0.0
    %2122 = vmatprep.subr.mxu0 0.0
    %2123 = vmatpush1.msra.mxu0 0.0
    %2124 = vmatprep.subr.mxu0 0.0
    %2125 = vmatpush1.msra.mxu0 0.0
    %2126 = vmatprep.subr.mxu0 0.0
    %2127 = vmatpush1.msra.mxu0 0.0
    %2128 = vmatprep.subr.mxu0 0.0
    %2129 = vmatpush1.msra.mxu0 0.0
    %2130 = vmatprep.subr.mxu0 0.0
    %2131 = vmatpush1.msra.mxu0 0.0
    %2132 = vmatprep.subr.mxu0 0.0
    %2133 = vmatpush1.msra.mxu0 0.0
    %2134 = vmatprep.subr.mxu0 0.0
    %2135 = vmatpush1.msra.mxu0 0.0
    %2136 = vmatprep.subr.mxu0 0.0
    %2137 = vmatpush1.msra.mxu0 0.0
    %2138 = vmatprep.subr.mxu0 0.0
    %2139 = vmatpush1.msra.mxu0 0.0
    %2140 = vmatprep.subr.mxu0 0.0
    %2141 = vmatpush1.msra.mxu0 0.0
    %2142 = vmatprep.subr.mxu0 0.0
    %2143 = vmatpush1.msra.mxu0 0.0
    %2144 = vmatprep.subr.mxu0 0.0
    %2145 = vmatpush1.msra.mxu0 0.0
    %2146 = vmatprep.mubr.f32.mxu0 0.0
    %2147 = vmatmul.mubr.f32.gmra.mrb[0].mxu0 %v2074
    %v2148 = vpop.f32.mrb[0].mxu0
    %v2149 = vadd.f32 0.0, %v2148
    %v2150 = vpop.f32.mrb[0].mxu0
    %2151 = vmatprep.mubr.f32.mxu0 0.0
    %2152 = vmatmul.mubr.f32.gmra.mrb[0].mxu0 %v2077
    %v2153 = vpop.f32.mrb[0].mxu0
    %v2154 = vadd.f32 0.0, %v2153
    %v2155 = vpop.f32.mrb[0].mxu0
    %2156 = vmatprep.mubr.f32.mxu0 0.0
    %2157 = vmatmul.mubr.f32.gmra.mrb[0].mxu0 %v2080
    %v2158 = vpop.f32.mrb[0].mxu0
    %v2159 = vadd.f32 0.0, %v2158
    %v2160 = vpop.f32.mrb[0].mxu0
    %2161 = vdwg.mxu0
    %2162 = vrot.lane.b32.xlu0 %v657, 96
    %v2163 = vpop.permute.xlu0 %2162
    %2164 = vrot.lane.b32.xlu0 %v663, 96
    %v2165 = vpop.permute.xlu0 %2164
    %2166 = vrot.lane.b32.xlu0 %v667, 96
    %v2167 = vpop.permute.xlu0 %2166
    %2168 = vrot.lane.b32.xlu0 %v657, 32
    %v2169 = vpop.permute.xlu0 %2168
    %2170 = vrot.lane.b32.xlu0 %v663, 32
    %v2171 = vpop.permute.xlu0 %2170
    %2172 = vrot.lane.b32.xlu0 %v667, 32
    %v2173 = vpop.permute.xlu0 %2172
    %v2174 = vsel %vm261, %v2163, 0
    %v2176 = vsel %vm261, %v2165, 0
    %v2178 = vsel %vm261, %v2167, 0
    %v2180 = vsel %vm261, %v2169, 0
    %v2182 = vsel %vm261, %v2171, 0
    %v2184 = vsel %vm261, %v2173, 0
    %2186 = vmatprep.subr.mxu0 0.0
    %2187 = vmatpush1.xpose.msra.mxu0 %v2180
    %2188 = vmatprep.subr.mxu0 0.0
    %2189 = vmatpush1.xpose.msra.mxu0 %v2182
    %2190 = vmatprep.subr.mxu0 0.0
    %2191 = vmatpush1.xpose.msra.mxu0 %v2184
    %2192 = vmatprep.subr.mxu0 0.0
    %2193 = vmatpush1.xpose.msra.mxu0 0.0
    %2194 = vmatprep.subr.mxu0 0.0
    %2195 = vmatpush1.xpose.msra.mxu0 0.0
    %2196 = vmatprep.subr.mxu0 0.0
    %2197 = vmatpush1.xpose.msra.mxu0 0.0
    %2198 = vmatprep.subr.mxu0 0.0
    %2199 = vmatpush1.xpose.msra.mxu0 0.0
    %2200 = vmatprep.subr.mxu0 0.0
    %2201 = vmatpush1.xpose.msra.mxu0 0.0
    %2202 = vmatprep.subr.mxu0 0.0
    %2203 = vmatpush1.xpose.msra.mxu0 0.0
    %2204 = vmatprep.subr.mxu0 0.0
    %2205 = vmatpush1.xpose.msra.mxu0 0.0
    %2206 = vmatprep.subr.mxu0 0.0
    %2207 = vmatpush1.xpose.msra.mxu0 0.0
    %2208 = vmatprep.subr.mxu0 0.0
    %2209 = vmatpush1.xpose.msra.mxu0 0.0
    %2210 = vmatprep.subr.mxu0 0.0
    %2211 = vmatpush1.xpose.msra.mxu0 0.0
    %2212 = vmatprep.subr.mxu0 0.0
    %2213 = vmatpush1.xpose.msra.mxu0 0.0
    %2214 = vmatprep.subr.mxu0 0.0
    %2215 = vmatpush1.xpose.msra.mxu0 0.0
    %2216 = vmatprep.subr.mxu0 0.0
    %2217 = vmatpush1.xpose.msra.mxu0 0.0
    %2218 = vmatprep.subr.mxu0 0.0
    %2219 = vmatpush1.xpose.msra.mxu0 0.0
    %2220 = vmatprep.subr.mxu0 0.0
    %2221 = vmatpush1.xpose.msra.mxu0 0.0
    %2222 = vmatprep.subr.mxu0 0.0
    %2223 = vmatpush1.xpose.msra.mxu0 0.0
    %2224 = vmatprep.subr.mxu0 0.0
    %2225 = vmatpush1.xpose.msra.mxu0 0.0
    %2226 = vmatprep.subr.mxu0 0.0
    %2227 = vmatpush1.xpose.msra.mxu0 0.0
    %2228 = vmatprep.subr.mxu0 0.0
    %2229 = vmatpush1.xpose.msra.mxu0 0.0
    %2230 = vmatprep.subr.mxu0 0.0
    %2231 = vmatpush1.xpose.msra.mxu0 0.0
    %2232 = vmatprep.subr.mxu0 0.0
    %2233 = vmatpush1.xpose.msra.mxu0 0.0
    %2234 = vmatprep.subr.mxu0 0.0
    %2235 = vmatpush1.xpose.msra.mxu0 0.0
    %2236 = vmatprep.subr.mxu0 0.0
    %2237 = vmatpush1.xpose.msra.mxu0 0.0
    %2238 = vmatprep.subr.mxu0 0.0
    %2239 = vmatpush1.xpose.msra.mxu0 0.0
    %2240 = vmatprep.subr.mxu0 0.0
    %2241 = vmatpush1.xpose.msra.mxu0 0.0
    %2242 = vmatprep.subr.mxu0 0.0
    %2243 = vmatpush1.xpose.msra.mxu0 0.0
    %2244 = vmatprep.subr.mxu0 0.0
    %2245 = vmatpush1.xpose.msra.mxu0 0.0
    %2246 = vmatprep.subr.mxu0 0.0
    %2247 = vmatpush1.xpose.msra.mxu0 0.0
    %2248 = vmatprep.subr.mxu0 0.0
    %2249 = vmatpush1.xpose.msra.mxu0 0.0
    %2250 = vmatprep.mubr.f32.mxu0 0.0
    %2251 = vmatmul.mubr.f32.gmra.mrb[0].mxu0 %v2174
    %v2252 = vpop.f32.mrb[0].mxu0
    %v2253 = vadd.f32 0.0, %v2252
    %v2254 = vpop.f32.mrb[0].mxu0
    %2255 = vmatprep.mubr.f32.mxu0 0.0
    %2256 = vmatmul.mubr.f32.gmra.mrb[0].mxu0 %v2176
    %v2257 = vpop.f32.mrb[0].mxu0
    %v2258 = vadd.f32 0.0, %v2257
    %v2259 = vpop.f32.mrb[0].mxu0
    %2260 = vmatprep.mubr.f32.mxu0 0.0
    %2261 = vmatmul.mubr.f32.gmra.mrb[0].mxu0 %v2178
    %v2262 = vpop.f32.mrb[0].mxu0
    %v2263 = vadd.f32 0.0, %v2262
    %v2264 = vpop.f32.mrb[0].mxu0
    %2265 = vdwg.mxu0
    %v2266 = vmul.f32 %v2253, 0.25
    %v2267 = vmul.f32 %v2258, 0.25
    %v2268 = vmul.f32 %v2263, 0.25
    %v2269 = vadd.f32 %v2266, %v1791
    %v2270 = vadd.f32 %v2267, %v1791
    %v2271 = vadd.f32 %v2268, %v1791
    %v2272 = vsel %vm785, %v2269, -inf
    %2273 = vmax.xlane.f32.xlu0 %v2272
    %v2274 = vpop.xlane.xlu0 %2273
    %v2275 = vsel %vm785, %v2270, -inf
    %2276 = vmax.xlane.f32.xlu0 %v2275
    %v2277 = vpop.xlane.xlu0 %2276
    %v2278 = vsel %vm785, %v2271, -inf
    %2279 = vmax.xlane.f32.xlu0 %v2278
    %v2280 = vpop.xlane.xlu0 %2279
    %v2281 = vsub.f32 %v2269, %v2274
    %v2282 = vsub.f32 %v2270, %v2277
    %v2283 = vsub.f32 %v2271, %v2280
    %v2284 = vmul.f32 %v2281, 1.442695
    %v2285 = vpow.pop %v2284
    %v2286 = vmul.f32 %v2282, 1.442695
    %v2287 = vpow.pop %v2286
    %v2288 = vmul.f32 %v2283, 1.442695
    %v2289 = vpow.pop %v2288
    %v2290 = vsel %vm785, %v2285, 0.0
    %2291 = vadd.xlane.f32.xlu0 %v2290
    %v2292 = vpop.xlane.xlu0 %2291
    %v2293 = vsel %vm785, %v2287, 0.0
    %2294 = vadd.xlane.f32.xlu0 %v2293
    %v2295 = vpop.xlane.xlu0 %2294
    %v2296 = vsel %vm785, %v2289, 0.0
    %2297 = vadd.xlane.f32.xlu0 %v2296
    %v2298 = vpop.xlane.xlu0 %2297
    %v2299 = vrcp.pop %v2292
    %v2300 = vmul.f32 %v2285, %v2299
    %v2301 = vrcp.pop %v2295
    %v2302 = vmul.f32 %v2287, %v2301
    %v2303 = vrcp.pop %v2298
    %v2304 = vmul.f32 %v2289, %v2303
    %2305 = vrot.lane.b32.xlu0 %v659, 96
    %v2306 = vpop.permute.xlu0 %2305
    %2307 = vrot.lane.b32.xlu0 %v665, 96
    %v2308 = vpop.permute.xlu0 %2307
    %2309 = vrot.lane.b32.xlu0 %v669, 96
    %v2310 = vpop.permute.xlu0 %2309
    %v2315 = vsel %vm785, %v2300, 0
    %v2318 = vsel %vm785, %v2302, 0
    %v2321 = vsel %vm785, %v2304, 0
    %2323 = vmatprep.subr.mxu0 0.0
    %2324 = vmatpush1.msra.mxu0 %v2306
    %2325 = vmatprep.subr.mxu0 0.0
    %2326 = vmatpush1.msra.mxu0 %v2308
    %2327 = vmatprep.subr.mxu0 0.0
    %2328 = vmatpush1.msra.mxu0 %v2310
    %2329 = vmatprep.subr.mxu0 0.0
    %2330 = vmatpush1.msra.mxu0 0.0
    %2331 = vmatprep.subr.mxu0 0.0
    %2332 = vmatpush1.msra.mxu0 0.0
    %2333 = vmatprep.subr.mxu0 0.0
    %2334 = vmatpush1.msra.mxu0 0.0
    %2335 = vmatprep.subr.mxu0 0.0
    %2336 = vmatpush1.msra.mxu0 0.0
    %2337 = vmatprep.subr.mxu0 0.0
    %2338 = vmatpush1.msra.mxu0 0.0
    %2339 = vmatprep.subr.mxu0 0.0
    %2340 = vmatpush1.msra.mxu0 0.0
    %2341 = vmatprep.subr.mxu0 0.0
    %2342 = vmatpush1.msra.mxu0 0.0
    %2343 = vmatprep.subr.mxu0 0.0
    %2344 = vmatpush1.msra.mxu0 0.0
    %2345 = vmatprep.subr.mxu0 0.0
    %2346 = vmatpush1.msra.mxu0 0.0
    %2347 = vmatprep.subr.mxu0 0.0
    %2348 = vmatpush1.msra.mxu0 0.0
    %2349 = vmatprep.subr.mxu0 0.0
    %2350 = vmatpush1.msra.mxu0 0.0
    %2351 = vmatprep.subr.mxu0 0.0
    %2352 = vmatpush1.msra.mxu0 0.0
    %2353 = vmatprep.subr.mxu0 0.0
    %2354 = vmatpush1.msra.mxu0 0.0
    %2355 = vmatprep.subr.mxu0 0.0
    %2356 = vmatpush1.msra.mxu0 0.0
    %2357 = vmatprep.subr.mxu0 0.0
    %2358 = vmatpush1.msra.mxu0 0.0
    %2359 = vmatprep.subr.mxu0 0.0
    %2360 = vmatpush1.msra.mxu0 0.0
    %2361 = vmatprep.subr.mxu0 0.0
    %2362 = vmatpush1.msra.mxu0 0.0
    %2363 = vmatprep.subr.mxu0 0.0
    %2364 = vmatpush1.msra.mxu0 0.0
    %2365 = vmatprep.subr.mxu0 0.0
    %2366 = vmatpush1.msra.mxu0 0.0
    %2367 = vmatprep.subr.mxu0 0.0
    %2368 = vmatpush1.msra.mxu0 0.0
    %2369 = vmatprep.subr.mxu0 0.0
    %2370 = vmatpush1.msra.mxu0 0.0
    %2371 = vmatprep.subr.mxu0 0.0
    %2372 = vmatpush1.msra.mxu0 0.0
    %2373 = vmatprep.subr.mxu0 0.0
    %2374 = vmatpush1.msra.mxu0 0.0
    %2375 = vmatprep.subr.mxu0 0.0
    %2376 = vmatpush1.msra.mxu0 0.0
    %2377 = vmatprep.subr.mxu0 0.0
    %2378 = vmatpush1.msra.mxu0 0.0
    %2379 = vmatprep.subr.mxu0 0.0
    %2380 = vmatpush1.msra.mxu0 0.0
    %2381 = vmatprep.subr.mxu0 0.0
    %2382 = vmatpush1.msra.mxu0 0.0
    %2383 = vmatprep.subr.mxu0 0.0
    %2384 = vmatpush1.msra.mxu0 0.0
    %2385 = vmatprep.subr.mxu0 0.0
    %2386 = vmatpush1.msra.mxu0 0.0
    %2387 = vmatprep.mubr.f32.mxu0 0.0
    %2388 = vmatmul.mubr.f32.gmra.mrb[0].mxu0 %v2315
    %v2389 = vpop.f32.mrb[0].mxu0
    %v2390 = vadd.f32 0.0, %v2389
    %v2391 = vpop.f32.mrb[0].mxu0
    %2392 = vmatprep.mubr.f32.mxu0 0.0
    %2393 = vmatmul.mubr.f32.gmra.mrb[0].mxu0 %v2318
    %v2394 = vpop.f32.mrb[0].mxu0
    %v2395 = vadd.f32 0.0, %v2394
    %v2396 = vpop.f32.mrb[0].mxu0
    %2397 = vmatprep.mubr.f32.mxu0 0.0
    %2398 = vmatmul.mubr.f32.gmra.mrb[0].mxu0 %v2321
    %v2399 = vpop.f32.mrb[0].mxu0
    %v2400 = vadd.f32 0.0, %v2399
    %v2401 = vpop.f32.mrb[0].mxu0
    %2402 = vdwg.mxu0
    %2403 = vrot.lane.b32.xlu0 %v657, 80
    %v2404 = vpop.permute.xlu0 %2403
    %2405 = vrot.lane.b32.xlu0 %v663, 80
    %v2406 = vpop.permute.xlu0 %2405
    %2407 = vrot.lane.b32.xlu0 %v667, 80
    %v2408 = vpop.permute.xlu0 %2407
    %2409 = vrot.lane.b32.xlu0 %v657, 16
    %v2410 = vpop.permute.xlu0 %2409
    %2411 = vrot.lane.b32.xlu0 %v663, 16
    %v2412 = vpop.permute.xlu0 %2411
    %2413 = vrot.lane.b32.xlu0 %v667, 16
    %v2414 = vpop.permute.xlu0 %2413
    %v2415 = vsel %vm261, %v2404, 0
    %v2417 = vsel %vm261, %v2406, 0
    %v2419 = vsel %vm261, %v2408, 0
    %v2421 = vsel %vm261, %v2410, 0
    %v2423 = vsel %vm261, %v2412, 0
    %v2425 = vsel %vm261, %v2414, 0
    %2427 = vmatprep.subr.mxu0 0.0
    %2428 = vmatpush1.xpose.msra.mxu0 %v2421
    %2429 = vmatprep.subr.mxu0 0.0
    %2430 = vmatpush1.xpose.msra.mxu0 %v2423
    %2431 = vmatprep.subr.mxu0 0.0
    %2432 = vmatpush1.xpose.msra.mxu0 %v2425
    %2433 = vmatprep.subr.mxu0 0.0
    %2434 = vmatpush1.xpose.msra.mxu0 0.0
    %2435 = vmatprep.subr.mxu0 0.0
    %2436 = vmatpush1.xpose.msra.mxu0 0.0
    %2437 = vmatprep.subr.mxu0 0.0
    %2438 = vmatpush1.xpose.msra.mxu0 0.0
    %2439 = vmatprep.subr.mxu0 0.0
    %2440 = vmatpush1.xpose.msra.mxu0 0.0
    %2441 = vmatprep.subr.mxu0 0.0
    %2442 = vmatpush1.xpose.msra.mxu0 0.0
    %2443 = vmatprep.subr.mxu0 0.0
    %2444 = vmatpush1.xpose.msra.mxu0 0.0
    %2445 = vmatprep.subr.mxu0 0.0
    %2446 = vmatpush1.xpose.msra.mxu0 0.0
    %2447 = vmatprep.subr.mxu0 0.0
    %2448 = vmatpush1.xpose.msra.mxu0 0.0
    %2449 = vmatprep.subr.mxu0 0.0
    %2450 = vmatpush1.xpose.msra.mxu0 0.0
    %2451 = vmatprep.subr.mxu0 0.0
    %2452 = vmatpush1.xpose.msra.mxu0 0.0
    %2453 = vmatprep.subr.mxu0 0.0
    %2454 = vmatpush1.xpose.msra.mxu0 0.0
    %2455 = vmatprep.subr.mxu0 0.0
    %2456 = vmatpush1.xpose.msra.mxu0 0.0
    %2457 = vmatprep.subr.mxu0 0.0
    %2458 = vmatpush1.xpose.msra.mxu0 0.0
    %2459 = vmatprep.subr.mxu0 0.0
    %2460 = vmatpush1.xpose.msra.mxu0 0.0
    %2461 = vmatprep.subr.mxu0 0.0
    %2462 = vmatpush1.xpose.msra.mxu0 0.0
    %2463 = vmatprep.subr.mxu0 0.0
    %2464 = vmatpush1.xpose.msra.mxu0 0.0
    %2465 = vmatprep.subr.mxu0 0.0
    %2466 = vmatpush1.xpose.msra.mxu0 0.0
    %2467 = vmatprep.subr.mxu0 0.0
    %2468 = vmatpush1.xpose.msra.mxu0 0.0
    %2469 = vmatprep.subr.mxu0 0.0
    %2470 = vmatpush1.xpose.msra.mxu0 0.0
    %2471 = vmatprep.subr.mxu0 0.0
    %2472 = vmatpush1.xpose.msra.mxu0 0.0
    %2473 = vmatprep.subr.mxu0 0.0
    %2474 = vmatpush1.xpose.msra.mxu0 0.0
    %2475 = vmatprep.subr.mxu0 0.0
    %2476 = vmatpush1.xpose.msra.mxu0 0.0
    %2477 = vmatprep.subr.mxu0 0.0
    %2478 = vmatpush1.xpose.msra.mxu0 0.0
    %2479 = vmatprep.subr.mxu0 0.0
    %2480 = vmatpush1.xpose.msra.mxu0 0.0
    %2481 = vmatprep.subr.mxu0 0.0
    %2482 = vmatpush1.xpose.msra.mxu0 0.0
    %2483 = vmatprep.subr.mxu0 0.0
    %2484 = vmatpush1.xpose.msra.mxu0 0.0
    %2485 = vmatprep.subr.mxu0 0.0
    %2486 = vmatpush1.xpose.msra.mxu0 0.0
    %2487 = vmatprep.subr.mxu0 0.0
    %2488 = vmatpush1.xpose.msra.mxu0 0.0
    %2489 = vmatprep.subr.mxu0 0.0
    %2490 = vmatpush1.xpose.msra.mxu0 0.0
    %2491 = vmatprep.mubr.f32.mxu0 0.0
    %2492 = vmatmul.mubr.f32.gmra.mrb[0].mxu0 %v2415
    %v2493 = vpop.f32.mrb[0].mxu0
    %v2494 = vadd.f32 0.0, %v2493
    %v2495 = vpop.f32.mrb[0].mxu0
    %2496 = vmatprep.mubr.f32.mxu0 0.0
    %2497 = vmatmul.mubr.f32.gmra.mrb[0].mxu0 %v2417
    %v2498 = vpop.f32.mrb[0].mxu0
    %v2499 = vadd.f32 0.0, %v2498
    %v2500 = vpop.f32.mrb[0].mxu0
    %2501 = vmatprep.mubr.f32.mxu0 0.0
    %2502 = vmatmul.mubr.f32.gmra.mrb[0].mxu0 %v2419
    %v2503 = vpop.f32.mrb[0].mxu0
    %v2504 = vadd.f32 0.0, %v2503
    %v2505 = vpop.f32.mrb[0].mxu0
    %2506 = vdwg.mxu0
    %v2507 = vmul.f32 %v2494, 0.25
    %v2508 = vmul.f32 %v2499, 0.25
    %v2509 = vmul.f32 %v2504, 0.25
    %v2510 = vadd.f32 %v2507, %v1791
    %v2511 = vadd.f32 %v2508, %v1791
    %v2512 = vadd.f32 %v2509, %v1791
    %v2513 = vsel %vm785, %v2510, -inf
    %2514 = vmax.xlane.f32.xlu0 %v2513
    %v2515 = vpop.xlane.xlu0 %2514
    %v2516 = vsel %vm785, %v2511, -inf
    %2517 = vmax.xlane.f32.xlu0 %v2516
    %v2518 = vpop.xlane.xlu0 %2517
    %v2519 = vsel %vm785, %v2512, -inf
    %2520 = vmax.xlane.f32.xlu0 %v2519
    %v2521 = vpop.xlane.xlu0 %2520
    %v2522 = vsub.f32 %v2510, %v2515
    %v2523 = vsub.f32 %v2511, %v2518
    %v2524 = vsub.f32 %v2512, %v2521
    %v2525 = vmul.f32 %v2522, 1.442695
    %v2526 = vpow.pop %v2525
    %v2527 = vmul.f32 %v2523, 1.442695
    %v2528 = vpow.pop %v2527
    %v2529 = vmul.f32 %v2524, 1.442695
    %v2530 = vpow.pop %v2529
    %v2531 = vsel %vm785, %v2526, 0.0
    %2532 = vadd.xlane.f32.xlu0 %v2531
    %v2533 = vpop.xlane.xlu0 %2532
    %v2534 = vsel %vm785, %v2528, 0.0
    %2535 = vadd.xlane.f32.xlu0 %v2534
    %v2536 = vpop.xlane.xlu0 %2535
    %v2537 = vsel %vm785, %v2530, 0.0
    %2538 = vadd.xlane.f32.xlu0 %v2537
    %v2539 = vpop.xlane.xlu0 %2538
    %v2540 = vrcp.pop %v2533
    %v2541 = vmul.f32 %v2526, %v2540
    %v2542 = vrcp.pop %v2536
    %v2543 = vmul.f32 %v2528, %v2542
    %v2544 = vrcp.pop %v2539
    %v2545 = vmul.f32 %v2530, %v2544
    %2546 = vrot.lane.b32.xlu0 %v659, 80
    %v2547 = vpop.permute.xlu0 %2546
    %2548 = vrot.lane.b32.xlu0 %v665, 80
    %v2549 = vpop.permute.xlu0 %2548
    %2550 = vrot.lane.b32.xlu0 %v669, 80
    %v2551 = vpop.permute.xlu0 %2550
    %v2556 = vsel %vm785, %v2541, 0
    %v2559 = vsel %vm785, %v2543, 0
    %v2562 = vsel %vm785, %v2545, 0
    %2564 = vmatprep.subr.mxu0 0.0
    %2565 = vmatpush1.msra.mxu0 %v2547
    %2566 = vmatprep.subr.mxu0 0.0
    %2567 = vmatpush1.msra.mxu0 %v2549
    %2568 = vmatprep.subr.mxu0 0.0
    %2569 = vmatpush1.msra.mxu0 %v2551
    %2570 = vmatprep.subr.mxu0 0.0
    %2571 = vmatpush1.msra.mxu0 0.0
    %2572 = vmatprep.subr.mxu0 0.0
    %2573 = vmatpush1.msra.mxu0 0.0
    %2574 = vmatprep.subr.mxu0 0.0
    %2575 = vmatpush1.msra.mxu0 0.0
    %2576 = vmatprep.subr.mxu0 0.0
    %2577 = vmatpush1.msra.mxu0 0.0
    %2578 = vmatprep.subr.mxu0 0.0
    %2579 = vmatpush1.msra.mxu0 0.0
    %2580 = vmatprep.subr.mxu0 0.0
    %2581 = vmatpush1.msra.mxu0 0.0
    %2582 = vmatprep.subr.mxu0 0.0
    %2583 = vmatpush1.msra.mxu0 0.0
    %2584 = vmatprep.subr.mxu0 0.0
    %2585 = vmatpush1.msra.mxu0 0.0
    %2586 = vmatprep.subr.mxu0 0.0
    %2587 = vmatpush1.msra.mxu0 0.0
    %2588 = vmatprep.subr.mxu0 0.0
    %2589 = vmatpush1.msra.mxu0 0.0
    %2590 = vmatprep.subr.mxu0 0.0
    %2591 = vmatpush1.msra.mxu0 0.0
    %2592 = vmatprep.subr.mxu0 0.0
    %2593 = vmatpush1.msra.mxu0 0.0
    %2594 = vmatprep.subr.mxu0 0.0
    %2595 = vmatpush1.msra.mxu0 0.0
    %2596 = vmatprep.subr.mxu0 0.0
    %2597 = vmatpush1.msra.mxu0 0.0
    %2598 = vmatprep.subr.mxu0 0.0
    %2599 = vmatpush1.msra.mxu0 0.0
    %2600 = vmatprep.subr.mxu0 0.0
    %2601 = vmatpush1.msra.mxu0 0.0
    %2602 = vmatprep.subr.mxu0 0.0
    %2603 = vmatpush1.msra.mxu0 0.0
    %2604 = vmatprep.subr.mxu0 0.0
    %2605 = vmatpush1.msra.mxu0 0.0
    %2606 = vmatprep.subr.mxu0 0.0
    %2607 = vmatpush1.msra.mxu0 0.0
    %2608 = vmatprep.subr.mxu0 0.0
    %2609 = vmatpush1.msra.mxu0 0.0
    %2610 = vmatprep.subr.mxu0 0.0
    %2611 = vmatpush1.msra.mxu0 0.0
    %2612 = vmatprep.subr.mxu0 0.0
    %2613 = vmatpush1.msra.mxu0 0.0
    %2614 = vmatprep.subr.mxu0 0.0
    %2615 = vmatpush1.msra.mxu0 0.0
    %2616 = vmatprep.subr.mxu0 0.0
    %2617 = vmatpush1.msra.mxu0 0.0
    %2618 = vmatprep.subr.mxu0 0.0
    %2619 = vmatpush1.msra.mxu0 0.0
    %2620 = vmatprep.subr.mxu0 0.0
    %2621 = vmatpush1.msra.mxu0 0.0
    %2622 = vmatprep.subr.mxu0 0.0
    %2623 = vmatpush1.msra.mxu0 0.0
    %2624 = vmatprep.subr.mxu0 0.0
    %2625 = vmatpush1.msra.mxu0 0.0
    %2626 = vmatprep.subr.mxu0 0.0
    %2627 = vmatpush1.msra.mxu0 0.0
    %2628 = vmatprep.mubr.f32.mxu0 0.0
    %2629 = vmatmul.mubr.f32.gmra.mrb[0].mxu0 %v2556
    %v2630 = vpop.f32.mrb[0].mxu0
    %v2631 = vadd.f32 0.0, %v2630
    %v2632 = vpop.f32.mrb[0].mxu0
    %2633 = vmatprep.mubr.f32.mxu0 0.0
    %2634 = vmatmul.mubr.f32.gmra.mrb[0].mxu0 %v2559
    %v2635 = vpop.f32.mrb[0].mxu0
    %v2636 = vadd.f32 0.0, %v2635
    %v2637 = vpop.f32.mrb[0].mxu0
    %2638 = vmatprep.mubr.f32.mxu0 0.0
    %2639 = vmatmul.mubr.f32.gmra.mrb[0].mxu0 %v2562
    %v2640 = vpop.f32.mrb[0].mxu0
    %v2641 = vadd.f32 0.0, %v2640
    %v2642 = vpop.f32.mrb[0].mxu0
    %2643 = vdwg.mxu0
    %2647 = vrot.lane.b32.xlu0 %v2149, 16
    %v2648 = vpop.permute.xlu0 %2647
    %2649 = vrot.lane.b32.xlu0 %v2154, 16
    %v2650 = vpop.permute.xlu0 %2649
    %2651 = vrot.lane.b32.xlu0 %v2159, 16
    %v2652 = vpop.permute.xlu0 %2651
    %2659 = vrot.lane.b32.xlu0 %v2390, 32
    %v2660 = vpop.permute.xlu0 %2659
    %2661 = vrot.lane.b32.xlu0 %v2395, 32
    %v2662 = vpop.permute.xlu0 %2661
    %2663 = vrot.lane.b32.xlu0 %v2400, 32
    %v2664 = vpop.permute.xlu0 %2663
    %2671 = vrot.lane.b32.xlu0 %v2631, 48
    %v2672 = vpop.permute.xlu0 %2671
    %2673 = vrot.lane.b32.xlu0 %v2636, 48
    %v2674 = vpop.permute.xlu0 %2673
    %2675 = vrot.lane.b32.xlu0 %v2641, 48
    %v2676 = vpop.permute.xlu0 %2675
    %v2680 = vsel %vm261, %v1905, %v2648
    %v2681 = vsel %vm261, %v1910, %v2650
    %v2682 = vsel %vm261, %v1915, %v2652
    %v2683 = vsel %vm1673, %v2680, %v2660
    %v2684 = vsel %vm1673, %v2681, %v2662
    %v2685 = vsel %vm1673, %v2682, %v2664
    %v2686 = vsel %vm1677, %v2683, %v2672
    %v2687 = vsel %vm1677, %v2684, %v2674
    %v2688 = vsel %vm1677, %v2685, %v2676
    %v2689 = vpack.c.bf16 %v1679, %v1678
    %v2690 = vpack.c.bf16 %v2686, %v1680
    %v2691 = vpack.c.bf16 %v2688, %v2687
    %v2692 = vld [vmem:[%s25] sm:$0xf]
    %v2693 = vld [vmem:[%s25 + $0x4] sm:$0xf]
    %v2694 = vld [vmem:[%s25 + $0x8] sm:$0xf]
    %v2695 = vld [vmem:[%s25 + $0xc] sm:$0xf]
    %v2696 = vld [vmem:[%s25 + $0x10] sm:$0xf]
    %v2697 = vld [vmem:[%s25 + $0x14] sm:$0xf]
    %v2698 = vld [vmem:[%s25 + $0x18] sm:$0xf]
    %v2699 = vld [vmem:[%s25 + $0x1c] sm:$0xf]
    %v2700 = vld [vmem:[%s27] sm:$0x1]
    %v2702 = vlaneseq
    %v2703 = vshrl.u32 %v2702, 7
    %v2704 = vsub.s32 0, %v2703
    %v2705 = vrot.slane %v2700, %v2704
    %v2715 = vunpack.c.l.b16 %v2692
    %v2716 = vunpack.c.l.b16 %v2693
    %v2717 = vunpack.c.l.b16 %v2694
    %v2718 = vunpack.c.l.b16 %v2695
    %v2719 = vunpack.c.l.b16 %v2696
    %v2720 = vunpack.c.l.b16 %v2697
    %v2721 = vunpack.c.l.b16 %v2698
    %v2722 = vunpack.c.l.b16 %v2699
    %v2723 = vpack.c.b16 %v2716, %v2715
    %v2724 = vpack.c.b16 %v2718, %v2717
    %v2725 = vpack.c.b16 %v2720, %v2719
    %v2726 = vpack.c.b16 %v2722, %v2721
    %v2732 = vsel %vm362, %v2689, 0
    %v2735 = vsel %vm362, %v2690, 0
    %v2738 = vsel %vm362, %v2691, 0
    %2740 = vmatprep.subr.bf16.mxu0 0
    %2741 = vmatpush1.bf16.msra.mxu0 %v2723
    %2742 = vmatprep.subr.bf16.mxu0 0
    %2743 = vmatpush1.bf16.msra.mxu0 %v2724
    %2744 = vmatprep.subr.bf16.mxu0 0
    %2745 = vmatpush1.bf16.msra.mxu0 %v2725
    %2746 = vmatprep.subr.bf16.mxu0 0
    %2747 = vmatpush1.bf16.msra.mxu0 %v2726
    %2748 = vmatprep.subr.bf16.mxu0 0
    %2749 = vmatpush1.bf16.msra.mxu0 0
    %2750 = vmatprep.subr.bf16.mxu0 0
    %2751 = vmatpush1.bf16.msra.mxu0 0
    %2752 = vmatprep.subr.bf16.mxu0 0
    %2753 = vmatpush1.bf16.msra.mxu0 0
    %2754 = vmatprep.subr.bf16.mxu0 0
    %2755 = vmatpush1.bf16.msra.mxu0 0
    %2756 = vmatprep.subr.bf16.mxu0 0
    %2757 = vmatpush1.bf16.msra.mxu0 0
    %2758 = vmatprep.subr.bf16.mxu0 0
    %2759 = vmatpush1.bf16.msra.mxu0 0
    %2760 = vmatprep.subr.bf16.mxu0 0
    %2761 = vmatpush1.bf16.msra.mxu0 0
    %2762 = vmatprep.subr.bf16.mxu0 0
    %2763 = vmatpush1.bf16.msra.mxu0 0
    %2764 = vmatprep.subr.bf16.mxu0 0
    %2765 = vmatpush1.bf16.msra.mxu0 0
    %2766 = vmatprep.subr.bf16.mxu0 0
    %2767 = vmatpush1.bf16.msra.mxu0 0
    %2768 = vmatprep.subr.bf16.mxu0 0
    %2769 = vmatpush1.bf16.msra.mxu0 0
    %2770 = vmatprep.subr.bf16.mxu0 0
    %2771 = vmatpush1.bf16.msra.mxu0 0
    %2772 = vmatprep.mubr.bf16.mxu0 0
    %2773 = vmatmul.mubr.bf16.gmra.mrb[0].mxu0 %v2732
    %v2774 = vpop.f32.mrb[0].mxu0
    %v2775 = vadd.f32 %v2705, %v2774
    %v2776 = vpop.f32.mrb[0].mxu0
    %v2777 = vpop.f32.mrb[0].mxu0
    %v2778 = vadd.f32 %v2705, %v2777
    %v2779 = vpop.f32.mrb[0].mxu0
    %2780 = vmatprep.mubr.bf16.mxu0 0
    %2781 = vmatmul.mubr.bf16.gmra.mrb[0].mxu0 %v2735
    %v2782 = vpop.f32.mrb[0].mxu0
    %v2783 = vadd.f32 %v2705, %v2782
    %v2784 = vpop.f32.mrb[0].mxu0
    %v2785 = vpop.f32.mrb[0].mxu0
    %v2786 = vadd.f32 %v2705, %v2785
    %v2787 = vpop.f32.mrb[0].mxu0
    %2788 = vmatprep.mubr.bf16.mxu0 0
    %2789 = vmatmul.mubr.bf16.gmra.mrb[0].mxu0 %v2738
    %v2790 = vpop.f32.mrb[0].mxu0
    %v2791 = vadd.f32 %v2705, %v2790
    %v2792 = vpop.f32.mrb[0].mxu0
    %v2793 = vpop.f32.mrb[0].mxu0
    %v2794 = vadd.f32 %v2705, %v2793
    %v2795 = vpop.f32.mrb[0].mxu0
    %2796 = vdwg.mxu0
    %v2797 = vadd.f32 %v2775, %v530
    %v2798 = vadd.f32 %v2778, %v531
    %v2799 = vadd.f32 %v2783, %v532
    %v2800 = vadd.f32 %v2786, %v533
    %v2801 = vadd.f32 %v2791, %v534
    %v2802 = vadd.f32 %v2794, %v535
    %v2803 = vld [vmem:[%s29] sm:$0x1]
    %v2804 = vld [vmem:[%s31] sm:$0x1]
    %v2805 = vsel %vm362, %v2797, 0.0
    %2806 = vadd.xlane.f32.xlu0 %v2805
    %v2807 = vpop.xlane.xlu0 %2806
    %v2808 = vsel %vm362, %v2798, 0.0
    %2809 = vadd.xlane.f32.xlu0 %v2808
    %v2810 = vpop.xlane.xlu0 %2809
    %v2811 = vsel %vm362, %v2799, 0.0
    %2812 = vadd.xlane.f32.xlu0 %v2811
    %v2813 = vpop.xlane.xlu0 %2812
    %v2814 = vsel %vm362, %v2800, 0.0
    %2815 = vadd.xlane.f32.xlu0 %v2814
    %v2816 = vpop.xlane.xlu0 %2815
    %v2817 = vsel %vm362, %v2801, 0.0
    %2818 = vadd.xlane.f32.xlu0 %v2817
    %v2819 = vpop.xlane.xlu0 %2818
    %v2820 = vsel %vm362, %v2802, 0.0
    %2821 = vadd.xlane.f32.xlu0 %v2820
    %v2822 = vpop.xlane.xlu0 %2821
    %v2823 = vmul.f32 %v2807, %v451
    %v2824 = vmul.f32 %v2810, %v451
    %v2825 = vmul.f32 %v2813, %v451
    %v2826 = vmul.f32 %v2816, %v451
    %v2827 = vmul.f32 %v2819, %v451
    %v2828 = vmul.f32 %v2822, %v451
    %v2829 = vsub.f32 %v2797, %v2823
    %v2830 = vsub.f32 %v2798, %v2824
    %v2831 = vsub.f32 %v2799, %v2825
    %v2832 = vsub.f32 %v2800, %v2826
    %v2833 = vsub.f32 %v2801, %v2827
    %v2834 = vsub.f32 %v2802, %v2828
    %v2835 = vmul.f32 %v2829, %v2829
    %v2836 = vmul.f32 %v2830, %v2830
    %v2837 = vmul.f32 %v2831, %v2831
    %v2838 = vmul.f32 %v2832, %v2832
    %v2839 = vmul.f32 %v2833, %v2833
    %v2840 = vmul.f32 %v2834, %v2834
    %v2841 = vsel %vm362, %v2835, 0.0
    %2842 = vadd.xlane.f32.xlu0 %v2841
    %v2843 = vpop.xlane.xlu0 %2842
    %v2844 = vsel %vm362, %v2836, 0.0
    %2845 = vadd.xlane.f32.xlu0 %v2844
    %v2846 = vpop.xlane.xlu0 %2845
    %v2847 = vsel %vm362, %v2837, 0.0
    %2848 = vadd.xlane.f32.xlu0 %v2847
    %v2849 = vpop.xlane.xlu0 %2848
    %v2850 = vsel %vm362, %v2838, 0.0
    %2851 = vadd.xlane.f32.xlu0 %v2850
    %v2852 = vpop.xlane.xlu0 %2851
    %v2853 = vsel %vm362, %v2839, 0.0
    %2854 = vadd.xlane.f32.xlu0 %v2853
    %v2855 = vpop.xlane.xlu0 %2854
    %v2856 = vsel %vm362, %v2840, 0.0
    %2857 = vadd.xlane.f32.xlu0 %v2856
    %v2858 = vpop.xlane.xlu0 %2857
    %v2859 = vmul.f32 %v2843, %v451
    %v2860 = vmul.f32 %v2846, %v451
    %v2861 = vmul.f32 %v2849, %v451
    %v2862 = vmul.f32 %v2852, %v451
    %v2863 = vmul.f32 %v2855, %v451
    %v2864 = vmul.f32 %v2858, %v451
    %v2865 = vadd.f32 %v2859, 1e-12
    %v2866 = vadd.f32 %v2860, 1e-12
    %v2867 = vadd.f32 %v2861, 1e-12
    %v2868 = vadd.f32 %v2862, 1e-12
    %v2869 = vadd.f32 %v2863, 1e-12
    %v2870 = vadd.f32 %v2864, 1e-12
    %v2871 = vrsqrt.pop %v2865
    %v2872 = vrsqrt.pop %v2866
    %v2873 = vrsqrt.pop %v2867
    %v2874 = vrsqrt.pop %v2868
    %v2875 = vrsqrt.pop %v2869
    %v2876 = vrsqrt.pop %v2870
    %v2877 = vmul.f32 %v2829, %v2871
    %v2878 = vmul.f32 %v2830, %v2872
    %v2879 = vmul.f32 %v2831, %v2873
    %v2880 = vmul.f32 %v2832, %v2874
    %v2881 = vmul.f32 %v2833, %v2875
    %v2882 = vmul.f32 %v2834, %v2876
    %v2884 = vlaneseq
    %v2885 = vshrl.u32 %v2884, 7
    %v2886 = vsub.s32 0, %v2885
    %v2887 = vrot.slane %v2803, %v2886
    %v2889 = vmul.f32 %v2877, %v2887
    %v2890 = vmul.f32 %v2878, %v2887
    %v2891 = vmul.f32 %v2879, %v2887
    %v2892 = vmul.f32 %v2880, %v2887
    %v2893 = vmul.f32 %v2881, %v2887
    %v2894 = vmul.f32 %v2882, %v2887
    %v2896 = vlaneseq
    %v2897 = vshrl.u32 %v2896, 7
    %v2898 = vsub.s32 0, %v2897
    %v2899 = vrot.slane %v2804, %v2898
    %v2901 = vadd.f32 %v2889, %v2899
    %v2902 = vadd.f32 %v2890, %v2899
    %v2903 = vadd.f32 %v2891, %v2899
    %v2904 = vadd.f32 %v2892, %v2899
    %v2905 = vadd.f32 %v2893, %v2899
    %v2906 = vadd.f32 %v2894, %v2899
    %v2907 = vpack.c.bf16 %v2902, %v2901
    %v2908 = vpack.c.bf16 %v2904, %v2903
    %v2909 = vpack.c.bf16 %v2906, %v2905
    %v2910 = vld [vmem:[%s33] sm:$0xf]
    %v2911 = vld [vmem:[%s33 + $0x4] sm:$0xf]
    %v2912 = vld [vmem:[%s33 + $0x8] sm:$0xf]
    %v2913 = vld [vmem:[%s33 + $0xc] sm:$0xf]
    %v2914 = vld [vmem:[%s33 + $0x10] sm:$0xf]
    %v2915 = vld [vmem:[%s33 + $0x14] sm:$0xf]
    %v2916 = vld [vmem:[%s33 + $0x18] sm:$0xf]
    %v2917 = vld [vmem:[%s33 + $0x1c] sm:$0xf]
    %v2918 = vld [vmem:[%s35] sm:$0x1]
    %v2920 = vlaneseq
    %v2921 = vshrl.u32 %v2920, 7
    %v2922 = vsub.s32 0, %v2921
    %v2923 = vrot.slane %v2918, %v2922
    %v2933 = vunpack.c.l.b16 %v2910
    %v2934 = vunpack.c.l.b16 %v2911
    %v2935 = vunpack.c.l.b16 %v2912
    %v2936 = vunpack.c.l.b16 %v2913
    %v2937 = vunpack.c.l.b16 %v2914
    %v2938 = vunpack.c.l.b16 %v2915
    %v2939 = vunpack.c.l.b16 %v2916
    %v2940 = vunpack.c.l.b16 %v2917
    %v2941 = vpack.c.b16 %v2934, %v2933
    %v2942 = vpack.c.b16 %v2936, %v2935
    %v2943 = vpack.c.b16 %v2938, %v2937
    %v2944 = vpack.c.b16 %v2940, %v2939
    %v2950 = vsel %vm362, %v2907, 0
    %v2953 = vsel %vm362, %v2908, 0
    %v2956 = vsel %vm362, %v2909, 0
    %2958 = vmatprep.subr.bf16.mxu0 0
    %2959 = vmatpush1.bf16.msra.mxu0 %v2941
    %2960 = vmatprep.subr.bf16.mxu0 0
    %2961 = vmatpush1.bf16.msra.mxu0 %v2942
    %2962 = vmatprep.subr.bf16.mxu0 0
    %2963 = vmatpush1.bf16.msra.mxu0 %v2943
    %2964 = vmatprep.subr.bf16.mxu0 0
    %2965 = vmatpush1.bf16.msra.mxu0 %v2944
    %2966 = vmatprep.subr.bf16.mxu0 0
    %2967 = vmatpush1.bf16.msra.mxu0 0
    %2968 = vmatprep.subr.bf16.mxu0 0
    %2969 = vmatpush1.bf16.msra.mxu0 0
    %2970 = vmatprep.subr.bf16.mxu0 0
    %2971 = vmatpush1.bf16.msra.mxu0 0
    %2972 = vmatprep.subr.bf16.mxu0 0
    %2973 = vmatpush1.bf16.msra.mxu0 0
    %2974 = vmatprep.subr.bf16.mxu0 0
    %2975 = vmatpush1.bf16.msra.mxu0 0
    %2976 = vmatprep.subr.bf16.mxu0 0
    %2977 = vmatpush1.bf16.msra.mxu0 0
    %2978 = vmatprep.subr.bf16.mxu0 0
    %2979 = vmatpush1.bf16.msra.mxu0 0
    %2980 = vmatprep.subr.bf16.mxu0 0
    %2981 = vmatpush1.bf16.msra.mxu0 0
    %2982 = vmatprep.subr.bf16.mxu0 0
    %2983 = vmatpush1.bf16.msra.mxu0 0
    %2984 = vmatprep.subr.bf16.mxu0 0
    %2985 = vmatpush1.bf16.msra.mxu0 0
    %2986 = vmatprep.subr.bf16.mxu0 0
    %2987 = vmatpush1.bf16.msra.mxu0 0
    %2988 = vmatprep.subr.bf16.mxu0 0
    %2989 = vmatpush1.bf16.msra.mxu0 0
    %2990 = vmatprep.mubr.bf16.mxu0 0
    %2991 = vmatmul.mubr.bf16.gmra.mrb[0].mxu0 %v2950
    %v2992 = vpop.f32.mrb[0].mxu0
    %v2993 = vadd.f32 %v2923, %v2992
    %v2994 = vpop.f32.mrb[0].mxu0
    %v2995 = vpop.f32.mrb[0].mxu0
    %v2996 = vadd.f32 %v2923, %v2995
    %v2997 = vpop.f32.mrb[0].mxu0
    %2998 = vmatprep.mubr.bf16.mxu0 0
    %2999 = vmatmul.mubr.bf16.gmra.mrb[0].mxu0 %v2953
    %v3000 = vpop.f32.mrb[0].mxu0
    %v3001 = vadd.f32 %v2923, %v3000
    %v3002 = vpop.f32.mrb[0].mxu0
    %v3003 = vpop.f32.mrb[0].mxu0
    %v3004 = vadd.f32 %v2923, %v3003
    %v3005 = vpop.f32.mrb[0].mxu0
    %3006 = vmatprep.mubr.bf16.mxu0 0
    %3007 = vmatmul.mubr.bf16.gmra.mrb[0].mxu0 %v2956
    %v3008 = vpop.f32.mrb[0].mxu0
    %v3009 = vadd.f32 %v2923, %v3008
    %v3010 = vpop.f32.mrb[0].mxu0
    %v3011 = vpop.f32.mrb[0].mxu0
    %v3012 = vadd.f32 %v2923, %v3011
    %v3013 = vpop.f32.mrb[0].mxu0
    %3014 = vdwg.mxu0
    %v3015 = vmul.f32 %v2993, %v2993
    %v3016 = vmul.f32 %v2996, %v2996
    %v3017 = vmul.f32 %v3001, %v3001
    %v3018 = vmul.f32 %v3004, %v3004
    %v3019 = vmul.f32 %v3009, %v3009
    %v3020 = vmul.f32 %v3012, %v3012
    %v3021 = vmul.f32 %v2993, %v3015
    %v3022 = vmul.f32 %v2996, %v3016
    %v3023 = vmul.f32 %v3001, %v3017
    %v3024 = vmul.f32 %v3004, %v3018
    %v3025 = vmul.f32 %v3009, %v3019
    %v3026 = vmul.f32 %v3012, %v3020
    %v3027 = vmul.f32 %v3021, 0.044715
    %v3028 = vmul.f32 %v3022, 0.044715
    %v3029 = vmul.f32 %v3023, 0.044715
    %v3030 = vmul.f32 %v3024, 0.044715
    %v3031 = vmul.f32 %v3025, 0.044715
    %v3032 = vmul.f32 %v3026, 0.044715
    %v3033 = vadd.f32 %v2993, %v3027
    %v3034 = vadd.f32 %v2996, %v3028
    %v3035 = vadd.f32 %v3001, %v3029
    %v3036 = vadd.f32 %v3004, %v3030
    %v3037 = vadd.f32 %v3009, %v3031
    %v3038 = vadd.f32 %v3012, %v3032
    %v3039 = vmul.f32 %v3033, 0.7978846
    %v3040 = vmul.f32 %v3034, 0.7978846
    %v3041 = vmul.f32 %v3035, 0.7978846
    %v3042 = vmul.f32 %v3036, 0.7978846
    %v3043 = vmul.f32 %v3037, 0.7978846
    %v3044 = vmul.f32 %v3038, 0.7978846
    %v3045 = vtanh.pop %v3039
    %v3046 = vtanh.pop %v3040
    %v3047 = vtanh.pop %v3041
    %v3048 = vtanh.pop %v3042
    %v3049 = vtanh.pop %v3043
    %v3050 = vtanh.pop %v3044
    %v3051 = vadd.f32 %v3045, 1.0
    %v3052 = vadd.f32 %v3046, 1.0
    %v3053 = vadd.f32 %v3047, 1.0
    %v3054 = vadd.f32 %v3048, 1.0
    %v3055 = vadd.f32 %v3049, 1.0
    %v3056 = vadd.f32 %v3050, 1.0
    %v3057 = vmul.f32 %v3051, 0.5
    %v3058 = vmul.f32 %v3052, 0.5
    %v3059 = vmul.f32 %v3053, 0.5
    %v3060 = vmul.f32 %v3054, 0.5
    %v3061 = vmul.f32 %v3055, 0.5
    %v3062 = vmul.f32 %v3056, 0.5
    %v3063 = vmul.f32 %v2993, %v3057
    %v3064 = vmul.f32 %v2996, %v3058
    %v3065 = vmul.f32 %v3001, %v3059
    %v3066 = vmul.f32 %v3004, %v3060
    %v3067 = vmul.f32 %v3009, %v3061
    %v3068 = vmul.f32 %v3012, %v3062
    %v3069 = vpack.c.bf16 %v3064, %v3063
    %v3070 = vpack.c.bf16 %v3066, %v3065
    %v3071 = vpack.c.bf16 %v3068, %v3067
    %v3072 = vld [vmem:[%s37] sm:$0xf]
    %v3073 = vld [vmem:[%s37 + $0x4] sm:$0xf]
    %v3074 = vld [vmem:[%s37 + $0x8] sm:$0xf]
    %v3075 = vld [vmem:[%s37 + $0xc] sm:$0xf]
    %v3076 = vld [vmem:[%s37 + $0x10] sm:$0xf]
    %v3077 = vld [vmem:[%s37 + $0x14] sm:$0xf]
    %v3078 = vld [vmem:[%s37 + $0x18] sm:$0xf]
    %v3079 = vld [vmem:[%s37 + $0x1c] sm:$0xf]
    %v3080 = vld [vmem:[%s37 + $0x20] sm:$0xf]
    %v3081 = vld [vmem:[%s37 + $0x24] sm:$0xf]
    %v3082 = vld [vmem:[%s37 + $0x28] sm:$0xf]
    %v3083 = vld [vmem:[%s37 + $0x2c] sm:$0xf]
    %v3084 = vld [vmem:[%s37 + $0x30] sm:$0xf]
    %v3085 = vld [vmem:[%s37 + $0x34] sm:$0xf]
    %v3086 = vld [vmem:[%s37 + $0x38] sm:$0xf]
    %v3087 = vld [vmem:[%s37 + $0x3c] sm:$0xf]
    %v3088 = vld [vmem:[%s39] sm:$0x1]
    %v3090 = vlaneseq
    %v3091 = vshrl.u32 %v3090, 7
    %v3092 = vsub.s32 0, %v3091
    %v3093 = vrot.slane %v3088, %v3092
    %v3111 = vunpack.c.l.b16 %v3072
    %v3112 = vunpack.c.l.b16 %v3073
    %v3113 = vunpack.c.l.b16 %v3074
    %v3114 = vunpack.c.l.b16 %v3075
    %v3115 = vunpack.c.l.b16 %v3076
    %v3116 = vunpack.c.l.b16 %v3077
    %v3117 = vunpack.c.l.b16 %v3078
    %v3118 = vunpack.c.l.b16 %v3079
    %v3119 = vunpack.c.l.b16 %v3080
    %v3120 = vunpack.c.l.b16 %v3081
    %v3121 = vunpack.c.l.b16 %v3082
    %v3122 = vunpack.c.l.b16 %v3083
    %v3123 = vunpack.c.l.b16 %v3084
    %v3124 = vunpack.c.l.b16 %v3085
    %v3125 = vunpack.c.l.b16 %v3086
    %v3126 = vunpack.c.l.b16 %v3087
    %v3127 = vpack.c.b16 %v3112, %v3111
    %v3128 = vpack.c.b16 %v3114, %v3113
    %v3129 = vpack.c.b16 %v3116, %v3115
    %v3130 = vpack.c.b16 %v3118, %v3117
    %v3131 = vpack.c.b16 %v3120, %v3119
    %v3132 = vpack.c.b16 %v3122, %v3121
    %v3133 = vpack.c.b16 %v3124, %v3123
    %v3134 = vpack.c.b16 %v3126, %v3125
    %3143 = vmatprep.subr.bf16.mxu0 0
    %3144 = vmatpush1.bf16.msra.mxu0 %v3127
    %3145 = vmatprep.subr.bf16.mxu0 0
    %3146 = vmatpush1.bf16.msra.mxu0 %v3128
    %3147 = vmatprep.subr.bf16.mxu0 0
    %3148 = vmatpush1.bf16.msra.mxu0 %v3129
    %3149 = vmatprep.subr.bf16.mxu0 0
    %3150 = vmatpush1.bf16.msra.mxu0 %v3130
    %3151 = vmatprep.subr.bf16.mxu0 0
    %3152 = vmatpush1.bf16.msra.mxu0 %v3131
    %3153 = vmatprep.subr.bf16.mxu0 0
    %3154 = vmatpush1.bf16.msra.mxu0 %v3132
    %3155 = vmatprep.subr.bf16.mxu0 0
    %3156 = vmatpush1.bf16.msra.mxu0 %v3133
    %3157 = vmatprep.subr.bf16.mxu0 0
    %3158 = vmatpush1.bf16.msra.mxu0 %v3134
    %3159 = vmatprep.subr.bf16.mxu0 0
    %3160 = vmatpush1.bf16.msra.mxu0 0
    %3161 = vmatprep.subr.bf16.mxu0 0
    %3162 = vmatpush1.bf16.msra.mxu0 0
    %3163 = vmatprep.subr.bf16.mxu0 0
    %3164 = vmatpush1.bf16.msra.mxu0 0
    %3165 = vmatprep.subr.bf16.mxu0 0
    %3166 = vmatpush1.bf16.msra.mxu0 0
    %3167 = vmatprep.subr.bf16.mxu0 0
    %3168 = vmatpush1.bf16.msra.mxu0 0
    %3169 = vmatprep.subr.bf16.mxu0 0
    %3170 = vmatpush1.bf16.msra.mxu0 0
    %3171 = vmatprep.subr.bf16.mxu0 0
    %3172 = vmatpush1.bf16.msra.mxu0 0
    %3173 = vmatprep.subr.bf16.mxu0 0
    %3174 = vmatpush1.bf16.msra.mxu0 0
    %3175 = vmatprep.mubr.bf16.mxu0 0
    %3176 = vmatmul.mubr.bf16.gmra.mrb[0].mxu0 %v3069
    %v3177 = vpop.f32.mrb[0].mxu0
    %v3178 = vadd.f32 %v3093, %v3177
    %v3179 = vpop.f32.mrb[0].mxu0
    %v3180 = vpop.f32.mrb[0].mxu0
    %v3181 = vadd.f32 %v3093, %v3180
    %v3182 = vpop.f32.mrb[0].mxu0
    %3183 = vmatprep.mubr.bf16.mxu0 0
    %3184 = vmatmul.mubr.bf16.gmra.mrb[0].mxu0 %v3070
    %v3185 = vpop.f32.mrb[0].mxu0
    %v3186 = vadd.f32 %v3093, %v3185
    %v3187 = vpop.f32.mrb[0].mxu0
    %v3188 = vpop.f32.mrb[0].mxu0
    %v3189 = vadd.f32 %v3093, %v3188
    %v3190 = vpop.f32.mrb[0].mxu0
    %3191 = vmatprep.mubr.bf16.mxu0 0
    %3192 = vmatmul.mubr.bf16.gmra.mrb[0].mxu0 %v3071
    %v3193 = vpop.f32.mrb[0].mxu0
    %v3194 = vadd.f32 %v3093, %v3193
    %v3195 = vpop.f32.mrb[0].mxu0
    %v3196 = vpop.f32.mrb[0].mxu0
    %v3197 = vadd.f32 %v3093, %v3196
    %v3198 = vpop.f32.mrb[0].mxu0
    %3199 = vdwg.mxu0
    %v3200 = vadd.f32 %v3178, %v2901
    %v3201 = vadd.f32 %v3181, %v2902
    %v3202 = vadd.f32 %v3186, %v2903
    %v3203 = vadd.f32 %v3189, %v2904
    %v3204 = vadd.f32 %v3194, %v2905
    %v3205 = vadd.f32 %v3197, %v2906
    %v3206 = vld [vmem:[%s41] sm:$0x1]
    %v3207 = vld [vmem:[%s43] sm:$0x1]
    %v3208 = vsel %vm362, %v3200, 0.0
    %3209 = vadd.xlane.f32.xlu0 %v3208
    %v3210 = vpop.xlane.xlu0 %3209
    %v3211 = vsel %vm362, %v3201, 0.0
    %3212 = vadd.xlane.f32.xlu0 %v3211
    %v3213 = vpop.xlane.xlu0 %3212
    %v3214 = vsel %vm362, %v3202, 0.0
    %3215 = vadd.xlane.f32.xlu0 %v3214
    %v3216 = vpop.xlane.xlu0 %3215
    %v3217 = vsel %vm362, %v3203, 0.0
    %3218 = vadd.xlane.f32.xlu0 %v3217
    %v3219 = vpop.xlane.xlu0 %3218
    %v3220 = vsel %vm362, %v3204, 0.0
    %3221 = vadd.xlane.f32.xlu0 %v3220
    %v3222 = vpop.xlane.xlu0 %3221
    %v3223 = vsel %vm362, %v3205, 0.0
    %3224 = vadd.xlane.f32.xlu0 %v3223
    %v3225 = vpop.xlane.xlu0 %3224
    %v3226 = vmul.f32 %v3210, %v451
    %v3227 = vmul.f32 %v3213, %v451
    %v3228 = vmul.f32 %v3216, %v451
    %v3229 = vmul.f32 %v3219, %v451
    %v3230 = vmul.f32 %v3222, %v451
    %v3231 = vmul.f32 %v3225, %v451
    %v3232 = vsub.f32 %v3200, %v3226
    %v3233 = vsub.f32 %v3201, %v3227
    %v3234 = vsub.f32 %v3202, %v3228
    %v3235 = vsub.f32 %v3203, %v3229
    %v3236 = vsub.f32 %v3204, %v3230
    %v3237 = vsub.f32 %v3205, %v3231
    %v3238 = vmul.f32 %v3232, %v3232
    %v3239 = vmul.f32 %v3233, %v3233
    %v3240 = vmul.f32 %v3234, %v3234
    %v3241 = vmul.f32 %v3235, %v3235
    %v3242 = vmul.f32 %v3236, %v3236
    %v3243 = vmul.f32 %v3237, %v3237
    %v3244 = vsel %vm362, %v3238, 0.0
    %3245 = vadd.xlane.f32.xlu0 %v3244
    %v3246 = vpop.xlane.xlu0 %3245
    %v3247 = vsel %vm362, %v3239, 0.0
    %3248 = vadd.xlane.f32.xlu0 %v3247
    %v3249 = vpop.xlane.xlu0 %3248
    %v3250 = vsel %vm362, %v3240, 0.0
    %3251 = vadd.xlane.f32.xlu0 %v3250
    %v3252 = vpop.xlane.xlu0 %3251
    %v3253 = vsel %vm362, %v3241, 0.0
    %3254 = vadd.xlane.f32.xlu0 %v3253
    %v3255 = vpop.xlane.xlu0 %3254
    %v3256 = vsel %vm362, %v3242, 0.0
    %3257 = vadd.xlane.f32.xlu0 %v3256
    %v3258 = vpop.xlane.xlu0 %3257
    %v3259 = vsel %vm362, %v3243, 0.0
    %3260 = vadd.xlane.f32.xlu0 %v3259
    %v3261 = vpop.xlane.xlu0 %3260
    %v3262 = vmul.f32 %v3246, %v451
    %v3263 = vmul.f32 %v3249, %v451
    %v3264 = vmul.f32 %v3252, %v451
    %v3265 = vmul.f32 %v3255, %v451
    %v3266 = vmul.f32 %v3258, %v451
    %v3267 = vmul.f32 %v3261, %v451
    %v3268 = vadd.f32 %v3262, 1e-12
    %v3269 = vadd.f32 %v3263, 1e-12
    %v3270 = vadd.f32 %v3264, 1e-12
    %v3271 = vadd.f32 %v3265, 1e-12
    %v3272 = vadd.f32 %v3266, 1e-12
    %v3273 = vadd.f32 %v3267, 1e-12
    %v3274 = vrsqrt.pop %v3268
    %v3275 = vrsqrt.pop %v3269
    %v3276 = vrsqrt.pop %v3270
    %v3277 = vrsqrt.pop %v3271
    %v3278 = vrsqrt.pop %v3272
    %v3279 = vrsqrt.pop %v3273
    %v3280 = vmul.f32 %v3232, %v3274
    %v3281 = vmul.f32 %v3233, %v3275
    %v3282 = vmul.f32 %v3234, %v3276
    %v3283 = vmul.f32 %v3235, %v3277
    %v3284 = vmul.f32 %v3236, %v3278
    %v3285 = vmul.f32 %v3237, %v3279
    %v3287 = vlaneseq
    %v3288 = vshrl.u32 %v3287, 7
    %v3289 = vsub.s32 0, %v3288
    %v3290 = vrot.slane %v3206, %v3289
    %v3292 = vmul.f32 %v3280, %v3290
    %v3293 = vmul.f32 %v3281, %v3290
    %v3294 = vmul.f32 %v3282, %v3290
    %v3295 = vmul.f32 %v3283, %v3290
    %v3296 = vmul.f32 %v3284, %v3290
    %v3297 = vmul.f32 %v3285, %v3290
    %v3299 = vlaneseq
    %v3300 = vshrl.u32 %v3299, 7
    %v3301 = vsub.s32 0, %v3300
    %v3302 = vrot.slane %v3207, %v3301
    %v3304 = vadd.f32 %v3292, %v3302
    %v3305 = vadd.f32 %v3293, %v3302
    %v3306 = vadd.f32 %v3294, %v3302
    %v3307 = vadd.f32 %v3295, %v3302
    %v3308 = vadd.f32 %v3296, %v3302
    %v3309 = vadd.f32 %v3297, %v3302
    %v3310 = vpack.c.bf16 %v3305, %v3304
    %v3311 = vpack.c.bf16 %v3307, %v3306
    %v3312 = vpack.c.bf16 %v3309, %v3308
    %v3313 = vld [vmem:[%s45] sm:$0xff]
    %v3314 = vld [vmem:[%s45 + $0x8] sm:$0xff]
    %v3315 = vld [vmem:[%s45 + $0x10] sm:$0xff]
    %v3316 = vld [vmem:[%s45 + $0x18] sm:$0xff]
    %v3317 = vld [vmem:[%s45 + $0x20] sm:$0xff]
    %v3318 = vld [vmem:[%s45 + $0x28] sm:$0xff]
    %v3319 = vld [vmem:[%s45 + $0x30] sm:$0xff]
    %v3320 = vld [vmem:[%s45 + $0x38] sm:$0xff]
    %v3321 = vld [vmem:[%s47] sm:$0x3]
    %v3323 = vlaneseq
    %v3324 = vshrl.u32 %v3323, 7
    %v3325 = vsub.s32 0, %v3324
    %v3326 = vrot.slane %v3321, %v3325
    %v3327 = vlaneseq
    %v3328 = vshrl.u32 %v3327, 7
    %v3329 = vsub.s32 1, %v3328
    %v3330 = vrot.slane %v3321, %v3329
    %v3341 = vunpack.c.l.b16 %v3313
    %v3342 = vunpack.c.h.b16 %v3313
    %v3343 = vunpack.c.l.b16 %v3314
    %v3344 = vunpack.c.h.b16 %v3314
    %v3345 = vunpack.c.l.b16 %v3315
    %v3346 = vunpack.c.h.b16 %v3315
    %v3347 = vunpack.c.l.b16 %v3316
    %v3348 = vunpack.c.h.b16 %v3316
    %v3349 = vunpack.c.l.b16 %v3317
    %v3350 = vunpack.c.h.b16 %v3317
    %v3351 = vunpack.c.l.b16 %v3318
    %v3352 = vunpack.c.h.b16 %v3318
    %v3353 = vunpack.c.l.b16 %v3319
    %v3354 = vunpack.c.h.b16 %v3319
    %v3355 = vunpack.c.l.b16 %v3320
    %v3356 = vunpack.c.h.b16 %v3320
    %v3357 = vpack.c.b16 %v3343, %v3341
    %v3358 = vpack.c.b16 %v3344, %v3342
    %v3359 = vpack.c.b16 %v3347, %v3345
    %v3360 = vpack.c.b16 %v3348, %v3346
    %v3361 = vpack.c.b16 %v3351, %v3349
    %v3362 = vpack.c.b16 %v3352, %v3350
    %v3363 = vpack.c.b16 %v3355, %v3353
    %v3364 = vpack.c.b16 %v3356, %v3354
    %v3374 = vsel %vm362, %v3310, 0
    %v3377 = vsel %vm362, %v3311, 0
    %v3380 = vsel %vm362, %v3312, 0
    %3382 = vmatprep.subr.bf16.mxu0 %v3358
    %3383 = vmatpush1.bf16.msra.mxu0 %v3357
    %3384 = vmatprep.subr.bf16.mxu0 %v3360
    %3385 = vmatpush1.bf16.msra.mxu0 %v3359
    %3386 = vmatprep.subr.bf16.mxu0 %v3362
    %3387 = vmatpush1.bf16.msra.mxu0 %v3361
    %3388 = vmatprep.subr.bf16.mxu0 %v3364
    %3389 = vmatpush1.bf16.msra.mxu0 %v3363
    %3390 = vmatprep.subr.bf16.mxu0 0
    %3391 = vmatpush1.bf16.msra.mxu0 0
    %3392 = vmatprep.subr.bf16.mxu0 0
    %3393 = vmatpush1.bf16.msra.mxu0 0
    %3394 = vmatprep.subr.bf16.mxu0 0
    %3395 = vmatpush1.bf16.msra.mxu0 0
    %3396 = vmatprep.subr.bf16.mxu0 0
    %3397 = vmatpush1.bf16.msra.mxu0 0
    %3398 = vmatprep.subr.bf16.mxu0 0
    %3399 = vmatpush1.bf16.msra.mxu0 0
    %3400 = vmatprep.subr.bf16.mxu0 0
    %3401 = vmatpush1.bf16.msra.mxu0 0
    %3402 = vmatprep.subr.bf16.mxu0 0
    %3403 = vmatpush1.bf16.msra.mxu0 0
    %3404 = vmatprep.subr.bf16.mxu0 0
    %3405 = vmatpush1.bf16.msra.mxu0 0
    %3406 = vmatprep.subr.bf16.mxu0 0
    %3407 = vmatpush1.bf16.msra.mxu0 0
    %3408 = vmatprep.subr.bf16.mxu0 0
    %3409 = vmatpush1.bf16.msra.mxu0 0
    %3410 = vmatprep.subr.bf16.mxu0 0
    %3411 = vmatpush1.bf16.msra.mxu0 0
    %3412 = vmatprep.subr.bf16.mxu0 0
    %3413 = vmatpush1.bf16.msra.mxu0 0
    %3414 = vmatprep.mubr.bf16.mxu0 0
    %3415 = vmatmul.mubr.bf16.gmra.mrb[0].mxu0 %v3374
    %v3416 = vpop.f32.mrb[0].mxu0
    %v3417 = vadd.f32 %v3326, %v3416
    %v3418 = vpop.f32.mrb[0].mxu0
    %v3419 = vadd.f32 %v3330, %v3418
    %v3420 = vpop.f32.mrb[0].mxu0
    %v3421 = vadd.f32 %v3326, %v3420
    %v3422 = vpop.f32.mrb[0].mxu0
    %v3423 = vadd.f32 %v3330, %v3422
    %3424 = vmatprep.mubr.bf16.mxu0 0
    %3425 = vmatmul.mubr.bf16.gmra.mrb[0].mxu0 %v3377
    %v3426 = vpop.f32.mrb[0].mxu0
    %v3427 = vadd.f32 %v3326, %v3426
    %v3428 = vpop.f32.mrb[0].mxu0
    %v3429 = vadd.f32 %v3330, %v3428
    %v3430 = vpop.f32.mrb[0].mxu0
    %v3431 = vadd.f32 %v3326, %v3430
    %v3432 = vpop.f32.mrb[0].mxu0
    %v3433 = vadd.f32 %v3330, %v3432
    %3434 = vmatprep.mubr.bf16.mxu0 0
    %3435 = vmatmul.mubr.bf16.gmra.mrb[0].mxu0 %v3380
    %v3436 = vpop.f32.mrb[0].mxu0
    %v3437 = vadd.f32 %v3326, %v3436
    %v3438 = vpop.f32.mrb[0].mxu0
    %v3439 = vadd.f32 %v3330, %v3438
    %v3440 = vpop.f32.mrb[0].mxu0
    %v3441 = vadd.f32 %v3326, %v3440
    %v3442 = vpop.f32.mrb[0].mxu0
    %v3443 = vadd.f32 %v3330, %v3442
    %3444 = vdwg.mxu0
    %3448 = vrot.lane.b32.xlu0 %v3417, 64
    %v3449 = vpop.permute.xlu0 %3448
    %3450 = vrot.lane.b32.xlu0 %v3421, 64
    %v3451 = vpop.permute.xlu0 %3450
    %3452 = vrot.lane.b32.xlu0 %v3427, 64
    %v3453 = vpop.permute.xlu0 %3452
    %v3454 = vsel %vm261, %v3417, 0
    %v3456 = vsel %vm261, %v3421, 0
    %v3458 = vsel %vm261, %v3427, 0
    %v3460 = vsel %vm261, %v3449, 0
    %v3462 = vsel %vm261, %v3451, 0
    %v3464 = vsel %vm261, %v3453, 0
    %3466 = vmatprep.subr.mxu0 0.0
    %3467 = vmatpush1.xpose.msra.mxu0 %v3460
    %3468 = vmatprep.subr.mxu0 0.0
    %3469 = vmatpush1.xpose.msra.mxu0 %v3462
    %3470 = vmatprep.subr.mxu0 0.0
    %3471 = vmatpush1.xpose.msra.mxu0 %v3464
    %3472 = vmatprep.subr.mxu0 0.0
    %3473 = vmatpush1.xpose.msra.mxu0 0.0
    %3474 = vmatprep.subr.mxu0 0.0
    %3475 = vmatpush1.xpose.msra.mxu0 0.0
    %3476 = vmatprep.subr.mxu0 0.0
    %3477 = vmatpush1.xpose.msra.mxu0 0.0
    %3478 = vmatprep.subr.mxu0 0.0
    %3479 = vmatpush1.xpose.msra.mxu0 0.0
    %3480 = vmatprep.subr.mxu0 0.0
    %3481 = vmatpush1.xpose.msra.mxu0 0.0
    %3482 = vmatprep.subr.mxu0 0.0
    %3483 = vmatpush1.xpose.msra.mxu0 0.0
    %3484 = vmatprep.subr.mxu0 0.0
    %3485 = vmatpush1.xpose.msra.mxu0 0.0
    %3486 = vmatprep.subr.mxu0 0.0
    %3487 = vmatpush1.xpose.msra.mxu0 0.0
    %3488 = vmatprep.subr.mxu0 0.0
    %3489 = vmatpush1.xpose.msra.mxu0 0.0
    %3490 = vmatprep.subr.mxu0 0.0
    %3491 = vmatpush1.xpose.msra.mxu0 0.0
    %3492 = vmatprep.subr.mxu0 0.0
    %3493 = vmatpush1.xpose.msra.mxu0 0.0
    %3494 = vmatprep.subr.mxu0 0.0
    %3495 = vmatpush1.xpose.msra.mxu0 0.0
    %3496 = vmatprep.subr.mxu0 0.0
    %3497 = vmatpush1.xpose.msra.mxu0 0.0
    %3498 = vmatprep.subr.mxu0 0.0
    %3499 = vmatpush1.xpose.msra.mxu0 0.0
    %3500 = vmatprep.subr.mxu0 0.0
    %3501 = vmatpush1.xpose.msra.mxu0 0.0
    %3502 = vmatprep.subr.mxu0 0.0
    %3503 = vmatpush1.xpose.msra.mxu0 0.0
    %3504 = vmatprep.subr.mxu0 0.0
    %3505 = vmatpush1.xpose.msra.mxu0 0.0
    %3506 = vmatprep.subr.mxu0 0.0
    %3507 = vmatpush1.xpose.msra.mxu0 0.0
    %3508 = vmatprep.subr.mxu0 0.0
    %3509 = vmatpush1.xpose.msra.mxu0 0.0
    %3510 = vmatprep.subr.mxu0 0.0
    %3511 = vmatpush1.xpose.msra.mxu0 0.0
    %3512 = vmatprep.subr.mxu0 0.0
    %3513 = vmatpush1.xpose.msra.mxu0 0.0
    %3514 = vmatprep.subr.mxu0 0.0
    %3515 = vmatpush1.xpose.msra.mxu0 0.0
    %3516 = vmatprep.subr.mxu0 0.0
    %3517 = vmatpush1.xpose.msra.mxu0 0.0
    %3518 = vmatprep.subr.mxu0 0.0
    %3519 = vmatpush1.xpose.msra.mxu0 0.0
    %3520 = vmatprep.subr.mxu0 0.0
    %3521 = vmatpush1.xpose.msra.mxu0 0.0
    %3522 = vmatprep.subr.mxu0 0.0
    %3523 = vmatpush1.xpose.msra.mxu0 0.0
    %3524 = vmatprep.subr.mxu0 0.0
    %3525 = vmatpush1.xpose.msra.mxu0 0.0
    %3526 = vmatprep.subr.mxu0 0.0
    %3527 = vmatpush1.xpose.msra.mxu0 0.0
    %3528 = vmatprep.subr.mxu0 0.0
    %3529 = vmatpush1.xpose.msra.mxu0 0.0
    %3530 = vmatprep.mubr.f32.mxu0 0.0
    %3531 = vmatmul.mubr.f32.gmra.mrb[0].mxu0 %v3454
    %v3532 = vpop.f32.mrb[0].mxu0
    %v3533 = vadd.f32 0.0, %v3532
    %v3534 = vpop.f32.mrb[0].mxu0
    %3535 = vmatprep.mubr.f32.mxu0 0.0
    %3536 = vmatmul.mubr.f32.gmra.mrb[0].mxu0 %v3456
    %v3537 = vpop.f32.mrb[0].mxu0
    %v3538 = vadd.f32 0.0, %v3537
    %v3539 = vpop.f32.mrb[0].mxu0
    %3540 = vmatprep.mubr.f32.mxu0 0.0
    %3541 = vmatmul.mubr.f32.gmra.mrb[0].mxu0 %v3458
    %v3542 = vpop.f32.mrb[0].mxu0
    %v3543 = vadd.f32 0.0, %v3542
    %v3544 = vpop.f32.mrb[0].mxu0
    %3545 = vdwg.mxu0
    %v3546 = vmul.f32 %v3533, 0.25
    %v3547 = vmul.f32 %v3538, 0.25
    %v3548 = vmul.f32 %v3543, 0.25
    %v3549 = vadd.f32 %v3546, %v780
    %v3550 = vadd.f32 %v3547, %v780
    %v3551 = vadd.f32 %v3548, %v780
    %v3552 = vsel %vm785, %v3549, -inf
    %3553 = vmax.xlane.f32.xlu0 %v3552
    %v3554 = vpop.xlane.xlu0 %3553
    %v3555 = vsel %vm785, %v3550, -inf
    %3556 = vmax.xlane.f32.xlu0 %v3555
    %v3557 = vpop.xlane.xlu0 %3556
    %v3558 = vsel %vm785, %v3551, -inf
    %3559 = vmax.xlane.f32.xlu0 %v3558
    %v3560 = vpop.xlane.xlu0 %3559
    %v3561 = vsub.f32 %v3549, %v3554
    %v3562 = vsub.f32 %v3550, %v3557
    %v3563 = vsub.f32 %v3551, %v3560
    %v3564 = vmul.f32 %v3561, 1.442695
    %v3565 = vpow.pop %v3564
    %v3566 = vmul.f32 %v3562, 1.442695
    %v3567 = vpow.pop %v3566
    %v3568 = vmul.f32 %v3563, 1.442695
    %v3569 = vpow.pop %v3568
    %v3570 = vsel %vm785, %v3565, 0.0
    %3571 = vadd.xlane.f32.xlu0 %v3570
    %v3572 = vpop.xlane.xlu0 %3571
    %v3573 = vsel %vm785, %v3567, 0.0
    %3574 = vadd.xlane.f32.xlu0 %v3573
    %v3575 = vpop.xlane.xlu0 %3574
    %v3576 = vsel %vm785, %v3569, 0.0
    %3577 = vadd.xlane.f32.xlu0 %v3576
    %v3578 = vpop.xlane.xlu0 %3577
    %v3579 = vrcp.pop %v3572
    %v3580 = vmul.f32 %v3565, %v3579
    %v3581 = vrcp.pop %v3575
    %v3582 = vmul.f32 %v3567, %v3581
    %v3583 = vrcp.pop %v3578
    %v3584 = vmul.f32 %v3569, %v3583
    %v3586 = vsel %vm785, %v3580, 0
    %v3589 = vsel %vm785, %v3582, 0
    %v3592 = vsel %vm785, %v3584, 0
    %3594 = vmatprep.subr.mxu0 0.0
    %3595 = vmatpush1.msra.mxu0 %v3419
    %3596 = vmatprep.subr.mxu0 0.0
    %3597 = vmatpush1.msra.mxu0 %v3423
    %3598 = vmatprep.subr.mxu0 0.0
    %3599 = vmatpush1.msra.mxu0 %v3429
    %3600 = vmatprep.subr.mxu0 0.0
    %3601 = vmatpush1.msra.mxu0 0.0
    %3602 = vmatprep.subr.mxu0 0.0
    %3603 = vmatpush1.msra.mxu0 0.0
    %3604 = vmatprep.subr.mxu0 0.0
    %3605 = vmatpush1.msra.mxu0 0.0
    %3606 = vmatprep.subr.mxu0 0.0
    %3607 = vmatpush1.msra.mxu0 0.0
    %3608 = vmatprep.subr.mxu0 0.0
    %3609 = vmatpush1.msra.mxu0 0.0
    %3610 = vmatprep.subr.mxu0 0.0
    %3611 = vmatpush1.msra.mxu0 0.0
    %3612 = vmatprep.subr.mxu0 0.0
    %3613 = vmatpush1.msra.mxu0 0.0
    %3614 = vmatprep.subr.mxu0 0.0
    %3615 = vmatpush1.msra.mxu0 0.0
    %3616 = vmatprep.subr.mxu0 0.0
    %3617 = vmatpush1.msra.mxu0 0.0
    %3618 = vmatprep.subr.mxu0 0.0
    %3619 = vmatpush1.msra.mxu0 0.0
    %3620 = vmatprep.subr.mxu0 0.0
    %3621 = vmatpush1.msra.mxu0 0.0
    %3622 = vmatprep.subr.mxu0 0.0
    %3623 = vmatpush1.msra.mxu0 0.0
    %3624 = vmatprep.subr.mxu0 0.0
    %3625 = vmatpush1.msra.mxu0 0.0
    %3626 = vmatprep.subr.mxu0 0.0
    %3627 = vmatpush1.msra.mxu0 0.0
    %3628 = vmatprep.subr.mxu0 0.0
    %3629 = vmatpush1.msra.mxu0 0.0
    %3630 = vmatprep.subr.mxu0 0.0
    %3631 = vmatpush1.msra.mxu0 0.0
    %3632 = vmatprep.subr.mxu0 0.0
    %3633 = vmatpush1.msra.mxu0 0.0
    %3634 = vmatprep.subr.mxu0 0.0
    %3635 = vmatpush1.msra.mxu0 0.0
    %3636 = vmatprep.subr.mxu0 0.0
    %3637 = vmatpush1.msra.mxu0 0.0
    %3638 = vmatprep.subr.mxu0 0.0
    %3639 = vmatpush1.msra.mxu0 0.0
    %3640 = vmatprep.subr.mxu0 0.0
    %3641 = vmatpush1.msra.mxu0 0.0
    %3642 = vmatprep.subr.mxu0 0.0
    %3643 = vmatpush1.msra.mxu0 0.0
    %3644 = vmatprep.subr.mxu0 0.0
    %3645 = vmatpush1.msra.mxu0 0.0
    %3646 = vmatprep.subr.mxu0 0.0
    %3647 = vmatpush1.msra.mxu0 0.0
    %3648 = vmatprep.subr.mxu0 0.0
    %3649 = vmatpush1.msra.mxu0 0.0
    %3650 = vmatprep.subr.mxu0 0.0
    %3651 = vmatpush1.msra.mxu0 0.0
    %3652 = vmatprep.subr.mxu0 0.0
    %3653 = vmatpush1.msra.mxu0 0.0
    %3654 = vmatprep.subr.mxu0 0.0
    %3655 = vmatpush1.msra.mxu0 0.0
    %3656 = vmatprep.subr.mxu0 0.0
    %3657 = vmatpush1.msra.mxu0 0.0
    %3658 = vmatprep.mubr.f32.mxu0 0.0
    %3659 = vmatmul.mubr.f32.gmra.mrb[0].mxu0 %v3586
    %v3660 = vpop.f32.mrb[0].mxu0
    %v3661 = vadd.f32 0.0, %v3660
    %v3662 = vpop.f32.mrb[0].mxu0
    %3663 = vmatprep.mubr.f32.mxu0 0.0
    %3664 = vmatmul.mubr.f32.gmra.mrb[0].mxu0 %v3589
    %v3665 = vpop.f32.mrb[0].mxu0
    %v3666 = vadd.f32 0.0, %v3665
    %v3667 = vpop.f32.mrb[0].mxu0
    %3668 = vmatprep.mubr.f32.mxu0 0.0
    %3669 = vmatmul.mubr.f32.gmra.mrb[0].mxu0 %v3592
    %v3670 = vpop.f32.mrb[0].mxu0
    %v3671 = vadd.f32 0.0, %v3670
    %v3672 = vpop.f32.mrb[0].mxu0
    %3673 = vdwg.mxu0
    %3674 = vrot.lane.b32.xlu0 %v3417, 112
    %v3675 = vpop.permute.xlu0 %3674
    %3676 = vrot.lane.b32.xlu0 %v3421, 112
    %v3677 = vpop.permute.xlu0 %3676
    %3678 = vrot.lane.b32.xlu0 %v3427, 112
    %v3679 = vpop.permute.xlu0 %3678
    %3680 = vrot.lane.b32.xlu0 %v3417, 48
    %v3681 = vpop.permute.xlu0 %3680
    %3682 = vrot.lane.b32.xlu0 %v3421, 48
    %v3683 = vpop.permute.xlu0 %3682
    %3684 = vrot.lane.b32.xlu0 %v3427, 48
    %v3685 = vpop.permute.xlu0 %3684
    %v3686 = vsel %vm261, %v3675, 0
    %v3688 = vsel %vm261, %v3677, 0
    %v3690 = vsel %vm261, %v3679, 0
    %v3692 = vsel %vm261, %v3681, 0
    %v3694 = vsel %vm261, %v3683, 0
    %v3696 = vsel %vm261, %v3685, 0
    %3698 = vmatprep.subr.mxu0 0.0
    %3699 = vmatpush1.xpose.msra.mxu0 %v3692
    %3700 = vmatprep.subr.mxu0 0.0
    %3701 = vmatpush1.xpose.msra.mxu0 %v3694
    %3702 = vmatprep.subr.mxu0 0.0
    %3703 = vmatpush1.xpose.msra.mxu0 %v3696
    %3704 = vmatprep.subr.mxu0 0.0
    %3705 = vmatpush1.xpose.msra.mxu0 0.0
    %3706 = vmatprep.subr.mxu0 0.0
    %3707 = vmatpush1.xpose.msra.mxu0 0.0
    %3708 = vmatprep.subr.mxu0 0.0
    %3709 = vmatpush1.xpose.msra.mxu0 0.0
    %3710 = vmatprep.subr.mxu0 0.0
    %3711 = vmatpush1.xpose.msra.mxu0 0.0
    %3712 = vmatprep.subr.mxu0 0.0
    %3713 = vmatpush1.xpose.msra.mxu0 0.0
    %3714 = vmatprep.subr.mxu0 0.0
    %3715 = vmatpush1.xpose.msra.mxu0 0.0
    %3716 = vmatprep.subr.mxu0 0.0
    %3717 = vmatpush1.xpose.msra.mxu0 0.0
    %3718 = vmatprep.subr.mxu0 0.0
    %3719 = vmatpush1.xpose.msra.mxu0 0.0
    %3720 = vmatprep.subr.mxu0 0.0
    %3721 = vmatpush1.xpose.msra.mxu0 0.0
    %3722 = vmatprep.subr.mxu0 0.0
    %3723 = vmatpush1.xpose.msra.mxu0 0.0
    %3724 = vmatprep.subr.mxu0 0.0
    %3725 = vmatpush1.xpose.msra.mxu0 0.0
    %3726 = vmatprep.subr.mxu0 0.0
    %3727 = vmatpush1.xpose.msra.mxu0 0.0
    %3728 = vmatprep.subr.mxu0 0.0
    %3729 = vmatpush1.xpose.msra.mxu0 0.0
    %3730 = vmatprep.subr.mxu0 0.0
    %3731 = vmatpush1.xpose.msra.mxu0 0.0
    %3732 = vmatprep.subr.mxu0 0.0
    %3733 = vmatpush1.xpose.msra.mxu0 0.0
    %3734 = vmatprep.subr.mxu0 0.0
    %3735 = vmatpush1.xpose.msra.mxu0 0.0
    %3736 = vmatprep.subr.mxu0 0.0
    %3737 = vmatpush1.xpose.msra.mxu0 0.0
    %3738 = vmatprep.subr.mxu0 0.0
    %3739 = vmatpush1.xpose.msra.mxu0 0.0
    %3740 = vmatprep.subr.mxu0 0.0
    %3741 = vmatpush1.xpose.msra.mxu0 0.0
    %3742 = vmatprep.subr.mxu0 0.0
    %3743 = vmatpush1.xpose.msra.mxu0 0.0
    %3744 = vmatprep.subr.mxu0 0.0
    %3745 = vmatpush1.xpose.msra.mxu0 0.0
    %3746 = vmatprep.subr.mxu0 0.0
    %3747 = vmatpush1.xpose.msra.mxu0 0.0
    %3748 = vmatprep.subr.mxu0 0.0
    %3749 = vmatpush1.xpose.msra.mxu0 0.0
    %3750 = vmatprep.subr.mxu0 0.0
    %3751 = vmatpush1.xpose.msra.mxu0 0.0
    %3752 = vmatprep.subr.mxu0 0.0
    %3753 = vmatpush1.xpose.msra.mxu0 0.0
    %3754 = vmatprep.subr.mxu0 0.0
    %3755 = vmatpush1.xpose.msra.mxu0 0.0
    %3756 = vmatprep.subr.mxu0 0.0
    %3757 = vmatpush1.xpose.msra.mxu0 0.0
    %3758 = vmatprep.subr.mxu0 0.0
    %3759 = vmatpush1.xpose.msra.mxu0 0.0
    %3760 = vmatprep.subr.mxu0 0.0
    %3761 = vmatpush1.xpose.msra.mxu0 0.0
    %3762 = vmatprep.mubr.f32.mxu0 0.0
    %3763 = vmatmul.mubr.f32.gmra.mrb[0].mxu0 %v3686
    %v3764 = vpop.f32.mrb[0].mxu0
    %v3765 = vadd.f32 0.0, %v3764
    %v3766 = vpop.f32.mrb[0].mxu0
    %3767 = vmatprep.mubr.f32.mxu0 0.0
    %3768 = vmatmul.mubr.f32.gmra.mrb[0].mxu0 %v3688
    %v3769 = vpop.f32.mrb[0].mxu0
    %v3770 = vadd.f32 0.0, %v3769
    %v3771 = vpop.f32.mrb[0].mxu0
    %3772 = vmatprep.mubr.f32.mxu0 0.0
    %3773 = vmatmul.mubr.f32.gmra.mrb[0].mxu0 %v3690
    %v3774 = vpop.f32.mrb[0].mxu0
    %v3775 = vadd.f32 0.0, %v3774
    %v3776 = vpop.f32.mrb[0].mxu0
    %3777 = vdwg.mxu0
    %v3778 = vmul.f32 %v3765, 0.25
    %v3779 = vmul.f32 %v3770, 0.25
    %v3780 = vmul.f32 %v3775, 0.25
    %v3781 = vadd.f32 %v3778, %v780
    %v3782 = vadd.f32 %v3779, %v780
    %v3783 = vadd.f32 %v3780, %v780
    %v3784 = vsel %vm785, %v3781, -inf
    %3785 = vmax.xlane.f32.xlu0 %v3784
    %v3786 = vpop.xlane.xlu0 %3785
    %v3787 = vsel %vm785, %v3782, -inf
    %3788 = vmax.xlane.f32.xlu0 %v3787
    %v3789 = vpop.xlane.xlu0 %3788
    %v3790 = vsel %vm785, %v3783, -inf
    %3791 = vmax.xlane.f32.xlu0 %v3790
    %v3792 = vpop.xlane.xlu0 %3791
    %v3793 = vsub.f32 %v3781, %v3786
    %v3794 = vsub.f32 %v3782, %v3789
    %v3795 = vsub.f32 %v3783, %v3792
    %v3796 = vmul.f32 %v3793, 1.442695
    %v3797 = vpow.pop %v3796
    %v3798 = vmul.f32 %v3794, 1.442695
    %v3799 = vpow.pop %v3798
    %v3800 = vmul.f32 %v3795, 1.442695
    %v3801 = vpow.pop %v3800
    %v3802 = vsel %vm785, %v3797, 0.0
    %3803 = vadd.xlane.f32.xlu0 %v3802
    %v3804 = vpop.xlane.xlu0 %3803
    %v3805 = vsel %vm785, %v3799, 0.0
    %3806 = vadd.xlane.f32.xlu0 %v3805
    %v3807 = vpop.xlane.xlu0 %3806
    %v3808 = vsel %vm785, %v3801, 0.0
    %3809 = vadd.xlane.f32.xlu0 %v3808
    %v3810 = vpop.xlane.xlu0 %3809
    %v3811 = vrcp.pop %v3804
    %v3812 = vmul.f32 %v3797, %v3811
    %v3813 = vrcp.pop %v3807
    %v3814 = vmul.f32 %v3799, %v3813
    %v3815 = vrcp.pop %v3810
    %v3816 = vmul.f32 %v3801, %v3815
    %3820 = vrot.lane.b32.xlu0 %v3419, 112
    %v3821 = vpop.permute.xlu0 %3820
    %3822 = vrot.lane.b32.xlu0 %v3423, 112
    %v3823 = vpop.permute.xlu0 %3822
    %3824 = vrot.lane.b32.xlu0 %v3429, 112
    %v3825 = vpop.permute.xlu0 %3824
    %v3830 = vsel %vm785, %v3812, 0
    %v3833 = vsel %vm785, %v3814, 0
    %v3836 = vsel %vm785, %v3816, 0
    %3838 = vmatprep.subr.mxu0 0.0
    %3839 = vmatpush1.msra.mxu0 %v3821
    %3840 = vmatprep.subr.mxu0 0.0
    %3841 = vmatpush1.msra.mxu0 %v3823
    %3842 = vmatprep.subr.mxu0 0.0
    %3843 = vmatpush1.msra.mxu0 %v3825
    %3844 = vmatprep.subr.mxu0 0.0
    %3845 = vmatpush1.msra.mxu0 0.0
    %3846 = vmatprep.subr.mxu0 0.0
    %3847 = vmatpush1.msra.mxu0 0.0
    %3848 = vmatprep.subr.mxu0 0.0
    %3849 = vmatpush1.msra.mxu0 0.0
    %3850 = vmatprep.subr.mxu0 0.0
    %3851 = vmatpush1.msra.mxu0 0.0
    %3852 = vmatprep.subr.mxu0 0.0
    %3853 = vmatpush1.msra.mxu0 0.0
    %3854 = vmatprep.subr.mxu0 0.0
    %3855 = vmatpush1.msra.mxu0 0.0
    %3856 = vmatprep.subr.mxu0 0.0
    %3857 = vmatpush1.msra.mxu0 0.0
    %3858 = vmatprep.subr.mxu0 0.0
    %3859 = vmatpush1.msra.mxu0 0.0
    %3860 = vmatprep.subr.mxu0 0.0
    %3861 = vmatpush1.msra.mxu0 0.0
    %3862 = vmatprep.subr.mxu0 0.0
    %3863 = vmatpush1.msra.mxu0 0.0
    %3864 = vmatprep.subr.mxu0 0.0
    %3865 = vmatpush1.msra.mxu0 0.0
    %3866 = vmatprep.subr.mxu0 0.0
    %3867 = vmatpush1.msra.mxu0 0.0
    %3868 = vmatprep.subr.mxu0 0.0
    %3869 = vmatpush1.msra.mxu0 0.0
    %3870 = vmatprep.subr.mxu0 0.0
    %3871 = vmatpush1.msra.mxu0 0.0
    %3872 = vmatprep.subr.mxu0 0.0
    %3873 = vmatpush1.msra.mxu0 0.0
    %3874 = vmatprep.subr.mxu0 0.0
    %3875 = vmatpush1.msra.mxu0 0.0
    %3876 = vmatprep.subr.mxu0 0.0
    %3877 = vmatpush1.msra.mxu0 0.0
    %3878 = vmatprep.subr.mxu0 0.0
    %3879 = vmatpush1.msra.mxu0 0.0
    %3880 = vmatprep.subr.mxu0 0.0
    %3881 = vmatpush1.msra.mxu0 0.0
    %3882 = vmatprep.subr.mxu0 0.0
    %3883 = vmatpush1.msra.mxu0 0.0
    %3884 = vmatprep.subr.mxu0 0.0
    %3885 = vmatpush1.msra.mxu0 0.0
    %3886 = vmatprep.subr.mxu0 0.0
    %3887 = vmatpush1.msra.mxu0 0.0
    %3888 = vmatprep.subr.mxu0 0.0
    %3889 = vmatpush1.msra.mxu0 0.0
    %3890 = vmatprep.subr.mxu0 0.0
    %3891 = vmatpush1.msra.mxu0 0.0
    %3892 = vmatprep.subr.mxu0 0.0
    %3893 = vmatpush1.msra.mxu0 0.0
    %3894 = vmatprep.subr.mxu0 0.0
    %3895 = vmatpush1.msra.mxu0 0.0
    %3896 = vmatprep.subr.mxu0 0.0
    %3897 = vmatpush1.msra.mxu0 0.0
    %3898 = vmatprep.subr.mxu0 0.0
    %3899 = vmatpush1.msra.mxu0 0.0
    %3900 = vmatprep.subr.mxu0 0.0
    %3901 = vmatpush1.msra.mxu0 0.0
    %3902 = vmatprep.mubr.f32.mxu0 0.0
    %3903 = vmatmul.mubr.f32.gmra.mrb[0].mxu0 %v3830
    %v3904 = vpop.f32.mrb[0].mxu0
    %v3905 = vadd.f32 0.0, %v3904
    %v3906 = vpop.f32.mrb[0].mxu0
    %3907 = vmatprep.mubr.f32.mxu0 0.0
    %3908 = vmatmul.mubr.f32.gmra.mrb[0].mxu0 %v3833
    %v3909 = vpop.f32.mrb[0].mxu0
    %v3910 = vadd.f32 0.0, %v3909
    %v3911 = vpop.f32.mrb[0].mxu0
    %3912 = vmatprep.mubr.f32.mxu0 0.0
    %3913 = vmatmul.mubr.f32.gmra.mrb[0].mxu0 %v3836
    %v3914 = vpop.f32.mrb[0].mxu0
    %v3915 = vadd.f32 0.0, %v3914
    %v3916 = vpop.f32.mrb[0].mxu0
    %3917 = vdwg.mxu0
    %3918 = vrot.lane.b32.xlu0 %v3417, 96
    %v3919 = vpop.permute.xlu0 %3918
    %3920 = vrot.lane.b32.xlu0 %v3421, 96
    %v3921 = vpop.permute.xlu0 %3920
    %3922 = vrot.lane.b32.xlu0 %v3427, 96
    %v3923 = vpop.permute.xlu0 %3922
    %3924 = vrot.lane.b32.xlu0 %v3417, 32
    %v3925 = vpop.permute.xlu0 %3924
    %3926 = vrot.lane.b32.xlu0 %v3421, 32
    %v3927 = vpop.permute.xlu0 %3926
    %3928 = vrot.lane.b32.xlu0 %v3427, 32
    %v3929 = vpop.permute.xlu0 %3928
    %v3930 = vsel %vm261, %v3919, 0
    %v3932 = vsel %vm261, %v3921, 0
    %v3934 = vsel %vm261, %v3923, 0
    %v3936 = vsel %vm261, %v3925, 0
    %v3938 = vsel %vm261, %v3927, 0
    %v3940 = vsel %vm261, %v3929, 0
    %3942 = vmatprep.subr.mxu0 0.0
    %3943 = vmatpush1.xpose.msra.mxu0 %v3936
    %3944 = vmatprep.subr.mxu0 0.0
    %3945 = vmatpush1.xpose.msra.mxu0 %v3938
    %3946 = vmatprep.subr.mxu0 0.0
    %3947 = vmatpush1.xpose.msra.mxu0 %v3940
    %3948 = vmatprep.subr.mxu0 0.0
    %3949 = vmatpush1.xpose.msra.mxu0 0.0
    %3950 = vmatprep.subr.mxu0 0.0
    %3951 = vmatpush1.xpose.msra.mxu0 0.0
    %3952 = vmatprep.subr.mxu0 0.0
    %3953 = vmatpush1.xpose.msra.mxu0 0.0
    %3954 = vmatprep.subr.mxu0 0.0
    %3955 = vmatpush1.xpose.msra.mxu0 0.0
    %3956 = vmatprep.subr.mxu0 0.0
    %3957 = vmatpush1.xpose.msra.mxu0 0.0
    %3958 = vmatprep.subr.mxu0 0.0
    %3959 = vmatpush1.xpose.msra.mxu0 0.0
    %3960 = vmatprep.subr.mxu0 0.0
    %3961 = vmatpush1.xpose.msra.mxu0 0.0
    %3962 = vmatprep.subr.mxu0 0.0
    %3963 = vmatpush1.xpose.msra.mxu0 0.0
    %3964 = vmatprep.subr.mxu0 0.0
    %3965 = vmatpush1.xpose.msra.mxu0 0.0
    %3966 = vmatprep.subr.mxu0 0.0
    %3967 = vmatpush1.xpose.msra.mxu0 0.0
    %3968 = vmatprep.subr.mxu0 0.0
    %3969 = vmatpush1.xpose.msra.mxu0 0.0
    %3970 = vmatprep.subr.mxu0 0.0
    %3971 = vmatpush1.xpose.msra.mxu0 0.0
    %3972 = vmatprep.subr.mxu0 0.0
    %3973 = vmatpush1.xpose.msra.mxu0 0.0
    %3974 = vmatprep.subr.mxu0 0.0
    %3975 = vmatpush1.xpose.msra.mxu0 0.0
    %3976 = vmatprep.subr.mxu0 0.0
    %3977 = vmatpush1.xpose.msra.mxu0 0.0
    %3978 = vmatprep.subr.mxu0 0.0
    %3979 = vmatpush1.xpose.msra.mxu0 0.0
    %3980 = vmatprep.subr.mxu0 0.0
    %3981 = vmatpush1.xpose.msra.mxu0 0.0
    %3982 = vmatprep.subr.mxu0 0.0
    %3983 = vmatpush1.xpose.msra.mxu0 0.0
    %3984 = vmatprep.subr.mxu0 0.0
    %3985 = vmatpush1.xpose.msra.mxu0 0.0
    %3986 = vmatprep.subr.mxu0 0.0
    %3987 = vmatpush1.xpose.msra.mxu0 0.0
    %3988 = vmatprep.subr.mxu0 0.0
    %3989 = vmatpush1.xpose.msra.mxu0 0.0
    %3990 = vmatprep.subr.mxu0 0.0
    %3991 = vmatpush1.xpose.msra.mxu0 0.0
    %3992 = vmatprep.subr.mxu0 0.0
    %3993 = vmatpush1.xpose.msra.mxu0 0.0
    %3994 = vmatprep.subr.mxu0 0.0
    %3995 = vmatpush1.xpose.msra.mxu0 0.0
    %3996 = vmatprep.subr.mxu0 0.0
    %3997 = vmatpush1.xpose.msra.mxu0 0.0
    %3998 = vmatprep.subr.mxu0 0.0
    %3999 = vmatpush1.xpose.msra.mxu0 0.0
    %4000 = vmatprep.subr.mxu0 0.0
    %4001 = vmatpush1.xpose.msra.mxu0 0.0
    %4002 = vmatprep.subr.mxu0 0.0
    %4003 = vmatpush1.xpose.msra.mxu0 0.0
    %4004 = vmatprep.subr.mxu0 0.0
    %4005 = vmatpush1.xpose.msra.mxu0 0.0
    %4006 = vmatprep.mubr.f32.mxu0 0.0
    %4007 = vmatmul.mubr.f32.gmra.mrb[0].mxu0 %v3930
    %v4008 = vpop.f32.mrb[0].mxu0
    %v4009 = vadd.f32 0.0, %v4008
    %v4010 = vpop.f32.mrb[0].mxu0
    %4011 = vmatprep.mubr.f32.mxu0 0.0
    %4012 = vmatmul.mubr.f32.gmra.mrb[0].mxu0 %v3932
    %v4013 = vpop.f32.mrb[0].mxu0
    %v4014 = vadd.f32 0.0, %v4013
    %v4015 = vpop.f32.mrb[0].mxu0
    %4016 = vmatprep.mubr.f32.mxu0 0.0
    %4017 = vmatmul.mubr.f32.gmra.mrb[0].mxu0 %v3934
    %v4018 = vpop.f32.mrb[0].mxu0
    %v4019 = vadd.f32 0.0, %v4018
    %v4020 = vpop.f32.mrb[0].mxu0
    %4021 = vdwg.mxu0
    %v4022 = vmul.f32 %v4009, 0.25
    %v4023 = vmul.f32 %v4014, 0.25
    %v4024 = vmul.f32 %v4019, 0.25
    %v4025 = vadd.f32 %v4022, %v780
    %v4026 = vadd.f32 %v4023, %v780
    %v4027 = vadd.f32 %v4024, %v780
    %v4028 = vsel %vm785, %v4025, -inf
    %4029 = vmax.xlane.f32.xlu0 %v4028
    %v4030 = vpop.xlane.xlu0 %4029
    %v4031 = vsel %vm785, %v4026, -inf
    %4032 = vmax.xlane.f32.xlu0 %v4031
    %v4033 = vpop.xlane.xlu0 %4032
    %v4034 = vsel %vm785, %v4027, -inf
    %4035 = vmax.xlane.f32.xlu0 %v4034
    %v4036 = vpop.xlane.xlu0 %4035
    %v4037 = vsub.f32 %v4025, %v4030
    %v4038 = vsub.f32 %v4026, %v4033
    %v4039 = vsub.f32 %v4027, %v4036
    %v4040 = vmul.f32 %v4037, 1.442695
    %v4041 = vpow.pop %v4040
    %v4042 = vmul.f32 %v4038, 1.442695
    %v4043 = vpow.pop %v4042
    %v4044 = vmul.f32 %v4039, 1.442695
    %v4045 = vpow.pop %v4044
    %v4046 = vsel %vm785, %v4041, 0.0
    %4047 = vadd.xlane.f32.xlu0 %v4046
    %v4048 = vpop.xlane.xlu0 %4047
    %v4049 = vsel %vm785, %v4043, 0.0
    %4050 = vadd.xlane.f32.xlu0 %v4049
    %v4051 = vpop.xlane.xlu0 %4050
    %v4052 = vsel %vm785, %v4045, 0.0
    %4053 = vadd.xlane.f32.xlu0 %v4052
    %v4054 = vpop.xlane.xlu0 %4053
    %v4055 = vrcp.pop %v4048
    %v4056 = vmul.f32 %v4041, %v4055
    %v4057 = vrcp.pop %v4051
    %v4058 = vmul.f32 %v4043, %v4057
    %v4059 = vrcp.pop %v4054
    %v4060 = vmul.f32 %v4045, %v4059
    %4061 = vrot.lane.b32.xlu0 %v3419, 96
    %v4062 = vpop.permute.xlu0 %4061
    %4063 = vrot.lane.b32.xlu0 %v3423, 96
    %v4064 = vpop.permute.xlu0 %4063
    %4065 = vrot.lane.b32.xlu0 %v3429, 96
    %v4066 = vpop.permute.xlu0 %4065
    %v4071 = vsel %vm785, %v4056, 0
    %v4074 = vsel %vm785, %v4058, 0
    %v4077 = vsel %vm785, %v4060, 0
    %4079 = vmatprep.subr.mxu0 0.0
    %4080 = vmatpush1.msra.mxu0 %v4062
    %4081 = vmatprep.subr.mxu0 0.0
    %4082 = vmatpush1.msra.mxu0 %v4064
    %4083 = vmatprep.subr.mxu0 0.0
    %4084 = vmatpush1.msra.mxu0 %v4066
    %4085 = vmatprep.subr.mxu0 0.0
    %4086 = vmatpush1.msra.mxu0 0.0
    %4087 = vmatprep.subr.mxu0 0.0
    %4088 = vmatpush1.msra.mxu0 0.0
    %4089 = vmatprep.subr.mxu0 0.0
    %4090 = vmatpush1.msra.mxu0 0.0
    %4091 = vmatprep.subr.mxu0 0.0
    %4092 = vmatpush1.msra.mxu0 0.0
    %4093 = vmatprep.subr.mxu0 0.0
    %4094 = vmatpush1.msra.mxu0 0.0
    %4095 = vmatprep.subr.mxu0 0.0
    %4096 = vmatpush1.msra.mxu0 0.0
    %4097 = vmatprep.subr.mxu0 0.0
    %4098 = vmatpush1.msra.mxu0 0.0
    %4099 = vmatprep.subr.mxu0 0.0
    %4100 = vmatpush1.msra.mxu0 0.0
    %4101 = vmatprep.subr.mxu0 0.0
    %4102 = vmatpush1.msra.mxu0 0.0
    %4103 = vmatprep.subr.mxu0 0.0
    %4104 = vmatpush1.msra.mxu0 0.0
    %4105 = vmatprep.subr.mxu0 0.0
    %4106 = vmatpush1.msra.mxu0 0.0
    %4107 = vmatprep.subr.mxu0 0.0
    %4108 = vmatpush1.msra.mxu0 0.0
    %4109 = vmatprep.subr.mxu0 0.0
    %4110 = vmatpush1.msra.mxu0 0.0
    %4111 = vmatprep.subr.mxu0 0.0
    %4112 = vmatpush1.msra.mxu0 0.0
    %4113 = vmatprep.subr.mxu0 0.0
    %4114 = vmatpush1.msra.mxu0 0.0
    %4115 = vmatprep.subr.mxu0 0.0
    %4116 = vmatpush1.msra.mxu0 0.0
    %4117 = vmatprep.subr.mxu0 0.0
    %4118 = vmatpush1.msra.mxu0 0.0
    %4119 = vmatprep.subr.mxu0 0.0
    %4120 = vmatpush1.msra.mxu0 0.0
    %4121 = vmatprep.subr.mxu0 0.0
    %4122 = vmatpush1.msra.mxu0 0.0
    %4123 = vmatprep.subr.mxu0 0.0
    %4124 = vmatpush1.msra.mxu0 0.0
    %4125 = vmatprep.subr.mxu0 0.0
    %4126 = vmatpush1.msra.mxu0 0.0
    %4127 = vmatprep.subr.mxu0 0.0
    %4128 = vmatpush1.msra.mxu0 0.0
    %4129 = vmatprep.subr.mxu0 0.0
    %4130 = vmatpush1.msra.mxu0 0.0
    %4131 = vmatprep.subr.mxu0 0.0
    %4132 = vmatpush1.msra.mxu0 0.0
    %4133 = vmatprep.subr.mxu0 0.0
    %4134 = vmatpush1.msra.mxu0 0.0
    %4135 = vmatprep.subr.mxu0 0.0
    %4136 = vmatpush1.msra.mxu0 0.0
    %4137 = vmatprep.subr.mxu0 0.0
    %4138 = vmatpush1.msra.mxu0 0.0
    %4139 = vmatprep.subr.mxu0 0.0
    %4140 = vmatpush1.msra.mxu0 0.0
    %4141 = vmatprep.subr.mxu0 0.0
    %4142 = vmatpush1.msra.mxu0 0.0
    %4143 = vmatprep.mubr.f32.mxu0 0.0
    %4144 = vmatmul.mubr.f32.gmra.mrb[0].mxu0 %v4071
    %v4145 = vpop.f32.mrb[0].mxu0
    %v4146 = vadd.f32 0.0, %v4145
    %v4147 = vpop.f32.mrb[0].mxu0
    %4148 = vmatprep.mubr.f32.mxu0 0.0
    %4149 = vmatmul.mubr.f32.gmra.mrb[0].mxu0 %v4074
    %v4150 = vpop.f32.mrb[0].mxu0
    %v4151 = vadd.f32 0.0, %v4150
    %v4152 = vpop.f32.mrb[0].mxu0
    %4153 = vmatprep.mubr.f32.mxu0 0.0
    %4154 = vmatmul.mubr.f32.gmra.mrb[0].mxu0 %v4077
    %v4155 = vpop.f32.mrb[0].mxu0
    %v4156 = vadd.f32 0.0, %v4155
    %v4157 = vpop.f32.mrb[0].mxu0
    %4158 = vdwg.mxu0
    %4159 = vrot.lane.b32.xlu0 %v3417, 80
    %v4160 = vpop.permute.xlu0 %4159
    %4161 = vrot.lane.b32.xlu0 %v3421, 80
    %v4162 = vpop.permute.xlu0 %4161
    %4163 = vrot.lane.b32.xlu0 %v3427, 80
    %v4164 = vpop.permute.xlu0 %4163
    %4165 = vrot.lane.b32.xlu0 %v3417, 16
    %v4166 = vpop.permute.xlu0 %4165
    %4167 = vrot.lane.b32.xlu0 %v3421, 16
    %v4168 = vpop.permute.xlu0 %4167
    %4169 = vrot.lane.b32.xlu0 %v3427, 16
    %v4170 = vpop.permute.xlu0 %4169
    %v4171 = vsel %vm261, %v4160, 0
    %v4173 = vsel %vm261, %v4162, 0
    %v4175 = vsel %vm261, %v4164, 0
    %v4177 = vsel %vm261, %v4166, 0
    %v4179 = vsel %vm261, %v4168, 0
    %v4181 = vsel %vm261, %v4170, 0
    %4183 = vmatprep.subr.mxu0 0.0
    %4184 = vmatpush1.xpose.msra.mxu0 %v4177
    %4185 = vmatprep.subr.mxu0 0.0
    %4186 = vmatpush1.xpose.msra.mxu0 %v4179
    %4187 = vmatprep.subr.mxu0 0.0
    %4188 = vmatpush1.xpose.msra.mxu0 %v4181
    %4189 = vmatprep.subr.mxu0 0.0
    %4190 = vmatpush1.xpose.msra.mxu0 0.0
    %4191 = vmatprep.subr.mxu0 0.0
    %4192 = vmatpush1.xpose.msra.mxu0 0.0
    %4193 = vmatprep.subr.mxu0 0.0
    %4194 = vmatpush1.xpose.msra.mxu0 0.0
    %4195 = vmatprep.subr.mxu0 0.0
    %4196 = vmatpush1.xpose.msra.mxu0 0.0
    %4197 = vmatprep.subr.mxu0 0.0
    %4198 = vmatpush1.xpose.msra.mxu0 0.0
    %4199 = vmatprep.subr.mxu0 0.0
    %4200 = vmatpush1.xpose.msra.mxu0 0.0
    %4201 = vmatprep.subr.mxu0 0.0
    %4202 = vmatpush1.xpose.msra.mxu0 0.0
    %4203 = vmatprep.subr.mxu0 0.0
    %4204 = vmatpush1.xpose.msra.mxu0 0.0
    %4205 = vmatprep.subr.mxu0 0.0
    %4206 = vmatpush1.xpose.msra.mxu0 0.0
    %4207 = vmatprep.subr.mxu0 0.0
    %4208 = vmatpush1.xpose.msra.mxu0 0.0
    %4209 = vmatprep.subr.mxu0 0.0
    %4210 = vmatpush1.xpose.msra.mxu0 0.0
    %4211 = vmatprep.subr.mxu0 0.0
    %4212 = vmatpush1.xpose.msra.mxu0 0.0
    %4213 = vmatprep.subr.mxu0 0.0
    %4214 = vmatpush1.xpose.msra.mxu0 0.0
    %4215 = vmatprep.subr.mxu0 0.0
    %4216 = vmatpush1.xpose.msra.mxu0 0.0
    %4217 = vmatprep.subr.mxu0 0.0
    %4218 = vmatpush1.xpose.msra.mxu0 0.0
    %4219 = vmatprep.subr.mxu0 0.0
    %4220 = vmatpush1.xpose.msra.mxu0 0.0
    %4221 = vmatprep.subr.mxu0 0.0
    %4222 = vmatpush1.xpose.msra.mxu0 0.0
    %4223 = vmatprep.subr.mxu0 0.0
    %4224 = vmatpush1.xpose.msra.mxu0 0.0
    %4225 = vmatprep.subr.mxu0 0.0
    %4226 = vmatpush1.xpose.msra.mxu0 0.0
    %4227 = vmatprep.subr.mxu0 0.0
    %4228 = vmatpush1.xpose.msra.mxu0 0.0
    %4229 = vmatprep.subr.mxu0 0.0
    %4230 = vmatpush1.xpose.msra.mxu0 0.0
    %4231 = vmatprep.subr.mxu0 0.0
    %4232 = vmatpush1.xpose.msra.mxu0 0.0
    %4233 = vmatprep.subr.mxu0 0.0
    %4234 = vmatpush1.xpose.msra.mxu0 0.0
    %4235 = vmatprep.subr.mxu0 0.0
    %4236 = vmatpush1.xpose.msra.mxu0 0.0
    %4237 = vmatprep.subr.mxu0 0.0
    %4238 = vmatpush1.xpose.msra.mxu0 0.0
    %4239 = vmatprep.subr.mxu0 0.0
    %4240 = vmatpush1.xpose.msra.mxu0 0.0
    %4241 = vmatprep.subr.mxu0 0.0
    %4242 = vmatpush1.xpose.msra.mxu0 0.0
    %4243 = vmatprep.subr.mxu0 0.0
    %4244 = vmatpush1.xpose.msra.mxu0 0.0
    %4245 = vmatprep.subr.mxu0 0.0
    %4246 = vmatpush1.xpose.msra.mxu0 0.0
    %4247 = vmatprep.mubr.f32.mxu0 0.0
    %4248 = vmatmul.mubr.f32.gmra.mrb[0].mxu0 %v4171
    %v4249 = vpop.f32.mrb[0].mxu0
    %v4250 = vadd.f32 0.0, %v4249
    %v4251 = vpop.f32.mrb[0].mxu0
    %4252 = vmatprep.mubr.f32.mxu0 0.0
    %4253 = vmatmul.mubr.f32.gmra.mrb[0].mxu0 %v4173
    %v4254 = vpop.f32.mrb[0].mxu0
    %v4255 = vadd.f32 0.0, %v4254
    %v4256 = vpop.f32.mrb[0].mxu0
    %4257 = vmatprep.mubr.f32.mxu0 0.0
    %4258 = vmatmul.mubr.f32.gmra.mrb[0].mxu0 %v4175
    %v4259 = vpop.f32.mrb[0].mxu0
    %v4260 = vadd.f32 0.0, %v4259
    %v4261 = vpop.f32.mrb[0].mxu0
    %4262 = vdwg.mxu0
    %v4263 = vmul.f32 %v4250, 0.25
    %v4264 = vmul.f32 %v4255, 0.25
    %v4265 = vmul.f32 %v4260, 0.25
    %v4266 = vadd.f32 %v4263, %v780
    %v4267 = vadd.f32 %v4264, %v780
    %v4268 = vadd.f32 %v4265, %v780
    %v4269 = vsel %vm785, %v4266, -inf
    %4270 = vmax.xlane.f32.xlu0 %v4269
    %v4271 = vpop.xlane.xlu0 %4270
    %v4272 = vsel %vm785, %v4267, -inf
    %4273 = vmax.xlane.f32.xlu0 %v4272
    %v4274 = vpop.xlane.xlu0 %4273
    %v4275 = vsel %vm785, %v4268, -inf
    %4276 = vmax.xlane.f32.xlu0 %v4275
    %v4277 = vpop.xlane.xlu0 %4276
    %v4278 = vsub.f32 %v4266, %v4271
    %v4279 = vsub.f32 %v4267, %v4274
    %v4280 = vsub.f32 %v4268, %v4277
    %v4281 = vmul.f32 %v4278, 1.442695
    %v4282 = vpow.pop %v4281
    %v4283 = vmul.f32 %v4279, 1.442695
    %v4284 = vpow.pop %v4283
    %v4285 = vmul.f32 %v4280, 1.442695
    %v4286 = vpow.pop %v4285
    %v4287 = vsel %vm785, %v4282, 0.0
    %4288 = vadd.xlane.f32.xlu0 %v4287
    %v4289 = vpop.xlane.xlu0 %4288
    %v4290 = vsel %vm785, %v4284, 0.0
    %4291 = vadd.xlane.f32.xlu0 %v4290
    %v4292 = vpop.xlane.xlu0 %4291
    %v4293 = vsel %vm785, %v4286, 0.0
    %4294 = vadd.xlane.f32.xlu0 %v4293
    %v4295 = vpop.xlane.xlu0 %4294
    %v4296 = vrcp.pop %v4289
    %v4297 = vmul.f32 %v4282, %v4296
    %v4298 = vrcp.pop %v4292
    %v4299 = vmul.f32 %v4284, %v4298
    %v4300 = vrcp.pop %v4295
    %v4301 = vmul.f32 %v4286, %v4300
    %4302 = vrot.lane.b32.xlu0 %v3419, 80
    %v4303 = vpop.permute.xlu0 %4302
    %4304 = vrot.lane.b32.xlu0 %v3423, 80
    %v4305 = vpop.permute.xlu0 %4304
    %4306 = vrot.lane.b32.xlu0 %v3429, 80
    %v4307 = vpop.permute.xlu0 %4306
    %v4312 = vsel %vm785, %v4297, 0
    %v4315 = vsel %vm785, %v4299, 0
    %v4318 = vsel %vm785, %v4301, 0
    %4320 = vmatprep.subr.mxu0 0.0
    %4321 = vmatpush1.msra.mxu0 %v4303
    %4322 = vmatprep.subr.mxu0 0.0
    %4323 = vmatpush1.msra.mxu0 %v4305
    %4324 = vmatprep.subr.mxu0 0.0
    %4325 = vmatpush1.msra.mxu0 %v4307
    %4326 = vmatprep.subr.mxu0 0.0
    %4327 = vmatpush1.msra.mxu0 0.0
    %4328 = vmatprep.subr.mxu0 0.0
    %4329 = vmatpush1.msra.mxu0 0.0
    %4330 = vmatprep.subr.mxu0 0.0
    %4331 = vmatpush1.msra.mxu0 0.0
    %4332 = vmatprep.subr.mxu0 0.0
    %4333 = vmatpush1.msra.mxu0 0.0
    %4334 = vmatprep.subr.mxu0 0.0
    %4335 = vmatpush1.msra.mxu0 0.0
    %4336 = vmatprep.subr.mxu0 0.0
    %4337 = vmatpush1.msra.mxu0 0.0
    %4338 = vmatprep.subr.mxu0 0.0
    %4339 = vmatpush1.msra.mxu0 0.0
    %4340 = vmatprep.subr.mxu0 0.0
    %4341 = vmatpush1.msra.mxu0 0.0
    %4342 = vmatprep.subr.mxu0 0.0
    %4343 = vmatpush1.msra.mxu0 0.0
    %4344 = vmatprep.subr.mxu0 0.0
    %4345 = vmatpush1.msra.mxu0 0.0
    %4346 = vmatprep.subr.mxu0 0.0
    %4347 = vmatpush1.msra.mxu0 0.0
    %4348 = vmatprep.subr.mxu0 0.0
    %4349 = vmatpush1.msra.mxu0 0.0
    %4350 = vmatprep.subr.mxu0 0.0
    %4351 = vmatpush1.msra.mxu0 0.0
    %4352 = vmatprep.subr.mxu0 0.0
    %4353 = vmatpush1.msra.mxu0 0.0
    %4354 = vmatprep.subr.mxu0 0.0
    %4355 = vmatpush1.msra.mxu0 0.0
    %4356 = vmatprep.subr.mxu0 0.0
    %4357 = vmatpush1.msra.mxu0 0.0
    %4358 = vmatprep.subr.mxu0 0.0
    %4359 = vmatpush1.msra.mxu0 0.0
    %4360 = vmatprep.subr.mxu0 0.0
    %4361 = vmatpush1.msra.mxu0 0.0
    %4362 = vmatprep.subr.mxu0 0.0
    %4363 = vmatpush1.msra.mxu0 0.0
    %4364 = vmatprep.subr.mxu0 0.0
    %4365 = vmatpush1.msra.mxu0 0.0
    %4366 = vmatprep.subr.mxu0 0.0
    %4367 = vmatpush1.msra.mxu0 0.0
    %4368 = vmatprep.subr.mxu0 0.0
    %4369 = vmatpush1.msra.mxu0 0.0
    %4370 = vmatprep.subr.mxu0 0.0
    %4371 = vmatpush1.msra.mxu0 0.0
    %4372 = vmatprep.subr.mxu0 0.0
    %4373 = vmatpush1.msra.mxu0 0.0
    %4374 = vmatprep.subr.mxu0 0.0
    %4375 = vmatpush1.msra.mxu0 0.0
    %4376 = vmatprep.subr.mxu0 0.0
    %4377 = vmatpush1.msra.mxu0 0.0
    %4378 = vmatprep.subr.mxu0 0.0
    %4379 = vmatpush1.msra.mxu0 0.0
    %4380 = vmatprep.subr.mxu0 0.0
    %4381 = vmatpush1.msra.mxu0 0.0
    %4382 = vmatprep.subr.mxu0 0.0
    %4383 = vmatpush1.msra.mxu0 0.0
    %4384 = vmatprep.mubr.f32.mxu0 0.0
    %4385 = vmatmul.mubr.f32.gmra.mrb[0].mxu0 %v4312
    %v4386 = vpop.f32.mrb[0].mxu0
    %v4387 = vadd.f32 0.0, %v4386
    %v4388 = vpop.f32.mrb[0].mxu0
    %4389 = vmatprep.mubr.f32.mxu0 0.0
    %4390 = vmatmul.mubr.f32.gmra.mrb[0].mxu0 %v4315
    %v4391 = vpop.f32.mrb[0].mxu0
    %v4392 = vadd.f32 0.0, %v4391
    %v4393 = vpop.f32.mrb[0].mxu0
    %4394 = vmatprep.mubr.f32.mxu0 0.0
    %4395 = vmatmul.mubr.f32.gmra.mrb[0].mxu0 %v4318
    %v4396 = vpop.f32.mrb[0].mxu0
    %v4397 = vadd.f32 0.0, %v4396
    %v4398 = vpop.f32.mrb[0].mxu0
    %4399 = vdwg.mxu0
    %4403 = vrot.lane.b32.xlu0 %v3905, 16
    %v4404 = vpop.permute.xlu0 %4403
    %4405 = vrot.lane.b32.xlu0 %v3910, 16
    %v4406 = vpop.permute.xlu0 %4405
    %4407 = vrot.lane.b32.xlu0 %v3915, 16
    %v4408 = vpop.permute.xlu0 %4407
    %4415 = vrot.lane.b32.xlu0 %v4146, 32
    %v4416 = vpop.permute.xlu0 %4415
    %4417 = vrot.lane.b32.xlu0 %v4151, 32
    %v4418 = vpop.permute.xlu0 %4417
    %4419 = vrot.lane.b32.xlu0 %v4156, 32
    %v4420 = vpop.permute.xlu0 %4419
    %4427 = vrot.lane.b32.xlu0 %v4387, 48
    %v4428 = vpop.permute.xlu0 %4427
    %4429 = vrot.lane.b32.xlu0 %v4392, 48
    %v4430 = vpop.permute.xlu0 %4429
    %4431 = vrot.lane.b32.xlu0 %v4397, 48
    %v4432 = vpop.permute.xlu0 %4431
    %v4436 = vsel %vm261, %v3661, %v4404
    %v4437 = vsel %vm261, %v3666, %v4406
    %v4438 = vsel %vm261, %v3671, %v4408
    %v4439 = vsel %vm1673, %v4436, %v4416
    %v4440 = vsel %vm1673, %v4437, %v4418
    %v4441 = vsel %vm1673, %v4438, %v4420
    %v4442 = vsel %vm1677, %v4439, %v4428
    %v4443 = vsel %vm1677, %v4440, %v4430
    %v4444 = vsel %vm1677, %v4441, %v4432
    %4448 = vrot.lane.b32.xlu0 %v3431, 64
    %v4449 = vpop.permute.xlu0 %4448
    %4450 = vrot.lane.b32.xlu0 %v3437, 64
    %v4451 = vpop.permute.xlu0 %4450
    %4452 = vrot.lane.b32.xlu0 %v3441, 64
    %v4453 = vpop.permute.xlu0 %4452
    %v4454 = vsel %vm261, %v3431, 0
    %v4456 = vsel %vm261, %v3437, 0
    %v4458 = vsel %vm261, %v3441, 0
    %v4460 = vsel %vm261, %v4449, 0
    %v4462 = vsel %vm261, %v4451, 0
    %v4464 = vsel %vm261, %v4453, 0
    %4466 = vmatprep.subr.mxu0 0.0
    %4467 = vmatpush1.xpose.msra.mxu0 %v4460
    %4468 = vmatprep.subr.mxu0 0.0
    %4469 = vmatpush1.xpose.msra.mxu0 %v4462
    %4470 = vmatprep.subr.mxu0 0.0
    %4471 = vmatpush1.xpose.msra.mxu0 %v4464
    %4472 = vmatprep.subr.mxu0 0.0
    %4473 = vmatpush1.xpose.msra.mxu0 0.0
    %4474 = vmatprep.subr.mxu0 0.0
    %4475 = vmatpush1.xpose.msra.mxu0 0.0
    %4476 = vmatprep.subr.mxu0 0.0
    %4477 = vmatpush1.xpose.msra.mxu0 0.0
    %4478 = vmatprep.subr.mxu0 0.0
    %4479 = vmatpush1.xpose.msra.mxu0 0.0
    %4480 = vmatprep.subr.mxu0 0.0
    %4481 = vmatpush1.xpose.msra.mxu0 0.0
    %4482 = vmatprep.subr.mxu0 0.0
    %4483 = vmatpush1.xpose.msra.mxu0 0.0
    %4484 = vmatprep.subr.mxu0 0.0
    %4485 = vmatpush1.xpose.msra.mxu0 0.0
    %4486 = vmatprep.subr.mxu0 0.0
    %4487 = vmatpush1.xpose.msra.mxu0 0.0
    %4488 = vmatprep.subr.mxu0 0.0
    %4489 = vmatpush1.xpose.msra.mxu0 0.0
    %4490 = vmatprep.subr.mxu0 0.0
    %4491 = vmatpush1.xpose.msra.mxu0 0.0
    %4492 = vmatprep.subr.mxu0 0.0
    %4493 = vmatpush1.xpose.msra.mxu0 0.0
    %4494 = vmatprep.subr.mxu0 0.0
    %4495 = vmatpush1.xpose.msra.mxu0 0.0
    %4496 = vmatprep.subr.mxu0 0.0
    %4497 = vmatpush1.xpose.msra.mxu0 0.0
    %4498 = vmatprep.subr.mxu0 0.0
    %4499 = vmatpush1.xpose.msra.mxu0 0.0
    %4500 = vmatprep.subr.mxu0 0.0
    %4501 = vmatpush1.xpose.msra.mxu0 0.0
    %4502 = vmatprep.subr.mxu0 0.0
    %4503 = vmatpush1.xpose.msra.mxu0 0.0
    %4504 = vmatprep.subr.mxu0 0.0
    %4505 = vmatpush1.xpose.msra.mxu0 0.0
    %4506 = vmatprep.subr.mxu0 0.0
    %4507 = vmatpush1.xpose.msra.mxu0 0.0
    %4508 = vmatprep.subr.mxu0 0.0
    %4509 = vmatpush1.xpose.msra.mxu0 0.0
    %4510 = vmatprep.subr.mxu0 0.0
    %4511 = vmatpush1.xpose.msra.mxu0 0.0
    %4512 = vmatprep.subr.mxu0 0.0
    %4513 = vmatpush1.xpose.msra.mxu0 0.0
    %4514 = vmatprep.subr.mxu0 0.0
    %4515 = vmatpush1.xpose.msra.mxu0 0.0
    %4516 = vmatprep.subr.mxu0 0.0
    %4517 = vmatpush1.xpose.msra.mxu0 0.0
    %4518 = vmatprep.subr.mxu0 0.0
    %4519 = vmatpush1.xpose.msra.mxu0 0.0
    %4520 = vmatprep.subr.mxu0 0.0
    %4521 = vmatpush1.xpose.msra.mxu0 0.0
    %4522 = vmatprep.subr.mxu0 0.0
    %4523 = vmatpush1.xpose.msra.mxu0 0.0
    %4524 = vmatprep.subr.mxu0 0.0
    %4525 = vmatpush1.xpose.msra.mxu0 0.0
    %4526 = vmatprep.subr.mxu0 0.0
    %4527 = vmatpush1.xpose.msra.mxu0 0.0
    %4528 = vmatprep.subr.mxu0 0.0
    %4529 = vmatpush1.xpose.msra.mxu0 0.0
    %4530 = vmatprep.mubr.f32.mxu0 0.0
    %4531 = vmatmul.mubr.f32.gmra.mrb[0].mxu0 %v4454
    %v4532 = vpop.f32.mrb[0].mxu0
    %v4533 = vadd.f32 0.0, %v4532
    %v4534 = vpop.f32.mrb[0].mxu0
    %4535 = vmatprep.mubr.f32.mxu0 0.0
    %4536 = vmatmul.mubr.f32.gmra.mrb[0].mxu0 %v4456
    %v4537 = vpop.f32.mrb[0].mxu0
    %v4538 = vadd.f32 0.0, %v4537
    %v4539 = vpop.f32.mrb[0].mxu0
    %4540 = vmatprep.mubr.f32.mxu0 0.0
    %4541 = vmatmul.mubr.f32.gmra.mrb[0].mxu0 %v4458
    %v4542 = vpop.f32.mrb[0].mxu0
    %v4543 = vadd.f32 0.0, %v4542
    %v4544 = vpop.f32.mrb[0].mxu0
    %4545 = vdwg.mxu0
    %v4546 = vmul.f32 %v4533, 0.25
    %v4547 = vmul.f32 %v4538, 0.25
    %v4548 = vmul.f32 %v4543, 0.25
    %v4549 = vadd.f32 %v4546, %v1791
    %v4550 = vadd.f32 %v4547, %v1791
    %v4551 = vadd.f32 %v4548, %v1791
    %v4552 = vsel %vm785, %v4549, -inf
    %4553 = vmax.xlane.f32.xlu0 %v4552
    %v4554 = vpop.xlane.xlu0 %4553
    %v4555 = vsel %vm785, %v4550, -inf
    %4556 = vmax.xlane.f32.xlu0 %v4555
    %v4557 = vpop.xlane.xlu0 %4556
    %v4558 = vsel %vm785, %v4551, -inf
    %4559 = vmax.xlane.f32.xlu0 %v4558
    %v4560 = vpop.xlane.xlu0 %4559
    %v4561 = vsub.f32 %v4549, %v4554
    %v4562 = vsub.f32 %v4550, %v4557
    %v4563 = vsub.f32 %v4551, %v4560
    %v4564 = vmul.f32 %v4561, 1.442695
    %v4565 = vpow.pop %v4564
    %v4566 = vmul.f32 %v4562, 1.442695
    %v4567 = vpow.pop %v4566
    %v4568 = vmul.f32 %v4563, 1.442695
    %v4569 = vpow.pop %v4568
    %v4570 = vsel %vm785, %v4565, 0.0
    %4571 = vadd.xlane.f32.xlu0 %v4570
    %v4572 = vpop.xlane.xlu0 %4571
    %v4573 = vsel %vm785, %v4567, 0.0
    %4574 = vadd.xlane.f32.xlu0 %v4573
    %v4575 = vpop.xlane.xlu0 %4574
    %v4576 = vsel %vm785, %v4569, 0.0
    %4577 = vadd.xlane.f32.xlu0 %v4576
    %v4578 = vpop.xlane.xlu0 %4577
    %v4579 = vrcp.pop %v4572
    %v4580 = vmul.f32 %v4565, %v4579
    %v4581 = vrcp.pop %v4575
    %v4582 = vmul.f32 %v4567, %v4581
    %v4583 = vrcp.pop %v4578
    %v4584 = vmul.f32 %v4569, %v4583
    %v4586 = vsel %vm785, %v4580, 0
    %v4589 = vsel %vm785, %v4582, 0
    %v4592 = vsel %vm785, %v4584, 0
    %4594 = vmatprep.subr.mxu0 0.0
    %4595 = vmatpush1.msra.mxu0 %v3433
    %4596 = vmatprep.subr.mxu0 0.0
    %4597 = vmatpush1.msra.mxu0 %v3439
    %4598 = vmatprep.subr.mxu0 0.0
    %4599 = vmatpush1.msra.mxu0 %v3443
    %4600 = vmatprep.subr.mxu0 0.0
    %4601 = vmatpush1.msra.mxu0 0.0
    %4602 = vmatprep.subr.mxu0 0.0
    %4603 = vmatpush1.msra.mxu0 0.0
    %4604 = vmatprep.subr.mxu0 0.0
    %4605 = vmatpush1.msra.mxu0 0.0
    %4606 = vmatprep.subr.mxu0 0.0
    %4607 = vmatpush1.msra.mxu0 0.0
    %4608 = vmatprep.subr.mxu0 0.0
    %4609 = vmatpush1.msra.mxu0 0.0
    %4610 = vmatprep.subr.mxu0 0.0
    %4611 = vmatpush1.msra.mxu0 0.0
    %4612 = vmatprep.subr.mxu0 0.0
    %4613 = vmatpush1.msra.mxu0 0.0
    %4614 = vmatprep.subr.mxu0 0.0
    %4615 = vmatpush1.msra.mxu0 0.0
    %4616 = vmatprep.subr.mxu0 0.0
    %4617 = vmatpush1.msra.mxu0 0.0
    %4618 = vmatprep.subr.mxu0 0.0
    %4619 = vmatpush1.msra.mxu0 0.0
    %4620 = vmatprep.subr.mxu0 0.0
    %4621 = vmatpush1.msra.mxu0 0.0
    %4622 = vmatprep.subr.mxu0 0.0
    %4623 = vmatpush1.msra.mxu0 0.0
    %4624 = vmatprep.subr.mxu0 0.0
    %4625 = vmatpush1.msra.mxu0 0.0
    %4626 = vmatprep.subr.mxu0 0.0
    %4627 = vmatpush1.msra.mxu0 0.0
    %4628 = vmatprep.subr.mxu0 0.0
    %4629 = vmatpush1.msra.mxu0 0.0
    %4630 = vmatprep.subr.mxu0 0.0
    %4631 = vmatpush1.msra.mxu0 0.0
    %4632 = vmatprep.subr.mxu0 0.0
    %4633 = vmatpush1.msra.mxu0 0.0
    %4634 = vmatprep.subr.mxu0 0.0
    %4635 = vmatpush1.msra.mxu0 0.0
    %4636 = vmatprep.subr.mxu0 0.0
    %4637 = vmatpush1.msra.mxu0 0.0
    %4638 = vmatprep.subr.mxu0 0.0
    %4639 = vmatpush1.msra.mxu0 0.0
    %4640 = vmatprep.subr.mxu0 0.0
    %4641 = vmatpush1.msra.mxu0 0.0
    %4642 = vmatprep.subr.mxu0 0.0
    %4643 = vmatpush1.msra.mxu0 0.0
    %4644 = vmatprep.subr.mxu0 0.0
    %4645 = vmatpush1.msra.mxu0 0.0
    %4646 = vmatprep.subr.mxu0 0.0
    %4647 = vmatpush1.msra.mxu0 0.0
    %4648 = vmatprep.subr.mxu0 0.0
    %4649 = vmatpush1.msra.mxu0 0.0
    %4650 = vmatprep.subr.mxu0 0.0
    %4651 = vmatpush1.msra.mxu0 0.0
    %4652 = vmatprep.subr.mxu0 0.0
    %4653 = vmatpush1.msra.mxu0 0.0
    %4654 = vmatprep.subr.mxu0 0.0
    %4655 = vmatpush1.msra.mxu0 0.0
    %4656 = vmatprep.subr.mxu0 0.0
    %4657 = vmatpush1.msra.mxu0 0.0
    %4658 = vmatprep.mubr.f32.mxu0 0.0
    %4659 = vmatmul.mubr.f32.gmra.mrb[0].mxu0 %v4586
    %v4660 = vpop.f32.mrb[0].mxu0
    %v4661 = vadd.f32 0.0, %v4660
    %v4662 = vpop.f32.mrb[0].mxu0
    %4663 = vmatprep.mubr.f32.mxu0 0.0
    %4664 = vmatmul.mubr.f32.gmra.mrb[0].mxu0 %v4589
    %v4665 = vpop.f32.mrb[0].mxu0
    %v4666 = vadd.f32 0.0, %v4665
    %v4667 = vpop.f32.mrb[0].mxu0
    %4668 = vmatprep.mubr.f32.mxu0 0.0
    %4669 = vmatmul.mubr.f32.gmra.mrb[0].mxu0 %v4592
    %v4670 = vpop.f32.mrb[0].mxu0
    %v4671 = vadd.f32 0.0, %v4670
    %v4672 = vpop.f32.mrb[0].mxu0
    %4673 = vdwg.mxu0
    %4674 = vrot.lane.b32.xlu0 %v3431, 112
    %v4675 = vpop.permute.xlu0 %4674
    %4676 = vrot.lane.b32.xlu0 %v3437, 112
    %v4677 = vpop.permute.xlu0 %4676
    %4678 = vrot.lane.b32.xlu0 %v3441, 112
    %v4679 = vpop.permute.xlu0 %4678
    %4680 = vrot.lane.b32.xlu0 %v3431, 48
    %v4681 = vpop.permute.xlu0 %4680
    %4682 = vrot.lane.b32.xlu0 %v3437, 48
    %v4683 = vpop.permute.xlu0 %4682
    %4684 = vrot.lane.b32.xlu0 %v3441, 48
    %v4685 = vpop.permute.xlu0 %4684
    %v4686 = vsel %vm261, %v4675, 0
    %v4688 = vsel %vm261, %v4677, 0
    %v4690 = vsel %vm261, %v4679, 0
    %v4692 = vsel %vm261, %v4681, 0
    %v4694 = vsel %vm261, %v4683, 0
    %v4696 = vsel %vm261, %v4685, 0
    %4698 = vmatprep.subr.mxu0 0.0
    %4699 = vmatpush1.xpose.msra.mxu0 %v4692
    %4700 = vmatprep.subr.mxu0 0.0
    %4701 = vmatpush1.xpose.msra.mxu0 %v4694
    %4702 = vmatprep.subr.mxu0 0.0
    %4703 = vmatpush1.xpose.msra.mxu0 %v4696
    %4704 = vmatprep.subr.mxu0 0.0
    %4705 = vmatpush1.xpose.msra.mxu0 0.0
    %4706 = vmatprep.subr.mxu0 0.0
    %4707 = vmatpush1.xpose.msra.mxu0 0.0
    %4708 = vmatprep.subr.mxu0 0.0
    %4709 = vmatpush1.xpose.msra.mxu0 0.0
    %4710 = vmatprep.subr.mxu0 0.0
    %4711 = vmatpush1.xpose.msra.mxu0 0.0
    %4712 = vmatprep.subr.mxu0 0.0
    %4713 = vmatpush1.xpose.msra.mxu0 0.0
    %4714 = vmatprep.subr.mxu0 0.0
    %4715 = vmatpush1.xpose.msra.mxu0 0.0
    %4716 = vmatprep.subr.mxu0 0.0
    %4717 = vmatpush1.xpose.msra.mxu0 0.0
    %4718 = vmatprep.subr.mxu0 0.0
    %4719 = vmatpush1.xpose.msra.mxu0 0.0
    %4720 = vmatprep.subr.mxu0 0.0
    %4721 = vmatpush1.xpose.msra.mxu0 0.0
    %4722 = vmatprep.subr.mxu0 0.0
    %4723 = vmatpush1.xpose.msra.mxu0 0.0
    %4724 = vmatprep.subr.mxu0 0.0
    %4725 = vmatpush1.xpose.msra.mxu0 0.0
    %4726 = vmatprep.subr.mxu0 0.0
    %4727 = vmatpush1.xpose.msra.mxu0 0.0
    %4728 = vmatprep.subr.mxu0 0.0
    %4729 = vmatpush1.xpose.msra.mxu0 0.0
    %4730 = vmatprep.subr.mxu0 0.0
    %4731 = vmatpush1.xpose.msra.mxu0 0.0
    %4732 = vmatprep.subr.mxu0 0.0
    %4733 = vmatpush1.xpose.msra.mxu0 0.0
    %4734 = vmatprep.subr.mxu0 0.0
    %4735 = vmatpush1.xpose.msra.mxu0 0.0
    %4736 = vmatprep.subr.mxu0 0.0
    %4737 = vmatpush1.xpose.msra.mxu0 0.0
    %4738 = vmatprep.subr.mxu0 0.0
    %4739 = vmatpush1.xpose.msra.mxu0 0.0
    %4740 = vmatprep.subr.mxu0 0.0
    %4741 = vmatpush1.xpose.msra.mxu0 0.0
    %4742 = vmatprep.subr.mxu0 0.0
    %4743 = vmatpush1.xpose.msra.mxu0 0.0
    %4744 = vmatprep.subr.mxu0 0.0
    %4745 = vmatpush1.xpose.msra.mxu0 0.0
    %4746 = vmatprep.subr.mxu0 0.0
    %4747 = vmatpush1.xpose.msra.mxu0 0.0
    %4748 = vmatprep.subr.mxu0 0.0
    %4749 = vmatpush1.xpose.msra.mxu0 0.0
    %4750 = vmatprep.subr.mxu0 0.0
    %4751 = vmatpush1.xpose.msra.mxu0 0.0
    %4752 = vmatprep.subr.mxu0 0.0
    %4753 = vmatpush1.xpose.msra.mxu0 0.0
    %4754 = vmatprep.subr.mxu0 0.0
    %4755 = vmatpush1.xpose.msra.mxu0 0.0
    %4756 = vmatprep.subr.mxu0 0.0
    %4757 = vmatpush1.xpose.msra.mxu0 0.0
    %4758 = vmatprep.subr.mxu0 0.0
    %4759 = vmatpush1.xpose.msra.mxu0 0.0
    %4760 = vmatprep.subr.mxu0 0.0
    %4761 = vmatpush1.xpose.msra.mxu0 0.0
    %4762 = vmatprep.mubr.f32.mxu0 0.0
    %4763 = vmatmul.mubr.f32.gmra.mrb[0].mxu0 %v4686
    %v4764 = vpop.f32.mrb[0].mxu0
    %v4765 = vadd.f32 0.0, %v4764
    %v4766 = vpop.f32.mrb[0].mxu0
    %4767 = vmatprep.mubr.f32.mxu0 0.0
    %4768 = vmatmul.mubr.f32.gmra.mrb[0].mxu0 %v4688
    %v4769 = vpop.f32.mrb[0].mxu0
    %v4770 = vadd.f32 0.0, %v4769
    %v4771 = vpop.f32.mrb[0].mxu0
    %4772 = vmatprep.mubr.f32.mxu0 0.0
    %4773 = vmatmul.mubr.f32.gmra.mrb[0].mxu0 %v4690
    %v4774 = vpop.f32.mrb[0].mxu0
    %v4775 = vadd.f32 0.0, %v4774
    %v4776 = vpop.f32.mrb[0].mxu0
    %4777 = vdwg.mxu0
    %v4778 = vmul.f32 %v4765, 0.25
    %v4779 = vmul.f32 %v4770, 0.25
    %v4780 = vmul.f32 %v4775, 0.25
    %v4781 = vadd.f32 %v4778, %v1791
    %v4782 = vadd.f32 %v4779, %v1791
    %v4783 = vadd.f32 %v4780, %v1791
    %v4784 = vsel %vm785, %v4781, -inf
    %4785 = vmax.xlane.f32.xlu0 %v4784
    %v4786 = vpop.xlane.xlu0 %4785
    %v4787 = vsel %vm785, %v4782, -inf
    %4788 = vmax.xlane.f32.xlu0 %v4787
    %v4789 = vpop.xlane.xlu0 %4788
    %v4790 = vsel %vm785, %v4783, -inf
    %4791 = vmax.xlane.f32.xlu0 %v4790
    %v4792 = vpop.xlane.xlu0 %4791
    %v4793 = vsub.f32 %v4781, %v4786
    %v4794 = vsub.f32 %v4782, %v4789
    %v4795 = vsub.f32 %v4783, %v4792
    %v4796 = vmul.f32 %v4793, 1.442695
    %v4797 = vpow.pop %v4796
    %v4798 = vmul.f32 %v4794, 1.442695
    %v4799 = vpow.pop %v4798
    %v4800 = vmul.f32 %v4795, 1.442695
    %v4801 = vpow.pop %v4800
    %v4802 = vsel %vm785, %v4797, 0.0
    %4803 = vadd.xlane.f32.xlu0 %v4802
    %v4804 = vpop.xlane.xlu0 %4803
    %v4805 = vsel %vm785, %v4799, 0.0
    %4806 = vadd.xlane.f32.xlu0 %v4805
    %v4807 = vpop.xlane.xlu0 %4806
    %v4808 = vsel %vm785, %v4801, 0.0
    %4809 = vadd.xlane.f32.xlu0 %v4808
    %v4810 = vpop.xlane.xlu0 %4809
    %v4811 = vrcp.pop %v4804
    %v4812 = vmul.f32 %v4797, %v4811
    %v4813 = vrcp.pop %v4807
    %v4814 = vmul.f32 %v4799, %v4813
    %v4815 = vrcp.pop %v4810
    %v4816 = vmul.f32 %v4801, %v4815
    %4820 = vrot.lane.b32.xlu0 %v3433, 112
    %v4821 = vpop.permute.xlu0 %4820
    %4822 = vrot.lane.b32.xlu0 %v3439, 112
    %v4823 = vpop.permute.xlu0 %4822
    %4824 = vrot.lane.b32.xlu0 %v3443, 112
    %v4825 = vpop.permute.xlu0 %4824
    %v4830 = vsel %vm785, %v4812, 0
    %v4833 = vsel %vm785, %v4814, 0
    %v4836 = vsel %vm785, %v4816, 0
    %4838 = vmatprep.subr.mxu0 0.0
    %4839 = vmatpush1.msra.mxu0 %v4821
    %4840 = vmatprep.subr.mxu0 0.0
    %4841 = vmatpush1.msra.mxu0 %v4823
    %4842 = vmatprep.subr.mxu0 0.0
    %4843 = vmatpush1.msra.mxu0 %v4825
    %4844 = vmatprep.subr.mxu0 0.0
    %4845 = vmatpush1.msra.mxu0 0.0
    %4846 = vmatprep.subr.mxu0 0.0
    %4847 = vmatpush1.msra.mxu0 0.0
    %4848 = vmatprep.subr.mxu0 0.0
    %4849 = vmatpush1.msra.mxu0 0.0
    %4850 = vmatprep.subr.mxu0 0.0
    %4851 = vmatpush1.msra.mxu0 0.0
    %4852 = vmatprep.subr.mxu0 0.0
    %4853 = vmatpush1.msra.mxu0 0.0
    %4854 = vmatprep.subr.mxu0 0.0
    %4855 = vmatpush1.msra.mxu0 0.0
    %4856 = vmatprep.subr.mxu0 0.0
    %4857 = vmatpush1.msra.mxu0 0.0
    %4858 = vmatprep.subr.mxu0 0.0
    %4859 = vmatpush1.msra.mxu0 0.0
    %4860 = vmatprep.subr.mxu0 0.0
    %4861 = vmatpush1.msra.mxu0 0.0
    %4862 = vmatprep.subr.mxu0 0.0
    %4863 = vmatpush1.msra.mxu0 0.0
    %4864 = vmatprep.subr.mxu0 0.0
    %4865 = vmatpush1.msra.mxu0 0.0
    %4866 = vmatprep.subr.mxu0 0.0
    %4867 = vmatpush1.msra.mxu0 0.0
    %4868 = vmatprep.subr.mxu0 0.0
    %4869 = vmatpush1.msra.mxu0 0.0
    %4870 = vmatprep.subr.mxu0 0.0
    %4871 = vmatpush1.msra.mxu0 0.0
    %4872 = vmatprep.subr.mxu0 0.0
    %4873 = vmatpush1.msra.mxu0 0.0
    %4874 = vmatprep.subr.mxu0 0.0
    %4875 = vmatpush1.msra.mxu0 0.0
    %4876 = vmatprep.subr.mxu0 0.0
    %4877 = vmatpush1.msra.mxu0 0.0
    %4878 = vmatprep.subr.mxu0 0.0
    %4879 = vmatpush1.msra.mxu0 0.0
    %4880 = vmatprep.subr.mxu0 0.0
    %4881 = vmatpush1.msra.mxu0 0.0
    %4882 = vmatprep.subr.mxu0 0.0
    %4883 = vmatpush1.msra.mxu0 0.0
    %4884 = vmatprep.subr.mxu0 0.0
    %4885 = vmatpush1.msra.mxu0 0.0
    %4886 = vmatprep.subr.mxu0 0.0
    %4887 = vmatpush1.msra.mxu0 0.0
    %4888 = vmatprep.subr.mxu0 0.0
    %4889 = vmatpush1.msra.mxu0 0.0
    %4890 = vmatprep.subr.mxu0 0.0
    %4891 = vmatpush1.msra.mxu0 0.0
    %4892 = vmatprep.subr.mxu0 0.0
    %4893 = vmatpush1.msra.mxu0 0.0
    %4894 = vmatprep.subr.mxu0 0.0
    %4895 = vmatpush1.msra.mxu0 0.0
    %4896 = vmatprep.subr.mxu0 0.0
    %4897 = vmatpush1.msra.mxu0 0.0
    %4898 = vmatprep.subr.mxu0 0.0
    %4899 = vmatpush1.msra.mxu0 0.0
    %4900 = vmatprep.subr.mxu0 0.0
    %4901 = vmatpush1.msra.mxu0 0.0
    %4902 = vmatprep.mubr.f32.mxu0 0.0
    %4903 = vmatmul.mubr.f32.gmra.mrb[0].mxu0 %v4830
    %v4904 = vpop.f32.mrb[0].mxu0
    %v4905 = vadd.f32 0.0, %v4904
    %v4906 = vpop.f32.mrb[0].mxu0
    %4907 = vmatprep.mubr.f32.mxu0 0.0
    %4908 = vmatmul.mubr.f32.gmra.mrb[0].mxu0 %v4833
    %v4909 = vpop.f32.mrb[0].mxu0
    %v4910 = vadd.f32 0.0, %v4909
    %v4911 = vpop.f32.mrb[0].mxu0
    %4912 = vmatprep.mubr.f32.mxu0 0.0
    %4913 = vmatmul.mubr.f32.gmra.mrb[0].mxu0 %v4836
    %v4914 = vpop.f32.mrb[0].mxu0
    %v4915 = vadd.f32 0.0, %v4914
    %v4916 = vpop.f32.mrb[0].mxu0
    %4917 = vdwg.mxu0
    %4918 = vrot.lane.b32.xlu0 %v3431, 96
    %v4919 = vpop.permute.xlu0 %4918
    %4920 = vrot.lane.b32.xlu0 %v3437, 96
    %v4921 = vpop.permute.xlu0 %4920
    %4922 = vrot.lane.b32.xlu0 %v3441, 96
    %v4923 = vpop.permute.xlu0 %4922
    %4924 = vrot.lane.b32.xlu0 %v3431, 32
    %v4925 = vpop.permute.xlu0 %4924
    %4926 = vrot.lane.b32.xlu0 %v3437, 32
    %v4927 = vpop.permute.xlu0 %4926
    %4928 = vrot.lane.b32.xlu0 %v3441, 32
    %v4929 = vpop.permute.xlu0 %4928
    %v4930 = vsel %vm261, %v4919, 0
    %v4932 = vsel %vm261, %v4921, 0
    %v4934 = vsel %vm261, %v4923, 0
    %v4936 = vsel %vm261, %v4925, 0
    %v4938 = vsel %vm261, %v4927, 0
    %v4940 = vsel %vm261, %v4929, 0
    %4942 = vmatprep.subr.mxu0 0.0
    %4943 = vmatpush1.xpose.msra.mxu0 %v4936
    %4944 = vmatprep.subr.mxu0 0.0
    %4945 = vmatpush1.xpose.msra.mxu0 %v4938
    %4946 = vmatprep.subr.mxu0 0.0
    %4947 = vmatpush1.xpose.msra.mxu0 %v4940
    %4948 = vmatprep.subr.mxu0 0.0
    %4949 = vmatpush1.xpose.msra.mxu0 0.0
    %4950 = vmatprep.subr.mxu0 0.0
    %4951 = vmatpush1.xpose.msra.mxu0 0.0
    %4952 = vmatprep.subr.mxu0 0.0
    %4953 = vmatpush1.xpose.msra.mxu0 0.0
    %4954 = vmatprep.subr.mxu0 0.0
    %4955 = vmatpush1.xpose.msra.mxu0 0.0
    %4956 = vmatprep.subr.mxu0 0.0
    %4957 = vmatpush1.xpose.msra.mxu0 0.0
    %4958 = vmatprep.subr.mxu0 0.0
    %4959 = vmatpush1.xpose.msra.mxu0 0.0
    %4960 = vmatprep.subr.mxu0 0.0
    %4961 = vmatpush1.xpose.msra.mxu0 0.0
    %4962 = vmatprep.subr.mxu0 0.0
    %4963 = vmatpush1.xpose.msra.mxu0 0.0
    %4964 = vmatprep.subr.mxu0 0.0
    %4965 = vmatpush1.xpose.msra.mxu0 0.0
    %4966 = vmatprep.subr.mxu0 0.0
    %4967 = vmatpush1.xpose.msra.mxu0 0.0
    %4968 = vmatprep.subr.mxu0 0.0
    %4969 = vmatpush1.xpose.msra.mxu0 0.0
    %4970 = vmatprep.subr.mxu0 0.0
    %4971 = vmatpush1.xpose.msra.mxu0 0.0
    %4972 = vmatprep.subr.mxu0 0.0
    %4973 = vmatpush1.xpose.msra.mxu0 0.0
    %4974 = vmatprep.subr.mxu0 0.0
    %4975 = vmatpush1.xpose.msra.mxu0 0.0
    %4976 = vmatprep.subr.mxu0 0.0
    %4977 = vmatpush1.xpose.msra.mxu0 0.0
    %4978 = vmatprep.subr.mxu0 0.0
    %4979 = vmatpush1.xpose.msra.mxu0 0.0
    %4980 = vmatprep.subr.mxu0 0.0
    %4981 = vmatpush1.xpose.msra.mxu0 0.0
    %4982 = vmatprep.subr.mxu0 0.0
    %4983 = vmatpush1.xpose.msra.mxu0 0.0
    %4984 = vmatprep.subr.mxu0 0.0
    %4985 = vmatpush1.xpose.msra.mxu0 0.0
    %4986 = vmatprep.subr.mxu0 0.0
    %4987 = vmatpush1.xpose.msra.mxu0 0.0
    %4988 = vmatprep.subr.mxu0 0.0
    %4989 = vmatpush1.xpose.msra.mxu0 0.0
    %4990 = vmatprep.subr.mxu0 0.0
    %4991 = vmatpush1.xpose.msra.mxu0 0.0
    %4992 = vmatprep.subr.mxu0 0.0
    %4993 = vmatpush1.xpose.msra.mxu0 0.0
    %4994 = vmatprep.subr.mxu0 0.0
    %4995 = vmatpush1.xpose.msra.mxu0 0.0
    %4996 = vmatprep.subr.mxu0 0.0
    %4997 = vmatpush1.xpose.msra.mxu0 0.0
    %4998 = vmatprep.subr.mxu0 0.0
    %4999 = vmatpush1.xpose.msra.mxu0 0.0
    %5000 = vmatprep.subr.mxu0 0.0
    %5001 = vmatpush1.xpose.msra.mxu0 0.0
    %5002 = vmatprep.subr.mxu0 0.0
    %5003 = vmatpush1.xpose.msra.mxu0 0.0
    %5004 = vmatprep.subr.mxu0 0.0
    %5005 = vmatpush1.xpose.msra.mxu0 0.0
    %5006 = vmatprep.mubr.f32.mxu0 0.0
    %5007 = vmatmul.mubr.f32.gmra.mrb[0].mxu0 %v4930
    %v5008 = vpop.f32.mrb[0].mxu0
    %v5009 = vadd.f32 0.0, %v5008
    %v5010 = vpop.f32.mrb[0].mxu0
    %5011 = vmatprep.mubr.f32.mxu0 0.0
    %5012 = vmatmul.mubr.f32.gmra.mrb[0].mxu0 %v4932
    %v5013 = vpop.f32.mrb[0].mxu0
    %v5014 = vadd.f32 0.0, %v5013
    %v5015 = vpop.f32.mrb[0].mxu0
    %5016 = vmatprep.mubr.f32.mxu0 0.0
    %5017 = vmatmul.mubr.f32.gmra.mrb[0].mxu0 %v4934
    %v5018 = vpop.f32.mrb[0].mxu0
    %v5019 = vadd.f32 0.0, %v5018
    %v5020 = vpop.f32.mrb[0].mxu0
    %5021 = vdwg.mxu0
    %v5022 = vmul.f32 %v5009, 0.25
    %v5023 = vmul.f32 %v5014, 0.25
    %v5024 = vmul.f32 %v5019, 0.25
    %v5025 = vadd.f32 %v5022, %v1791
    %v5026 = vadd.f32 %v5023, %v1791
    %v5027 = vadd.f32 %v5024, %v1791
    %v5028 = vsel %vm785, %v5025, -inf
    %5029 = vmax.xlane.f32.xlu0 %v5028
    %v5030 = vpop.xlane.xlu0 %5029
    %v5031 = vsel %vm785, %v5026, -inf
    %5032 = vmax.xlane.f32.xlu0 %v5031
    %v5033 = vpop.xlane.xlu0 %5032
    %v5034 = vsel %vm785, %v5027, -inf
    %5035 = vmax.xlane.f32.xlu0 %v5034
    %v5036 = vpop.xlane.xlu0 %5035
    %v5037 = vsub.f32 %v5025, %v5030
    %v5038 = vsub.f32 %v5026, %v5033
    %v5039 = vsub.f32 %v5027, %v5036
    %v5040 = vmul.f32 %v5037, 1.442695
    %v5041 = vpow.pop %v5040
    %v5042 = vmul.f32 %v5038, 1.442695
    %v5043 = vpow.pop %v5042
    %v5044 = vmul.f32 %v5039, 1.442695
    %v5045 = vpow.pop %v5044
    %v5046 = vsel %vm785, %v5041, 0.0
    %5047 = vadd.xlane.f32.xlu0 %v5046
    %v5048 = vpop.xlane.xlu0 %5047
    %v5049 = vsel %vm785, %v5043, 0.0
    %5050 = vadd.xlane.f32.xlu0 %v5049
    %v5051 = vpop.xlane.xlu0 %5050
    %v5052 = vsel %vm785, %v5045, 0.0
    %5053 = vadd.xlane.f32.xlu0 %v5052
    %v5054 = vpop.xlane.xlu0 %5053
    %v5055 = vrcp.pop %v5048
    %v5056 = vmul.f32 %v5041, %v5055
    %v5057 = vrcp.pop %v5051
    %v5058 = vmul.f32 %v5043, %v5057
    %v5059 = vrcp.pop %v5054
    %v5060 = vmul.f32 %v5045, %v5059
    %5061 = vrot.lane.b32.xlu0 %v3433, 96
    %v5062 = vpop.permute.xlu0 %5061
    %5063 = vrot.lane.b32.xlu0 %v3439, 96
    %v5064 = vpop.permute.xlu0 %5063
    %5065 = vrot.lane.b32.xlu0 %v3443, 96
    %v5066 = vpop.permute.xlu0 %5065
    %v5071 = vsel %vm785, %v5056, 0
    %v5074 = vsel %vm785, %v5058, 0
    %v5077 = vsel %vm785, %v5060, 0
    %5079 = vmatprep.subr.mxu0 0.0
    %5080 = vmatpush1.msra.mxu0 %v5062
    %5081 = vmatprep.subr.mxu0 0.0
    %5082 = vmatpush1.msra.mxu0 %v5064
    %5083 = vmatprep.subr.mxu0 0.0
    %5084 = vmatpush1.msra.mxu0 %v5066
    %5085 = vmatprep.subr.mxu0 0.0
    %5086 = vmatpush1.msra.mxu0 0.0
    %5087 = vmatprep.subr.mxu0 0.0
    %5088 = vmatpush1.msra.mxu0 0.0
    %5089 = vmatprep.subr.mxu0 0.0
    %5090 = vmatpush1.msra.mxu0 0.0
    %5091 = vmatprep.subr.mxu0 0.0
    %5092 = vmatpush1.msra.mxu0 0.0
    %5093 = vmatprep.subr.mxu0 0.0
    %5094 = vmatpush1.msra.mxu0 0.0
    %5095 = vmatprep.subr.mxu0 0.0
    %5096 = vmatpush1.msra.mxu0 0.0
    %5097 = vmatprep.subr.mxu0 0.0
    %5098 = vmatpush1.msra.mxu0 0.0
    %5099 = vmatprep.subr.mxu0 0.0
    %5100 = vmatpush1.msra.mxu0 0.0
    %5101 = vmatprep.subr.mxu0 0.0
    %5102 = vmatpush1.msra.mxu0 0.0
    %5103 = vmatprep.subr.mxu0 0.0
    %5104 = vmatpush1.msra.mxu0 0.0
    %5105 = vmatprep.subr.mxu0 0.0
    %5106 = vmatpush1.msra.mxu0 0.0
    %5107 = vmatprep.subr.mxu0 0.0
    %5108 = vmatpush1.msra.mxu0 0.0
    %5109 = vmatprep.subr.mxu0 0.0
    %5110 = vmatpush1.msra.mxu0 0.0
    %5111 = vmatprep.subr.mxu0 0.0
    %5112 = vmatpush1.msra.mxu0 0.0
    %5113 = vmatprep.subr.mxu0 0.0
    %5114 = vmatpush1.msra.mxu0 0.0
    %5115 = vmatprep.subr.mxu0 0.0
    %5116 = vmatpush1.msra.mxu0 0.0
    %5117 = vmatprep.subr.mxu0 0.0
    %5118 = vmatpush1.msra.mxu0 0.0
    %5119 = vmatprep.subr.mxu0 0.0
    %5120 = vmatpush1.msra.mxu0 0.0
    %5121 = vmatprep.subr.mxu0 0.0
    %5122 = vmatpush1.msra.mxu0 0.0
    %5123 = vmatprep.subr.mxu0 0.0
    %5124 = vmatpush1.msra.mxu0 0.0
    %5125 = vmatprep.subr.mxu0 0.0
    %5126 = vmatpush1.msra.mxu0 0.0
    %5127 = vmatprep.subr.mxu0 0.0
    %5128 = vmatpush1.msra.mxu0 0.0
    %5129 = vmatprep.subr.mxu0 0.0
    %5130 = vmatpush1.msra.mxu0 0.0
    %5131 = vmatprep.subr.mxu0 0.0
    %5132 = vmatpush1.msra.mxu0 0.0
    %5133 = vmatprep.subr.mxu0 0.0
    %5134 = vmatpush1.msra.mxu0 0.0
    %5135 = vmatprep.subr.mxu0 0.0
    %5136 = vmatpush1.msra.mxu0 0.0
    %5137 = vmatprep.subr.mxu0 0.0
    %5138 = vmatpush1.msra.mxu0 0.0
    %5139 = vmatprep.subr.mxu0 0.0
    %5140 = vmatpush1.msra.mxu0 0.0
    %5141 = vmatprep.subr.mxu0 0.0
    %5142 = vmatpush1.msra.mxu0 0.0
    %5143 = vmatprep.mubr.f32.mxu0 0.0
    %5144 = vmatmul.mubr.f32.gmra.mrb[0].mxu0 %v5071
    %v5145 = vpop.f32.mrb[0].mxu0
    %v5146 = vadd.f32 0.0, %v5145
    %v5147 = vpop.f32.mrb[0].mxu0
    %5148 = vmatprep.mubr.f32.mxu0 0.0
    %5149 = vmatmul.mubr.f32.gmra.mrb[0].mxu0 %v5074
    %v5150 = vpop.f32.mrb[0].mxu0
    %v5151 = vadd.f32 0.0, %v5150
    %v5152 = vpop.f32.mrb[0].mxu0
    %5153 = vmatprep.mubr.f32.mxu0 0.0
    %5154 = vmatmul.mubr.f32.gmra.mrb[0].mxu0 %v5077
    %v5155 = vpop.f32.mrb[0].mxu0
    %v5156 = vadd.f32 0.0, %v5155
    %v5157 = vpop.f32.mrb[0].mxu0
    %5158 = vdwg.mxu0
    %5159 = vrot.lane.b32.xlu0 %v3431, 80
    %v5160 = vpop.permute.xlu0 %5159
    %5161 = vrot.lane.b32.xlu0 %v3437, 80
    %v5162 = vpop.permute.xlu0 %5161
    %5163 = vrot.lane.b32.xlu0 %v3441, 80
    %v5164 = vpop.permute.xlu0 %5163
    %5165 = vrot.lane.b32.xlu0 %v3431, 16
    %v5166 = vpop.permute.xlu0 %5165
    %5167 = vrot.lane.b32.xlu0 %v3437, 16
    %v5168 = vpop.permute.xlu0 %5167
    %5169 = vrot.lane.b32.xlu0 %v3441, 16
    %v5170 = vpop.permute.xlu0 %5169
    %v5171 = vsel %vm261, %v5160, 0
    %v5173 = vsel %vm261, %v5162, 0
    %v5175 = vsel %vm261, %v5164, 0
    %v5177 = vsel %vm261, %v5166, 0
    %v5179 = vsel %vm261, %v5168, 0
    %v5181 = vsel %vm261, %v5170, 0
    %5183 = vmatprep.subr.mxu0 0.0
    %5184 = vmatpush1.xpose.msra.mxu0 %v5177
    %5185 = vmatprep.subr.mxu0 0.0
    %5186 = vmatpush1.xpose.msra.mxu0 %v5179
    %5187 = vmatprep.subr.mxu0 0.0
    %5188 = vmatpush1.xpose.msra.mxu0 %v5181
    %5189 = vmatprep.subr.mxu0 0.0
    %5190 = vmatpush1.xpose.msra.mxu0 0.0
    %5191 = vmatprep.subr.mxu0 0.0
    %5192 = vmatpush1.xpose.msra.mxu0 0.0
    %5193 = vmatprep.subr.mxu0 0.0
    %5194 = vmatpush1.xpose.msra.mxu0 0.0
    %5195 = vmatprep.subr.mxu0 0.0
    %5196 = vmatpush1.xpose.msra.mxu0 0.0
    %5197 = vmatprep.subr.mxu0 0.0
    %5198 = vmatpush1.xpose.msra.mxu0 0.0
    %5199 = vmatprep.subr.mxu0 0.0
    %5200 = vmatpush1.xpose.msra.mxu0 0.0
    %5201 = vmatprep.subr.mxu0 0.0
    %5202 = vmatpush1.xpose.msra.mxu0 0.0
    %5203 = vmatprep.subr.mxu0 0.0
    %5204 = vmatpush1.xpose.msra.mxu0 0.0
    %5205 = vmatprep.subr.mxu0 0.0
    %5206 = vmatpush1.xpose.msra.mxu0 0.0
    %5207 = vmatprep.subr.mxu0 0.0
    %5208 = vmatpush1.xpose.msra.mxu0 0.0
    %5209 = vmatprep.subr.mxu0 0.0
    %5210 = vmatpush1.xpose.msra.mxu0 0.0
    %5211 = vmatprep.subr.mxu0 0.0
    %5212 = vmatpush1.xpose.msra.mxu0 0.0
    %5213 = vmatprep.subr.mxu0 0.0
    %5214 = vmatpush1.xpose.msra.mxu0 0.0
    %5215 = vmatprep.subr.mxu0 0.0
    %5216 = vmatpush1.xpose.msra.mxu0 0.0
    %5217 = vmatprep.subr.mxu0 0.0
    %5218 = vmatpush1.xpose.msra.mxu0 0.0
    %5219 = vmatprep.subr.mxu0 0.0
    %5220 = vmatpush1.xpose.msra.mxu0 0.0
    %5221 = vmatprep.subr.mxu0 0.0
    %5222 = vmatpush1.xpose.msra.mxu0 0.0
    %5223 = vmatprep.subr.mxu0 0.0
    %5224 = vmatpush1.xpose.msra.mxu0 0.0
    %5225 = vmatprep.subr.mxu0 0.0
    %5226 = vmatpush1.xpose.msra.mxu0 0.0
    %5227 = vmatprep.subr.mxu0 0.0
    %5228 = vmatpush1.xpose.msra.mxu0 0.0
    %5229 = vmatprep.subr.mxu0 0.0
    %5230 = vmatpush1.xpose.msra.mxu0 0.0
    %5231 = vmatprep.subr.mxu0 0.0
    %5232 = vmatpush1.xpose.msra.mxu0 0.0
    %5233 = vmatprep.subr.mxu0 0.0
    %5234 = vmatpush1.xpose.msra.mxu0 0.0
    %5235 = vmatprep.subr.mxu0 0.0
    %5236 = vmatpush1.xpose.msra.mxu0 0.0
    %5237 = vmatprep.subr.mxu0 0.0
    %5238 = vmatpush1.xpose.msra.mxu0 0.0
    %5239 = vmatprep.subr.mxu0 0.0
    %5240 = vmatpush1.xpose.msra.mxu0 0.0
    %5241 = vmatprep.subr.mxu0 0.0
    %5242 = vmatpush1.xpose.msra.mxu0 0.0
    %5243 = vmatprep.subr.mxu0 0.0
    %5244 = vmatpush1.xpose.msra.mxu0 0.0
    %5245 = vmatprep.subr.mxu0 0.0
    %5246 = vmatpush1.xpose.msra.mxu0 0.0
    %5247 = vmatprep.mubr.f32.mxu0 0.0
    %5248 = vmatmul.mubr.f32.gmra.mrb[0].mxu0 %v5171
    %v5249 = vpop.f32.mrb[0].mxu0
    %v5250 = vadd.f32 0.0, %v5249
    %v5251 = vpop.f32.mrb[0].mxu0
    %5252 = vmatprep.mubr.f32.mxu0 0.0
    %5253 = vmatmul.mubr.f32.gmra.mrb[0].mxu0 %v5173
    %v5254 = vpop.f32.mrb[0].mxu0
    %v5255 = vadd.f32 0.0, %v5254
    %v5256 = vpop.f32.mrb[0].mxu0
    %5257 = vmatprep.mubr.f32.mxu0 0.0
    %5258 = vmatmul.mubr.f32.gmra.mrb[0].mxu0 %v5175
    %v5259 = vpop.f32.mrb[0].mxu0
    %v5260 = vadd.f32 0.0, %v5259
    %v5261 = vpop.f32.mrb[0].mxu0
    %5262 = vdwg.mxu0
    %v5263 = vmul.f32 %v5250, 0.25
    %v5264 = vmul.f32 %v5255, 0.25
    %v5265 = vmul.f32 %v5260, 0.25
    %v5266 = vadd.f32 %v5263, %v1791
    %v5267 = vadd.f32 %v5264, %v1791
    %v5268 = vadd.f32 %v5265, %v1791
    %v5269 = vsel %vm785, %v5266, -inf
    %5270 = vmax.xlane.f32.xlu0 %v5269
    %v5271 = vpop.xlane.xlu0 %5270
    %v5272 = vsel %vm785, %v5267, -inf
    %5273 = vmax.xlane.f32.xlu0 %v5272
    %v5274 = vpop.xlane.xlu0 %5273
    %v5275 = vsel %vm785, %v5268, -inf
    %5276 = vmax.xlane.f32.xlu0 %v5275
    %v5277 = vpop.xlane.xlu0 %5276
    %v5278 = vsub.f32 %v5266, %v5271
    %v5279 = vsub.f32 %v5267, %v5274
    %v5280 = vsub.f32 %v5268, %v5277
    %v5281 = vmul.f32 %v5278, 1.442695
    %v5282 = vpow.pop %v5281
    %v5283 = vmul.f32 %v5279, 1.442695
    %v5284 = vpow.pop %v5283
    %v5285 = vmul.f32 %v5280, 1.442695
    %v5286 = vpow.pop %v5285
    %v5287 = vsel %vm785, %v5282, 0.0
    %5288 = vadd.xlane.f32.xlu0 %v5287
    %v5289 = vpop.xlane.xlu0 %5288
    %v5290 = vsel %vm785, %v5284, 0.0
    %5291 = vadd.xlane.f32.xlu0 %v5290
    %v5292 = vpop.xlane.xlu0 %5291
    %v5293 = vsel %vm785, %v5286, 0.0
    %5294 = vadd.xlane.f32.xlu0 %v5293
    %v5295 = vpop.xlane.xlu0 %5294
    %v5296 = vrcp.pop %v5289
    %v5297 = vmul.f32 %v5282, %v5296
    %v5298 = vrcp.pop %v5292
    %v5299 = vmul.f32 %v5284, %v5298
    %v5300 = vrcp.pop %v5295
    %v5301 = vmul.f32 %v5286, %v5300
    %5302 = vrot.lane.b32.xlu0 %v3433, 80
    %v5303 = vpop.permute.xlu0 %5302
    %5304 = vrot.lane.b32.xlu0 %v3439, 80
    %v5305 = vpop.permute.xlu0 %5304
    %5306 = vrot.lane.b32.xlu0 %v3443, 80
    %v5307 = vpop.permute.xlu0 %5306
    %v5312 = vsel %vm785, %v5297, 0
    %v5315 = vsel %vm785, %v5299, 0
    %v5318 = vsel %vm785, %v5301, 0
    %5320 = vmatprep.subr.mxu0 0.0
    %5321 = vmatpush1.msra.mxu0 %v5303
    %5322 = vmatprep.subr.mxu0 0.0
    %5323 = vmatpush1.msra.mxu0 %v5305
    %5324 = vmatprep.subr.mxu0 0.0
    %5325 = vmatpush1.msra.mxu0 %v5307
    %5326 = vmatprep.subr.mxu0 0.0
    %5327 = vmatpush1.msra.mxu0 0.0
    %5328 = vmatprep.subr.mxu0 0.0
    %5329 = vmatpush1.msra.mxu0 0.0
    %5330 = vmatprep.subr.mxu0 0.0
    %5331 = vmatpush1.msra.mxu0 0.0
    %5332 = vmatprep.subr.mxu0 0.0
    %5333 = vmatpush1.msra.mxu0 0.0
    %5334 = vmatprep.subr.mxu0 0.0
    %5335 = vmatpush1.msra.mxu0 0.0
    %5336 = vmatprep.subr.mxu0 0.0
    %5337 = vmatpush1.msra.mxu0 0.0
    %5338 = vmatprep.subr.mxu0 0.0
    %5339 = vmatpush1.msra.mxu0 0.0
    %5340 = vmatprep.subr.mxu0 0.0
    %5341 = vmatpush1.msra.mxu0 0.0
    %5342 = vmatprep.subr.mxu0 0.0
    %5343 = vmatpush1.msra.mxu0 0.0
    %5344 = vmatprep.subr.mxu0 0.0
    %5345 = vmatpush1.msra.mxu0 0.0
    %5346 = vmatprep.subr.mxu0 0.0
    %5347 = vmatpush1.msra.mxu0 0.0
    %5348 = vmatprep.subr.mxu0 0.0
    %5349 = vmatpush1.msra.mxu0 0.0
    %5350 = vmatprep.subr.mxu0 0.0
    %5351 = vmatpush1.msra.mxu0 0.0
    %5352 = vmatprep.subr.mxu0 0.0
    %5353 = vmatpush1.msra.mxu0 0.0
    %5354 = vmatprep.subr.mxu0 0.0
    %5355 = vmatpush1.msra.mxu0 0.0
    %5356 = vmatprep.subr.mxu0 0.0
    %5357 = vmatpush1.msra.mxu0 0.0
    %5358 = vmatprep.subr.mxu0 0.0
    %5359 = vmatpush1.msra.mxu0 0.0
    %5360 = vmatprep.subr.mxu0 0.0
    %5361 = vmatpush1.msra.mxu0 0.0
    %5362 = vmatprep.subr.mxu0 0.0
    %5363 = vmatpush1.msra.mxu0 0.0
    %5364 = vmatprep.subr.mxu0 0.0
    %5365 = vmatpush1.msra.mxu0 0.0
    %5366 = vmatprep.subr.mxu0 0.0
    %5367 = vmatpush1.msra.mxu0 0.0
    %5368 = vmatprep.subr.mxu0 0.0
    %5369 = vmatpush1.msra.mxu0 0.0
    %5370 = vmatprep.subr.mxu0 0.0
    %5371 = vmatpush1.msra.mxu0 0.0
    %5372 = vmatprep.subr.mxu0 0.0
    %5373 = vmatpush1.msra.mxu0 0.0
    %5374 = vmatprep.subr.mxu0 0.0
    %5375 = vmatpush1.msra.mxu0 0.0
    %5376 = vmatprep.subr.mxu0 0.0
    %5377 = vmatpush1.msra.mxu0 0.0
    %5378 = vmatprep.subr.mxu0 0.0
    %5379 = vmatpush1.msra.mxu0 0.0
    %5380 = vmatprep.subr.mxu0 0.0
    %5381 = vmatpush1.msra.mxu0 0.0
    %5382 = vmatprep.subr.mxu0 0.0
    %5383 = vmatpush1.msra.mxu0 0.0
    %5384 = vmatprep.mubr.f32.mxu0 0.0
    %5385 = vmatmul.mubr.f32.gmra.mrb[0].mxu0 %v5312
    %v5386 = vpop.f32.mrb[0].mxu0
    %v5387 = vadd.f32 0.0, %v5386
    %v5388 = vpop.f32.mrb[0].mxu0
    %5389 = vmatprep.mubr.f32.mxu0 0.0
    %5390 = vmatmul.mubr.f32.gmra.mrb[0].mxu0 %v5315
    %v5391 = vpop.f32.mrb[0].mxu0
    %v5392 = vadd.f32 0.0, %v5391
    %v5393 = vpop.f32.mrb[0].mxu0
    %5394 = vmatprep.mubr.f32.mxu0 0.0
    %5395 = vmatmul.mubr.f32.gmra.mrb[0].mxu0 %v5318
    %v5396 = vpop.f32.mrb[0].mxu0
    %v5397 = vadd.f32 0.0, %v5396
    %v5398 = vpop.f32.mrb[0].mxu0
    %5399 = vdwg.mxu0
    %5403 = vrot.lane.b32.xlu0 %v4905, 16
    %v5404 = vpop.permute.xlu0 %5403
    %5405 = vrot.lane.b32.xlu0 %v4910, 16
    %v5406 = vpop.permute.xlu0 %5405
    %5407 = vrot.lane.b32.xlu0 %v4915, 16
    %v5408 = vpop.permute.xlu0 %5407
    %5415 = vrot.lane.b32.xlu0 %v5146, 32
    %v5416 = vpop.permute.xlu0 %5415
    %5417 = vrot.lane.b32.xlu0 %v5151, 32
    %v5418 = vpop.permute.xlu0 %5417
    %5419 = vrot.lane.b32.xlu0 %v5156, 32
    %v5420 = vpop.permute.xlu0 %5419
    %5427 = vrot.lane.b32.xlu0 %v5387, 48
    %v5428 = vpop.permute.xlu0 %5427
    %5429 = vrot.lane.b32.xlu0 %v5392, 48
    %v5430 = vpop.permute.xlu0 %5429
    %5431 = vrot.lane.b32.xlu0 %v5397, 48
    %v5432 = vpop.permute.xlu0 %5431
    %v5436 = vsel %vm261, %v4661, %v5404
    %v5437 = vsel %vm261, %v4666, %v5406
    %v5438 = vsel %vm261, %v4671, %v5408
    %v5439 = vsel %vm1673, %v5436, %v5416
    %v5440 = vsel %vm1673, %v5437, %v5418
    %v5441 = vsel %vm1673, %v5438, %v5420
    %v5442 = vsel %vm1677, %v5439, %v5428
    %v5443 = vsel %vm1677, %v5440, %v5430
    %v5444 = vsel %vm1677, %v5441, %v5432
    %v5445 = vpack.c.bf16 %v4443, %v4442
    %v5446 = vpack.c.bf16 %v5442, %v4444
    %v5447 = vpack.c.bf16 %v5444, %v5443
    %v5448 = vld [vmem:[%s49] sm:$0xf]
    %v5449 = vld [vmem:[%s49 + $0x4] sm:$0xf]
    %v5450 = vld [vmem:[%s49 + $0x8] sm:$0xf]
    %v5451 = vld [vmem:[%s49 + $0xc] sm:$0xf]
    %v5452 = vld [vmem:[%s49 + $0x10] sm:$0xf]
    %v5453 = vld [vmem:[%s49 + $0x14] sm:$0xf]
    %v5454 = vld [vmem:[%s49 + $0x18] sm:$0xf]
    %v5455 = vld [vmem:[%s49 + $0x1c] sm:$0xf]
    %v5456 = vld [vmem:[%s51] sm:$0x1]
    %v5458 = vlaneseq
    %v5459 = vshrl.u32 %v5458, 7
    %v5460 = vsub.s32 0, %v5459
    %v5461 = vrot.slane %v5456, %v5460
    %v5471 = vunpack.c.l.b16 %v5448
    %v5472 = vunpack.c.l.b16 %v5449
    %v5473 = vunpack.c.l.b16 %v5450
    %v5474 = vunpack.c.l.b16 %v5451
    %v5475 = vunpack.c.l.b16 %v5452
    %v5476 = vunpack.c.l.b16 %v5453
    %v5477 = vunpack.c.l.b16 %v5454
    %v5478 = vunpack.c.l.b16 %v5455
    %v5479 = vpack.c.b16 %v5472, %v5471
    %v5480 = vpack.c.b16 %v5474, %v5473
    %v5481 = vpack.c.b16 %v5476, %v5475
    %v5482 = vpack.c.b16 %v5478, %v5477
    %v5488 = vsel %vm362, %v5445, 0
    %v5491 = vsel %vm362, %v5446, 0
    %v5494 = vsel %vm362, %v5447, 0
    %5496 = vmatprep.subr.bf16.mxu0 0
    %5497 = vmatpush1.bf16.msra.mxu0 %v5479
    %5498 = vmatprep.subr.bf16.mxu0 0
    %5499 = vmatpush1.bf16.msra.mxu0 %v5480
    %5500 = vmatprep.subr.bf16.mxu0 0
    %5501 = vmatpush1.bf16.msra.mxu0 %v5481
    %5502 = vmatprep.subr.bf16.mxu0 0
    %5503 = vmatpush1.bf16.msra.mxu0 %v5482
    %5504 = vmatprep.subr.bf16.mxu0 0
    %5505 = vmatpush1.bf16.msra.mxu0 0
    %5506 = vmatprep.subr.bf16.mxu0 0
    %5507 = vmatpush1.bf16.msra.mxu0 0
    %5508 = vmatprep.subr.bf16.mxu0 0
    %5509 = vmatpush1.bf16.msra.mxu0 0
    %5510 = vmatprep.subr.bf16.mxu0 0
    %5511 = vmatpush1.bf16.msra.mxu0 0
    %5512 = vmatprep.subr.bf16.mxu0 0
    %5513 = vmatpush1.bf16.msra.mxu0 0
    %5514 = vmatprep.subr.bf16.mxu0 0
    %5515 = vmatpush1.bf16.msra.mxu0 0
    %5516 = vmatprep.subr.bf16.mxu0 0
    %5517 = vmatpush1.bf16.msra.mxu0 0
    %5518 = vmatprep.subr.bf16.mxu0 0
    %5519 = vmatpush1.bf16.msra.mxu0 0
    %5520 = vmatprep.subr.bf16.mxu0 0
    %5521 = vmatpush1.bf16.msra.mxu0 0
    %5522 = vmatprep.subr.bf16.mxu0 0
    %5523 = vmatpush1.bf16.msra.mxu0 0
    %5524 = vmatprep.subr.bf16.mxu0 0
    %5525 = vmatpush1.bf16.msra.mxu0 0
    %5526 = vmatprep.subr.bf16.mxu0 0
    %5527 = vmatpush1.bf16.msra.mxu0 0
    %5528 = vmatprep.mubr.bf16.mxu0 0
    %5529 = vmatmul.mubr.bf16.gmra.mrb[0].mxu0 %v5488
    %v5530 = vpop.f32.mrb[0].mxu0
    %v5531 = vadd.f32 %v5461, %v5530
    %v5532 = vpop.f32.mrb[0].mxu0
    %v5533 = vpop.f32.mrb[0].mxu0
    %v5534 = vadd.f32 %v5461, %v5533
    %v5535 = vpop.f32.mrb[0].mxu0
    %5536 = vmatprep.mubr.bf16.mxu0 0
    %5537 = vmatmul.mubr.bf16.gmra.mrb[0].mxu0 %v5491
    %v5538 = vpop.f32.mrb[0].mxu0
    %v5539 = vadd.f32 %v5461, %v5538
    %v5540 = vpop.f32.mrb[0].mxu0
    %v5541 = vpop.f32.mrb[0].mxu0
    %v5542 = vadd.f32 %v5461, %v5541
    %v5543 = vpop.f32.mrb[0].mxu0
    %5544 = vmatprep.mubr.bf16.mxu0 0
    %5545 = vmatmul.mubr.bf16.gmra.mrb[0].mxu0 %v5494
    %v5546 = vpop.f32.mrb[0].mxu0
    %v5547 = vadd.f32 %v5461, %v5546
    %v5548 = vpop.f32.mrb[0].mxu0
    %v5549 = vpop.f32.mrb[0].mxu0
    %v5550 = vadd.f32 %v5461, %v5549
    %v5551 = vpop.f32.mrb[0].mxu0
    %5552 = vdwg.mxu0
    %v5553 = vadd.f32 %v5531, %v3304
    %v5554 = vadd.f32 %v5534, %v3305
    %v5555 = vadd.f32 %v5539, %v3306
    %v5556 = vadd.f32 %v5542, %v3307
    %v5557 = vadd.f32 %v5547, %v3308
    %v5558 = vadd.f32 %v5550, %v3309
    %v5559 = vld [vmem:[%s53] sm:$0x1]
    %v5560 = vld [vmem:[%s55] sm:$0x1]
    %v5561 = vsel %vm362, %v5553, 0.0
    %5562 = vadd.xlane.f32.xlu0 %v5561
    %v5563 = vpop.xlane.xlu0 %5562
    %v5564 = vsel %vm362, %v5554, 0.0
    %5565 = vadd.xlane.f32.xlu0 %v5564
    %v5566 = vpop.xlane.xlu0 %5565
    %v5567 = vsel %vm362, %v5555, 0.0
    %5568 = vadd.xlane.f32.xlu0 %v5567
    %v5569 = vpop.xlane.xlu0 %5568
    %v5570 = vsel %vm362, %v5556, 0.0
    %5571 = vadd.xlane.f32.xlu0 %v5570
    %v5572 = vpop.xlane.xlu0 %5571
    %v5573 = vsel %vm362, %v5557, 0.0
    %5574 = vadd.xlane.f32.xlu0 %v5573
    %v5575 = vpop.xlane.xlu0 %5574
    %v5576 = vsel %vm362, %v5558, 0.0
    %5577 = vadd.xlane.f32.xlu0 %v5576
    %v5578 = vpop.xlane.xlu0 %5577
    %v5579 = vmul.f32 %v5563, %v451
    %v5580 = vmul.f32 %v5566, %v451
    %v5581 = vmul.f32 %v5569, %v451
    %v5582 = vmul.f32 %v5572, %v451
    %v5583 = vmul.f32 %v5575, %v451
    %v5584 = vmul.f32 %v5578, %v451
    %v5585 = vsub.f32 %v5553, %v5579
    %v5586 = vsub.f32 %v5554, %v5580
    %v5587 = vsub.f32 %v5555, %v5581
    %v5588 = vsub.f32 %v5556, %v5582
    %v5589 = vsub.f32 %v5557, %v5583
    %v5590 = vsub.f32 %v5558, %v5584
    %v5591 = vmul.f32 %v5585, %v5585
    %v5592 = vmul.f32 %v5586, %v5586
    %v5593 = vmul.f32 %v5587, %v5587
    %v5594 = vmul.f32 %v5588, %v5588
    %v5595 = vmul.f32 %v5589, %v5589
    %v5596 = vmul.f32 %v5590, %v5590
    %v5597 = vsel %vm362, %v5591, 0.0
    %5598 = vadd.xlane.f32.xlu0 %v5597
    %v5599 = vpop.xlane.xlu0 %5598
    %v5600 = vsel %vm362, %v5592, 0.0
    %5601 = vadd.xlane.f32.xlu0 %v5600
    %v5602 = vpop.xlane.xlu0 %5601
    %v5603 = vsel %vm362, %v5593, 0.0
    %5604 = vadd.xlane.f32.xlu0 %v5603
    %v5605 = vpop.xlane.xlu0 %5604
    %v5606 = vsel %vm362, %v5594, 0.0
    %5607 = vadd.xlane.f32.xlu0 %v5606
    %v5608 = vpop.xlane.xlu0 %5607
    %v5609 = vsel %vm362, %v5595, 0.0
    %5610 = vadd.xlane.f32.xlu0 %v5609
    %v5611 = vpop.xlane.xlu0 %5610
    %v5612 = vsel %vm362, %v5596, 0.0
    %5613 = vadd.xlane.f32.xlu0 %v5612
    %v5614 = vpop.xlane.xlu0 %5613
    %v5615 = vmul.f32 %v5599, %v451
    %v5616 = vmul.f32 %v5602, %v451
    %v5617 = vmul.f32 %v5605, %v451
    %v5618 = vmul.f32 %v5608, %v451
    %v5619 = vmul.f32 %v5611, %v451
    %v5620 = vmul.f32 %v5614, %v451
    %v5621 = vadd.f32 %v5615, 1e-12
    %v5622 = vadd.f32 %v5616, 1e-12
    %v5623 = vadd.f32 %v5617, 1e-12
    %v5624 = vadd.f32 %v5618, 1e-12
    %v5625 = vadd.f32 %v5619, 1e-12
    %v5626 = vadd.f32 %v5620, 1e-12
    %v5627 = vrsqrt.pop %v5621
    %v5628 = vrsqrt.pop %v5622
    %v5629 = vrsqrt.pop %v5623
    %v5630 = vrsqrt.pop %v5624
    %v5631 = vrsqrt.pop %v5625
    %v5632 = vrsqrt.pop %v5626
    %v5633 = vmul.f32 %v5585, %v5627
    %v5634 = vmul.f32 %v5586, %v5628
    %v5635 = vmul.f32 %v5587, %v5629
    %v5636 = vmul.f32 %v5588, %v5630
    %v5637 = vmul.f32 %v5589, %v5631
    %v5638 = vmul.f32 %v5590, %v5632
    %v5640 = vlaneseq
    %v5641 = vshrl.u32 %v5640, 7
    %v5642 = vsub.s32 0, %v5641
    %v5643 = vrot.slane %v5559, %v5642
    %v5645 = vmul.f32 %v5633, %v5643
    %v5646 = vmul.f32 %v5634, %v5643
    %v5647 = vmul.f32 %v5635, %v5643
    %v5648 = vmul.f32 %v5636, %v5643
    %v5649 = vmul.f32 %v5637, %v5643
    %v5650 = vmul.f32 %v5638, %v5643
    %v5652 = vlaneseq
    %v5653 = vshrl.u32 %v5652, 7
    %v5654 = vsub.s32 0, %v5653
    %v5655 = vrot.slane %v5560, %v5654
    %v5657 = vadd.f32 %v5645, %v5655
    %v5658 = vadd.f32 %v5646, %v5655
    %v5659 = vadd.f32 %v5647, %v5655
    %v5660 = vadd.f32 %v5648, %v5655
    %v5661 = vadd.f32 %v5649, %v5655
    %v5662 = vadd.f32 %v5650, %v5655
    %v5663 = vpack.c.bf16 %v5658, %v5657
    %v5664 = vpack.c.bf16 %v5660, %v5659
    %v5665 = vpack.c.bf16 %v5662, %v5661
    %v5666 = vld [vmem:[%s57] sm:$0xf]
    %v5667 = vld [vmem:[%s57 + $0x4] sm:$0xf]
    %v5668 = vld [vmem:[%s57 + $0x8] sm:$0xf]
    %v5669 = vld [vmem:[%s57 + $0xc] sm:$0xf]
    %v5670 = vld [vmem:[%s57 + $0x10] sm:$0xf]
    %v5671 = vld [vmem:[%s57 + $0x14] sm:$0xf]
    %v5672 = vld [vmem:[%s57 + $0x18] sm:$0xf]
    %v5673 = vld [vmem:[%s57 + $0x1c] sm:$0xf]
    %v5674 = vld [vmem:[%s59] sm:$0x1]
    %v5676 = vlaneseq
    %v5677 = vshrl.u32 %v5676, 7
    %v5678 = vsub.s32 0, %v5677
    %v5679 = vrot.slane %v5674, %v5678
    %v5689 = vunpack.c.l.b16 %v5666
    %v5690 = vunpack.c.l.b16 %v5667
    %v5691 = vunpack.c.l.b16 %v5668
    %v5692 = vunpack.c.l.b16 %v5669
    %v5693 = vunpack.c.l.b16 %v5670
    %v5694 = vunpack.c.l.b16 %v5671
    %v5695 = vunpack.c.l.b16 %v5672
    %v5696 = vunpack.c.l.b16 %v5673
    %v5697 = vpack.c.b16 %v5690, %v5689
    %v5698 = vpack.c.b16 %v5692, %v5691
    %v5699 = vpack.c.b16 %v5694, %v5693
    %v5700 = vpack.c.b16 %v5696, %v5695
    %v5706 = vsel %vm362, %v5663, 0
    %v5709 = vsel %vm362, %v5664, 0
    %v5712 = vsel %vm362, %v5665, 0
    %5714 = vmatprep.subr.bf16.mxu0 0
    %5715 = vmatpush1.bf16.msra.mxu0 %v5697
    %5716 = vmatprep.subr.bf16.mxu0 0
    %5717 = vmatpush1.bf16.msra.mxu0 %v5698
    %5718 = vmatprep.subr.bf16.mxu0 0
    %5719 = vmatpush1.bf16.msra.mxu0 %v5699
    %5720 = vmatprep.subr.bf16.mxu0 0
    %5721 = vmatpush1.bf16.msra.mxu0 %v5700
    %5722 = vmatprep.subr.bf16.mxu0 0
    %5723 = vmatpush1.bf16.msra.mxu0 0
    %5724 = vmatprep.subr.bf16.mxu0 0
    %5725 = vmatpush1.bf16.msra.mxu0 0
    %5726 = vmatprep.subr.bf16.mxu0 0
    %5727 = vmatpush1.bf16.msra.mxu0 0
    %5728 = vmatprep.subr.bf16.mxu0 0
    %5729 = vmatpush1.bf16.msra.mxu0 0
    %5730 = vmatprep.subr.bf16.mxu0 0
    %5731 = vmatpush1.bf16.msra.mxu0 0
    %5732 = vmatprep.subr.bf16.mxu0 0
    %5733 = vmatpush1.bf16.msra.mxu0 0
    %5734 = vmatprep.subr.bf16.mxu0 0
    %5735 = vmatpush1.bf16.msra.mxu0 0
    %5736 = vmatprep.subr.bf16.mxu0 0
    %5737 = vmatpush1.bf16.msra.mxu0 0
    %5738 = vmatprep.subr.bf16.mxu0 0
    %5739 = vmatpush1.bf16.msra.mxu0 0
    %5740 = vmatprep.subr.bf16.mxu0 0
    %5741 = vmatpush1.bf16.msra.mxu0 0
    %5742 = vmatprep.subr.bf16.mxu0 0
    %5743 = vmatpush1.bf16.msra.mxu0 0
    %5744 = vmatprep.subr.bf16.mxu0 0
    %5745 = vmatpush1.bf16.msra.mxu0 0
    %5746 = vmatprep.mubr.bf16.mxu0 0
    %5747 = vmatmul.mubr.bf16.gmra.mrb[0].mxu0 %v5706
    %v5748 = vpop.f32.mrb[0].mxu0
    %v5749 = vadd.f32 %v5679, %v5748
    %v5750 = vpop.f32.mrb[0].mxu0
    %v5751 = vpop.f32.mrb[0].mxu0
    %v5752 = vadd.f32 %v5679, %v5751
    %v5753 = vpop.f32.mrb[0].mxu0
    %5754 = vmatprep.mubr.bf16.mxu0 0
    %5755 = vmatmul.mubr.bf16.gmra.mrb[0].mxu0 %v5709
    %v5756 = vpop.f32.mrb[0].mxu0
    %v5757 = vadd.f32 %v5679, %v5756
    %v5758 = vpop.f32.mrb[0].mxu0
    %v5759 = vpop.f32.mrb[0].mxu0
    %v5760 = vadd.f32 %v5679, %v5759
    %v5761 = vpop.f32.mrb[0].mxu0
    %5762 = vmatprep.mubr.bf16.mxu0 0
    %5763 = vmatmul.mubr.bf16.gmra.mrb[0].mxu0 %v5712
    %v5764 = vpop.f32.mrb[0].mxu0
    %v5765 = vadd.f32 %v5679, %v5764
    %v5766 = vpop.f32.mrb[0].mxu0
    %v5767 = vpop.f32.mrb[0].mxu0
    %v5768 = vadd.f32 %v5679, %v5767
    %v5769 = vpop.f32.mrb[0].mxu0
    %5770 = vdwg.mxu0
    %v5771 = vmul.f32 %v5749, %v5749
    %v5772 = vmul.f32 %v5752, %v5752
    %v5773 = vmul.f32 %v5757, %v5757
    %v5774 = vmul.f32 %v5760, %v5760
    %v5775 = vmul.f32 %v5765, %v5765
    %v5776 = vmul.f32 %v5768, %v5768
    %v5777 = vmul.f32 %v5749, %v5771
    %v5778 = vmul.f32 %v5752, %v5772
    %v5779 = vmul.f32 %v5757, %v5773
    %v5780 = vmul.f32 %v5760, %v5774
    %v5781 = vmul.f32 %v5765, %v5775
    %v5782 = vmul.f32 %v5768, %v5776
    %v5783 = vmul.f32 %v5777, 0.044715
    %v5784 = vmul.f32 %v5778, 0.044715
    %v5785 = vmul.f32 %v5779, 0.044715
    %v5786 = vmul.f32 %v5780, 0.044715
    %v5787 = vmul.f32 %v5781, 0.044715
    %v5788 = vmul.f32 %v5782, 0.044715
    %v5789 = vadd.f32 %v5749, %v5783
    %v5790 = vadd.f32 %v5752, %v5784
    %v5791 = vadd.f32 %v5757, %v5785
    %v5792 = vadd.f32 %v5760, %v5786
    %v5793 = vadd.f32 %v5765, %v5787
    %v5794 = vadd.f32 %v5768, %v5788
    %v5795 = vmul.f32 %v5789, 0.7978846
    %v5796 = vmul.f32 %v5790, 0.7978846
    %v5797 = vmul.f32 %v5791, 0.7978846
    %v5798 = vmul.f32 %v5792, 0.7978846
    %v5799 = vmul.f32 %v5793, 0.7978846
    %v5800 = vmul.f32 %v5794, 0.7978846
    %v5801 = vtanh.pop %v5795
    %v5802 = vtanh.pop %v5796
    %v5803 = vtanh.pop %v5797
    %v5804 = vtanh.pop %v5798
    %v5805 = vtanh.pop %v5799
    %v5806 = vtanh.pop %v5800
    %v5807 = vadd.f32 %v5801, 1.0
    %v5808 = vadd.f32 %v5802, 1.0
    %v5809 = vadd.f32 %v5803, 1.0
    %v5810 = vadd.f32 %v5804, 1.0
    %v5811 = vadd.f32 %v5805, 1.0
    %v5812 = vadd.f32 %v5806, 1.0
    %v5813 = vmul.f32 %v5807, 0.5
    %v5814 = vmul.f32 %v5808, 0.5
    %v5815 = vmul.f32 %v5809, 0.5
    %v5816 = vmul.f32 %v5810, 0.5
    %v5817 = vmul.f32 %v5811, 0.5
    %v5818 = vmul.f32 %v5812, 0.5
    %v5819 = vmul.f32 %v5749, %v5813
    %v5820 = vmul.f32 %v5752, %v5814
    %v5821 = vmul.f32 %v5757, %v5815
    %v5822 = vmul.f32 %v5760, %v5816
    %v5823 = vmul.f32 %v5765, %v5817
    %v5824 = vmul.f32 %v5768, %v5818
    %v5825 = vpack.c.bf16 %v5820, %v5819
    %v5826 = vpack.c.bf16 %v5822, %v5821
    %v5827 = vpack.c.bf16 %v5824, %v5823
    %v5828 = vld [vmem:[%s61] sm:$0xf]
    %v5829 = vld [vmem:[%s61 + $0x4] sm:$0xf]
    %v5830 = vld [vmem:[%s61 + $0x8] sm:$0xf]
    %v5831 = vld [vmem:[%s61 + $0xc] sm:$0xf]
    %v5832 = vld [vmem:[%s61 + $0x10] sm:$0xf]
    %v5833 = vld [vmem:[%s61 + $0x14] sm:$0xf]
    %v5834 = vld [vmem:[%s61 + $0x18] sm:$0xf]
    %v5835 = vld [vmem:[%s61 + $0x1c] sm:$0xf]
    %v5836 = vld [vmem:[%s61 + $0x20] sm:$0xf]
    %v5837 = vld [vmem:[%s61 + $0x24] sm:$0xf]
    %v5838 = vld [vmem:[%s61 + $0x28] sm:$0xf]
    %v5839 = vld [vmem:[%s61 + $0x2c] sm:$0xf]
    %v5840 = vld [vmem:[%s61 + $0x30] sm:$0xf]
    %v5841 = vld [vmem:[%s61 + $0x34] sm:$0xf]
    %v5842 = vld [vmem:[%s61 + $0x38] sm:$0xf]
    %v5843 = vld [vmem:[%s61 + $0x3c] sm:$0xf]
    %v5844 = vld [vmem:[%s63] sm:$0x1]
    %v5846 = vlaneseq
    %v5847 = vshrl.u32 %v5846, 7
    %v5848 = vsub.s32 0, %v5847
    %v5849 = vrot.slane %v5844, %v5848
    %v5867 = vunpack.c.l.b16 %v5828
    %v5868 = vunpack.c.l.b16 %v5829
    %v5869 = vunpack.c.l.b16 %v5830
    %v5870 = vunpack.c.l.b16 %v5831
    %v5871 = vunpack.c.l.b16 %v5832
    %v5872 = vunpack.c.l.b16 %v5833
    %v5873 = vunpack.c.l.b16 %v5834
    %v5874 = vunpack.c.l.b16 %v5835
    %v5875 = vunpack.c.l.b16 %v5836
    %v5876 = vunpack.c.l.b16 %v5837
    %v5877 = vunpack.c.l.b16 %v5838
    %v5878 = vunpack.c.l.b16 %v5839
    %v5879 = vunpack.c.l.b16 %v5840
    %v5880 = vunpack.c.l.b16 %v5841
    %v5881 = vunpack.c.l.b16 %v5842
    %v5882 = vunpack.c.l.b16 %v5843
    %v5883 = vpack.c.b16 %v5868, %v5867
    %v5884 = vpack.c.b16 %v5870, %v5869
    %v5885 = vpack.c.b16 %v5872, %v5871
    %v5886 = vpack.c.b16 %v5874, %v5873
    %v5887 = vpack.c.b16 %v5876, %v5875
    %v5888 = vpack.c.b16 %v5878, %v5877
    %v5889 = vpack.c.b16 %v5880, %v5879
    %v5890 = vpack.c.b16 %v5882, %v5881
    %5899 = vmatprep.subr.bf16.mxu0 0
    %5900 = vmatpush1.bf16.msra.mxu0 %v5883
    %5901 = vmatprep.subr.bf16.mxu0 0
    %5902 = vmatpush1.bf16.msra.mxu0 %v5884
    %5903 = vmatprep.subr.bf16.mxu0 0
    %5904 = vmatpush1.bf16.msra.mxu0 %v5885
    %5905 = vmatprep.subr.bf16.mxu0 0
    %5906 = vmatpush1.bf16.msra.mxu0 %v5886
    %5907 = vmatprep.subr.bf16.mxu0 0
    %5908 = vmatpush1.bf16.msra.mxu0 %v5887
    %5909 = vmatprep.subr.bf16.mxu0 0
    %5910 = vmatpush1.bf16.msra.mxu0 %v5888
    %5911 = vmatprep.subr.bf16.mxu0 0
    %5912 = vmatpush1.bf16.msra.mxu0 %v5889
    %5913 = vmatprep.subr.bf16.mxu0 0
    %5914 = vmatpush1.bf16.msra.mxu0 %v5890
    %5915 = vmatprep.subr.bf16.mxu0 0
    %5916 = vmatpush1.bf16.msra.mxu0 0
    %5917 = vmatprep.subr.bf16.mxu0 0
    %5918 = vmatpush1.bf16.msra.mxu0 0
    %5919 = vmatprep.subr.bf16.mxu0 0
    %5920 = vmatpush1.bf16.msra.mxu0 0
    %5921 = vmatprep.subr.bf16.mxu0 0
    %5922 = vmatpush1.bf16.msra.mxu0 0
    %5923 = vmatprep.subr.bf16.mxu0 0
    %5924 = vmatpush1.bf16.msra.mxu0 0
    %5925 = vmatprep.subr.bf16.mxu0 0
    %5926 = vmatpush1.bf16.msra.mxu0 0
    %5927 = vmatprep.subr.bf16.mxu0 0
    %5928 = vmatpush1.bf16.msra.mxu0 0
    %5929 = vmatprep.subr.bf16.mxu0 0
    %5930 = vmatpush1.bf16.msra.mxu0 0
    %5931 = vmatprep.mubr.bf16.mxu0 0
    %5932 = vmatmul.mubr.bf16.gmra.mrb[0].mxu0 %v5825
    %v5933 = vpop.f32.mrb[0].mxu0
    %v5934 = vadd.f32 %v5849, %v5933
    %v5935 = vpop.f32.mrb[0].mxu0
    %v5936 = vpop.f32.mrb[0].mxu0
    %v5937 = vpop.f32.mrb[0].mxu0
    %5938 = vmatprep.mubr.bf16.mxu0 0
    %5939 = vmatmul.mubr.bf16.gmra.mrb[0].mxu0 %v5826
    %v5940 = vpop.f32.mrb[0].mxu0
    %v5941 = vpop.f32.mrb[0].mxu0
    %v5942 = vpop.f32.mrb[0].mxu0
    %v5943 = vadd.f32 %v5849, %v5942
    %v5944 = vpop.f32.mrb[0].mxu0
    %5945 = vmatprep.mubr.bf16.mxu0 0
    %5946 = vmatmul.mubr.bf16.gmra.mrb[0].mxu0 %v5827
    %v5947 = vpop.f32.mrb[0].mxu0
    %v5948 = vpop.f32.mrb[0].mxu0
    %v5949 = vpop.f32.mrb[0].mxu0
    %v5950 = vpop.f32.mrb[0].mxu0
    %5951 = vdwg.mxu0
    %v5952 = vadd.f32 %v5934, %v5657
    %v5953 = vadd.f32 %v5943, %v5660
    %v5954 = vld [vmem:[%s65] sm:$0x1]
    %v5955 = vld [vmem:[%s67] sm:$0x1]
    %v5956 = vsel %vm362, %v5952, 0.0
    %5957 = vadd.xlane.f32.xlu0 %v5956
    %v5958 = vpop.xlane.xlu0 %5957
    %v5959 = vsel %vm362, %v5953, 0.0
    %5960 = vadd.xlane.f32.xlu0 %v5959
    %v5961 = vpop.xlane.xlu0 %5960
    %v5962 = vmul.f32 %v5958, %v451
    %v5963 = vmul.f32 %v5961, %v451
    %v5964 = vsub.f32 %v5952, %v5962
    %v5965 = vsub.f32 %v5953, %v5963
    %v5966 = vmul.f32 %v5964, %v5964
    %v5967 = vmul.f32 %v5965, %v5965
    %v5968 = vsel %vm362, %v5966, 0.0
    %5969 = vadd.xlane.f32.xlu0 %v5968
    %v5970 = vpop.xlane.xlu0 %5969
    %v5971 = vsel %vm362, %v5967, 0.0
    %5972 = vadd.xlane.f32.xlu0 %v5971
    %v5973 = vpop.xlane.xlu0 %5972
    %v5974 = vmul.f32 %v5970, %v451
    %v5975 = vmul.f32 %v5973, %v451
    %v5976 = vadd.f32 %v5974, 1e-12
    %v5977 = vadd.f32 %v5975, 1e-12
    %v5978 = vrsqrt.pop %v5976
    %v5979 = vrsqrt.pop %v5977
    %v5980 = vmul.f32 %v5964, %v5978
    %v5981 = vmul.f32 %v5965, %v5979
    %v5983 = vlaneseq
    %v5984 = vshrl.u32 %v5983, 7
    %v5985 = vsub.s32 0, %v5984
    %v5986 = vrot.slane %v5954, %v5985
    %v5988 = vmul.f32 %v5980, %v5986
    %v5989 = vmul.f32 %v5981, %v5986
    %v5991 = vlaneseq
    %v5992 = vshrl.u32 %v5991, 7
    %v5993 = vsub.s32 0, %v5992
    %v5994 = vrot.slane %v5955, %v5993
    %v5996 = vadd.f32 %v5988, %v5994
    %v5997 = vadd.f32 %v5989, %v5994
    %v5999 = vrot.slane %v5997, 7
    %vm6001 = vcmask 1040384
    %v6002 = vsel %vm6001, %v5996, %v5999
    %v6003 = vpack.c.bf16 %v6002, %v6002
    %v6004 = vld [vmem:[%s69] sm:$0xf]
    %v6005 = vld [vmem:[%s69 + $0x4] sm:$0xf]
    %v6006 = vld [vmem:[%s69 + $0x8] sm:$0xf]
    %v6007 = vld [vmem:[%s69 + $0xc] sm:$0xf]
    %v6008 = vld [vmem:[%s69 + $0x10] sm:$0xf]
    %v6009 = vld [vmem:[%s69 + $0x14] sm:$0xf]
    %v6010 = vld [vmem:[%s69 + $0x18] sm:$0xf]
    %v6011 = vld [vmem:[%s69 + $0x1c] sm:$0xf]
    %v6012 = vld [vmem:[%s71] sm:$0x1]
    %v6014 = vlaneseq
    %v6015 = vshrl.u32 %v6014, 7
    %v6016 = vsub.s32 0, %v6015
    %v6017 = vrot.slane %v6012, %v6016
    %v6027 = vunpack.c.l.b16 %v6004
    %v6028 = vunpack.c.l.b16 %v6005
    %v6029 = vunpack.c.l.b16 %v6006
    %v6030 = vunpack.c.l.b16 %v6007
    %v6031 = vunpack.c.l.b16 %v6008
    %v6032 = vunpack.c.l.b16 %v6009
    %v6033 = vunpack.c.l.b16 %v6010
    %v6034 = vunpack.c.l.b16 %v6011
    %v6035 = vpack.c.b16 %v6028, %v6027
    %v6036 = vpack.c.b16 %v6030, %v6029
    %v6037 = vpack.c.b16 %v6032, %v6031
    %v6038 = vpack.c.b16 %v6034, %v6033
    %v6044 = vsel %vm362, %v6003, 0
    %6046 = vmatprep.subr.bf16.mxu0 0
    %6047 = vmatpush1.bf16.msra.mxu0 %v6035
    %6048 = vmatprep.subr.bf16.mxu0 0
    %6049 = vmatpush1.bf16.msra.mxu0 %v6036
    %6050 = vmatprep.subr.bf16.mxu0 0
    %6051 = vmatpush1.bf16.msra.mxu0 %v6037
    %6052 = vmatprep.subr.bf16.mxu0 0
    %6053 = vmatpush1.bf16.msra.mxu0 %v6038
    %6054 = vmatprep.subr.bf16.mxu0 0
    %6055 = vmatpush1.bf16.msra.mxu0 0
    %6056 = vmatprep.subr.bf16.mxu0 0
    %6057 = vmatpush1.bf16.msra.mxu0 0
    %6058 = vmatprep.subr.bf16.mxu0 0
    %6059 = vmatpush1.bf16.msra.mxu0 0
    %6060 = vmatprep.subr.bf16.mxu0 0
    %6061 = vmatpush1.bf16.msra.mxu0 0
    %6062 = vmatprep.subr.bf16.mxu0 0
    %6063 = vmatpush1.bf16.msra.mxu0 0
    %6064 = vmatprep.subr.bf16.mxu0 0
    %6065 = vmatpush1.bf16.msra.mxu0 0
    %6066 = vmatprep.subr.bf16.mxu0 0
    %6067 = vmatpush1.bf16.msra.mxu0 0
    %6068 = vmatprep.subr.bf16.mxu0 0
    %6069 = vmatpush1.bf16.msra.mxu0 0
    %6070 = vmatprep.subr.bf16.mxu0 0
    %6071 = vmatpush1.bf16.msra.mxu0 0
    %6072 = vmatprep.subr.bf16.mxu0 0
    %6073 = vmatpush1.bf16.msra.mxu0 0
    %6074 = vmatprep.subr.bf16.mxu0 0
    %6075 = vmatpush1.bf16.msra.mxu0 0
    %6076 = vmatprep.subr.bf16.mxu0 0
    %6077 = vmatpush1.bf16.msra.mxu0 0
    %6078 = vmatprep.mubr.bf16.mxu0 0
    %6079 = vmatmul.mubr.bf16.gmra.mrb[0].mxu0 %v6044
    %v6080 = vpop.f32.mrb[0].mxu0
    %v6081 = vadd.f32 %v6017, %v6080
    %v6082 = vpop.f32.mrb[0].mxu0
    %v6083 = vpop.f32.mrb[0].mxu0
    %v6084 = vpop.f32.mrb[0].mxu0
    %6085 = vdwg.mxu0
    %v6086 = vtanh.pop %v6081
    %v6087 = vpack.c.bf16 %v6086, %v6086
    %v6088 = vld [vmem:[%s73] sm:$0xf]
    %v6089 = vld [vmem:[%s73 + $0x4] sm:$0xf]
    %v6090 = vld [vmem:[%s73 + $0x8] sm:$0xf]
    %v6091 = vld [vmem:[%s73 + $0xc] sm:$0xf]
    %v6092 = vld [vmem:[%s73 + $0x10] sm:$0xf]
    %v6093 = vld [vmem:[%s73 + $0x14] sm:$0xf]
    %v6094 = vld [vmem:[%s73 + $0x18] sm:$0xf]
    %v6095 = vld [vmem:[%s73 + $0x1c] sm:$0xf]
    %v6096 = vld [vmem:[%s75] sm:$0x1]
    %v6098 = vlaneseq
    %v6099 = vshrl.u32 %v6098, 7
    %v6100 = vsub.s32 0, %v6099
    %v6101 = vrot.slane %v6096, %v6100
    %v6111 = vunpack.c.l.b16 %v6088
    %v6112 = vunpack.c.l.b16 %v6089
    %v6113 = vunpack.c.l.b16 %v6090
    %v6114 = vunpack.c.l.b16 %v6091
    %v6115 = vunpack.c.l.b16 %v6092
    %v6116 = vunpack.c.l.b16 %v6093
    %v6117 = vunpack.c.l.b16 %v6094
    %v6118 = vunpack.c.l.b16 %v6095
    %v6119 = vpack.c.b16 %v6112, %v6111
    %v6120 = vpack.c.b16 %v6114, %v6113
    %v6121 = vpack.c.b16 %v6116, %v6115
    %v6122 = vpack.c.b16 %v6118, %v6117
    %v6128 = vsel %vm362, %v6087, 0
    %6130 = vmatprep.subr.bf16.mxu0 0
    %6131 = vmatpush1.bf16.msra.mxu0 %v6119
    %6132 = vmatprep.subr.bf16.mxu0 0
    %6133 = vmatpush1.bf16.msra.mxu0 %v6120
    %6134 = vmatprep.subr.bf16.mxu0 0
    %6135 = vmatpush1.bf16.msra.mxu0 %v6121
    %6136 = vmatprep.subr.bf16.mxu0 0
    %6137 = vmatpush1.bf16.msra.mxu0 %v6122
    %6138 = vmatprep.subr.bf16.mxu0 0
    %6139 = vmatpush1.bf16.msra.mxu0 0
    %6140 = vmatprep.subr.bf16.mxu0 0
    %6141 = vmatpush1.bf16.msra.mxu0 0
    %6142 = vmatprep.subr.bf16.mxu0 0
    %6143 = vmatpush1.bf16.msra.mxu0 0
    %6144 = vmatprep.subr.bf16.mxu0 0
    %6145 = vmatpush1.bf16.msra.mxu0 0
    %6146 = vmatprep.subr.bf16.mxu0 0
    %6147 = vmatpush1.bf16.msra.mxu0 0
    %6148 = vmatprep.subr.bf16.mxu0 0
    %6149 = vmatpush1.bf16.msra.mxu0 0
    %6150 = vmatprep.subr.bf16.mxu0 0
    %6151 = vmatpush1.bf16.msra.mxu0 0
    %6152 = vmatprep.subr.bf16.mxu0 0
    %6153 = vmatpush1.bf16.msra.mxu0 0
    %6154 = vmatprep.subr.bf16.mxu0 0
    %6155 = vmatpush1.bf16.msra.mxu0 0
    %6156 = vmatprep.subr.bf16.mxu0 0
    %6157 = vmatpush1.bf16.msra.mxu0 0
    %6158 = vmatprep.subr.bf16.mxu0 0
    %6159 = vmatpush1.bf16.msra.mxu0 0
    %6160 = vmatprep.subr.bf16.mxu0 0
    %6161 = vmatpush1.bf16.msra.mxu0 0
    %6162 = vmatprep.mubr.bf16.mxu0 0
    %6163 = vmatmul.mubr.bf16.gmra.mrb[0].mxu0 %v6128
    %v6164 = vpop.f32.mrb[0].mxu0
    %v6165 = vadd.f32 %v6101, %v6164
    %v6166 = vpop.f32.mrb[0].mxu0
    %v6167 = vpop.f32.mrb[0].mxu0
    %v6168 = vpop.f32.mrb[0].mxu0
    %6169 = vdwg.mxu0
    %vm6170 = vcmask 74752
    %6171 = vst.msk [vmem:[#allocation2] sm:$0x3] %vm6170, %v6165
    // Predicated region
    $region154: #{vqa_forward.3} parent=1 // pred_check
      _
    $region155: #{vqa_forward.3} parent=1 // pred_check_branch
      %6173 = sbr.rel (0) target = $region157
    $region156: #{vqa_forward.3} parent=1 // pred_region
      %s6175 = ssub.s32 32, 32
      %6176 = vsyncadd [#allocation3], %s6175
      %s6178 = sshll.u32 [#allocation2], 4
      %s6179 = int_to_ptr.vmem [resolvable:$true] %s6178
      %6181 = dma.vmem_to_hbm [thread:$0]  %s6179, 32, %s77, [#allocation3]
    $region157: #{vqa_forward.3} parent=1 // pred_fallthru
      _
    // Predicated region
    $region158: #{vqa_forward.3} parent=1 // pred_check
      _
    $region159: #{vqa_forward.3} parent=1 // pred_check_branch
      %6183 = sbr.rel (0) target = $region161
    $region160: #{vqa_forward.3} parent=1 // pred_region
      %6184 = dma.done [#allocation3], 32
    $region161: #{vqa_forward.3} parent=1 // pred_fallthru
      _
    %6185 = vsyncpa [#allocation3], 1

</llo_original>
